<compile_context>
chip_gen: v7x
topology: tpu7x:2x2x1
jax: 0.10.0
libtpu: 0.0.40
codegen_flags: <defaults>
</compile_context>

<pallas_src>
import functools

import jax
import jax.numpy as jnp
from jax.experimental import pallas as pl
from jax.experimental.pallas import tpu as pltpu

# Make the pure-JAX reference / wrapper matmuls true f32 so the tight f32
# correctness check below is meaningful (TPU default matmul precision is low).
jax.config.update("jax_default_matmul_precision", "highest")


def _recip(x):
    """1/x: EUP approximate reciprocal + one Newton step (~f32 accurate)."""
    r = pl.reciprocal(x, approx=True)
    return r * (2.0 - x * r)


# ---------------------------------------------------------------------------
# Kernel 1: attention + trans_conv + per-batch BatchNorm partial statistics.
# ---------------------------------------------------------------------------
def _sa_attn_kernel(x_ref, w_ref, b_ref, t_ref, stats_ref, *,
                    matmul_dtype, channels, batch_block):
    f32 = jnp.float32
    C = channels
    N = x_ref.shape[-1]
    inv_n = 1.0 / N

    # Grid-invariant weights/biases: load + cast once per step, outside the
    # per-batch loop.
    w = w_ref[...]
    w_mv = w[0:2 * C].astype(matmul_dtype)      # [M_gram ; W_v]      (2C, C)
    w_t = w[2 * C:3 * C].astype(matmul_dtype)   # W_trans             (C, C)
    b_v = b_ref[0]                              # (C, 1) f32
    b_t = b_ref[1]                              # (C, 1) f32

    def per_batch(b, carry):
        x = x_ref[b]                            # (C, N) f32
        xc = x.astype(matmul_dtype)

        # Fused [M_gram; W_v] @ x -> xm (M x) and v from a single MXU matmul.
        mv = jnp.dot(w_mv, xc, preferred_element_type=f32)        # (2C, N)
        xm = mv[0:C]                                              # (C, N)
        v = mv[C:2 * C] + b_v                                     # (C, N)

        # energy[n, m] = x[:, n]^T (Wqk^T Wqk) x[:, m]  (shared q/k weight).
        # Contract the channel axis of both operands directly — no transpose.
        energy = jax.lax.dot_general(
            xm.astype(matmul_dtype), xc,
            dimension_numbers=(((0,), (0,)), ((), ())),
            preferred_element_type=f32)                           # (N, N)

        # Row softmax (torch dim=-1); divide-free via EUP recip + Newton step.
        e_max = jnp.max(energy, axis=-1, keepdims=True)
        p = jnp.exp(energy - e_max)
        attn = p * _recip(jnp.sum(p, axis=-1, keepdims=True))
        # torch `attention.sum(dim=1)` == query-row axis == axis 0 here.
        attn = attn * _recip(1e-9 + jnp.sum(attn, axis=0, keepdims=True))

        # x_r = bmm(x_v, attention) ; t = trans_conv(x - x_r)
        x_r = jnp.dot(v.astype(matmul_dtype), attn.astype(matmul_dtype),
                      preferred_element_type=f32)                 # (C, N)
        d = x - x_r
        t = jnp.dot(w_t, d.astype(matmul_dtype),
                    preferred_element_type=f32) + b_t             # (C, N)

        t_ref[b] = t.astype(t_ref.dtype)

        # Per-batch BN partials: sum and *centered* sum-of-squares (f32), so
        # the host-side pooled variance avoids E[t^2]-E[t]^2 cancellation.
        s = jnp.sum(t, axis=-1, keepdims=True)                    # (C, 1)
        mu = s * inv_n
        ssq = jnp.sum(jnp.square(t - mu), axis=-1, keepdims=True) # (C, 1)
        stats_ref[b] = jnp.concatenate([s, ssq], axis=-1)         # one store
        return carry

    jax.lax.fori_loop(0, batch_block, per_batch, 0,
                      unroll=batch_block <= 4)


# ---------------------------------------------------------------------------
# Kernel 2: out = x + relu(t * scale + shift)  (folded BatchNorm affine).
# ---------------------------------------------------------------------------
def _sa_bn_kernel(x_ref, t_ref, ss_ref, o_ref):
    scale = ss_ref[0]                                   # (C, 1) f32
    shift = ss_ref[1]                                   # (C, 1) f32
    t = t_ref[...].astype(jnp.float32)                  # (Bblk, C, N)
    bn = t * scale[None] + shift[None]
    o_ref[...] = x_ref[...] + jnp.maximum(bn, 0.0)


# ---------------------------------------------------------------------------
# Trace-time sizing helpers.
# ---------------------------------------------------------------------------
def _vmem_budget_bytes():
    """Generation-aware scoped-VMEM budget (~80% of physical per-core VMEM)."""
    try:
        cap = int(pltpu.get_tpu_info().vmem_capacity_bytes)
    except Exception:  # pragma: no cover - conservative fallback (v7x-sized)
        cap = 64 << 20
    return int(0.8 * cap)


def _attn_vmem_bytes(bblk, C, N, t_bytes):
    io = 2 * bblk * (C * N * 4 + C * N * t_bytes + C * 2 * 4)  # dbl-buffered
    weights = 2 * (3 * C * C * 4 + 2 * C * 128 * 4)
    temps = (4 * N * N + 14 * C * N) * 4          # energy/p/attn (+bf16), mv..
    return io + weights + temps + (4 << 20)       # Mosaic scratch headroom


def _bn_vmem_bytes(bblk, C, N, t_bytes):
    io = 2 * bblk * C * N * (4 + t_bytes + 4)
    return io + 2 * C * 128 * 4 + (2 << 20)


def _choose_batch_block(B, per_block_bytes, fits, *, min_steps=4,
                        small_block_bytes=128 << 10,
                        target_block_bytes=1 << 20):
    """Pick Bblk (a divisor of B): grow blocks while they fit in VMEM, stop at
    ~target_block_bytes per step, and never drop below `min_steps` grid steps
    once blocks already exceed `small_block_bytes` (keeps pipeline depth and
    even extents for v7x's two TensorCores when B is large)."""
    best = 1
    for d in range(1, B + 1):
        if B % d:
            continue
        if not fits(d):
            break
        if d > 1 and d * per_block_bytes > small_block_bytes and (B // d) < min_steps:
            break
        best = d
        if d * per_block_bytes >= target_block_bytes:
            break
    return best


# ---------------------------------------------------------------------------
# Wrapper.
# ---------------------------------------------------------------------------
def sa_layer(x, params, *, matmul_dtype=jnp.bfloat16):
    """SA_Layer forward. x: (B, C, N) float32, same layout as the PyTorch module."""
    B, C, N = x.shape
    wqk, wv, bv, wt, bt, gamma, beta = params
    f32 = jnp.float32
    x = x.astype(f32)

    t_dtype = jnp.bfloat16 if matmul_dtype == jnp.bfloat16 else f32
    t_bytes = jnp.dtype(t_dtype).itemsize

    # Shared-q/k Gram matrix (exact f32); pack [M_gram; W_v; W_t] so the
    # kernel runs a single fused [M_gram; W_v] matmul per batch.
    m_gram = jnp.dot(wqk.T.astype(f32), wqk.astype(f32),
                     precision=jax.lax.Precision.HIGHEST)          # (C, C)
    w_pack = jnp.concatenate([m_gram, wv.astype(f32), wt.astype(f32)], axis=0)
    b_pack = jnp.stack([bv, bt]).astype(f32).reshape(2, C, 1)

    budget = _vmem_budget_bytes()

    # ---- kernel 1: attention + trans_conv + per-batch BN partial sums -----
    per_blk1 = C * N * (4 + t_bytes)
    bblk1 = _choose_batch_block(
        B, per_blk1, lambda d: _attn_vmem_bytes(d, C, N, t_bytes) <= budget)
    grid1 = B // bblk1
    vmem1 = int(min(budget, max(_attn_vmem_bytes(bblk1, C, N, t_bytes), 32 << 20)))
    batch_spec1 = pl.BlockSpec((bblk1, C, N), lambda i: (i, 0, 0))

    t, stats = pl.pallas_call(
        functools.partial(_sa_attn_kernel, matmul_dtype=matmul_dtype,
                          channels=C, batch_block=bblk1),
        grid=(grid1,),
        in_specs=[
            batch_spec1,                                           # x
            pl.BlockSpec((3 * C, C), lambda i: (0, 0)),            # packed weights
            pl.BlockSpec((2, C, 1), lambda i: (0, 0, 0)),          # packed biases
        ],
        out_specs=[
            pl.BlockSpec((bblk1, C, N), lambda i: (i, 0, 0)),      # t
            pl.BlockSpec((bblk1, C, 2), lambda i: (i, 0, 0)),      # BN partials
        ],
        out_shape=[
            jax.ShapeDtypeStruct((B, C, N), t_dtype),
            jax.ShapeDtypeStruct((B, C, 2), f32),
        ],
        compiler_params=pltpu.CompilerParams(
            dimension_semantics=("parallel",),
            vmem_limit_bytes=vmem1,
        ),
    )(x, w_pack, b_pack)

    # ---- BatchNorm1d (training) stats over (B, N): pooled mean/variance ---
    cnt = jnp.asarray(B * N, f32)
    n_f = jnp.asarray(N, f32)
    s_b = stats[:, :, 0]                                           # (B, C)
    ssq_b = stats[:, :, 1]                                         # (B, C)
    mean = jnp.sum(s_b, axis=0) / cnt
    var = (jnp.sum(ssq_b, axis=0)
           + n_f * jnp.sum(jnp.square(s_b / n_f - mean), axis=0)) / cnt
    scale = gamma.astype(f32) * jax.lax.rsqrt(var + 1e-5)
    shift = beta.astype(f32) - mean * scale
    ss_pack = jnp.stack([scale, shift]).reshape(2, C, 1)

    # ---- kernel 2: BN affine + ReLU + residual, streamed in large blocks ---
    per_blk2 = C * N * (8 + t_bytes)
    bblk2 = _choose_batch_block(
        B, per_blk2, lambda d: _bn_vmem_bytes(d, C, N, t_bytes) <= budget,
        small_block_bytes=512 << 10, target_block_bytes=2 << 20)
    grid2 = B // bblk2
    vmem2 = int(min(budget, max(_bn_vmem_bytes(bblk2, C, N, t_bytes), 32 << 20)))
    batch_spec2 = pl.BlockSpec((bblk2, C, N), lambda i: (i, 0, 0))

    out = pl.pallas_call(
        _sa_bn_kernel,
        grid=(grid2,),
        in_specs=[
            batch_spec2,                                           # x (residual)
            batch_spec2,                                           # t
            pl.BlockSpec((2, C, 1), lambda i: (0, 0, 0)),          # BN scale/shift
        ],
        out_specs=batch_spec2,
        out_shape=jax.ShapeDtypeStruct((B, C, N), f32),
        input_output_aliases={0: 0},                               # reuse x's HBM buffer
        compiler_params=pltpu.CompilerParams(
            dimension_semantics=("parallel",),
            vmem_limit_bytes=vmem2,
        ),
    )(x, t, ss_pack)
    return out


# ---------------------------------------------------------------------------
# Pure-JAX reference mirroring the PyTorch forward (NCW layout).
# ---------------------------------------------------------------------------
def sa_layer_ref(x, params):
    wqk, wv, bv, wt, bt, gamma, beta = params
    x_q = jnp.einsum('dc,bcn->bdn', wqk, x).transpose(0, 2, 1)     # (B, N, C4)
    x_k = jnp.einsum('dc,bcn->bdn', wqk, x)                        # (B, C4, N)
    x_v = jnp.einsum('dc,bcn->bdn', wv, x) + bv[None, :, None]     # (B, C, N)
    energy = jnp.einsum('bnd,bdm->bnm', x_q, x_k)
    attn = jax.nn.softmax(energy, axis=-1)
    attn = attn / (1e-9 + attn.sum(axis=1, keepdims=True))
    x_r = jnp.einsum('bcn,bnm->bcm', x_v, attn)
    d = x - x_r
    t = jnp.einsum('dc,bcn->bdn', wt, d) + bt[None, :, None]
    mean = t.mean(axis=(0, 2), keepdims=True)
    var = ((t - mean) ** 2).mean(axis=(0, 2), keepdims=True)
    bn = (t - mean) / jnp.sqrt(var + 1e-5)
    bn = bn * gamma[None, :, None] + beta[None, :, None]
    return x + jax.nn.relu(bn)


if __name__ == "__main__":
    B, C, N = 2, 32, 128            # batch, channels (C // 4 = 8), number of points
    key = jax.random.PRNGKey(0)
    ks = jax.random.split(key, 6)
    x = jax.random.normal(ks[0], (B, C, N), jnp.float32)

    # Deterministic parameter init (Conv1d weights ~ small normals; BN affine
    # at its PyTorch init: weight=1, bias=0).
    wqk = jax.random.normal(ks[1], (C // 4, C), jnp.float32) / jnp.sqrt(C)
    wv = jax.random.normal(ks[2], (C, C), jnp.float32) / jnp.sqrt(C)
    bv = 0.1 * jax.random.normal(ks[3], (C,), jnp.float32)
    wt = jax.random.normal(ks[4], (C, C), jnp.float32) / jnp.sqrt(C)
    bt = 0.1 * jax.random.normal(ks[5], (C,), jnp.float32)
    gamma = jnp.ones((C,), jnp.float32)
    beta = jnp.zeros((C,), jnp.float32)
    params = (wqk, wv, bv, wt, bt, gamma, beta)

    ref = sa_layer_ref(x, params)
    run = jax.jit(sa_layer, static_argnames=("matmul_dtype",))

    # f32 MXU operands: tight semantic check against the PyTorch-mirroring ref.
    out_f32 = jax.block_until_ready(run(x, params, matmul_dtype=jnp.float32))
    assert out_f32.shape == (B, C, N)
    err_f32 = float(jnp.max(jnp.abs(out_f32 - ref)))
    assert jnp.allclose(out_f32, ref, atol=1e-3, rtol=1e-3), err_f32

    # bf16 MXU operands (native MXU dtype on v5e/v6e/v7x): looser tolerance,
    # dominated by bf16 rounding of the matmul inputs and bf16 t storage.
    out_bf16 = jax.block_until_ready(run(x, params, matmul_dtype=jnp.bfloat16))
    err_bf16 = float(jnp.max(jnp.abs(out_bf16 - ref)))
    assert jnp.allclose(out_bf16, ref, atol=2.5e-1, rtol=1e-1), err_bf16

    print("KERNEL_OK")
</pallas_src>

<mosaic_0001>
module attributes {stable_mosaic.version = 11 : i64} {
  func.func @_sa_bn_kernel(%arg0: i32, %arg1: memref<2x32x128xf32, #tpu.memory_space<vmem>>, %arg2: memref<2x32x128xf32, #tpu.memory_space<vmem>>, %arg3: memref<2x32x1xf32, #tpu.memory_space<vmem>>, %arg4: memref<2x32x128xf32, #tpu.memory_space<vmem>>) attributes {dimension_semantics = [#tpu.dimension_semantics<parallel>], iteration_bounds = array<i64: 1>, scalar_prefetch = 0 : i64, scratch_operands = 0 : i64, tpu.core_type = #tpu.core_type<tc>, window_params = [{transform_indices = @transform_0, window_bounds = array<i64: 2, 32, 128>}, {transform_indices = @transform_1, window_bounds = array<i64: 2, 32, 128>}, {pipeline_mode = #tpu.pipeline_mode<synchronous>, transform_indices = @transform_2, window_bounds = array<i64: 2, 32, 1>}, {transform_indices = @transform_3, window_bounds = array<i64: 2, 32, 128>}]} {
    %c0 = arith.constant 0 : index
    %c0_0 = arith.constant 0 : index
    %c0_1 = arith.constant 0 : index
    %0 = vector.load %arg3[%c0, %c0_0, %c0_1] : memref<2x32x1xf32, #tpu.memory_space<vmem>>, vector<1x32x1xf32>
    %1 = vector.shape_cast %0 : vector<1x32x1xf32> to vector<32x1xf32>
    %c1 = arith.constant 1 : index
    %c0_2 = arith.constant 0 : index
    %c0_3 = arith.constant 0 : index
    %2 = vector.load %arg3[%c1, %c0_2, %c0_3] : memref<2x32x1xf32, #tpu.memory_space<vmem>>, vector<1x32x1xf32>
    %3 = vector.shape_cast %2 : vector<1x32x1xf32> to vector<32x1xf32>
    %c0_4 = arith.constant 0 : index
    %c0_5 = arith.constant 0 : index
    %c0_6 = arith.constant 0 : index
    %4 = vector.load %arg2[%c0_4, %c0_5, %c0_6] : memref<2x32x128xf32, #tpu.memory_space<vmem>>, vector<2x32x128xf32>
    %5 = vector.shape_cast %1 : vector<32x1xf32> to vector<1x32x1xf32>
    %6 = vector.broadcast %5 : vector<1x32x1xf32> to vector<2x32x128xf32>
    %7 = arith.mulf %4, %6 : vector<2x32x128xf32>
    %8 = vector.shape_cast %3 : vector<32x1xf32> to vector<1x32x1xf32>
    %9 = vector.broadcast %8 : vector<1x32x1xf32> to vector<2x32x128xf32>
    %10 = arith.addf %7, %9 : vector<2x32x128xf32>
    %c0_7 = arith.constant 0 : index
    %c0_8 = arith.constant 0 : index
    %c0_9 = arith.constant 0 : index
    %11 = vector.load %arg1[%c0_7, %c0_8, %c0_9] : memref<2x32x128xf32, #tpu.memory_space<vmem>>, vector<2x32x128xf32>
    %cst = arith.constant 0.000000e+00 : f32
    %12 = vector.broadcast %cst : f32 to vector<2x32x128xf32>
    %13 = arith.maximumf %10, %12 : vector<2x32x128xf32>
    %14 = arith.addf %11, %13 : vector<2x32x128xf32>
    %c0_10 = arith.constant 0 : index
    %c0_11 = arith.constant 0 : index
    %c0_12 = arith.constant 0 : index
    %15 = vector.load %arg4[%c0_10, %c0_11, %c0_12] : memref<2x32x128xf32, #tpu.memory_space<vmem>>, vector<2x32x128xf32>
    tpu.vector_store %arg4[%c0_10, %c0_11, %c0_12], %14 {strides = array<i32>} : memref<2x32x128xf32, #tpu.memory_space<vmem>>, vector<2x32x128xf32>,
    return
  }
  func.func @transform_0(%arg0: i32) -> (i32, i32, i32) {
    %c0_i32 = arith.constant 0 : i32
    %c0_i32_0 = arith.constant 0 : i32
    %c0_i32_1 = arith.constant 0 : i32
    return %arg0, %c0_i32, %c0_i32_0 : i32, i32, i32
  }
  func.func @transform_1(%arg0: i32) -> (i32, i32, i32) {
    %c0_i32 = arith.constant 0 : i32
    %c0_i32_0 = arith.constant 0 : i32
    %c0_i32_1 = arith.constant 0 : i32
    return %arg0, %c0_i32, %c0_i32_0 : i32, i32, i32
  }
  func.func @transform_2(%arg0: i32) -> (i32, i32, i32) {
    %c0_i32 = arith.constant 0 : i32
    %c0_i32_0 = arith.constant 0 : i32
    %c0_i32_1 = arith.constant 0 : i32
    %c0_i32_2 = arith.constant 0 : i32
    return %c0_i32, %c0_i32_0, %c0_i32_1 : i32, i32, i32
  }
  func.func @transform_3(%arg0: i32) -> (i32, i32, i32) {
    %c0_i32 = arith.constant 0 : i32
    %c0_i32_0 = arith.constant 0 : i32
    %c0_i32_1 = arith.constant 0 : i32
    return %arg0, %c0_i32, %c0_i32_0 : i32, i32, i32
  }
}

module attributes {stable_mosaic.version = 11 : i64} {
  func.func @_sa_attn_kernel(%arg0: i32, %arg1: memref<2x32x128xf32, #tpu.memory_space<vmem>>, %arg2: memref<96x32xf32, #tpu.memory_space<vmem>>, %arg3: memref<2x32x1xf32, #tpu.memory_space<vmem>>, %arg4: memref<2x32x128xf32, #tpu.memory_space<vmem>>, %arg5: memref<2x32x2xf32, #tpu.memory_space<vmem>>) attributes {dimension_semantics = [#tpu.dimension_semantics<parallel>], iteration_bounds = array<i64: 1>, scalar_prefetch = 0 : i64, scratch_operands = 0 : i64, tpu.core_type = #tpu.core_type<tc>, window_params = [{transform_indices = @transform_0, window_bounds = array<i64: 2, 32, 128>}, {pipeline_mode = #tpu.pipeline_mode<synchronous>, transform_indices = @transform_1, window_bounds = array<i64: 96, 32>}, {pipeline_mode = #tpu.pipeline_mode<synchronous>, transform_indices = @transform_2, window_bounds = array<i64: 2, 32, 1>}, {transform_indices = @transform_3, window_bounds = array<i64: 2, 32, 128>}, {transform_indices = @transform_4, window_bounds = array<i64: 2, 32, 2>}]} {
    %c0 = arith.constant 0 : index
    %c0_0 = arith.constant 0 : index
    %0 = vector.load %arg2[%c0, %c0_0] : memref<96x32xf32, #tpu.memory_space<vmem>>, vector<96x32xf32>
    %1 = vector.extract_strided_slice %0 {offsets = [0, 0], sizes = [64, 32], strides = [1, 1]} : vector<96x32xf32> to vector<64x32xf32>
    %2 = vector.extract_strided_slice %0 {offsets = [64, 0], sizes = [32, 32], strides = [1, 1]} : vector<96x32xf32> to vector<32x32xf32>
    %c0_1 = arith.constant 0 : index
    %c0_2 = arith.constant 0 : index
    %c0_3 = arith.constant 0 : index
    %3 = vector.load %arg3[%c0_1, %c0_2, %c0_3] : memref<2x32x1xf32, #tpu.memory_space<vmem>>, vector<1x32x1xf32>
    %4 = vector.shape_cast %3 : vector<1x32x1xf32> to vector<32x1xf32>
    %c1 = arith.constant 1 : index
    %c0_4 = arith.constant 0 : index
    %c0_5 = arith.constant 0 : index
    %5 = vector.load %arg3[%c1, %c0_4, %c0_5] : memref<2x32x1xf32, #tpu.memory_space<vmem>>, vector<1x32x1xf32>
    %6 = vector.shape_cast %5 : vector<1x32x1xf32> to vector<32x1xf32>
    %c0_i32 = arith.constant 0 : i32
    %7 = arith.index_cast %c0_i32 : i32 to index
    %c0_6 = arith.constant 0 : index
    %c0_7 = arith.constant 0 : index
    %8 = vector.load %arg1[%7, %c0_6, %c0_7] : memref<2x32x128xf32, #tpu.memory_space<vmem>>, vector<1x32x128xf32>
    %9 = vector.shape_cast %8 : vector<1x32x128xf32> to vector<32x128xf32>
    %cst = arith.constant dense<0.000000e+00> : vector<64x128xf32>
    %10 = tpu.matmul %1, %9, %cst {dimension_numbers = #tpu.dot_dimension_numbers<[1], [0], [0], [1], [0, 0, 1, 1], [], []>, precision = #tpu.contract_precision<fp32>} : vector<64x32xf32>, vector<32x128xf32>, vector<64x128xf32> -> vector<64x128xf32>
    %11 = vector.extract_strided_slice %10 {offsets = [0, 0], sizes = [32, 128], strides = [1, 1]} : vector<64x128xf32> to vector<32x128xf32>
    %12 = vector.extract_strided_slice %10 {offsets = [32, 0], sizes = [32, 128], strides = [1, 1]} : vector<64x128xf32> to vector<32x128xf32>
    %13 = vector.broadcast %4 : vector<32x1xf32> to vector<32x128xf32>
    %14 = arith.addf %12, %13 : vector<32x128xf32>
    %cst_8 = arith.constant dense<0.000000e+00> : vector<128x128xf32>
    %15 = tpu.matmul %11, %9, %cst_8 {dimension_numbers = #tpu.dot_dimension_numbers<[0], [0], [1], [1], [0, 1, 1, 1], [], []>, precision = #tpu.contract_precision<fp32>} : vector<32x128xf32>, vector<32x128xf32>, vector<128x128xf32> -> vector<128x128xf32>
    %cst_9 = arith.constant dense<0xFF800000> : vector<128xf32>
    %16 = vector.multi_reduction <maximumf>, %15, %cst_9 [1] : vector<128x128xf32> to vector<128xf32>
    %17 = vector.shape_cast %16 : vector<128xf32> to vector<128x1xf32>
    %18 = vector.broadcast %17 : vector<128x1xf32> to vector<128x128xf32>
    %19 = arith.subf %15, %18 : vector<128x128xf32>
    %20 = math.exp %19 : vector<128x128xf32>
    %cst_10 = arith.constant dense<0.000000e+00> : vector<128xf32>
    %21 = vector.multi_reduction <add>, %20, %cst_10 [1] : vector<128x128xf32> to vector<128xf32>
    %22 = vector.shape_cast %21 : vector<128xf32> to vector<128x1xf32>
    %23 = tpu.reciprocal %22 {approx = true} : vector<128x1xf32> -> vector<128x1xf32>
    %24 = arith.mulf %22, %23 : vector<128x1xf32>
    %cst_11 = arith.constant 2.000000e+00 : f32
    %25 = vector.broadcast %cst_11 : f32 to vector<128x1xf32>
    %26 = arith.subf %25, %24 : vector<128x1xf32>
    %27 = arith.mulf %23, %26 : vector<128x1xf32>
    %28 = vector.broadcast %27 : vector<128x1xf32> to vector<128x128xf32>
    %29 = arith.mulf %20, %28 : vector<128x128xf32>
    %cst_12 = arith.constant dense<0.000000e+00> : vector<128xf32>
    %30 = vector.multi_reduction <add>, %29, %cst_12 [0] : vector<128x128xf32> to vector<128xf32>
    %31 = vector.shape_cast %30 : vector<128xf32> to vector<1x128xf32>
    %cst_13 = arith.constant 9.99999971E-10 : f32
    %32 = vector.broadcast %cst_13 : f32 to vector<1x128xf32>
    %33 = arith.addf %32, %31 : vector<1x128xf32>
    %34 = tpu.reciprocal %33 {approx = true} : vector<1x128xf32> -> vector<1x128xf32>
    %35 = arith.mulf %33, %34 : vector<1x128xf32>
    %cst_14 = arith.constant 2.000000e+00 : f32
    %36 = vector.broadcast %cst_14 : f32 to vector<1x128xf32>
    %37 = arith.subf %36, %35 : vector<1x128xf32>
    %38 = arith.mulf %34, %37 : vector<1x128xf32>
    %39 = vector.broadcast %38 : vector<1x128xf32> to vector<128x128xf32>
    %40 = arith.mulf %29, %39 : vector<128x128xf32>
    %cst_15 = arith.constant dense<0.000000e+00> : vector<32x128xf32>
    %41 = tpu.matmul %14, %40, %cst_15 {dimension_numbers = #tpu.dot_dimension_numbers<[1], [0], [0], [1], [0, 0, 1, 1], [], []>, precision = #tpu.contract_precision<fp32>} : vector<32x128xf32>, vector<128x128xf32>, vector<32x128xf32> -> vector<32x128xf32>
    %42 = arith.subf %9, %41 : vector<32x128xf32>
    %cst_16 = arith.constant dense<0.000000e+00> : vector<32x128xf32>
    %43 = tpu.matmul %2, %42, %cst_16 {dimension_numbers = #tpu.dot_dimension_numbers<[1], [0], [0], [1], [0, 0, 1, 1], [], []>, precision = #tpu.contract_precision<fp32>} : vector<32x32xf32>, vector<32x128xf32>, vector<32x128xf32> -> vector<32x128xf32>
    %44 = vector.broadcast %6 : vector<32x1xf32> to vector<32x128xf32>
    %45 = arith.addf %43, %44 : vector<32x128xf32>
    %46 = arith.index_cast %c0_i32 : i32 to index
    %c0_17 = arith.constant 0 : index
    %c0_18 = arith.constant 0 : index
    %47 = vector.load %arg4[%46, %c0_17, %c0_18] : memref<2x32x128xf32, #tpu.memory_space<vmem>>, vector<1x32x128xf32>
    %48 = vector.shape_cast %47 : vector<1x32x128xf32> to vector<32x128xf32>
    %49 = vector.shape_cast %45 : vector<32x128xf32> to vector<1x32x128xf32>
    tpu.vector_store %arg4[%46, %c0_17, %c0_18], %49 {strides = array<i32>} : memref<2x32x128xf32, #tpu.memory_space<vmem>>, vector<1x32x128xf32>,
    %cst_19 = arith.constant dense<0.000000e+00> : vector<32xf32>
    %50 = vector.multi_reduction <add>, %45, %cst_19 [1] : vector<32x128xf32> to vector<32xf32>
    %51 = vector.shape_cast %50 : vector<32xf32> to vector<32x1xf32>
    %cst_20 = arith.constant 7.812500e-03 : f32
    %52 = vector.broadcast %cst_20 : f32 to vector<32x1xf32>
    %53 = arith.mulf %51, %52 : vector<32x1xf32>
    %54 = vector.broadcast %53 : vector<32x1xf32> to vector<32x128xf32>
    %55 = arith.subf %45, %54 : vector<32x128xf32>
    %56 = arith.mulf %55, %55 : vector<32x128xf32>
    %cst_21 = arith.constant dense<0.000000e+00> : vector<32xf32>
    %57 = vector.multi_reduction <add>, %56, %cst_21 [1] : vector<32x128xf32> to vector<32xf32>
    %58 = vector.shape_cast %57 : vector<32xf32> to vector<32x1xf32>
    %59 = tpu.concatenate %51, %58 in 1 : vector<32x1xf32>, vector<32x1xf32> -> vector<32x2xf32>
    %60 = arith.index_cast %c0_i32 : i32 to index
    %c0_22 = arith.constant 0 : index
    %c0_23 = arith.constant 0 : index
    %61 = vector.load %arg5[%60, %c0_22, %c0_23] : memref<2x32x2xf32, #tpu.memory_space<vmem>>, vector<1x32x2xf32>
    %62 = vector.shape_cast %61 : vector<1x32x2xf32> to vector<32x2xf32>
    %63 = vector.shape_cast %59 : vector<32x2xf32> to vector<1x32x2xf32>
    tpu.vector_store %arg5[%60, %c0_22, %c0_23], %63 {strides = array<i32>} : memref<2x32x2xf32, #tpu.memory_space<vmem>>, vector<1x32x2xf32>,
    %c1_i32 = arith.constant 1 : i32
    %64 = arith.index_cast %c1_i32 : i32 to index
    %c0_24 = arith.constant 0 : index
    %c0_25 = arith.constant 0 : index
    %65 = vector.load %arg1[%64, %c0_24, %c0_25] : memref<2x32x128xf32, #tpu.memory_space<vmem>>, vector<1x32x128xf32>
    %66 = vector.shape_cast %65 : vector<1x32x128xf32> to vector<32x128xf32>
    %cst_26 = arith.constant dense<0.000000e+00> : vector<64x128xf32>
    %67 = tpu.matmul %1, %66, %cst_26 {dimension_numbers = #tpu.dot_dimension_numbers<[1], [0], [0], [1], [0, 0, 1, 1], [], []>, precision = #tpu.contract_precision<fp32>} : vector<64x32xf32>, vector<32x128xf32>, vector<64x128xf32> -> vector<64x128xf32>
    %68 = vector.extract_strided_slice %67 {offsets = [0, 0], sizes = [32, 128], strides = [1, 1]} : vector<64x128xf32> to vector<32x128xf32>
    %69 = vector.extract_strided_slice %67 {offsets = [32, 0], sizes = [32, 128], strides = [1, 1]} : vector<64x128xf32> to vector<32x128xf32>
    %70 = vector.broadcast %4 : vector<32x1xf32> to vector<32x128xf32>
    %71 = arith.addf %69, %70 : vector<32x128xf32>
    %cst_27 = arith.constant dense<0.000000e+00> : vector<128x128xf32>
    %72 = tpu.matmul %68, %66, %cst_27 {dimension_numbers = #tpu.dot_dimension_numbers<[0], [0], [1], [1], [0, 1, 1, 1], [], []>, precision = #tpu.contract_precision<fp32>} : vector<32x128xf32>, vector<32x128xf32>, vector<128x128xf32> -> vector<128x128xf32>
    %cst_28 = arith.constant dense<0xFF800000> : vector<128xf32>
    %73 = vector.multi_reduction <maximumf>, %72, %cst_28 [1] : vector<128x128xf32> to vector<128xf32>
    %74 = vector.shape_cast %73 : vector<128xf32> to vector<128x1xf32>
    %75 = vector.broadcast %74 : vector<128x1xf32> to vector<128x128xf32>
    %76 = arith.subf %72, %75 : vector<128x128xf32>
    %77 = math.exp %76 : vector<128x128xf32>
    %cst_29 = arith.constant dense<0.000000e+00> : vector<128xf32>
    %78 = vector.multi_reduction <add>, %77, %cst_29 [1] : vector<128x128xf32> to vector<128xf32>
    %79 = vector.shape_cast %78 : vector<128xf32> to vector<128x1xf32>
    %80 = tpu.reciprocal %79 {approx = true} : vector<128x1xf32> -> vector<128x1xf32>
    %81 = arith.mulf %79, %80 : vector<128x1xf32>
    %cst_30 = arith.constant 2.000000e+00 : f32
    %82 = vector.broadcast %cst_30 : f32 to vector<128x1xf32>
    %83 = arith.subf %82, %81 : vector<128x1xf32>
    %84 = arith.mulf %80, %83 : vector<128x1xf32>
    %85 = vector.broadcast %84 : vector<128x1xf32> to vector<128x128xf32>
    %86 = arith.mulf %77, %85 : vector<128x128xf32>
    %cst_31 = arith.constant dense<0.000000e+00> : vector<128xf32>
    %87 = vector.multi_reduction <add>, %86, %cst_31 [0] : vector<128x128xf32> to vector<128xf32>
    %88 = vector.shape_cast %87 : vector<128xf32> to vector<1x128xf32>
    %cst_32 = arith.constant 9.99999971E-10 : f32
    %89 = vector.broadcast %cst_32 : f32 to vector<1x128xf32>
    %90 = arith.addf %89, %88 : vector<1x128xf32>
    %91 = tpu.reciprocal %90 {approx = true} : vector<1x128xf32> -> vector<1x128xf32>
    %92 = arith.mulf %90, %91 : vector<1x128xf32>
    %cst_33 = arith.constant 2.000000e+00 : f32
    %93 = vector.broadcast %cst_33 : f32 to vector<1x128xf32>
    %94 = arith.subf %93, %92 : vector<1x128xf32>
    %95 = arith.mulf %91, %94 : vector<1x128xf32>
    %96 = vector.broadcast %95 : vector<1x128xf32> to vector<128x128xf32>
    %97 = arith.mulf %86, %96 : vector<128x128xf32>
    %cst_34 = arith.constant dense<0.000000e+00> : vector<32x128xf32>
    %98 = tpu.matmul %71, %97, %cst_34 {dimension_numbers = #tpu.dot_dimension_numbers<[1], [0], [0], [1], [0, 0, 1, 1], [], []>, precision = #tpu.contract_precision<fp32>} : vector<32x128xf32>, vector<128x128xf32>, vector<32x128xf32> -> vector<32x128xf32>
    %99 = arith.subf %66, %98 : vector<32x128xf32>
    %cst_35 = arith.constant dense<0.000000e+00> : vector<32x128xf32>
    %100 = tpu.matmul %2, %99, %cst_35 {dimension_numbers = #tpu.dot_dimension_numbers<[1], [0], [0], [1], [0, 0, 1, 1], [], []>, precision = #tpu.contract_precision<fp32>} : vector<32x32xf32>, vector<32x128xf32>, vector<32x128xf32> -> vector<32x128xf32>
    %101 = vector.broadcast %6 : vector<32x1xf32> to vector<32x128xf32>
    %102 = arith.addf %100, %101 : vector<32x128xf32>
    %103 = arith.index_cast %c1_i32 : i32 to index
    %c0_36 = arith.constant 0 : index
    %c0_37 = arith.constant 0 : index
    %104 = vector.load %arg4[%103, %c0_36, %c0_37] : memref<2x32x128xf32, #tpu.memory_space<vmem>>, vector<1x32x128xf32>
    %105 = vector.shape_cast %104 : vector<1x32x128xf32> to vector<32x128xf32>
    %106 = vector.shape_cast %102 : vector<32x128xf32> to vector<1x32x128xf32>
    tpu.vector_store %arg4[%103, %c0_36, %c0_37], %106 {strides = array<i32>} : memref<2x32x128xf32, #tpu.memory_space<vmem>>, vector<1x32x128xf32>,
    %cst_38 = arith.constant dense<0.000000e+00> : vector<32xf32>
    %107 = vector.multi_reduction <add>, %102, %cst_38 [1] : vector<32x128xf32> to vector<32xf32>
    %108 = vector.shape_cast %107 : vector<32xf32> to vector<32x1xf32>
    %cst_39 = arith.constant 7.812500e-03 : f32
    %109 = vector.broadcast %cst_39 : f32 to vector<32x1xf32>
    %110 = arith.mulf %108, %109 : vector<32x1xf32>
    %111 = vector.broadcast %110 : vector<32x1xf32> to vector<32x128xf32>
    %112 = arith.subf %102, %111 : vector<32x128xf32>
    %113 = arith.mulf %112, %112 : vector<32x128xf32>
    %cst_40 = arith.constant dense<0.000000e+00> : vector<32xf32>
    %114 = vector.multi_reduction <add>, %113, %cst_40 [1] : vector<32x128xf32> to vector<32xf32>
    %115 = vector.shape_cast %114 : vector<32xf32> to vector<32x1xf32>
    %116 = tpu.concatenate %108, %115 in 1 : vector<32x1xf32>, vector<32x1xf32> -> vector<32x2xf32>
    %117 = arith.index_cast %c1_i32 : i32 to index
    %c0_41 = arith.constant 0 : index
    %c0_42 = arith.constant 0 : index
    %118 = vector.load %arg5[%117, %c0_41, %c0_42] : memref<2x32x2xf32, #tpu.memory_space<vmem>>, vector<1x32x2xf32>
    %119 = vector.shape_cast %118 : vector<1x32x2xf32> to vector<32x2xf32>
    %120 = vector.shape_cast %116 : vector<32x2xf32> to vector<1x32x2xf32>
    tpu.vector_store %arg5[%117, %c0_41, %c0_42], %120 {strides = array<i32>} : memref<2x32x2xf32, #tpu.memory_space<vmem>>, vector<1x32x2xf32>,
    %c2_i32 = arith.constant 2 : i32
    return
  }
  func.func @transform_0(%arg0: i32) -> (i32, i32, i32) {
    %c0_i32 = arith.constant 0 : i32
    %c0_i32_0 = arith.constant 0 : i32
    %c0_i32_1 = arith.constant 0 : i32
    return %arg0, %c0_i32, %c0_i32_0 : i32, i32, i32
  }
  func.func @transform_1(%arg0: i32) -> (i32, i32) {
    %c0_i32 = arith.constant 0 : i32
    %c0_i32_0 = arith.constant 0 : i32
    %c0_i32_1 = arith.constant 0 : i32
    return %c0_i32, %c0_i32_0 : i32, i32
  }
  func.func @transform_2(%arg0: i32) -> (i32, i32, i32) {
    %c0_i32 = arith.constant 0 : i32
    %c0_i32_0 = arith.constant 0 : i32
    %c0_i32_1 = arith.constant 0 : i32
    %c0_i32_2 = arith.constant 0 : i32
    return %c0_i32, %c0_i32_0, %c0_i32_1 : i32, i32, i32
  }
  func.func @transform_3(%arg0: i32) -> (i32, i32, i32) {
    %c0_i32 = arith.constant 0 : i32
    %c0_i32_0 = arith.constant 0 : i32
    %c0_i32_1 = arith.constant 0 : i32
    return %arg0, %c0_i32, %c0_i32_0 : i32, i32, i32
  }
  func.func @transform_4(%arg0: i32) -> (i32, i32, i32) {
    %c0_i32 = arith.constant 0 : i32
    %c0_i32_0 = arith.constant 0 : i32
    %c0_i32_1 = arith.constant 0 : i32
    return %arg0, %c0_i32, %c0_i32_0 : i32, i32, i32
  }
}

</mosaic_0001>

<llo_original>
// kernel: sa_layer.3
$region0: #{sa_layer.3}
  #allocation0 [shape = 'u32[]', space=smem, size = 0x4, offset = 0x4, fixed_abs, tag = 'smem constant byte address 0x4 - core index']
  #allocation1 [shape = 'u32[144,128]{1,0:T(1,128)}', space=vmem, size = 0x12000, scoped, tag = 'internal scratch']
  %s0 = inlined_call_operand.hbm [shape: f32[2,32,128], index: 0, kind: input, shape index: {}, may-alias: {0,3}]
  %s1 = inlined_call_operand.vmem [shape: f32[2,32,128], index: 1, kind: input, shape index: {}]
  %s2 = inlined_call_operand.vmem [shape: f32[2,32,1], index: 2, kind: input, shape index: {}]
  %s3 = inlined_call_operand.hbm [shape: f32[2,32,128], index: 3, kind: output, shape index: {}, may-alias: {0,3}]
  %s4 = sld [smem:[#allocation0]]
  $region26: #{sa_layer.3} parent=0
    _
  %s6 = ssub.s32 1, %s4
  %s7 = scalar_select 0, %s6, %s4
  $region1: #{sa_layer.3} parent=0
    #allocation2 [shape = 'u8[32768]{0}', space=vmem, size = 0x8000, scoped, tag = 'input window, operand 0, single buffered']
    #allocation3 [shape = 's32[1]{0}', space=sflag, size = 0x4, scoped, tag = 'scoped memory for sa_layer.3']
    #allocation4 [shape = 's32[1]{0}', space=sflag, size = 0x4, scoped, tag = 'scoped memory for sa_layer.3']
    #allocation5 [shape = 'u8[32768]{0}', space=vmem, size = 0x8000, scoped, tag = 'output window, operand 0, single buffered']
    %8 = vsyncpa [#allocation3], 0
    %9 = vsyncpa [#allocation4], 0
    // Predicated region
    $region2: #{sa_layer.3} parent=1 // pred_check
      _
    $region3: #{sa_layer.3} parent=1 // pred_check_branch
      %11 = sbr.rel (0) target = $region5
    $region4: #{sa_layer.3} parent=1 // pred_region
      %s13 = ssub.s32 1024, 1024
      %14 = vsyncadd [#allocation3], %s13
      %s15 = sshll.u32 [#allocation2], 4
      %s16 = int_to_ptr.vmem [resolvable:$true] %s15
      %21 = dma.hbm_to_vmem [thread:$0]  %s0, 1024, %s16, [#allocation3], 128, 128, 8
    $region5: #{sa_layer.3} parent=1 // pred_fallthru
      _
    // Predicated region
    $region6: #{sa_layer.3} parent=1 // pred_check
      _
    $region7: #{sa_layer.3} parent=1 // pred_check_branch
      %23 = sbr.rel (0) target = $region9
    $region8: #{sa_layer.3} parent=1 // pred_region
      _
    $region9: #{sa_layer.3} parent=1 // pred_fallthru
      _
    // Predicated region
    $region10: #{sa_layer.3} parent=1 // pred_check
      _
    $region11: #{sa_layer.3} parent=1 // pred_check_branch
      %25 = sbr.rel (0) target = $region13
    $region12: #{sa_layer.3} parent=1 // pred_region
      _
    $region13: #{sa_layer.3} parent=1 // pred_fallthru
      _
    // Predicated region
    $region14: #{sa_layer.3} parent=1 // pred_check
      _
    $region15: #{sa_layer.3} parent=1 // pred_check_branch
      %27 = sbr.rel (0) target = $region17
    $region16: #{sa_layer.3} parent=1 // pred_region
      %28 = dma.done [#allocation3], 1024
    $region17: #{sa_layer.3} parent=1 // pred_fallthru
      _
    %v29 = vld [vmem:[%s2] sm:$0xff]
    %v30 = vld [vmem:[%s2 + $0x8] sm:$0xff]
    %v31 = vld [vmem:[%s2 + $0x10] sm:$0xff]
    %v32 = vld [vmem:[%s2 + $0x18] sm:$0xff]
    %s33 = scalar_lea.vmem %s2, 32
    %v34 = vld [vmem:[%s33] sm:$0xff]
    %v35 = vld [vmem:[%s33 + $0x8] sm:$0xff]
    %v36 = vld [vmem:[%s33 + $0x10] sm:$0xff]
    %v37 = vld [vmem:[%s33 + $0x18] sm:$0xff]
    %v38 = vld [vmem:[%s1] sm:$0xff]
    %v39 = vld [vmem:[%s1 + $0x8] sm:$0xff]
    %v40 = vld [vmem:[%s1 + $0x10] sm:$0xff]
    %v41 = vld [vmem:[%s1 + $0x18] sm:$0xff]
    %v42 = vld [vmem:[%s1 + $0x20] sm:$0xff]
    %v43 = vld [vmem:[%s1 + $0x28] sm:$0xff]
    %v44 = vld [vmem:[%s1 + $0x30] sm:$0xff]
    %v45 = vld [vmem:[%s1 + $0x38] sm:$0xff]
    %47 = vset.pattern.permute.xlu0 0
    %48 = vperm.xlu0 %47, %v29
    %v49 = vpop.permute.xlu0 %48
    %52 = vset.pattern.permute.xlu0 0
    %53 = vperm.xlu0 %52, %v30
    %v54 = vpop.permute.xlu0 %53
    %57 = vset.pattern.permute.xlu0 0
    %58 = vperm.xlu0 %57, %v31
    %v59 = vpop.permute.xlu0 %58
    %62 = vset.pattern.permute.xlu0 0
    %63 = vperm.xlu0 %62, %v32
    %v64 = vpop.permute.xlu0 %63
    %v66 = vmul.f32 %v38, %v49
    %v67 = vmul.f32 %v39, %v54
    %v68 = vmul.f32 %v40, %v59
    %v69 = vmul.f32 %v41, %v64
    %v70 = vmul.f32 %v42, %v49
    %v71 = vmul.f32 %v43, %v54
    %v72 = vmul.f32 %v44, %v59
    %v73 = vmul.f32 %v45, %v64
    %75 = vset.pattern.permute.xlu0 0
    %76 = vperm.xlu0 %75, %v34
    %v77 = vpop.permute.xlu0 %76
    %80 = vset.pattern.permute.xlu0 0
    %81 = vperm.xlu0 %80, %v35
    %v82 = vpop.permute.xlu0 %81
    %85 = vset.pattern.permute.xlu0 0
    %86 = vperm.xlu0 %85, %v36
    %v87 = vpop.permute.xlu0 %86
    %90 = vset.pattern.permute.xlu0 0
    %91 = vperm.xlu0 %90, %v37
    %v92 = vpop.permute.xlu0 %91
    %v94 = vadd.f32 %v66, %v77
    %v95 = vadd.f32 %v67, %v82
    %v96 = vadd.f32 %v68, %v87
    %v97 = vadd.f32 %v69, %v92
    %v98 = vadd.f32 %v70, %v77
    %v99 = vadd.f32 %v71, %v82
    %v100 = vadd.f32 %v72, %v87
    %v101 = vadd.f32 %v73, %v92
    %v102 = vld [vmem:[#allocation2] sm:$0xff]
    %v103 = vld [vmem:[#allocation2 + $0x8] sm:$0xff]
    %v104 = vld [vmem:[#allocation2 + $0x10] sm:$0xff]
    %v105 = vld [vmem:[#allocation2 + $0x18] sm:$0xff]
    %v106 = vld [vmem:[#allocation2 + $0x20] sm:$0xff]
    %v107 = vld [vmem:[#allocation2 + $0x28] sm:$0xff]
    %v108 = vld [vmem:[#allocation2 + $0x30] sm:$0xff]
    %v109 = vld [vmem:[#allocation2 + $0x38] sm:$0xff]
    %v110 = vmax.f32 %v94, 0.0
    %v111 = vmax.f32 %v95, 0.0
    %v112 = vmax.f32 %v96, 0.0
    %v113 = vmax.f32 %v97, 0.0
    %v114 = vmax.f32 %v98, 0.0
    %v115 = vmax.f32 %v99, 0.0
    %v116 = vmax.f32 %v100, 0.0
    %v117 = vmax.f32 %v101, 0.0
    %v118 = vadd.f32 %v102, %v110
    %v119 = vadd.f32 %v103, %v111
    %v120 = vadd.f32 %v104, %v112
    %v121 = vadd.f32 %v105, %v113
    %v122 = vadd.f32 %v106, %v114
    %v123 = vadd.f32 %v107, %v115
    %v124 = vadd.f32 %v108, %v116
    %v125 = vadd.f32 %v109, %v117
    %126 = vst [vmem:[#allocation5] sm:$0xff] %v118
    %127 = vst [vmem:[#allocation5 + $0x8] sm:$0xff] %v119
    %128 = vst [vmem:[#allocation5 + $0x10] sm:$0xff] %v120
    %129 = vst [vmem:[#allocation5 + $0x18] sm:$0xff] %v121
    %130 = vst [vmem:[#allocation5 + $0x20] sm:$0xff] %v122
    %131 = vst [vmem:[#allocation5 + $0x28] sm:$0xff] %v123
    %132 = vst [vmem:[#allocation5 + $0x30] sm:$0xff] %v124
    %133 = vst [vmem:[#allocation5 + $0x38] sm:$0xff] %v125
    // Predicated region
    $region18: #{sa_layer.3} parent=1 // pred_check
      _
    $region19: #{sa_layer.3} parent=1 // pred_check_branch
      %135 = sbr.rel (0) target = $region21
    $region20: #{sa_layer.3} parent=1 // pred_region
      %s137 = ssub.s32 1024, 1024
      %138 = vsyncadd [#allocation4], %s137
      %s139 = sshll.u32 [#allocation5], 4
      %s140 = int_to_ptr.vmem [resolvable:$true] %s139
      %145 = dma.vmem_to_hbm [thread:$0]  %s140, 1024, %s3, [#allocation4], 128, 128, 8
    $region21: #{sa_layer.3} parent=1 // pred_fallthru
      _
    // Predicated region
    $region22: #{sa_layer.3} parent=1 // pred_check
      _
    $region23: #{sa_layer.3} parent=1 // pred_check_branch
      %147 = sbr.rel (0) target = $region25
    $region24: #{sa_layer.3} parent=1 // pred_region
      %148 = dma.done [#allocation4], 1024
    $region25: #{sa_layer.3} parent=1 // pred_fallthru
      _
    %149 = vsyncpa [#allocation3], 1
    %150 = vsyncpa [#allocation4], 1

// kernel: sa_layer.2
$region0: #{sa_layer.2}
  #allocation0 [shape = 'u32[]', space=smem, size = 0x4, offset = 0x4, fixed_abs, tag = 'smem constant byte address 0x4 - core index']
  #allocation1 [shape = 'u32[144,128]{1,0:T(1,128)}', space=vmem, size = 0x12000, scoped, tag = 'internal scratch']
  %s0 = inlined_call_operand.vmem [shape: f32[2,32,128], index: 0, kind: input, shape index: {}]
  %s1 = inlined_call_operand.vmem [shape: f32[96,32], index: 1, kind: input, shape index: {}]
  %s2 = inlined_call_operand.vmem [shape: f32[2,32,1], index: 2, kind: input, shape index: {}]
  %s3 = inlined_call_operand.vmem [shape: f32[2,32,128], index: 3, kind: output, shape index: {0}]
  %s4 = inlined_call_operand.vmem [shape: f32[2,32,2], index: 4, kind: output, shape index: {1}]
  %5 = xla_tuple %s3, %s4
  %s6 = sld [smem:[#allocation0]]
  $region30: #{sa_layer.2} parent=0
    _
  %s8 = ssub.s32 1, %s6
  %s9 = scalar_select 0, %s8, %s6
  // Predicated region
  $region2: #{sa_layer.2} parent=0 // pred_check
    _
  $region3: #{sa_layer.2} parent=0 // pred_check_branch
    %11 = sbr.rel (0) target = $region5
  $region4: #{sa_layer.2} parent=0 // pred_region
    _
  $region5: #{sa_layer.2} parent=0 // pred_fallthru
    _
  // Predicated region
  $region6: #{sa_layer.2} parent=0 // pred_check
    _
  $region7: #{sa_layer.2} parent=0 // pred_check_branch
    %13 = sbr.rel (0) target = $region9
  $region8: #{sa_layer.2} parent=0 // pred_region
    _
  $region9: #{sa_layer.2} parent=0 // pred_fallthru
    _
  // Predicated region
  $region10: #{sa_layer.2} parent=0 // pred_check
    _
  $region11: #{sa_layer.2} parent=0 // pred_check_branch
    %15 = sbr.rel (0) target = $region13
  $region12: #{sa_layer.2} parent=0 // pred_region
    _
  $region13: #{sa_layer.2} parent=0 // pred_fallthru
    _
  %v16 = vld [vmem:[%s1] sm:$0xff]
  %v17 = vld [vmem:[%s1 + $0x8] sm:$0xff]
  %v18 = vld [vmem:[%s1 + $0x10] sm:$0xff]
  %v19 = vld [vmem:[%s1 + $0x18] sm:$0xff]
  %v20 = vld [vmem:[%s1 + $0x20] sm:$0xff]
  %v21 = vld [vmem:[%s1 + $0x28] sm:$0xff]
  %v22 = vld [vmem:[%s1 + $0x30] sm:$0xff]
  %v23 = vld [vmem:[%s1 + $0x38] sm:$0xff]
  %v24 = vld [vmem:[%s1 + $0x40] sm:$0xff]
  %v25 = vld [vmem:[%s1 + $0x48] sm:$0xff]
  %v26 = vld [vmem:[%s1 + $0x50] sm:$0xff]
  %v27 = vld [vmem:[%s1 + $0x58] sm:$0xff]
  %v28 = vld [vmem:[%s2] sm:$0xff]
  %v29 = vld [vmem:[%s2 + $0x8] sm:$0xff]
  %v30 = vld [vmem:[%s2 + $0x10] sm:$0xff]
  %v31 = vld [vmem:[%s2 + $0x18] sm:$0xff]
  %s32 = scalar_lea.vmem %s2, 32
  %v33 = vld [vmem:[%s32] sm:$0xff]
  %v34 = vld [vmem:[%s32 + $0x8] sm:$0xff]
  %v35 = vld [vmem:[%s32 + $0x10] sm:$0xff]
  %v36 = vld [vmem:[%s32 + $0x18] sm:$0xff]
  %v37 = vld [vmem:[%s0] sm:$0xff]
  %v38 = vld [vmem:[%s0 + $0x8] sm:$0xff]
  %v39 = vld [vmem:[%s0 + $0x10] sm:$0xff]
  %v40 = vld [vmem:[%s0 + $0x18] sm:$0xff]
  %vm41 = vcmask 261120
  %v43 = vsel %vm41, %v16, 0
  %v46 = vsel %vm41, %v17, 0
  %v49 = vsel %vm41, %v18, 0
  %v52 = vsel %vm41, %v19, 0
  %v55 = vsel %vm41, %v20, 0
  %v58 = vsel %vm41, %v21, 0
  %v61 = vsel %vm41, %v22, 0
  %v64 = vsel %vm41, %v23, 0
  %66 = vmatprep.subr.mxu0 0.0
  %v67 = vand.u32 %v37, 4294901760
  %68 = vmatpush1.msra.mxu0 %v67
  %69 = vmatprep.subr.mxu0 0.0
  %v70 = vand.u32 %v38, 4294901760
  %71 = vmatpush1.msra.mxu0 %v70
  %72 = vmatprep.subr.mxu0 0.0
  %v73 = vand.u32 %v39, 4294901760
  %74 = vmatpush1.msra.mxu0 %v73
  %75 = vmatprep.subr.mxu0 0.0
  %v76 = vand.u32 %v40, 4294901760
  %77 = vmatpush1.msra.mxu0 %v76
  %78 = vmatprep.subr.mxu0 0.0
  %79 = vmatpush1.msra.mxu0 0.0
  %80 = vmatprep.subr.mxu0 0.0
  %81 = vmatpush1.msra.mxu0 0.0
  %82 = vmatprep.subr.mxu0 0.0
  %83 = vmatpush1.msra.mxu0 0.0
  %84 = vmatprep.subr.mxu0 0.0
  %85 = vmatpush1.msra.mxu0 0.0
  %86 = vmatprep.subr.mxu0 0.0
  %87 = vmatpush1.msra.mxu0 0.0
  %88 = vmatprep.subr.mxu0 0.0
  %89 = vmatpush1.msra.mxu0 0.0
  %90 = vmatprep.subr.mxu0 0.0
  %91 = vmatpush1.msra.mxu0 0.0
  %92 = vmatprep.subr.mxu0 0.0
  %93 = vmatpush1.msra.mxu0 0.0
  %94 = vmatprep.subr.mxu0 0.0
  %95 = vmatpush1.msra.mxu0 0.0
  %96 = vmatprep.subr.mxu0 0.0
  %97 = vmatpush1.msra.mxu0 0.0
  %98 = vmatprep.subr.mxu0 0.0
  %99 = vmatpush1.msra.mxu0 0.0
  %100 = vmatprep.subr.mxu0 0.0
  %101 = vmatpush1.msra.mxu0 0.0
  %102 = vmatprep.subr.mxu0 0.0
  %103 = vmatpush1.msra.mxu0 0.0
  %104 = vmatprep.subr.mxu0 0.0
  %105 = vmatpush1.msra.mxu0 0.0
  %106 = vmatprep.subr.mxu0 0.0
  %107 = vmatpush1.msra.mxu0 0.0
  %108 = vmatprep.subr.mxu0 0.0
  %109 = vmatpush1.msra.mxu0 0.0
  %110 = vmatprep.subr.mxu0 0.0
  %111 = vmatpush1.msra.mxu0 0.0
  %112 = vmatprep.subr.mxu0 0.0
  %113 = vmatpush1.msra.mxu0 0.0
  %114 = vmatprep.subr.mxu0 0.0
  %115 = vmatpush1.msra.mxu0 0.0
  %116 = vmatprep.subr.mxu0 0.0
  %117 = vmatpush1.msra.mxu0 0.0
  %118 = vmatprep.subr.mxu0 0.0
  %119 = vmatpush1.msra.mxu0 0.0
  %120 = vmatprep.subr.mxu0 0.0
  %121 = vmatpush1.msra.mxu0 0.0
  %122 = vmatprep.subr.mxu0 0.0
  %123 = vmatpush1.msra.mxu0 0.0
  %124 = vmatprep.subr.mxu0 0.0
  %125 = vmatpush1.msra.mxu0 0.0
  %126 = vmatprep.subr.mxu0 0.0
  %127 = vmatpush1.msra.mxu0 0.0
  %128 = vmatprep.subr.mxu0 0.0
  %129 = vmatpush1.msra.mxu0 0.0
  %130 = vmatprep.subr.mxu0 0.0
  %131 = vmatpush1.msra.mxu0 0.0
  %132 = vmatprep.subr.mxu0 0.0
  %133 = vmatpush1.msra.mxu0 0.0
  %134 = vmatprep.mubr.f32.mxu0 0.0
  %v135 = vand.u32 %v43, 4294901760
  %v136 = vsub.f32 %v43, %v135
  %v137 = vand.u32 %v136, 4294901760
  %v138 = vsub.f32 %v136, %v137
  %v139 = vand.u32 %v138, 4294901760
  %140 = vmatmul.mubr.f32.gmra.mrb[0].mxu0 %v139
  %v141 = vpop.f32.mrb[0].mxu0
  %v142 = vadd.f32 0.0, %v141
  %v143 = vpop.f32.mrb[0].mxu0
  %144 = vmatprep.mubr.f32.mxu0 0.0
  %v145 = vand.u32 %v46, 4294901760
  %v146 = vsub.f32 %v46, %v145
  %v147 = vand.u32 %v146, 4294901760
  %v148 = vsub.f32 %v146, %v147
  %v149 = vand.u32 %v148, 4294901760
  %150 = vmatmul.mubr.f32.gmra.mrb[0].mxu0 %v149
  %v151 = vpop.f32.mrb[0].mxu0
  %v152 = vadd.f32 0.0, %v151
  %v153 = vpop.f32.mrb[0].mxu0
  %154 = vmatprep.mubr.f32.mxu0 0.0
  %v155 = vand.u32 %v49, 4294901760
  %v156 = vsub.f32 %v49, %v155
  %v157 = vand.u32 %v156, 4294901760
  %v158 = vsub.f32 %v156, %v157
  %v159 = vand.u32 %v158, 4294901760
  %160 = vmatmul.mubr.f32.gmra.mrb[0].mxu0 %v159
  %v161 = vpop.f32.mrb[0].mxu0
  %v162 = vadd.f32 0.0, %v161
  %v163 = vpop.f32.mrb[0].mxu0
  %164 = vmatprep.mubr.f32.mxu0 0.0
  %v165 = vand.u32 %v52, 4294901760
  %v166 = vsub.f32 %v52, %v165
  %v167 = vand.u32 %v166, 4294901760
  %v168 = vsub.f32 %v166, %v167
  %v169 = vand.u32 %v168, 4294901760
  %170 = vmatmul.mubr.f32.gmra.mrb[0].mxu0 %v169
  %v171 = vpop.f32.mrb[0].mxu0
  %v172 = vadd.f32 0.0, %v171
  %v173 = vpop.f32.mrb[0].mxu0
  %174 = vmatprep.mubr.f32.mxu0 0.0
  %v175 = vand.u32 %v55, 4294901760
  %v176 = vsub.f32 %v55, %v175
  %v177 = vand.u32 %v176, 4294901760
  %v178 = vsub.f32 %v176, %v177
  %v179 = vand.u32 %v178, 4294901760
  %180 = vmatmul.mubr.f32.gmra.mrb[0].mxu0 %v179
  %v181 = vpop.f32.mrb[0].mxu0
  %v182 = vadd.f32 0.0, %v181
  %v183 = vpop.f32.mrb[0].mxu0
  %184 = vmatprep.mubr.f32.mxu0 0.0
  %v185 = vand.u32 %v58, 4294901760
  %v186 = vsub.f32 %v58, %v185
  %v187 = vand.u32 %v186, 4294901760
  %v188 = vsub.f32 %v186, %v187
  %v189 = vand.u32 %v188, 4294901760
  %190 = vmatmul.mubr.f32.gmra.mrb[0].mxu0 %v189
  %v191 = vpop.f32.mrb[0].mxu0
  %v192 = vadd.f32 0.0, %v191
  %v193 = vpop.f32.mrb[0].mxu0
  %194 = vmatprep.mubr.f32.mxu0 0.0
  %v195 = vand.u32 %v61, 4294901760
  %v196 = vsub.f32 %v61, %v195
  %v197 = vand.u32 %v196, 4294901760
  %v198 = vsub.f32 %v196, %v197
  %v199 = vand.u32 %v198, 4294901760
  %200 = vmatmul.mubr.f32.gmra.mrb[0].mxu0 %v199
  %v201 = vpop.f32.mrb[0].mxu0
  %v202 = vadd.f32 0.0, %v201
  %v203 = vpop.f32.mrb[0].mxu0
  %204 = vmatprep.mubr.f32.mxu0 0.0
  %v205 = vand.u32 %v64, 4294901760
  %v206 = vsub.f32 %v64, %v205
  %v207 = vand.u32 %v206, 4294901760
  %v208 = vsub.f32 %v206, %v207
  %v209 = vand.u32 %v208, 4294901760
  %210 = vmatmul.mubr.f32.gmra.mrb[0].mxu0 %v209
  %v211 = vpop.f32.mrb[0].mxu0
  %v212 = vadd.f32 0.0, %v211
  %v213 = vpop.f32.mrb[0].mxu0
  %214 = vdwg.mxu0
  %215 = vmatprep.subr.mxu0 0.0
  %v216 = vand.u32 %v37, 4294901760
  %v217 = vsub.f32 %v37, %v216
  %v218 = vand.u32 %v217, 4294901760
  %v219 = vsub.f32 %v217, %v218
  %v220 = vand.u32 %v219, 4294901760
  %221 = vmatpush1.msra.mxu0 %v220
  %222 = vmatprep.subr.mxu0 0.0
  %v223 = vand.u32 %v38, 4294901760
  %v224 = vsub.f32 %v38, %v223
  %v225 = vand.u32 %v224, 4294901760
  %v226 = vsub.f32 %v224, %v225
  %v227 = vand.u32 %v226, 4294901760
  %228 = vmatpush1.msra.mxu0 %v227
  %229 = vmatprep.subr.mxu0 0.0
  %v230 = vand.u32 %v39, 4294901760
  %v231 = vsub.f32 %v39, %v230
  %v232 = vand.u32 %v231, 4294901760
  %v233 = vsub.f32 %v231, %v232
  %v234 = vand.u32 %v233, 4294901760
  %235 = vmatpush1.msra.mxu0 %v234
  %236 = vmatprep.subr.mxu0 0.0
  %v237 = vand.u32 %v40, 4294901760
  %v238 = vsub.f32 %v40, %v237
  %v239 = vand.u32 %v238, 4294901760
  %v240 = vsub.f32 %v238, %v239
  %v241 = vand.u32 %v240, 4294901760
  %242 = vmatpush1.msra.mxu0 %v241
  %243 = vmatprep.subr.mxu0 0.0
  %244 = vmatpush1.msra.mxu0 0.0
  %245 = vmatprep.subr.mxu0 0.0
  %246 = vmatpush1.msra.mxu0 0.0
  %247 = vmatprep.subr.mxu0 0.0
  %248 = vmatpush1.msra.mxu0 0.0
  %249 = vmatprep.subr.mxu0 0.0
  %250 = vmatpush1.msra.mxu0 0.0
  %251 = vmatprep.subr.mxu0 0.0
  %252 = vmatpush1.msra.mxu0 0.0
  %253 = vmatprep.subr.mxu0 0.0
  %254 = vmatpush1.msra.mxu0 0.0
  %255 = vmatprep.subr.mxu0 0.0
  %256 = vmatpush1.msra.mxu0 0.0
  %257 = vmatprep.subr.mxu0 0.0
  %258 = vmatpush1.msra.mxu0 0.0
  %259 = vmatprep.subr.mxu0 0.0
  %260 = vmatpush1.msra.mxu0 0.0
  %261 = vmatprep.subr.mxu0 0.0
  %262 = vmatpush1.msra.mxu0 0.0
  %263 = vmatprep.subr.mxu0 0.0
  %264 = vmatpush1.msra.mxu0 0.0
  %265 = vmatprep.subr.mxu0 0.0
  %266 = vmatpush1.msra.mxu0 0.0
  %267 = vmatprep.subr.mxu0 0.0
  %268 = vmatpush1.msra.mxu0 0.0
  %269 = vmatprep.subr.mxu0 0.0
  %270 = vmatpush1.msra.mxu0 0.0
  %271 = vmatprep.subr.mxu0 0.0
  %272 = vmatpush1.msra.mxu0 0.0
  %273 = vmatprep.subr.mxu0 0.0
  %274 = vmatpush1.msra.mxu0 0.0
  %275 = vmatprep.subr.mxu0 0.0
  %276 = vmatpush1.msra.mxu0 0.0
  %277 = vmatprep.subr.mxu0 0.0
  %278 = vmatpush1.msra.mxu0 0.0
  %279 = vmatprep.subr.mxu0 0.0
  %280 = vmatpush1.msra.mxu0 0.0
  %281 = vmatprep.subr.mxu0 0.0
  %282 = vmatpush1.msra.mxu0 0.0
  %283 = vmatprep.subr.mxu0 0.0
  %284 = vmatpush1.msra.mxu0 0.0
  %285 = vmatprep.subr.mxu0 0.0
  %286 = vmatpush1.msra.mxu0 0.0
  %287 = vmatprep.subr.mxu0 0.0
  %288 = vmatpush1.msra.mxu0 0.0
  %289 = vmatprep.subr.mxu0 0.0
  %290 = vmatpush1.msra.mxu0 0.0
  %291 = vmatprep.subr.mxu0 0.0
  %292 = vmatpush1.msra.mxu0 0.0
  %293 = vmatprep.subr.mxu0 0.0
  %294 = vmatpush1.msra.mxu0 0.0
  %295 = vmatprep.subr.mxu0 0.0
  %296 = vmatpush1.msra.mxu0 0.0
  %297 = vmatprep.subr.mxu0 0.0
  %298 = vmatpush1.msra.mxu0 0.0
  %299 = vmatprep.mubr.f32.mxu0 0.0
  %v300 = vand.u32 %v43, 4294901760
  %301 = vmatmul.mubr.f32.gmra.mrb[0].mxu0 %v300
  %v302 = vpop.f32.mrb[0].mxu0
  %v303 = vadd.f32 %v142, %v302
  %v304 = vpop.f32.mrb[0].mxu0
  %305 = vmatprep.mubr.f32.mxu0 0.0
  %v306 = vand.u32 %v46, 4294901760
  %307 = vmatmul.mubr.f32.gmra.mrb[0].mxu0 %v306
  %v308 = vpop.f32.mrb[0].mxu0
  %v309 = vadd.f32 %v152, %v308
  %v310 = vpop.f32.mrb[0].mxu0
  %311 = vmatprep.mubr.f32.mxu0 0.0
  %v312 = vand.u32 %v49, 4294901760
  %313 = vmatmul.mubr.f32.gmra.mrb[0].mxu0 %v312
  %v314 = vpop.f32.mrb[0].mxu0
  %v315 = vadd.f32 %v162, %v314
  %v316 = vpop.f32.mrb[0].mxu0
  %317 = vmatprep.mubr.f32.mxu0 0.0
  %v318 = vand.u32 %v52, 4294901760
  %319 = vmatmul.mubr.f32.gmra.mrb[0].mxu0 %v318
  %v320 = vpop.f32.mrb[0].mxu0
  %v321 = vadd.f32 %v172, %v320
  %v322 = vpop.f32.mrb[0].mxu0
  %323 = vmatprep.mubr.f32.mxu0 0.0
  %v324 = vand.u32 %v55, 4294901760
  %325 = vmatmul.mubr.f32.gmra.mrb[0].mxu0 %v324
  %v326 = vpop.f32.mrb[0].mxu0
  %v327 = vadd.f32 %v182, %v326
  %v328 = vpop.f32.mrb[0].mxu0
  %329 = vmatprep.mubr.f32.mxu0 0.0
  %v330 = vand.u32 %v58, 4294901760
  %331 = vmatmul.mubr.f32.gmra.mrb[0].mxu0 %v330
  %v332 = vpop.f32.mrb[0].mxu0
  %v333 = vadd.f32 %v192, %v332
  %v334 = vpop.f32.mrb[0].mxu0
  %335 = vmatprep.mubr.f32.mxu0 0.0
  %v336 = vand.u32 %v61, 4294901760
  %337 = vmatmul.mubr.f32.gmra.mrb[0].mxu0 %v336
  %v338 = vpop.f32.mrb[0].mxu0
  %v339 = vadd.f32 %v202, %v338
  %v340 = vpop.f32.mrb[0].mxu0
  %341 = vmatprep.mubr.f32.mxu0 0.0
  %v342 = vand.u32 %v64, 4294901760
  %343 = vmatmul.mubr.f32.gmra.mrb[0].mxu0 %v342
  %v344 = vpop.f32.mrb[0].mxu0
  %v345 = vadd.f32 %v212, %v344
  %v346 = vpop.f32.mrb[0].mxu0
  %347 = vdwg.mxu0
  %348 = vmatprep.subr.mxu0 0.0
  %v349 = vand.u32 %v37, 4294901760
  %v350 = vsub.f32 %v37, %v349
  %351 = vmatpush1.msra.mxu0 %v350
  %352 = vmatprep.subr.mxu0 0.0
  %v353 = vand.u32 %v38, 4294901760
  %v354 = vsub.f32 %v38, %v353
  %355 = vmatpush1.msra.mxu0 %v354
  %356 = vmatprep.subr.mxu0 0.0
  %v357 = vand.u32 %v39, 4294901760
  %v358 = vsub.f32 %v39, %v357
  %359 = vmatpush1.msra.mxu0 %v358
  %360 = vmatprep.subr.mxu0 0.0
  %v361 = vand.u32 %v40, 4294901760
  %v362 = vsub.f32 %v40, %v361
  %363 = vmatpush1.msra.mxu0 %v362
  %364 = vmatprep.subr.mxu0 0.0
  %365 = vmatpush1.msra.mxu0 0.0
  %366 = vmatprep.subr.mxu0 0.0
  %367 = vmatpush1.msra.mxu0 0.0
  %368 = vmatprep.subr.mxu0 0.0
  %369 = vmatpush1.msra.mxu0 0.0
  %370 = vmatprep.subr.mxu0 0.0
  %371 = vmatpush1.msra.mxu0 0.0
  %372 = vmatprep.subr.mxu0 0.0
  %373 = vmatpush1.msra.mxu0 0.0
  %374 = vmatprep.subr.mxu0 0.0
  %375 = vmatpush1.msra.mxu0 0.0
  %376 = vmatprep.subr.mxu0 0.0
  %377 = vmatpush1.msra.mxu0 0.0
  %378 = vmatprep.subr.mxu0 0.0
  %379 = vmatpush1.msra.mxu0 0.0
  %380 = vmatprep.subr.mxu0 0.0
  %381 = vmatpush1.msra.mxu0 0.0
  %382 = vmatprep.subr.mxu0 0.0
  %383 = vmatpush1.msra.mxu0 0.0
  %384 = vmatprep.subr.mxu0 0.0
  %385 = vmatpush1.msra.mxu0 0.0
  %386 = vmatprep.subr.mxu0 0.0
  %387 = vmatpush1.msra.mxu0 0.0
  %388 = vmatprep.subr.mxu0 0.0
  %389 = vmatpush1.msra.mxu0 0.0
  %390 = vmatprep.subr.mxu0 0.0
  %391 = vmatpush1.msra.mxu0 0.0
  %392 = vmatprep.subr.mxu0 0.0
  %393 = vmatpush1.msra.mxu0 0.0
  %394 = vmatprep.subr.mxu0 0.0
  %395 = vmatpush1.msra.mxu0 0.0
  %396 = vmatprep.subr.mxu0 0.0
  %397 = vmatpush1.msra.mxu0 0.0
  %398 = vmatprep.subr.mxu0 0.0
  %399 = vmatpush1.msra.mxu0 0.0
  %400 = vmatprep.subr.mxu0 0.0
  %401 = vmatpush1.msra.mxu0 0.0
  %402 = vmatprep.subr.mxu0 0.0
  %403 = vmatpush1.msra.mxu0 0.0
  %404 = vmatprep.subr.mxu0 0.0
  %405 = vmatpush1.msra.mxu0 0.0
  %406 = vmatprep.subr.mxu0 0.0
  %407 = vmatpush1.msra.mxu0 0.0
  %408 = vmatprep.subr.mxu0 0.0
  %409 = vmatpush1.msra.mxu0 0.0
  %410 = vmatprep.subr.mxu0 0.0
  %411 = vmatpush1.msra.mxu0 0.0
  %412 = vmatprep.subr.mxu0 0.0
  %413 = vmatpush1.msra.mxu0 0.0
  %414 = vmatprep.subr.mxu0 0.0
  %415 = vmatpush1.msra.mxu0 0.0
  %416 = vmatprep.subr.mxu0 0.0
  %417 = vmatpush1.msra.mxu0 0.0
  %418 = vmatprep.subr.mxu0 0.0
  %419 = vmatpush1.msra.mxu0 0.0
  %420 = vmatprep.mubr.f32.mxu0 0.0
  %v421 = vand.u32 %v43, 4294901760
  %v422 = vsub.f32 %v43, %v421
  %423 = vmatmul.mubr.f32.gmra.mrb[0].mxu0 %v422
  %v424 = vpop.f32.mrb[0].mxu0
  %v425 = vadd.f32 %v303, %v424
  %v426 = vpop.f32.mrb[0].mxu0
  %427 = vmatprep.mubr.f32.mxu0 0.0
  %v428 = vand.u32 %v46, 4294901760
  %v429 = vsub.f32 %v46, %v428
  %430 = vmatmul.mubr.f32.gmra.mrb[0].mxu0 %v429
  %v431 = vpop.f32.mrb[0].mxu0
  %v432 = vadd.f32 %v309, %v431
  %v433 = vpop.f32.mrb[0].mxu0
  %434 = vmatprep.mubr.f32.mxu0 0.0
  %v435 = vand.u32 %v49, 4294901760
  %v436 = vsub.f32 %v49, %v435
  %437 = vmatmul.mubr.f32.gmra.mrb[0].mxu0 %v436
  %v438 = vpop.f32.mrb[0].mxu0
  %v439 = vadd.f32 %v315, %v438
  %v440 = vpop.f32.mrb[0].mxu0
  %441 = vmatprep.mubr.f32.mxu0 0.0
  %v442 = vand.u32 %v52, 4294901760
  %v443 = vsub.f32 %v52, %v442
  %444 = vmatmul.mubr.f32.gmra.mrb[0].mxu0 %v443
  %v445 = vpop.f32.mrb[0].mxu0
  %v446 = vadd.f32 %v321, %v445
  %v447 = vpop.f32.mrb[0].mxu0
  %448 = vmatprep.mubr.f32.mxu0 0.0
  %v449 = vand.u32 %v55, 4294901760
  %v450 = vsub.f32 %v55, %v449
  %451 = vmatmul.mubr.f32.gmra.mrb[0].mxu0 %v450
  %v452 = vpop.f32.mrb[0].mxu0
  %v453 = vadd.f32 %v327, %v452
  %v454 = vpop.f32.mrb[0].mxu0
  %455 = vmatprep.mubr.f32.mxu0 0.0
  %v456 = vand.u32 %v58, 4294901760
  %v457 = vsub.f32 %v58, %v456
  %458 = vmatmul.mubr.f32.gmra.mrb[0].mxu0 %v457
  %v459 = vpop.f32.mrb[0].mxu0
  %v460 = vadd.f32 %v333, %v459
  %v461 = vpop.f32.mrb[0].mxu0
  %462 = vmatprep.mubr.f32.mxu0 0.0
  %v463 = vand.u32 %v61, 4294901760
  %v464 = vsub.f32 %v61, %v463
  %465 = vmatmul.mubr.f32.gmra.mrb[0].mxu0 %v464
  %v466 = vpop.f32.mrb[0].mxu0
  %v467 = vadd.f32 %v339, %v466
  %v468 = vpop.f32.mrb[0].mxu0
  %469 = vmatprep.mubr.f32.mxu0 0.0
  %v470 = vand.u32 %v64, 4294901760
  %v471 = vsub.f32 %v64, %v470
  %472 = vmatmul.mubr.f32.gmra.mrb[0].mxu0 %v471
  %v473 = vpop.f32.mrb[0].mxu0
  %v474 = vadd.f32 %v345, %v473
  %v475 = vpop.f32.mrb[0].mxu0
  %476 = vdwg.mxu0
  %477 = vmatprep.subr.mxu0 0.0
  %v478 = vand.u32 %v37, 4294901760
  %479 = vmatpush1.msra.mxu0 %v478
  %480 = vmatprep.subr.mxu0 0.0
  %v481 = vand.u32 %v38, 4294901760
  %482 = vmatpush1.msra.mxu0 %v481
  %483 = vmatprep.subr.mxu0 0.0
  %v484 = vand.u32 %v39, 4294901760
  %485 = vmatpush1.msra.mxu0 %v484
  %486 = vmatprep.subr.mxu0 0.0
  %v487 = vand.u32 %v40, 4294901760
  %488 = vmatpush1.msra.mxu0 %v487
  %489 = vmatprep.subr.mxu0 0.0
  %490 = vmatpush1.msra.mxu0 0.0
  %491 = vmatprep.subr.mxu0 0.0
  %492 = vmatpush1.msra.mxu0 0.0
  %493 = vmatprep.subr.mxu0 0.0
  %494 = vmatpush1.msra.mxu0 0.0
  %495 = vmatprep.subr.mxu0 0.0
  %496 = vmatpush1.msra.mxu0 0.0
  %497 = vmatprep.subr.mxu0 0.0
  %498 = vmatpush1.msra.mxu0 0.0
  %499 = vmatprep.subr.mxu0 0.0
  %500 = vmatpush1.msra.mxu0 0.0
  %501 = vmatprep.subr.mxu0 0.0
  %502 = vmatpush1.msra.mxu0 0.0
  %503 = vmatprep.subr.mxu0 0.0
  %504 = vmatpush1.msra.mxu0 0.0
  %505 = vmatprep.subr.mxu0 0.0
  %506 = vmatpush1.msra.mxu0 0.0
  %507 = vmatprep.subr.mxu0 0.0
  %508 = vmatpush1.msra.mxu0 0.0
  %509 = vmatprep.subr.mxu0 0.0
  %510 = vmatpush1.msra.mxu0 0.0
  %511 = vmatprep.subr.mxu0 0.0
  %512 = vmatpush1.msra.mxu0 0.0
  %513 = vmatprep.subr.mxu0 0.0
  %514 = vmatpush1.msra.mxu0 0.0
  %515 = vmatprep.subr.mxu0 0.0
  %516 = vmatpush1.msra.mxu0 0.0
  %517 = vmatprep.subr.mxu0 0.0
  %518 = vmatpush1.msra.mxu0 0.0
  %519 = vmatprep.subr.mxu0 0.0
  %520 = vmatpush1.msra.mxu0 0.0
  %521 = vmatprep.subr.mxu0 0.0
  %522 = vmatpush1.msra.mxu0 0.0
  %523 = vmatprep.subr.mxu0 0.0
  %524 = vmatpush1.msra.mxu0 0.0
  %525 = vmatprep.subr.mxu0 0.0
  %526 = vmatpush1.msra.mxu0 0.0
  %527 = vmatprep.subr.mxu0 0.0
  %528 = vmatpush1.msra.mxu0 0.0
  %529 = vmatprep.subr.mxu0 0.0
  %530 = vmatpush1.msra.mxu0 0.0
  %531 = vmatprep.subr.mxu0 0.0
  %532 = vmatpush1.msra.mxu0 0.0
  %533 = vmatprep.subr.mxu0 0.0
  %534 = vmatpush1.msra.mxu0 0.0
  %535 = vmatprep.subr.mxu0 0.0
  %536 = vmatpush1.msra.mxu0 0.0
  %537 = vmatprep.subr.mxu0 0.0
  %538 = vmatpush1.msra.mxu0 0.0
  %539 = vmatprep.subr.mxu0 0.0
  %540 = vmatpush1.msra.mxu0 0.0
  %541 = vmatprep.subr.mxu0 0.0
  %542 = vmatpush1.msra.mxu0 0.0
  %543 = vmatprep.subr.mxu0 0.0
  %544 = vmatpush1.msra.mxu0 0.0
  %545 = vmatprep.mubr.f32.mxu0 0.0
  %v546 = vand.u32 %v43, 4294901760
  %v547 = vsub.f32 %v43, %v546
  %v548 = vand.u32 %v547, 4294901760
  %549 = vmatmul.mubr.f32.gmra.mrb[0].mxu0 %v548
  %v550 = vpop.f32.mrb[0].mxu0
  %v551 = vadd.f32 %v425, %v550
  %v552 = vpop.f32.mrb[0].mxu0
  %553 = vmatprep.mubr.f32.mxu0 0.0
  %v554 = vand.u32 %v46, 4294901760
  %v555 = vsub.f32 %v46, %v554
  %v556 = vand.u32 %v555, 4294901760
  %557 = vmatmul.mubr.f32.gmra.mrb[0].mxu0 %v556
  %v558 = vpop.f32.mrb[0].mxu0
  %v559 = vadd.f32 %v432, %v558
  %v560 = vpop.f32.mrb[0].mxu0
  %561 = vmatprep.mubr.f32.mxu0 0.0
  %v562 = vand.u32 %v49, 4294901760
  %v563 = vsub.f32 %v49, %v562
  %v564 = vand.u32 %v563, 4294901760
  %565 = vmatmul.mubr.f32.gmra.mrb[0].mxu0 %v564
  %v566 = vpop.f32.mrb[0].mxu0
  %v567 = vadd.f32 %v439, %v566
  %v568 = vpop.f32.mrb[0].mxu0
  %569 = vmatprep.mubr.f32.mxu0 0.0
  %v570 = vand.u32 %v52, 4294901760
  %v571 = vsub.f32 %v52, %v570
  %v572 = vand.u32 %v571, 4294901760
  %573 = vmatmul.mubr.f32.gmra.mrb[0].mxu0 %v572
  %v574 = vpop.f32.mrb[0].mxu0
  %v575 = vadd.f32 %v446, %v574
  %v576 = vpop.f32.mrb[0].mxu0
  %577 = vmatprep.mubr.f32.mxu0 0.0
  %v578 = vand.u32 %v55, 4294901760
  %v579 = vsub.f32 %v55, %v578
  %v580 = vand.u32 %v579, 4294901760
  %581 = vmatmul.mubr.f32.gmra.mrb[0].mxu0 %v580
  %v582 = vpop.f32.mrb[0].mxu0
  %v583 = vadd.f32 %v453, %v582
  %v584 = vpop.f32.mrb[0].mxu0
  %585 = vmatprep.mubr.f32.mxu0 0.0
  %v586 = vand.u32 %v58, 4294901760
  %v587 = vsub.f32 %v58, %v586
  %v588 = vand.u32 %v587, 4294901760
  %589 = vmatmul.mubr.f32.gmra.mrb[0].mxu0 %v588
  %v590 = vpop.f32.mrb[0].mxu0
  %v591 = vadd.f32 %v460, %v590
  %v592 = vpop.f32.mrb[0].mxu0
  %593 = vmatprep.mubr.f32.mxu0 0.0
  %v594 = vand.u32 %v61, 4294901760
  %v595 = vsub.f32 %v61, %v594
  %v596 = vand.u32 %v595, 4294901760
  %597 = vmatmul.mubr.f32.gmra.mrb[0].mxu0 %v596
  %v598 = vpop.f32.mrb[0].mxu0
  %v599 = vadd.f32 %v467, %v598
  %v600 = vpop.f32.mrb[0].mxu0
  %601 = vmatprep.mubr.f32.mxu0 0.0
  %v602 = vand.u32 %v64, 4294901760
  %v603 = vsub.f32 %v64, %v602
  %v604 = vand.u32 %v603, 4294901760
  %605 = vmatmul.mubr.f32.gmra.mrb[0].mxu0 %v604
  %v606 = vpop.f32.mrb[0].mxu0
  %v607 = vadd.f32 %v474, %v606
  %v608 = vpop.f32.mrb[0].mxu0
  %609 = vdwg.mxu0
  %610 = vmatprep.subr.mxu0 0.0
  %v611 = vand.u32 %v37, 4294901760
  %v612 = vsub.f32 %v37, %v611
  %v613 = vand.u32 %v612, 4294901760
  %614 = vmatpush1.msra.mxu0 %v613
  %615 = vmatprep.subr.mxu0 0.0
  %v616 = vand.u32 %v38, 4294901760
  %v617 = vsub.f32 %v38, %v616
  %v618 = vand.u32 %v617, 4294901760
  %619 = vmatpush1.msra.mxu0 %v618
  %620 = vmatprep.subr.mxu0 0.0
  %v621 = vand.u32 %v39, 4294901760
  %v622 = vsub.f32 %v39, %v621
  %v623 = vand.u32 %v622, 4294901760
  %624 = vmatpush1.msra.mxu0 %v623
  %625 = vmatprep.subr.mxu0 0.0
  %v626 = vand.u32 %v40, 4294901760
  %v627 = vsub.f32 %v40, %v626
  %v628 = vand.u32 %v627, 4294901760
  %629 = vmatpush1.msra.mxu0 %v628
  %630 = vmatprep.subr.mxu0 0.0
  %631 = vmatpush1.msra.mxu0 0.0
  %632 = vmatprep.subr.mxu0 0.0
  %633 = vmatpush1.msra.mxu0 0.0
  %634 = vmatprep.subr.mxu0 0.0
  %635 = vmatpush1.msra.mxu0 0.0
  %636 = vmatprep.subr.mxu0 0.0
  %637 = vmatpush1.msra.mxu0 0.0
  %638 = vmatprep.subr.mxu0 0.0
  %639 = vmatpush1.msra.mxu0 0.0
  %640 = vmatprep.subr.mxu0 0.0
  %641 = vmatpush1.msra.mxu0 0.0
  %642 = vmatprep.subr.mxu0 0.0
  %643 = vmatpush1.msra.mxu0 0.0
  %644 = vmatprep.subr.mxu0 0.0
  %645 = vmatpush1.msra.mxu0 0.0
  %646 = vmatprep.subr.mxu0 0.0
  %647 = vmatpush1.msra.mxu0 0.0
  %648 = vmatprep.subr.mxu0 0.0
  %649 = vmatpush1.msra.mxu0 0.0
  %650 = vmatprep.subr.mxu0 0.0
  %651 = vmatpush1.msra.mxu0 0.0
  %652 = vmatprep.subr.mxu0 0.0
  %653 = vmatpush1.msra.mxu0 0.0
  %654 = vmatprep.subr.mxu0 0.0
  %655 = vmatpush1.msra.mxu0 0.0
  %656 = vmatprep.subr.mxu0 0.0
  %657 = vmatpush1.msra.mxu0 0.0
  %658 = vmatprep.subr.mxu0 0.0
  %659 = vmatpush1.msra.mxu0 0.0
  %660 = vmatprep.subr.mxu0 0.0
  %661 = vmatpush1.msra.mxu0 0.0
  %662 = vmatprep.subr.mxu0 0.0
  %663 = vmatpush1.msra.mxu0 0.0
  %664 = vmatprep.subr.mxu0 0.0
  %665 = vmatpush1.msra.mxu0 0.0
  %666 = vmatprep.subr.mxu0 0.0
  %667 = vmatpush1.msra.mxu0 0.0
  %668 = vmatprep.subr.mxu0 0.0
  %669 = vmatpush1.msra.mxu0 0.0
  %670 = vmatprep.subr.mxu0 0.0
  %671 = vmatpush1.msra.mxu0 0.0
  %672 = vmatprep.subr.mxu0 0.0
  %673 = vmatpush1.msra.mxu0 0.0
  %674 = vmatprep.subr.mxu0 0.0
  %675 = vmatpush1.msra.mxu0 0.0
  %676 = vmatprep.subr.mxu0 0.0
  %677 = vmatpush1.msra.mxu0 0.0
  %678 = vmatprep.subr.mxu0 0.0
  %679 = vmatpush1.msra.mxu0 0.0
  %680 = vmatprep.subr.mxu0 0.0
  %681 = vmatpush1.msra.mxu0 0.0
  %682 = vmatprep.subr.mxu0 0.0
  %683 = vmatpush1.msra.mxu0 0.0
  %684 = vmatprep.subr.mxu0 0.0
  %685 = vmatpush1.msra.mxu0 0.0
  %686 = vmatprep.mubr.f32.mxu0 0.0
  %v687 = vand.u32 %v43, 4294901760
  %688 = vmatmul.mubr.f32.gmra.mrb[0].mxu0 %v687
  %v689 = vpop.f32.mrb[0].mxu0
  %v690 = vadd.f32 %v551, %v689
  %v691 = vpop.f32.mrb[0].mxu0
  %692 = vmatprep.mubr.f32.mxu0 0.0
  %v693 = vand.u32 %v46, 4294901760
  %694 = vmatmul.mubr.f32.gmra.mrb[0].mxu0 %v693
  %v695 = vpop.f32.mrb[0].mxu0
  %v696 = vadd.f32 %v559, %v695
  %v697 = vpop.f32.mrb[0].mxu0
  %698 = vmatprep.mubr.f32.mxu0 0.0
  %v699 = vand.u32 %v49, 4294901760
  %700 = vmatmul.mubr.f32.gmra.mrb[0].mxu0 %v699
  %v701 = vpop.f32.mrb[0].mxu0
  %v702 = vadd.f32 %v567, %v701
  %v703 = vpop.f32.mrb[0].mxu0
  %704 = vmatprep.mubr.f32.mxu0 0.0
  %v705 = vand.u32 %v52, 4294901760
  %706 = vmatmul.mubr.f32.gmra.mrb[0].mxu0 %v705
  %v707 = vpop.f32.mrb[0].mxu0
  %v708 = vadd.f32 %v575, %v707
  %v709 = vpop.f32.mrb[0].mxu0
  %710 = vmatprep.mubr.f32.mxu0 0.0
  %v711 = vand.u32 %v55, 4294901760
  %712 = vmatmul.mubr.f32.gmra.mrb[0].mxu0 %v711
  %v713 = vpop.f32.mrb[0].mxu0
  %v714 = vadd.f32 %v583, %v713
  %v715 = vpop.f32.mrb[0].mxu0
  %716 = vmatprep.mubr.f32.mxu0 0.0
  %v717 = vand.u32 %v58, 4294901760
  %718 = vmatmul.mubr.f32.gmra.mrb[0].mxu0 %v717
  %v719 = vpop.f32.mrb[0].mxu0
  %v720 = vadd.f32 %v591, %v719
  %v721 = vpop.f32.mrb[0].mxu0
  %722 = vmatprep.mubr.f32.mxu0 0.0
  %v723 = vand.u32 %v61, 4294901760
  %724 = vmatmul.mubr.f32.gmra.mrb[0].mxu0 %v723
  %v725 = vpop.f32.mrb[0].mxu0
  %v726 = vadd.f32 %v599, %v725
  %v727 = vpop.f32.mrb[0].mxu0
  %728 = vmatprep.mubr.f32.mxu0 0.0
  %v729 = vand.u32 %v64, 4294901760
  %730 = vmatmul.mubr.f32.gmra.mrb[0].mxu0 %v729
  %v731 = vpop.f32.mrb[0].mxu0
  %v732 = vadd.f32 %v607, %v731
  %v733 = vpop.f32.mrb[0].mxu0
  %734 = vdwg.mxu0
  %735 = vmatprep.subr.mxu0 0.0
  %v736 = vand.u32 %v37, 4294901760
  %737 = vmatpush1.msra.mxu0 %v736
  %738 = vmatprep.subr.mxu0 0.0
  %v739 = vand.u32 %v38, 4294901760
  %740 = vmatpush1.msra.mxu0 %v739
  %741 = vmatprep.subr.mxu0 0.0
  %v742 = vand.u32 %v39, 4294901760
  %743 = vmatpush1.msra.mxu0 %v742
  %744 = vmatprep.subr.mxu0 0.0
  %v745 = vand.u32 %v40, 4294901760
  %746 = vmatpush1.msra.mxu0 %v745
  %747 = vmatprep.subr.mxu0 0.0
  %748 = vmatpush1.msra.mxu0 0.0
  %749 = vmatprep.subr.mxu0 0.0
  %750 = vmatpush1.msra.mxu0 0.0
  %751 = vmatprep.subr.mxu0 0.0
  %752 = vmatpush1.msra.mxu0 0.0
  %753 = vmatprep.subr.mxu0 0.0
  %754 = vmatpush1.msra.mxu0 0.0
  %755 = vmatprep.subr.mxu0 0.0
  %756 = vmatpush1.msra.mxu0 0.0
  %757 = vmatprep.subr.mxu0 0.0
  %758 = vmatpush1.msra.mxu0 0.0
  %759 = vmatprep.subr.mxu0 0.0
  %760 = vmatpush1.msra.mxu0 0.0
  %761 = vmatprep.subr.mxu0 0.0
  %762 = vmatpush1.msra.mxu0 0.0
  %763 = vmatprep.subr.mxu0 0.0
  %764 = vmatpush1.msra.mxu0 0.0
  %765 = vmatprep.subr.mxu0 0.0
  %766 = vmatpush1.msra.mxu0 0.0
  %767 = vmatprep.subr.mxu0 0.0
  %768 = vmatpush1.msra.mxu0 0.0
  %769 = vmatprep.subr.mxu0 0.0
  %770 = vmatpush1.msra.mxu0 0.0
  %771 = vmatprep.subr.mxu0 0.0
  %772 = vmatpush1.msra.mxu0 0.0
  %773 = vmatprep.subr.mxu0 0.0
  %774 = vmatpush1.msra.mxu0 0.0
  %775 = vmatprep.subr.mxu0 0.0
  %776 = vmatpush1.msra.mxu0 0.0
  %777 = vmatprep.subr.mxu0 0.0
  %778 = vmatpush1.msra.mxu0 0.0
  %779 = vmatprep.subr.mxu0 0.0
  %780 = vmatpush1.msra.mxu0 0.0
  %781 = vmatprep.subr.mxu0 0.0
  %782 = vmatpush1.msra.mxu0 0.0
  %783 = vmatprep.subr.mxu0 0.0
  %784 = vmatpush1.msra.mxu0 0.0
  %785 = vmatprep.subr.mxu0 0.0
  %786 = vmatpush1.msra.mxu0 0.0
  %787 = vmatprep.subr.mxu0 0.0
  %788 = vmatpush1.msra.mxu0 0.0
  %789 = vmatprep.subr.mxu0 0.0
  %790 = vmatpush1.msra.mxu0 0.0
  %791 = vmatprep.subr.mxu0 0.0
  %792 = vmatpush1.msra.mxu0 0.0
  %793 = vmatprep.subr.mxu0 0.0
  %794 = vmatpush1.msra.mxu0 0.0
  %795 = vmatprep.subr.mxu0 0.0
  %796 = vmatpush1.msra.mxu0 0.0
  %797 = vmatprep.subr.mxu0 0.0
  %798 = vmatpush1.msra.mxu0 0.0
  %799 = vmatprep.subr.mxu0 0.0
  %800 = vmatpush1.msra.mxu0 0.0
  %801 = vmatprep.subr.mxu0 0.0
  %802 = vmatpush1.msra.mxu0 0.0
  %803 = vmatprep.mubr.f32.mxu0 0.0
  %v804 = vand.u32 %v43, 4294901760
  %805 = vmatmul.mubr.f32.gmra.mrb[0].mxu0 %v804
  %v806 = vpop.f32.mrb[0].mxu0
  %v807 = vadd.f32 %v690, %v806
  %v808 = vpop.f32.mrb[0].mxu0
  %809 = vmatprep.mubr.f32.mxu0 0.0
  %v810 = vand.u32 %v46, 4294901760
  %811 = vmatmul.mubr.f32.gmra.mrb[0].mxu0 %v810
  %v812 = vpop.f32.mrb[0].mxu0
  %v813 = vadd.f32 %v696, %v812
  %v814 = vpop.f32.mrb[0].mxu0
  %815 = vmatprep.mubr.f32.mxu0 0.0
  %v816 = vand.u32 %v49, 4294901760
  %817 = vmatmul.mubr.f32.gmra.mrb[0].mxu0 %v816
  %v818 = vpop.f32.mrb[0].mxu0
  %v819 = vadd.f32 %v702, %v818
  %v820 = vpop.f32.mrb[0].mxu0
  %821 = vmatprep.mubr.f32.mxu0 0.0
  %v822 = vand.u32 %v52, 4294901760
  %823 = vmatmul.mubr.f32.gmra.mrb[0].mxu0 %v822
  %v824 = vpop.f32.mrb[0].mxu0
  %v825 = vadd.f32 %v708, %v824
  %v826 = vpop.f32.mrb[0].mxu0
  %827 = vmatprep.mubr.f32.mxu0 0.0
  %v828 = vand.u32 %v55, 4294901760
  %829 = vmatmul.mubr.f32.gmra.mrb[0].mxu0 %v828
  %v830 = vpop.f32.mrb[0].mxu0
  %v831 = vadd.f32 %v714, %v830
  %v832 = vpop.f32.mrb[0].mxu0
  %833 = vmatprep.mubr.f32.mxu0 0.0
  %v834 = vand.u32 %v58, 4294901760
  %835 = vmatmul.mubr.f32.gmra.mrb[0].mxu0 %v834
  %v836 = vpop.f32.mrb[0].mxu0
  %v837 = vadd.f32 %v720, %v836
  %v838 = vpop.f32.mrb[0].mxu0
  %839 = vmatprep.mubr.f32.mxu0 0.0
  %v840 = vand.u32 %v61, 4294901760
  %841 = vmatmul.mubr.f32.gmra.mrb[0].mxu0 %v840
  %v842 = vpop.f32.mrb[0].mxu0
  %v843 = vadd.f32 %v726, %v842
  %v844 = vpop.f32.mrb[0].mxu0
  %845 = vmatprep.mubr.f32.mxu0 0.0
  %v846 = vand.u32 %v64, 4294901760
  %847 = vmatmul.mubr.f32.gmra.mrb[0].mxu0 %v846
  %v848 = vpop.f32.mrb[0].mxu0
  %v849 = vadd.f32 %v732, %v848
  %v850 = vpop.f32.mrb[0].mxu0
  %851 = vdwg.mxu0
  %853 = vset.pattern.permute.xlu0 0
  %854 = vperm.xlu0 %853, %v28
  %v855 = vpop.permute.xlu0 %854
  %858 = vset.pattern.permute.xlu0 0
  %859 = vperm.xlu0 %858, %v29
  %v860 = vpop.permute.xlu0 %859
  %863 = vset.pattern.permute.xlu0 0
  %864 = vperm.xlu0 %863, %v30
  %v865 = vpop.permute.xlu0 %864
  %868 = vset.pattern.permute.xlu0 0
  %869 = vperm.xlu0 %868, %v31
  %v870 = vpop.permute.xlu0 %869
  %v872 = vadd.f32 %v831, %v855
  %v873 = vadd.f32 %v837, %v860
  %v874 = vadd.f32 %v843, %v865
  %v875 = vadd.f32 %v849, %v870
  %876 = vxpose.xlu0.b32.start [1/16] %v807, 128
  %877 = vxpose.xlu0.b32.cont [2/16] %v813, 128
  %878 = vxpose.xlu0.b32.cont [3/16] %v819, 128
  %879 = vxpose.xlu0.b32.cont [4/16] %v825, 128
  %880 = vxpose.xlu0.b32.cont [5/16] 0.0, 128
  %881 = vxpose.xlu0.b32.cont [6/16] 0.0, 128
  %882 = vxpose.xlu0.b32.cont [7/16] 0.0, 128
  %883 = vxpose.xlu0.b32.cont [8/16] 0.0, 128
  %884 = vxpose.xlu0.b32.cont [9/16] 0.0, 128
  %885 = vxpose.xlu0.b32.cont [10/16] 0.0, 128
  %886 = vxpose.xlu0.b32.cont [11/16] 0.0, 128
  %887 = vxpose.xlu0.b32.cont [12/16] 0.0, 128
  %888 = vxpose.xlu0.b32.cont [13/16] 0.0, 128
  %889 = vxpose.xlu0.b32.cont [14/16] 0.0, 128
  %890 = vxpose.xlu0.b32.cont [15/16] 0.0, 128
  %891 = vxpose.xlu0.b32.end [16/16] 0.0, 128
  %v892 = vpop.trf.xlu0
  %v893 = vpop.trf.xlu0
  %v894 = vpop.trf.xlu0
  %v895 = vpop.trf.xlu0
  %v896 = vpop.trf.xlu0
  %v897 = vpop.trf.xlu0
  %v898 = vpop.trf.xlu0
  %v899 = vpop.trf.xlu0
  %v900 = vpop.trf.xlu0
  %v901 = vpop.trf.xlu0
  %v902 = vpop.trf.xlu0
  %v903 = vpop.trf.xlu0
  %v904 = vpop.trf.xlu0
  %v905 = vpop.trf.xlu0
  %v906 = vpop.trf.xlu0
  %v907 = vpop.trf.xlu0
  %v909 = vsel %vm41, %v892, 0
  %v912 = vsel %vm41, %v893, 0
  %v915 = vsel %vm41, %v894, 0
  %v918 = vsel %vm41, %v895, 0
  %v921 = vsel %vm41, %v896, 0
  %v924 = vsel %vm41, %v897, 0
  %v927 = vsel %vm41, %v898, 0
  %v930 = vsel %vm41, %v899, 0
  %v933 = vsel %vm41, %v900, 0
  %v936 = vsel %vm41, %v901, 0
  %v939 = vsel %vm41, %v902, 0
  %v942 = vsel %vm41, %v903, 0
  %v945 = vsel %vm41, %v904, 0
  %v948 = vsel %vm41, %v905, 0
  %v951 = vsel %vm41, %v906, 0
  %v954 = vsel %vm41, %v907, 0
  %956 = vmatprep.subr.mxu0 0.0
  %v957 = vand.u32 %v37, 4294901760
  %958 = vmatpush1.msra.mxu0 %v957
  %959 = vmatprep.subr.mxu0 0.0
  %v960 = vand.u32 %v38, 4294901760
  %961 = vmatpush1.msra.mxu0 %v960
  %962 = vmatprep.subr.mxu0 0.0
  %v963 = vand.u32 %v39, 4294901760
  %964 = vmatpush1.msra.mxu0 %v963
  %965 = vmatprep.subr.mxu0 0.0
  %v966 = vand.u32 %v40, 4294901760
  %967 = vmatpush1.msra.mxu0 %v966
  %968 = vmatprep.subr.mxu0 0.0
  %969 = vmatpush1.msra.mxu0 0.0
  %970 = vmatprep.subr.mxu0 0.0
  %971 = vmatpush1.msra.mxu0 0.0
  %972 = vmatprep.subr.mxu0 0.0
  %973 = vmatpush1.msra.mxu0 0.0
  %974 = vmatprep.subr.mxu0 0.0
  %975 = vmatpush1.msra.mxu0 0.0
  %976 = vmatprep.subr.mxu0 0.0
  %977 = vmatpush1.msra.mxu0 0.0
  %978 = vmatprep.subr.mxu0 0.0
  %979 = vmatpush1.msra.mxu0 0.0
  %980 = vmatprep.subr.mxu0 0.0
  %981 = vmatpush1.msra.mxu0 0.0
  %982 = vmatprep.subr.mxu0 0.0
  %983 = vmatpush1.msra.mxu0 0.0
  %984 = vmatprep.subr.mxu0 0.0
  %985 = vmatpush1.msra.mxu0 0.0
  %986 = vmatprep.subr.mxu0 0.0
  %987 = vmatpush1.msra.mxu0 0.0
  %988 = vmatprep.subr.mxu0 0.0
  %989 = vmatpush1.msra.mxu0 0.0
  %990 = vmatprep.subr.mxu0 0.0
  %991 = vmatpush1.msra.mxu0 0.0
  %992 = vmatprep.subr.mxu0 0.0
  %993 = vmatpush1.msra.mxu0 0.0
  %994 = vmatprep.subr.mxu0 0.0
  %995 = vmatpush1.msra.mxu0 0.0
  %996 = vmatprep.subr.mxu0 0.0
  %997 = vmatpush1.msra.mxu0 0.0
  %998 = vmatprep.subr.mxu0 0.0
  %999 = vmatpush1.msra.mxu0 0.0
  %1000 = vmatprep.subr.mxu0 0.0
  %1001 = vmatpush1.msra.mxu0 0.0
  %1002 = vmatprep.subr.mxu0 0.0
  %1003 = vmatpush1.msra.mxu0 0.0
  %1004 = vmatprep.subr.mxu0 0.0
  %1005 = vmatpush1.msra.mxu0 0.0
  %1006 = vmatprep.subr.mxu0 0.0
  %1007 = vmatpush1.msra.mxu0 0.0
  %1008 = vmatprep.subr.mxu0 0.0
  %1009 = vmatpush1.msra.mxu0 0.0
  %1010 = vmatprep.subr.mxu0 0.0
  %1011 = vmatpush1.msra.mxu0 0.0
  %1012 = vmatprep.subr.mxu0 0.0
  %1013 = vmatpush1.msra.mxu0 0.0
  %1014 = vmatprep.subr.mxu0 0.0
  %1015 = vmatpush1.msra.mxu0 0.0
  %1016 = vmatprep.subr.mxu0 0.0
  %1017 = vmatpush1.msra.mxu0 0.0
  %1018 = vmatprep.subr.mxu0 0.0
  %1019 = vmatpush1.msra.mxu0 0.0
  %1020 = vmatprep.subr.mxu0 0.0
  %1021 = vmatpush1.msra.mxu0 0.0
  %1022 = vmatprep.subr.mxu0 0.0
  %1023 = vmatpush1.msra.mxu0 0.0
  %1024 = vmatprep.mubr.f32.mxu0 0.0
  %v1025 = vand.u32 %v909, 4294901760
  %v1026 = vsub.f32 %v909, %v1025
  %v1027 = vand.u32 %v1026, 4294901760
  %v1028 = vsub.f32 %v1026, %v1027
  %v1029 = vand.u32 %v1028, 4294901760
  %1030 = vmatmul.mubr.f32.gmra.mrb[0].mxu0 %v1029
  %v1031 = vpop.f32.mrb[0].mxu0
  %v1032 = vadd.f32 0.0, %v1031
  %v1033 = vpop.f32.mrb[0].mxu0
  %1034 = vmatprep.mubr.f32.mxu0 0.0
  %v1035 = vand.u32 %v912, 4294901760
  %v1036 = vsub.f32 %v912, %v1035
  %v1037 = vand.u32 %v1036, 4294901760
  %v1038 = vsub.f32 %v1036, %v1037
  %v1039 = vand.u32 %v1038, 4294901760
  %1040 = vmatmul.mubr.f32.gmra.mrb[0].mxu0 %v1039
  %v1041 = vpop.f32.mrb[0].mxu0
  %v1042 = vadd.f32 0.0, %v1041
  %v1043 = vpop.f32.mrb[0].mxu0
  %1044 = vmatprep.mubr.f32.mxu0 0.0
  %v1045 = vand.u32 %v915, 4294901760
  %v1046 = vsub.f32 %v915, %v1045
  %v1047 = vand.u32 %v1046, 4294901760
  %v1048 = vsub.f32 %v1046, %v1047
  %v1049 = vand.u32 %v1048, 4294901760
  %1050 = vmatmul.mubr.f32.gmra.mrb[0].mxu0 %v1049
  %v1051 = vpop.f32.mrb[0].mxu0
  %v1052 = vadd.f32 0.0, %v1051
  %v1053 = vpop.f32.mrb[0].mxu0
  %1054 = vmatprep.mubr.f32.mxu0 0.0
  %v1055 = vand.u32 %v918, 4294901760
  %v1056 = vsub.f32 %v918, %v1055
  %v1057 = vand.u32 %v1056, 4294901760
  %v1058 = vsub.f32 %v1056, %v1057
  %v1059 = vand.u32 %v1058, 4294901760
  %1060 = vmatmul.mubr.f32.gmra.mrb[0].mxu0 %v1059
  %v1061 = vpop.f32.mrb[0].mxu0
  %v1062 = vadd.f32 0.0, %v1061
  %v1063 = vpop.f32.mrb[0].mxu0
  %1064 = vmatprep.mubr.f32.mxu0 0.0
  %v1065 = vand.u32 %v921, 4294901760
  %v1066 = vsub.f32 %v921, %v1065
  %v1067 = vand.u32 %v1066, 4294901760
  %v1068 = vsub.f32 %v1066, %v1067
  %v1069 = vand.u32 %v1068, 4294901760
  %1070 = vmatmul.mubr.f32.gmra.mrb[0].mxu0 %v1069
  %v1071 = vpop.f32.mrb[0].mxu0
  %v1072 = vadd.f32 0.0, %v1071
  %v1073 = vpop.f32.mrb[0].mxu0
  %1074 = vmatprep.mubr.f32.mxu0 0.0
  %v1075 = vand.u32 %v924, 4294901760
  %v1076 = vsub.f32 %v924, %v1075
  %v1077 = vand.u32 %v1076, 4294901760
  %v1078 = vsub.f32 %v1076, %v1077
  %v1079 = vand.u32 %v1078, 4294901760
  %1080 = vmatmul.mubr.f32.gmra.mrb[0].mxu0 %v1079
  %v1081 = vpop.f32.mrb[0].mxu0
  %v1082 = vadd.f32 0.0, %v1081
  %v1083 = vpop.f32.mrb[0].mxu0
  %1084 = vmatprep.mubr.f32.mxu0 0.0
  %v1085 = vand.u32 %v927, 4294901760
  %v1086 = vsub.f32 %v927, %v1085
  %v1087 = vand.u32 %v1086, 4294901760
  %v1088 = vsub.f32 %v1086, %v1087
  %v1089 = vand.u32 %v1088, 4294901760
  %1090 = vmatmul.mubr.f32.gmra.mrb[0].mxu0 %v1089
  %v1091 = vpop.f32.mrb[0].mxu0
  %v1092 = vadd.f32 0.0, %v1091
  %v1093 = vpop.f32.mrb[0].mxu0
  %1094 = vmatprep.mubr.f32.mxu0 0.0
  %v1095 = vand.u32 %v930, 4294901760
  %v1096 = vsub.f32 %v930, %v1095
  %v1097 = vand.u32 %v1096, 4294901760
  %v1098 = vsub.f32 %v1096, %v1097
  %v1099 = vand.u32 %v1098, 4294901760
  %1100 = vmatmul.mubr.f32.gmra.mrb[0].mxu0 %v1099
  %v1101 = vpop.f32.mrb[0].mxu0
  %v1102 = vadd.f32 0.0, %v1101
  %v1103 = vpop.f32.mrb[0].mxu0
  %1104 = vmatprep.mubr.f32.mxu0 0.0
  %v1105 = vand.u32 %v933, 4294901760
  %v1106 = vsub.f32 %v933, %v1105
  %v1107 = vand.u32 %v1106, 4294901760
  %v1108 = vsub.f32 %v1106, %v1107
  %v1109 = vand.u32 %v1108, 4294901760
  %1110 = vmatmul.mubr.f32.gmra.mrb[0].mxu0 %v1109
  %v1111 = vpop.f32.mrb[0].mxu0
  %v1112 = vadd.f32 0.0, %v1111
  %v1113 = vpop.f32.mrb[0].mxu0
  %1114 = vmatprep.mubr.f32.mxu0 0.0
  %v1115 = vand.u32 %v936, 4294901760
  %v1116 = vsub.f32 %v936, %v1115
  %v1117 = vand.u32 %v1116, 4294901760
  %v1118 = vsub.f32 %v1116, %v1117
  %v1119 = vand.u32 %v1118, 4294901760
  %1120 = vmatmul.mubr.f32.gmra.mrb[0].mxu0 %v1119
  %v1121 = vpop.f32.mrb[0].mxu0
  %v1122 = vadd.f32 0.0, %v1121
  %v1123 = vpop.f32.mrb[0].mxu0
  %1124 = vmatprep.mubr.f32.mxu0 0.0
  %v1125 = vand.u32 %v939, 4294901760
  %v1126 = vsub.f32 %v939, %v1125
  %v1127 = vand.u32 %v1126, 4294901760
  %v1128 = vsub.f32 %v1126, %v1127
  %v1129 = vand.u32 %v1128, 4294901760
  %1130 = vmatmul.mubr.f32.gmra.mrb[0].mxu0 %v1129
  %v1131 = vpop.f32.mrb[0].mxu0
  %v1132 = vadd.f32 0.0, %v1131
  %v1133 = vpop.f32.mrb[0].mxu0
  %1134 = vmatprep.mubr.f32.mxu0 0.0
  %v1135 = vand.u32 %v942, 4294901760
  %v1136 = vsub.f32 %v942, %v1135
  %v1137 = vand.u32 %v1136, 4294901760
  %v1138 = vsub.f32 %v1136, %v1137
  %v1139 = vand.u32 %v1138, 4294901760
  %1140 = vmatmul.mubr.f32.gmra.mrb[0].mxu0 %v1139
  %v1141 = vpop.f32.mrb[0].mxu0
  %v1142 = vadd.f32 0.0, %v1141
  %v1143 = vpop.f32.mrb[0].mxu0
  %1144 = vmatprep.mubr.f32.mxu0 0.0
  %v1145 = vand.u32 %v945, 4294901760
  %v1146 = vsub.f32 %v945, %v1145
  %v1147 = vand.u32 %v1146, 4294901760
  %v1148 = vsub.f32 %v1146, %v1147
  %v1149 = vand.u32 %v1148, 4294901760
  %1150 = vmatmul.mubr.f32.gmra.mrb[0].mxu0 %v1149
  %v1151 = vpop.f32.mrb[0].mxu0
  %v1152 = vadd.f32 0.0, %v1151
  %v1153 = vpop.f32.mrb[0].mxu0
  %1154 = vmatprep.mubr.f32.mxu0 0.0
  %v1155 = vand.u32 %v948, 4294901760
  %v1156 = vsub.f32 %v948, %v1155
  %v1157 = vand.u32 %v1156, 4294901760
  %v1158 = vsub.f32 %v1156, %v1157
  %v1159 = vand.u32 %v1158, 4294901760
  %1160 = vmatmul.mubr.f32.gmra.mrb[0].mxu0 %v1159
  %v1161 = vpop.f32.mrb[0].mxu0
  %v1162 = vadd.f32 0.0, %v1161
  %v1163 = vpop.f32.mrb[0].mxu0
  %1164 = vmatprep.mubr.f32.mxu0 0.0
  %v1165 = vand.u32 %v951, 4294901760
  %v1166 = vsub.f32 %v951, %v1165
  %v1167 = vand.u32 %v1166, 4294901760
  %v1168 = vsub.f32 %v1166, %v1167
  %v1169 = vand.u32 %v1168, 4294901760
  %1170 = vmatmul.mubr.f32.gmra.mrb[0].mxu0 %v1169
  %v1171 = vpop.f32.mrb[0].mxu0
  %v1172 = vadd.f32 0.0, %v1171
  %v1173 = vpop.f32.mrb[0].mxu0
  %1174 = vmatprep.mubr.f32.mxu0 0.0
  %v1175 = vand.u32 %v954, 4294901760
  %v1176 = vsub.f32 %v954, %v1175
  %v1177 = vand.u32 %v1176, 4294901760
  %v1178 = vsub.f32 %v1176, %v1177
  %v1179 = vand.u32 %v1178, 4294901760
  %1180 = vmatmul.mubr.f32.gmra.mrb[0].mxu0 %v1179
  %v1181 = vpop.f32.mrb[0].mxu0
  %v1182 = vadd.f32 0.0, %v1181
  %v1183 = vpop.f32.mrb[0].mxu0
  %1184 = vdwg.mxu0
  %1185 = vmatprep.subr.mxu0 0.0
  %v1186 = vand.u32 %v37, 4294901760
  %v1187 = vsub.f32 %v37, %v1186
  %v1188 = vand.u32 %v1187, 4294901760
  %v1189 = vsub.f32 %v1187, %v1188
  %v1190 = vand.u32 %v1189, 4294901760
  %1191 = vmatpush1.msra.mxu0 %v1190
  %1192 = vmatprep.subr.mxu0 0.0
  %v1193 = vand.u32 %v38, 4294901760
  %v1194 = vsub.f32 %v38, %v1193
  %v1195 = vand.u32 %v1194, 4294901760
  %v1196 = vsub.f32 %v1194, %v1195
  %v1197 = vand.u32 %v1196, 4294901760
  %1198 = vmatpush1.msra.mxu0 %v1197
  %1199 = vmatprep.subr.mxu0 0.0
  %v1200 = vand.u32 %v39, 4294901760
  %v1201 = vsub.f32 %v39, %v1200
  %v1202 = vand.u32 %v1201, 4294901760
  %v1203 = vsub.f32 %v1201, %v1202
  %v1204 = vand.u32 %v1203, 4294901760
  %1205 = vmatpush1.msra.mxu0 %v1204
  %1206 = vmatprep.subr.mxu0 0.0
  %v1207 = vand.u32 %v40, 4294901760
  %v1208 = vsub.f32 %v40, %v1207
  %v1209 = vand.u32 %v1208, 4294901760
  %v1210 = vsub.f32 %v1208, %v1209
  %v1211 = vand.u32 %v1210, 4294901760
  %1212 = vmatpush1.msra.mxu0 %v1211
  %1213 = vmatprep.subr.mxu0 0.0
  %1214 = vmatpush1.msra.mxu0 0.0
  %1215 = vmatprep.subr.mxu0 0.0
  %1216 = vmatpush1.msra.mxu0 0.0
  %1217 = vmatprep.subr.mxu0 0.0
  %1218 = vmatpush1.msra.mxu0 0.0
  %1219 = vmatprep.subr.mxu0 0.0
  %1220 = vmatpush1.msra.mxu0 0.0
  %1221 = vmatprep.subr.mxu0 0.0
  %1222 = vmatpush1.msra.mxu0 0.0
  %1223 = vmatprep.subr.mxu0 0.0
  %1224 = vmatpush1.msra.mxu0 0.0
  %1225 = vmatprep.subr.mxu0 0.0
  %1226 = vmatpush1.msra.mxu0 0.0
  %1227 = vmatprep.subr.mxu0 0.0
  %1228 = vmatpush1.msra.mxu0 0.0
  %1229 = vmatprep.subr.mxu0 0.0
  %1230 = vmatpush1.msra.mxu0 0.0
  %1231 = vmatprep.subr.mxu0 0.0
  %1232 = vmatpush1.msra.mxu0 0.0
  %1233 = vmatprep.subr.mxu0 0.0
  %1234 = vmatpush1.msra.mxu0 0.0
  %1235 = vmatprep.subr.mxu0 0.0
  %1236 = vmatpush1.msra.mxu0 0.0
  %1237 = vmatprep.subr.mxu0 0.0
  %1238 = vmatpush1.msra.mxu0 0.0
  %1239 = vmatprep.subr.mxu0 0.0
  %1240 = vmatpush1.msra.mxu0 0.0
  %1241 = vmatprep.subr.mxu0 0.0
  %1242 = vmatpush1.msra.mxu0 0.0
  %1243 = vmatprep.subr.mxu0 0.0
  %1244 = vmatpush1.msra.mxu0 0.0
  %1245 = vmatprep.subr.mxu0 0.0
  %1246 = vmatpush1.msra.mxu0 0.0
  %1247 = vmatprep.subr.mxu0 0.0
  %1248 = vmatpush1.msra.mxu0 0.0
  %1249 = vmatprep.subr.mxu0 0.0
  %1250 = vmatpush1.msra.mxu0 0.0
  %1251 = vmatprep.subr.mxu0 0.0
  %1252 = vmatpush1.msra.mxu0 0.0
  %1253 = vmatprep.subr.mxu0 0.0
  %1254 = vmatpush1.msra.mxu0 0.0
  %1255 = vmatprep.subr.mxu0 0.0
  %1256 = vmatpush1.msra.mxu0 0.0
  %1257 = vmatprep.subr.mxu0 0.0
  %1258 = vmatpush1.msra.mxu0 0.0
  %1259 = vmatprep.subr.mxu0 0.0
  %1260 = vmatpush1.msra.mxu0 0.0
  %1261 = vmatprep.subr.mxu0 0.0
  %1262 = vmatpush1.msra.mxu0 0.0
  %1263 = vmatprep.subr.mxu0 0.0
  %1264 = vmatpush1.msra.mxu0 0.0
  %1265 = vmatprep.subr.mxu0 0.0
  %1266 = vmatpush1.msra.mxu0 0.0
  %1267 = vmatprep.subr.mxu0 0.0
  %1268 = vmatpush1.msra.mxu0 0.0
  %1269 = vmatprep.mubr.f32.mxu0 0.0
  %v1270 = vand.u32 %v909, 4294901760
  %1271 = vmatmul.mubr.f32.gmra.mrb[0].mxu0 %v1270
  %v1272 = vpop.f32.mrb[0].mxu0
  %v1273 = vadd.f32 %v1032, %v1272
  %v1274 = vpop.f32.mrb[0].mxu0
  %1275 = vmatprep.mubr.f32.mxu0 0.0
  %v1276 = vand.u32 %v912, 4294901760
  %1277 = vmatmul.mubr.f32.gmra.mrb[0].mxu0 %v1276
  %v1278 = vpop.f32.mrb[0].mxu0
  %v1279 = vadd.f32 %v1042, %v1278
  %v1280 = vpop.f32.mrb[0].mxu0
  %1281 = vmatprep.mubr.f32.mxu0 0.0
  %v1282 = vand.u32 %v915, 4294901760
  %1283 = vmatmul.mubr.f32.gmra.mrb[0].mxu0 %v1282
  %v1284 = vpop.f32.mrb[0].mxu0
  %v1285 = vadd.f32 %v1052, %v1284
  %v1286 = vpop.f32.mrb[0].mxu0
  %1287 = vmatprep.mubr.f32.mxu0 0.0
  %v1288 = vand.u32 %v918, 4294901760
  %1289 = vmatmul.mubr.f32.gmra.mrb[0].mxu0 %v1288
  %v1290 = vpop.f32.mrb[0].mxu0
  %v1291 = vadd.f32 %v1062, %v1290
  %v1292 = vpop.f32.mrb[0].mxu0
  %1293 = vmatprep.mubr.f32.mxu0 0.0
  %v1294 = vand.u32 %v921, 4294901760
  %1295 = vmatmul.mubr.f32.gmra.mrb[0].mxu0 %v1294
  %v1296 = vpop.f32.mrb[0].mxu0
  %v1297 = vadd.f32 %v1072, %v1296
  %v1298 = vpop.f32.mrb[0].mxu0
  %1299 = vmatprep.mubr.f32.mxu0 0.0
  %v1300 = vand.u32 %v924, 4294901760
  %1301 = vmatmul.mubr.f32.gmra.mrb[0].mxu0 %v1300
  %v1302 = vpop.f32.mrb[0].mxu0
  %v1303 = vadd.f32 %v1082, %v1302
  %v1304 = vpop.f32.mrb[0].mxu0
  %1305 = vmatprep.mubr.f32.mxu0 0.0
  %v1306 = vand.u32 %v927, 4294901760
  %1307 = vmatmul.mubr.f32.gmra.mrb[0].mxu0 %v1306
  %v1308 = vpop.f32.mrb[0].mxu0
  %v1309 = vadd.f32 %v1092, %v1308
  %v1310 = vpop.f32.mrb[0].mxu0
  %1311 = vmatprep.mubr.f32.mxu0 0.0
  %v1312 = vand.u32 %v930, 4294901760
  %1313 = vmatmul.mubr.f32.gmra.mrb[0].mxu0 %v1312
  %v1314 = vpop.f32.mrb[0].mxu0
  %v1315 = vadd.f32 %v1102, %v1314
  %v1316 = vpop.f32.mrb[0].mxu0
  %1317 = vmatprep.mubr.f32.mxu0 0.0
  %v1318 = vand.u32 %v933, 4294901760
  %1319 = vmatmul.mubr.f32.gmra.mrb[0].mxu0 %v1318
  %v1320 = vpop.f32.mrb[0].mxu0
  %v1321 = vadd.f32 %v1112, %v1320
  %v1322 = vpop.f32.mrb[0].mxu0
  %1323 = vmatprep.mubr.f32.mxu0 0.0
  %v1324 = vand.u32 %v936, 4294901760
  %1325 = vmatmul.mubr.f32.gmra.mrb[0].mxu0 %v1324
  %v1326 = vpop.f32.mrb[0].mxu0
  %v1327 = vadd.f32 %v1122, %v1326
  %v1328 = vpop.f32.mrb[0].mxu0
  %1329 = vmatprep.mubr.f32.mxu0 0.0
  %v1330 = vand.u32 %v939, 4294901760
  %1331 = vmatmul.mubr.f32.gmra.mrb[0].mxu0 %v1330
  %v1332 = vpop.f32.mrb[0].mxu0
  %v1333 = vadd.f32 %v1132, %v1332
  %v1334 = vpop.f32.mrb[0].mxu0
  %1335 = vmatprep.mubr.f32.mxu0 0.0
  %v1336 = vand.u32 %v942, 4294901760
  %1337 = vmatmul.mubr.f32.gmra.mrb[0].mxu0 %v1336
  %v1338 = vpop.f32.mrb[0].mxu0
  %v1339 = vadd.f32 %v1142, %v1338
  %v1340 = vpop.f32.mrb[0].mxu0
  %1341 = vmatprep.mubr.f32.mxu0 0.0
  %v1342 = vand.u32 %v945, 4294901760
  %1343 = vmatmul.mubr.f32.gmra.mrb[0].mxu0 %v1342
  %v1344 = vpop.f32.mrb[0].mxu0
  %v1345 = vadd.f32 %v1152, %v1344
  %v1346 = vpop.f32.mrb[0].mxu0
  %1347 = vmatprep.mubr.f32.mxu0 0.0
  %v1348 = vand.u32 %v948, 4294901760
  %1349 = vmatmul.mubr.f32.gmra.mrb[0].mxu0 %v1348
  %v1350 = vpop.f32.mrb[0].mxu0
  %v1351 = vadd.f32 %v1162, %v1350
  %v1352 = vpop.f32.mrb[0].mxu0
  %1353 = vmatprep.mubr.f32.mxu0 0.0
  %v1354 = vand.u32 %v951, 4294901760
  %1355 = vmatmul.mubr.f32.gmra.mrb[0].mxu0 %v1354
  %v1356 = vpop.f32.mrb[0].mxu0
  %v1357 = vadd.f32 %v1172, %v1356
  %v1358 = vpop.f32.mrb[0].mxu0
  %1359 = vmatprep.mubr.f32.mxu0 0.0
  %v1360 = vand.u32 %v954, 4294901760
  %1361 = vmatmul.mubr.f32.gmra.mrb[0].mxu0 %v1360
  %v1362 = vpop.f32.mrb[0].mxu0
  %v1363 = vadd.f32 %v1182, %v1362
  %v1364 = vpop.f32.mrb[0].mxu0
  %1365 = vdwg.mxu0
  %1366 = vmatprep.subr.mxu0 0.0
  %v1367 = vand.u32 %v37, 4294901760
  %v1368 = vsub.f32 %v37, %v1367
  %1369 = vmatpush1.msra.mxu0 %v1368
  %1370 = vmatprep.subr.mxu0 0.0
  %v1371 = vand.u32 %v38, 4294901760
  %v1372 = vsub.f32 %v38, %v1371
  %1373 = vmatpush1.msra.mxu0 %v1372
  %1374 = vmatprep.subr.mxu0 0.0
  %v1375 = vand.u32 %v39, 4294901760
  %v1376 = vsub.f32 %v39, %v1375
  %1377 = vmatpush1.msra.mxu0 %v1376
  %1378 = vmatprep.subr.mxu0 0.0
  %v1379 = vand.u32 %v40, 4294901760
  %v1380 = vsub.f32 %v40, %v1379
  %1381 = vmatpush1.msra.mxu0 %v1380
  %1382 = vmatprep.subr.mxu0 0.0
  %1383 = vmatpush1.msra.mxu0 0.0
  %1384 = vmatprep.subr.mxu0 0.0
  %1385 = vmatpush1.msra.mxu0 0.0
  %1386 = vmatprep.subr.mxu0 0.0
  %1387 = vmatpush1.msra.mxu0 0.0
  %1388 = vmatprep.subr.mxu0 0.0
  %1389 = vmatpush1.msra.mxu0 0.0
  %1390 = vmatprep.subr.mxu0 0.0
  %1391 = vmatpush1.msra.mxu0 0.0
  %1392 = vmatprep.subr.mxu0 0.0
  %1393 = vmatpush1.msra.mxu0 0.0
  %1394 = vmatprep.subr.mxu0 0.0
  %1395 = vmatpush1.msra.mxu0 0.0
  %1396 = vmatprep.subr.mxu0 0.0
  %1397 = vmatpush1.msra.mxu0 0.0
  %1398 = vmatprep.subr.mxu0 0.0
  %1399 = vmatpush1.msra.mxu0 0.0
  %1400 = vmatprep.subr.mxu0 0.0
  %1401 = vmatpush1.msra.mxu0 0.0
  %1402 = vmatprep.subr.mxu0 0.0
  %1403 = vmatpush1.msra.mxu0 0.0
  %1404 = vmatprep.subr.mxu0 0.0
  %1405 = vmatpush1.msra.mxu0 0.0
  %1406 = vmatprep.subr.mxu0 0.0
  %1407 = vmatpush1.msra.mxu0 0.0
  %1408 = vmatprep.subr.mxu0 0.0
  %1409 = vmatpush1.msra.mxu0 0.0
  %1410 = vmatprep.subr.mxu0 0.0
  %1411 = vmatpush1.msra.mxu0 0.0
  %1412 = vmatprep.subr.mxu0 0.0
  %1413 = vmatpush1.msra.mxu0 0.0
  %1414 = vmatprep.subr.mxu0 0.0
  %1415 = vmatpush1.msra.mxu0 0.0
  %1416 = vmatprep.subr.mxu0 0.0
  %1417 = vmatpush1.msra.mxu0 0.0
  %1418 = vmatprep.subr.mxu0 0.0
  %1419 = vmatpush1.msra.mxu0 0.0
  %1420 = vmatprep.subr.mxu0 0.0
  %1421 = vmatpush1.msra.mxu0 0.0
  %1422 = vmatprep.subr.mxu0 0.0
  %1423 = vmatpush1.msra.mxu0 0.0
  %1424 = vmatprep.subr.mxu0 0.0
  %1425 = vmatpush1.msra.mxu0 0.0
  %1426 = vmatprep.subr.mxu0 0.0
  %1427 = vmatpush1.msra.mxu0 0.0
  %1428 = vmatprep.subr.mxu0 0.0
  %1429 = vmatpush1.msra.mxu0 0.0
  %1430 = vmatprep.subr.mxu0 0.0
  %1431 = vmatpush1.msra.mxu0 0.0
  %1432 = vmatprep.subr.mxu0 0.0
  %1433 = vmatpush1.msra.mxu0 0.0
  %1434 = vmatprep.subr.mxu0 0.0
  %1435 = vmatpush1.msra.mxu0 0.0
  %1436 = vmatprep.subr.mxu0 0.0
  %1437 = vmatpush1.msra.mxu0 0.0
  %1438 = vmatprep.mubr.f32.mxu0 0.0
  %v1439 = vand.u32 %v909, 4294901760
  %v1440 = vsub.f32 %v909, %v1439
  %1441 = vmatmul.mubr.f32.gmra.mrb[0].mxu0 %v1440
  %v1442 = vpop.f32.mrb[0].mxu0
  %v1443 = vadd.f32 %v1273, %v1442
  %v1444 = vpop.f32.mrb[0].mxu0
  %1445 = vmatprep.mubr.f32.mxu0 0.0
  %v1446 = vand.u32 %v912, 4294901760
  %v1447 = vsub.f32 %v912, %v1446
  %1448 = vmatmul.mubr.f32.gmra.mrb[0].mxu0 %v1447
  %v1449 = vpop.f32.mrb[0].mxu0
  %v1450 = vadd.f32 %v1279, %v1449
  %v1451 = vpop.f32.mrb[0].mxu0
  %1452 = vmatprep.mubr.f32.mxu0 0.0
  %v1453 = vand.u32 %v915, 4294901760
  %v1454 = vsub.f32 %v915, %v1453
  %1455 = vmatmul.mubr.f32.gmra.mrb[0].mxu0 %v1454
  %v1456 = vpop.f32.mrb[0].mxu0
  %v1457 = vadd.f32 %v1285, %v1456
  %v1458 = vpop.f32.mrb[0].mxu0
  %1459 = vmatprep.mubr.f32.mxu0 0.0
  %v1460 = vand.u32 %v918, 4294901760
  %v1461 = vsub.f32 %v918, %v1460
  %1462 = vmatmul.mubr.f32.gmra.mrb[0].mxu0 %v1461
  %v1463 = vpop.f32.mrb[0].mxu0
  %v1464 = vadd.f32 %v1291, %v1463
  %v1465 = vpop.f32.mrb[0].mxu0
  %1466 = vmatprep.mubr.f32.mxu0 0.0
  %v1467 = vand.u32 %v921, 4294901760
  %v1468 = vsub.f32 %v921, %v1467
  %1469 = vmatmul.mubr.f32.gmra.mrb[0].mxu0 %v1468
  %v1470 = vpop.f32.mrb[0].mxu0
  %v1471 = vadd.f32 %v1297, %v1470
  %v1472 = vpop.f32.mrb[0].mxu0
  %1473 = vmatprep.mubr.f32.mxu0 0.0
  %v1474 = vand.u32 %v924, 4294901760
  %v1475 = vsub.f32 %v924, %v1474
  %1476 = vmatmul.mubr.f32.gmra.mrb[0].mxu0 %v1475
  %v1477 = vpop.f32.mrb[0].mxu0
  %v1478 = vadd.f32 %v1303, %v1477
  %v1479 = vpop.f32.mrb[0].mxu0
  %1480 = vmatprep.mubr.f32.mxu0 0.0
  %v1481 = vand.u32 %v927, 4294901760
  %v1482 = vsub.f32 %v927, %v1481
  %1483 = vmatmul.mubr.f32.gmra.mrb[0].mxu0 %v1482
  %v1484 = vpop.f32.mrb[0].mxu0
  %v1485 = vadd.f32 %v1309, %v1484
  %v1486 = vpop.f32.mrb[0].mxu0
  %1487 = vmatprep.mubr.f32.mxu0 0.0
  %v1488 = vand.u32 %v930, 4294901760
  %v1489 = vsub.f32 %v930, %v1488
  %1490 = vmatmul.mubr.f32.gmra.mrb[0].mxu0 %v1489
  %v1491 = vpop.f32.mrb[0].mxu0
  %v1492 = vadd.f32 %v1315, %v1491
  %v1493 = vpop.f32.mrb[0].mxu0
  %1494 = vmatprep.mubr.f32.mxu0 0.0
  %v1495 = vand.u32 %v933, 4294901760
  %v1496 = vsub.f32 %v933, %v1495
  %1497 = vmatmul.mubr.f32.gmra.mrb[0].mxu0 %v1496
  %v1498 = vpop.f32.mrb[0].mxu0
  %v1499 = vadd.f32 %v1321, %v1498
  %v1500 = vpop.f32.mrb[0].mxu0
  %1501 = vmatprep.mubr.f32.mxu0 0.0
  %v1502 = vand.u32 %v936, 4294901760
  %v1503 = vsub.f32 %v936, %v1502
  %1504 = vmatmul.mubr.f32.gmra.mrb[0].mxu0 %v1503
  %v1505 = vpop.f32.mrb[0].mxu0
  %v1506 = vadd.f32 %v1327, %v1505
  %v1507 = vpop.f32.mrb[0].mxu0
  %1508 = vmatprep.mubr.f32.mxu0 0.0
  %v1509 = vand.u32 %v939, 4294901760
  %v1510 = vsub.f32 %v939, %v1509
  %1511 = vmatmul.mubr.f32.gmra.mrb[0].mxu0 %v1510
  %v1512 = vpop.f32.mrb[0].mxu0
  %v1513 = vadd.f32 %v1333, %v1512
  %v1514 = vpop.f32.mrb[0].mxu0
  %1515 = vmatprep.mubr.f32.mxu0 0.0
  %v1516 = vand.u32 %v942, 4294901760
  %v1517 = vsub.f32 %v942, %v1516
  %1518 = vmatmul.mubr.f32.gmra.mrb[0].mxu0 %v1517
  %v1519 = vpop.f32.mrb[0].mxu0
  %v1520 = vadd.f32 %v1339, %v1519
  %v1521 = vpop.f32.mrb[0].mxu0
  %1522 = vmatprep.mubr.f32.mxu0 0.0
  %v1523 = vand.u32 %v945, 4294901760
  %v1524 = vsub.f32 %v945, %v1523
  %1525 = vmatmul.mubr.f32.gmra.mrb[0].mxu0 %v1524
  %v1526 = vpop.f32.mrb[0].mxu0
  %v1527 = vadd.f32 %v1345, %v1526
  %v1528 = vpop.f32.mrb[0].mxu0
  %1529 = vmatprep.mubr.f32.mxu0 0.0
  %v1530 = vand.u32 %v948, 4294901760
  %v1531 = vsub.f32 %v948, %v1530
  %1532 = vmatmul.mubr.f32.gmra.mrb[0].mxu0 %v1531
  %v1533 = vpop.f32.mrb[0].mxu0
  %v1534 = vadd.f32 %v1351, %v1533
  %v1535 = vpop.f32.mrb[0].mxu0
  %1536 = vmatprep.mubr.f32.mxu0 0.0
  %v1537 = vand.u32 %v951, 4294901760
  %v1538 = vsub.f32 %v951, %v1537
  %1539 = vmatmul.mubr.f32.gmra.mrb[0].mxu0 %v1538
  %v1540 = vpop.f32.mrb[0].mxu0
  %v1541 = vadd.f32 %v1357, %v1540
  %v1542 = vpop.f32.mrb[0].mxu0
  %1543 = vmatprep.mubr.f32.mxu0 0.0
  %v1544 = vand.u32 %v954, 4294901760
  %v1545 = vsub.f32 %v954, %v1544
  %1546 = vmatmul.mubr.f32.gmra.mrb[0].mxu0 %v1545
  %v1547 = vpop.f32.mrb[0].mxu0
  %v1548 = vadd.f32 %v1363, %v1547
  %v1549 = vpop.f32.mrb[0].mxu0
  %1550 = vdwg.mxu0
  %1551 = vmatprep.subr.mxu0 0.0
  %v1552 = vand.u32 %v37, 4294901760
  %1553 = vmatpush1.msra.mxu0 %v1552
  %1554 = vmatprep.subr.mxu0 0.0
  %v1555 = vand.u32 %v38, 4294901760
  %1556 = vmatpush1.msra.mxu0 %v1555
  %1557 = vmatprep.subr.mxu0 0.0
  %v1558 = vand.u32 %v39, 4294901760
  %1559 = vmatpush1.msra.mxu0 %v1558
  %1560 = vmatprep.subr.mxu0 0.0
  %v1561 = vand.u32 %v40, 4294901760
  %1562 = vmatpush1.msra.mxu0 %v1561
  %1563 = vmatprep.subr.mxu0 0.0
  %1564 = vmatpush1.msra.mxu0 0.0
  %1565 = vmatprep.subr.mxu0 0.0
  %1566 = vmatpush1.msra.mxu0 0.0
  %1567 = vmatprep.subr.mxu0 0.0
  %1568 = vmatpush1.msra.mxu0 0.0
  %1569 = vmatprep.subr.mxu0 0.0
  %1570 = vmatpush1.msra.mxu0 0.0
  %1571 = vmatprep.subr.mxu0 0.0
  %1572 = vmatpush1.msra.mxu0 0.0
  %1573 = vmatprep.subr.mxu0 0.0
  %1574 = vmatpush1.msra.mxu0 0.0
  %1575 = vmatprep.subr.mxu0 0.0
  %1576 = vmatpush1.msra.mxu0 0.0
  %1577 = vmatprep.subr.mxu0 0.0
  %1578 = vmatpush1.msra.mxu0 0.0
  %1579 = vmatprep.subr.mxu0 0.0
  %1580 = vmatpush1.msra.mxu0 0.0
  %1581 = vmatprep.subr.mxu0 0.0
  %1582 = vmatpush1.msra.mxu0 0.0
  %1583 = vmatprep.subr.mxu0 0.0
  %1584 = vmatpush1.msra.mxu0 0.0
  %1585 = vmatprep.subr.mxu0 0.0
  %1586 = vmatpush1.msra.mxu0 0.0
  %1587 = vmatprep.subr.mxu0 0.0
  %1588 = vmatpush1.msra.mxu0 0.0
  %1589 = vmatprep.subr.mxu0 0.0
  %1590 = vmatpush1.msra.mxu0 0.0
  %1591 = vmatprep.subr.mxu0 0.0
  %1592 = vmatpush1.msra.mxu0 0.0
  %1593 = vmatprep.subr.mxu0 0.0
  %1594 = vmatpush1.msra.mxu0 0.0
  %1595 = vmatprep.subr.mxu0 0.0
  %1596 = vmatpush1.msra.mxu0 0.0
  %1597 = vmatprep.subr.mxu0 0.0
  %1598 = vmatpush1.msra.mxu0 0.0
  %1599 = vmatprep.subr.mxu0 0.0
  %1600 = vmatpush1.msra.mxu0 0.0
  %1601 = vmatprep.subr.mxu0 0.0
  %1602 = vmatpush1.msra.mxu0 0.0
  %1603 = vmatprep.subr.mxu0 0.0
  %1604 = vmatpush1.msra.mxu0 0.0
  %1605 = vmatprep.subr.mxu0 0.0
  %1606 = vmatpush1.msra.mxu0 0.0
  %1607 = vmatprep.subr.mxu0 0.0
  %1608 = vmatpush1.msra.mxu0 0.0
  %1609 = vmatprep.subr.mxu0 0.0
  %1610 = vmatpush1.msra.mxu0 0.0
  %1611 = vmatprep.subr.mxu0 0.0
  %1612 = vmatpush1.msra.mxu0 0.0
  %1613 = vmatprep.subr.mxu0 0.0
  %1614 = vmatpush1.msra.mxu0 0.0
  %1615 = vmatprep.subr.mxu0 0.0
  %1616 = vmatpush1.msra.mxu0 0.0
  %1617 = vmatprep.subr.mxu0 0.0
  %1618 = vmatpush1.msra.mxu0 0.0
  %1619 = vmatprep.mubr.f32.mxu0 0.0
  %v1620 = vand.u32 %v909, 4294901760
  %v1621 = vsub.f32 %v909, %v1620
  %v1622 = vand.u32 %v1621, 4294901760
  %1623 = vmatmul.mubr.f32.gmra.mrb[0].mxu0 %v1622
  %v1624 = vpop.f32.mrb[0].mxu0
  %v1625 = vadd.f32 %v1443, %v1624
  %v1626 = vpop.f32.mrb[0].mxu0
  %1627 = vmatprep.mubr.f32.mxu0 0.0
  %v1628 = vand.u32 %v912, 4294901760
  %v1629 = vsub.f32 %v912, %v1628
  %v1630 = vand.u32 %v1629, 4294901760
  %1631 = vmatmul.mubr.f32.gmra.mrb[0].mxu0 %v1630
  %v1632 = vpop.f32.mrb[0].mxu0
  %v1633 = vadd.f32 %v1450, %v1632
  %v1634 = vpop.f32.mrb[0].mxu0
  %1635 = vmatprep.mubr.f32.mxu0 0.0
  %v1636 = vand.u32 %v915, 4294901760
  %v1637 = vsub.f32 %v915, %v1636
  %v1638 = vand.u32 %v1637, 4294901760
  %1639 = vmatmul.mubr.f32.gmra.mrb[0].mxu0 %v1638
  %v1640 = vpop.f32.mrb[0].mxu0
  %v1641 = vadd.f32 %v1457, %v1640
  %v1642 = vpop.f32.mrb[0].mxu0
  %1643 = vmatprep.mubr.f32.mxu0 0.0
  %v1644 = vand.u32 %v918, 4294901760
  %v1645 = vsub.f32 %v918, %v1644
  %v1646 = vand.u32 %v1645, 4294901760
  %1647 = vmatmul.mubr.f32.gmra.mrb[0].mxu0 %v1646
  %v1648 = vpop.f32.mrb[0].mxu0
  %v1649 = vadd.f32 %v1464, %v1648
  %v1650 = vpop.f32.mrb[0].mxu0
  %1651 = vmatprep.mubr.f32.mxu0 0.0
  %v1652 = vand.u32 %v921, 4294901760
  %v1653 = vsub.f32 %v921, %v1652
  %v1654 = vand.u32 %v1653, 4294901760
  %1655 = vmatmul.mubr.f32.gmra.mrb[0].mxu0 %v1654
  %v1656 = vpop.f32.mrb[0].mxu0
  %v1657 = vadd.f32 %v1471, %v1656
  %v1658 = vpop.f32.mrb[0].mxu0
  %1659 = vmatprep.mubr.f32.mxu0 0.0
  %v1660 = vand.u32 %v924, 4294901760
  %v1661 = vsub.f32 %v924, %v1660
  %v1662 = vand.u32 %v1661, 4294901760
  %1663 = vmatmul.mubr.f32.gmra.mrb[0].mxu0 %v1662
  %v1664 = vpop.f32.mrb[0].mxu0
  %v1665 = vadd.f32 %v1478, %v1664
  %v1666 = vpop.f32.mrb[0].mxu0
  %1667 = vmatprep.mubr.f32.mxu0 0.0
  %v1668 = vand.u32 %v927, 4294901760
  %v1669 = vsub.f32 %v927, %v1668
  %v1670 = vand.u32 %v1669, 4294901760
  %1671 = vmatmul.mubr.f32.gmra.mrb[0].mxu0 %v1670
  %v1672 = vpop.f32.mrb[0].mxu0
  %v1673 = vadd.f32 %v1485, %v1672
  %v1674 = vpop.f32.mrb[0].mxu0
  %1675 = vmatprep.mubr.f32.mxu0 0.0
  %v1676 = vand.u32 %v930, 4294901760
  %v1677 = vsub.f32 %v930, %v1676
  %v1678 = vand.u32 %v1677, 4294901760
  %1679 = vmatmul.mubr.f32.gmra.mrb[0].mxu0 %v1678
  %v1680 = vpop.f32.mrb[0].mxu0
  %v1681 = vadd.f32 %v1492, %v1680
  %v1682 = vpop.f32.mrb[0].mxu0
  %1683 = vmatprep.mubr.f32.mxu0 0.0
  %v1684 = vand.u32 %v933, 4294901760
  %v1685 = vsub.f32 %v933, %v1684
  %v1686 = vand.u32 %v1685, 4294901760
  %1687 = vmatmul.mubr.f32.gmra.mrb[0].mxu0 %v1686
  %v1688 = vpop.f32.mrb[0].mxu0
  %v1689 = vadd.f32 %v1499, %v1688
  %v1690 = vpop.f32.mrb[0].mxu0
  %1691 = vmatprep.mubr.f32.mxu0 0.0
  %v1692 = vand.u32 %v936, 4294901760
  %v1693 = vsub.f32 %v936, %v1692
  %v1694 = vand.u32 %v1693, 4294901760
  %1695 = vmatmul.mubr.f32.gmra.mrb[0].mxu0 %v1694
  %v1696 = vpop.f32.mrb[0].mxu0
  %v1697 = vadd.f32 %v1506, %v1696
  %v1698 = vpop.f32.mrb[0].mxu0
  %1699 = vmatprep.mubr.f32.mxu0 0.0
  %v1700 = vand.u32 %v939, 4294901760
  %v1701 = vsub.f32 %v939, %v1700
  %v1702 = vand.u32 %v1701, 4294901760
  %1703 = vmatmul.mubr.f32.gmra.mrb[0].mxu0 %v1702
  %v1704 = vpop.f32.mrb[0].mxu0
  %v1705 = vadd.f32 %v1513, %v1704
  %v1706 = vpop.f32.mrb[0].mxu0
  %1707 = vmatprep.mubr.f32.mxu0 0.0
  %v1708 = vand.u32 %v942, 4294901760
  %v1709 = vsub.f32 %v942, %v1708
  %v1710 = vand.u32 %v1709, 4294901760
  %1711 = vmatmul.mubr.f32.gmra.mrb[0].mxu0 %v1710
  %v1712 = vpop.f32.mrb[0].mxu0
  %v1713 = vadd.f32 %v1520, %v1712
  %v1714 = vpop.f32.mrb[0].mxu0
  %1715 = vmatprep.mubr.f32.mxu0 0.0
  %v1716 = vand.u32 %v945, 4294901760
  %v1717 = vsub.f32 %v945, %v1716
  %v1718 = vand.u32 %v1717, 4294901760
  %1719 = vmatmul.mubr.f32.gmra.mrb[0].mxu0 %v1718
  %v1720 = vpop.f32.mrb[0].mxu0
  %v1721 = vadd.f32 %v1527, %v1720
  %v1722 = vpop.f32.mrb[0].mxu0
  %1723 = vmatprep.mubr.f32.mxu0 0.0
  %v1724 = vand.u32 %v948, 4294901760
  %v1725 = vsub.f32 %v948, %v1724
  %v1726 = vand.u32 %v1725, 4294901760
  %1727 = vmatmul.mubr.f32.gmra.mrb[0].mxu0 %v1726
  %v1728 = vpop.f32.mrb[0].mxu0
  %v1729 = vadd.f32 %v1534, %v1728
  %v1730 = vpop.f32.mrb[0].mxu0
  %1731 = vmatprep.mubr.f32.mxu0 0.0
  %v1732 = vand.u32 %v951, 4294901760
  %v1733 = vsub.f32 %v951, %v1732
  %v1734 = vand.u32 %v1733, 4294901760
  %1735 = vmatmul.mubr.f32.gmra.mrb[0].mxu0 %v1734
  %v1736 = vpop.f32.mrb[0].mxu0
  %v1737 = vadd.f32 %v1541, %v1736
  %v1738 = vpop.f32.mrb[0].mxu0
  %1739 = vmatprep.mubr.f32.mxu0 0.0
  %v1740 = vand.u32 %v954, 4294901760
  %v1741 = vsub.f32 %v954, %v1740
  %v1742 = vand.u32 %v1741, 4294901760
  %1743 = vmatmul.mubr.f32.gmra.mrb[0].mxu0 %v1742
  %v1744 = vpop.f32.mrb[0].mxu0
  %v1745 = vadd.f32 %v1548, %v1744
  %v1746 = vpop.f32.mrb[0].mxu0
  %1747 = vdwg.mxu0
  %1748 = vmatprep.subr.mxu0 0.0
  %v1749 = vand.u32 %v37, 4294901760
  %v1750 = vsub.f32 %v37, %v1749
  %v1751 = vand.u32 %v1750, 4294901760
  %1752 = vmatpush1.msra.mxu0 %v1751
  %1753 = vmatprep.subr.mxu0 0.0
  %v1754 = vand.u32 %v38, 4294901760
  %v1755 = vsub.f32 %v38, %v1754
  %v1756 = vand.u32 %v1755, 4294901760
  %1757 = vmatpush1.msra.mxu0 %v1756
  %1758 = vmatprep.subr.mxu0 0.0
  %v1759 = vand.u32 %v39, 4294901760
  %v1760 = vsub.f32 %v39, %v1759
  %v1761 = vand.u32 %v1760, 4294901760
  %1762 = vmatpush1.msra.mxu0 %v1761
  %1763 = vmatprep.subr.mxu0 0.0
  %v1764 = vand.u32 %v40, 4294901760
  %v1765 = vsub.f32 %v40, %v1764
  %v1766 = vand.u32 %v1765, 4294901760
  %1767 = vmatpush1.msra.mxu0 %v1766
  %1768 = vmatprep.subr.mxu0 0.0
  %1769 = vmatpush1.msra.mxu0 0.0
  %1770 = vmatprep.subr.mxu0 0.0
  %1771 = vmatpush1.msra.mxu0 0.0
  %1772 = vmatprep.subr.mxu0 0.0
  %1773 = vmatpush1.msra.mxu0 0.0
  %1774 = vmatprep.subr.mxu0 0.0
  %1775 = vmatpush1.msra.mxu0 0.0
  %1776 = vmatprep.subr.mxu0 0.0
  %1777 = vmatpush1.msra.mxu0 0.0
  %1778 = vmatprep.subr.mxu0 0.0
  %1779 = vmatpush1.msra.mxu0 0.0
  %1780 = vmatprep.subr.mxu0 0.0
  %1781 = vmatpush1.msra.mxu0 0.0
  %1782 = vmatprep.subr.mxu0 0.0
  %1783 = vmatpush1.msra.mxu0 0.0
  %1784 = vmatprep.subr.mxu0 0.0
  %1785 = vmatpush1.msra.mxu0 0.0
  %1786 = vmatprep.subr.mxu0 0.0
  %1787 = vmatpush1.msra.mxu0 0.0
  %1788 = vmatprep.subr.mxu0 0.0
  %1789 = vmatpush1.msra.mxu0 0.0
  %1790 = vmatprep.subr.mxu0 0.0
  %1791 = vmatpush1.msra.mxu0 0.0
  %1792 = vmatprep.subr.mxu0 0.0
  %1793 = vmatpush1.msra.mxu0 0.0
  %1794 = vmatprep.subr.mxu0 0.0
  %1795 = vmatpush1.msra.mxu0 0.0
  %1796 = vmatprep.subr.mxu0 0.0
  %1797 = vmatpush1.msra.mxu0 0.0
  %1798 = vmatprep.subr.mxu0 0.0
  %1799 = vmatpush1.msra.mxu0 0.0
  %1800 = vmatprep.subr.mxu0 0.0
  %1801 = vmatpush1.msra.mxu0 0.0
  %1802 = vmatprep.subr.mxu0 0.0
  %1803 = vmatpush1.msra.mxu0 0.0
  %1804 = vmatprep.subr.mxu0 0.0
  %1805 = vmatpush1.msra.mxu0 0.0
  %1806 = vmatprep.subr.mxu0 0.0
  %1807 = vmatpush1.msra.mxu0 0.0
  %1808 = vmatprep.subr.mxu0 0.0
  %1809 = vmatpush1.msra.mxu0 0.0
  %1810 = vmatprep.subr.mxu0 0.0
  %1811 = vmatpush1.msra.mxu0 0.0
  %1812 = vmatprep.subr.mxu0 0.0
  %1813 = vmatpush1.msra.mxu0 0.0
  %1814 = vmatprep.subr.mxu0 0.0
  %1815 = vmatpush1.msra.mxu0 0.0
  %1816 = vmatprep.subr.mxu0 0.0
  %1817 = vmatpush1.msra.mxu0 0.0
  %1818 = vmatprep.subr.mxu0 0.0
  %1819 = vmatpush1.msra.mxu0 0.0
  %1820 = vmatprep.subr.mxu0 0.0
  %1821 = vmatpush1.msra.mxu0 0.0
  %1822 = vmatprep.subr.mxu0 0.0
  %1823 = vmatpush1.msra.mxu0 0.0
  %1824 = vmatprep.mubr.f32.mxu0 0.0
  %v1825 = vand.u32 %v909, 4294901760
  %1826 = vmatmul.mubr.f32.gmra.mrb[0].mxu0 %v1825
  %v1827 = vpop.f32.mrb[0].mxu0
  %v1828 = vadd.f32 %v1625, %v1827
  %v1829 = vpop.f32.mrb[0].mxu0
  %1830 = vmatprep.mubr.f32.mxu0 0.0
  %v1831 = vand.u32 %v912, 4294901760
  %1832 = vmatmul.mubr.f32.gmra.mrb[0].mxu0 %v1831
  %v1833 = vpop.f32.mrb[0].mxu0
  %v1834 = vadd.f32 %v1633, %v1833
  %v1835 = vpop.f32.mrb[0].mxu0
  %1836 = vmatprep.mubr.f32.mxu0 0.0
  %v1837 = vand.u32 %v915, 4294901760
  %1838 = vmatmul.mubr.f32.gmra.mrb[0].mxu0 %v1837
  %v1839 = vpop.f32.mrb[0].mxu0
  %v1840 = vadd.f32 %v1641, %v1839
  %v1841 = vpop.f32.mrb[0].mxu0
  %1842 = vmatprep.mubr.f32.mxu0 0.0
  %v1843 = vand.u32 %v918, 4294901760
  %1844 = vmatmul.mubr.f32.gmra.mrb[0].mxu0 %v1843
  %v1845 = vpop.f32.mrb[0].mxu0
  %v1846 = vadd.f32 %v1649, %v1845
  %v1847 = vpop.f32.mrb[0].mxu0
  %1848 = vmatprep.mubr.f32.mxu0 0.0
  %v1849 = vand.u32 %v921, 4294901760
  %1850 = vmatmul.mubr.f32.gmra.mrb[0].mxu0 %v1849
  %v1851 = vpop.f32.mrb[0].mxu0
  %v1852 = vadd.f32 %v1657, %v1851
  %v1853 = vpop.f32.mrb[0].mxu0
  %1854 = vmatprep.mubr.f32.mxu0 0.0
  %v1855 = vand.u32 %v924, 4294901760
  %1856 = vmatmul.mubr.f32.gmra.mrb[0].mxu0 %v1855
  %v1857 = vpop.f32.mrb[0].mxu0
  %v1858 = vadd.f32 %v1665, %v1857
  %v1859 = vpop.f32.mrb[0].mxu0
  %1860 = vmatprep.mubr.f32.mxu0 0.0
  %v1861 = vand.u32 %v927, 4294901760
  %1862 = vmatmul.mubr.f32.gmra.mrb[0].mxu0 %v1861
  %v1863 = vpop.f32.mrb[0].mxu0
  %v1864 = vadd.f32 %v1673, %v1863
  %v1865 = vpop.f32.mrb[0].mxu0
  %1866 = vmatprep.mubr.f32.mxu0 0.0
  %v1867 = vand.u32 %v930, 4294901760
  %1868 = vmatmul.mubr.f32.gmra.mrb[0].mxu0 %v1867
  %v1869 = vpop.f32.mrb[0].mxu0
  %v1870 = vadd.f32 %v1681, %v1869
  %v1871 = vpop.f32.mrb[0].mxu0
  %1872 = vmatprep.mubr.f32.mxu0 0.0
  %v1873 = vand.u32 %v933, 4294901760
  %1874 = vmatmul.mubr.f32.gmra.mrb[0].mxu0 %v1873
  %v1875 = vpop.f32.mrb[0].mxu0
  %v1876 = vadd.f32 %v1689, %v1875
  %v1877 = vpop.f32.mrb[0].mxu0
  %1878 = vmatprep.mubr.f32.mxu0 0.0
  %v1879 = vand.u32 %v936, 4294901760
  %1880 = vmatmul.mubr.f32.gmra.mrb[0].mxu0 %v1879
  %v1881 = vpop.f32.mrb[0].mxu0
  %v1882 = vadd.f32 %v1697, %v1881
  %v1883 = vpop.f32.mrb[0].mxu0
  %1884 = vmatprep.mubr.f32.mxu0 0.0
  %v1885 = vand.u32 %v939, 4294901760
  %1886 = vmatmul.mubr.f32.gmra.mrb[0].mxu0 %v1885
  %v1887 = vpop.f32.mrb[0].mxu0
  %v1888 = vadd.f32 %v1705, %v1887
  %v1889 = vpop.f32.mrb[0].mxu0
  %1890 = vmatprep.mubr.f32.mxu0 0.0
  %v1891 = vand.u32 %v942, 4294901760
  %1892 = vmatmul.mubr.f32.gmra.mrb[0].mxu0 %v1891
  %v1893 = vpop.f32.mrb[0].mxu0
  %v1894 = vadd.f32 %v1713, %v1893
  %v1895 = vpop.f32.mrb[0].mxu0
  %1896 = vmatprep.mubr.f32.mxu0 0.0
  %v1897 = vand.u32 %v945, 4294901760
  %1898 = vmatmul.mubr.f32.gmra.mrb[0].mxu0 %v1897
  %v1899 = vpop.f32.mrb[0].mxu0
  %v1900 = vadd.f32 %v1721, %v1899
  %v1901 = vpop.f32.mrb[0].mxu0
  %1902 = vmatprep.mubr.f32.mxu0 0.0
  %v1903 = vand.u32 %v948, 4294901760
  %1904 = vmatmul.mubr.f32.gmra.mrb[0].mxu0 %v1903
  %v1905 = vpop.f32.mrb[0].mxu0
  %v1906 = vadd.f32 %v1729, %v1905
  %v1907 = vpop.f32.mrb[0].mxu0
  %1908 = vmatprep.mubr.f32.mxu0 0.0
  %v1909 = vand.u32 %v951, 4294901760
  %1910 = vmatmul.mubr.f32.gmra.mrb[0].mxu0 %v1909
  %v1911 = vpop.f32.mrb[0].mxu0
  %v1912 = vadd.f32 %v1737, %v1911
  %v1913 = vpop.f32.mrb[0].mxu0
  %1914 = vmatprep.mubr.f32.mxu0 0.0
  %v1915 = vand.u32 %v954, 4294901760
  %1916 = vmatmul.mubr.f32.gmra.mrb[0].mxu0 %v1915
  %v1917 = vpop.f32.mrb[0].mxu0
  %v1918 = vadd.f32 %v1745, %v1917
  %v1919 = vpop.f32.mrb[0].mxu0
  %1920 = vdwg.mxu0
  %1921 = vmatprep.subr.mxu0 0.0
  %v1922 = vand.u32 %v37, 4294901760
  %1923 = vmatpush1.msra.mxu0 %v1922
  %1924 = vmatprep.subr.mxu0 0.0
  %v1925 = vand.u32 %v38, 4294901760
  %1926 = vmatpush1.msra.mxu0 %v1925
  %1927 = vmatprep.subr.mxu0 0.0
  %v1928 = vand.u32 %v39, 4294901760
  %1929 = vmatpush1.msra.mxu0 %v1928
  %1930 = vmatprep.subr.mxu0 0.0
  %v1931 = vand.u32 %v40, 4294901760
  %1932 = vmatpush1.msra.mxu0 %v1931
  %1933 = vmatprep.subr.mxu0 0.0
  %1934 = vmatpush1.msra.mxu0 0.0
  %1935 = vmatprep.subr.mxu0 0.0
  %1936 = vmatpush1.msra.mxu0 0.0
  %1937 = vmatprep.subr.mxu0 0.0
  %1938 = vmatpush1.msra.mxu0 0.0
  %1939 = vmatprep.subr.mxu0 0.0
  %1940 = vmatpush1.msra.mxu0 0.0
  %1941 = vmatprep.subr.mxu0 0.0
  %1942 = vmatpush1.msra.mxu0 0.0
  %1943 = vmatprep.subr.mxu0 0.0
  %1944 = vmatpush1.msra.mxu0 0.0
  %1945 = vmatprep.subr.mxu0 0.0
  %1946 = vmatpush1.msra.mxu0 0.0
  %1947 = vmatprep.subr.mxu0 0.0
  %1948 = vmatpush1.msra.mxu0 0.0
  %1949 = vmatprep.subr.mxu0 0.0
  %1950 = vmatpush1.msra.mxu0 0.0
  %1951 = vmatprep.subr.mxu0 0.0
  %1952 = vmatpush1.msra.mxu0 0.0
  %1953 = vmatprep.subr.mxu0 0.0
  %1954 = vmatpush1.msra.mxu0 0.0
  %1955 = vmatprep.subr.mxu0 0.0
  %1956 = vmatpush1.msra.mxu0 0.0
  %1957 = vmatprep.subr.mxu0 0.0
  %1958 = vmatpush1.msra.mxu0 0.0
  %1959 = vmatprep.subr.mxu0 0.0
  %1960 = vmatpush1.msra.mxu0 0.0
  %1961 = vmatprep.subr.mxu0 0.0
  %1962 = vmatpush1.msra.mxu0 0.0
  %1963 = vmatprep.subr.mxu0 0.0
  %1964 = vmatpush1.msra.mxu0 0.0
  %1965 = vmatprep.subr.mxu0 0.0
  %1966 = vmatpush1.msra.mxu0 0.0
  %1967 = vmatprep.subr.mxu0 0.0
  %1968 = vmatpush1.msra.mxu0 0.0
  %1969 = vmatprep.subr.mxu0 0.0
  %1970 = vmatpush1.msra.mxu0 0.0
  %1971 = vmatprep.subr.mxu0 0.0
  %1972 = vmatpush1.msra.mxu0 0.0
  %1973 = vmatprep.subr.mxu0 0.0
  %1974 = vmatpush1.msra.mxu0 0.0
  %1975 = vmatprep.subr.mxu0 0.0
  %1976 = vmatpush1.msra.mxu0 0.0
  %1977 = vmatprep.subr.mxu0 0.0
  %1978 = vmatpush1.msra.mxu0 0.0
  %1979 = vmatprep.subr.mxu0 0.0
  %1980 = vmatpush1.msra.mxu0 0.0
  %1981 = vmatprep.subr.mxu0 0.0
  %1982 = vmatpush1.msra.mxu0 0.0
  %1983 = vmatprep.subr.mxu0 0.0
  %1984 = vmatpush1.msra.mxu0 0.0
  %1985 = vmatprep.subr.mxu0 0.0
  %1986 = vmatpush1.msra.mxu0 0.0
  %1987 = vmatprep.subr.mxu0 0.0
  %1988 = vmatpush1.msra.mxu0 0.0
  %1989 = vmatprep.mubr.f32.mxu0 0.0
  %v1990 = vand.u32 %v909, 4294901760
  %1991 = vmatmul.mubr.f32.gmra.mrb[0].mxu0 %v1990
  %v1992 = vpop.f32.mrb[0].mxu0
  %v1993 = vadd.f32 %v1828, %v1992
  %v1994 = vpop.f32.mrb[0].mxu0
  %1995 = vmatprep.mubr.f32.mxu0 0.0
  %v1996 = vand.u32 %v912, 4294901760
  %1997 = vmatmul.mubr.f32.gmra.mrb[0].mxu0 %v1996
  %v1998 = vpop.f32.mrb[0].mxu0
  %v1999 = vadd.f32 %v1834, %v1998
  %v2000 = vpop.f32.mrb[0].mxu0
  %2001 = vmatprep.mubr.f32.mxu0 0.0
  %v2002 = vand.u32 %v915, 4294901760
  %2003 = vmatmul.mubr.f32.gmra.mrb[0].mxu0 %v2002
  %v2004 = vpop.f32.mrb[0].mxu0
  %v2005 = vadd.f32 %v1840, %v2004
  %v2006 = vpop.f32.mrb[0].mxu0
  %2007 = vmatprep.mubr.f32.mxu0 0.0
  %v2008 = vand.u32 %v918, 4294901760
  %2009 = vmatmul.mubr.f32.gmra.mrb[0].mxu0 %v2008
  %v2010 = vpop.f32.mrb[0].mxu0
  %v2011 = vadd.f32 %v1846, %v2010
  %v2012 = vpop.f32.mrb[0].mxu0
  %2013 = vmatprep.mubr.f32.mxu0 0.0
  %v2014 = vand.u32 %v921, 4294901760
  %2015 = vmatmul.mubr.f32.gmra.mrb[0].mxu0 %v2014
  %v2016 = vpop.f32.mrb[0].mxu0
  %v2017 = vadd.f32 %v1852, %v2016
  %v2018 = vpop.f32.mrb[0].mxu0
  %2019 = vmatprep.mubr.f32.mxu0 0.0
  %v2020 = vand.u32 %v924, 4294901760
  %2021 = vmatmul.mubr.f32.gmra.mrb[0].mxu0 %v2020
  %v2022 = vpop.f32.mrb[0].mxu0
  %v2023 = vadd.f32 %v1858, %v2022
  %v2024 = vpop.f32.mrb[0].mxu0
  %2025 = vmatprep.mubr.f32.mxu0 0.0
  %v2026 = vand.u32 %v927, 4294901760
  %2027 = vmatmul.mubr.f32.gmra.mrb[0].mxu0 %v2026
  %v2028 = vpop.f32.mrb[0].mxu0
  %v2029 = vadd.f32 %v1864, %v2028
  %v2030 = vpop.f32.mrb[0].mxu0
  %2031 = vmatprep.mubr.f32.mxu0 0.0
  %v2032 = vand.u32 %v930, 4294901760
  %2033 = vmatmul.mubr.f32.gmra.mrb[0].mxu0 %v2032
  %v2034 = vpop.f32.mrb[0].mxu0
  %v2035 = vadd.f32 %v1870, %v2034
  %v2036 = vpop.f32.mrb[0].mxu0
  %2037 = vmatprep.mubr.f32.mxu0 0.0
  %v2038 = vand.u32 %v933, 4294901760
  %2039 = vmatmul.mubr.f32.gmra.mrb[0].mxu0 %v2038
  %v2040 = vpop.f32.mrb[0].mxu0
  %v2041 = vadd.f32 %v1876, %v2040
  %v2042 = vpop.f32.mrb[0].mxu0
  %2043 = vmatprep.mubr.f32.mxu0 0.0
  %v2044 = vand.u32 %v936, 4294901760
  %2045 = vmatmul.mubr.f32.gmra.mrb[0].mxu0 %v2044
  %v2046 = vpop.f32.mrb[0].mxu0
  %v2047 = vadd.f32 %v1882, %v2046
  %v2048 = vpop.f32.mrb[0].mxu0
  %2049 = vmatprep.mubr.f32.mxu0 0.0
  %v2050 = vand.u32 %v939, 4294901760
  %2051 = vmatmul.mubr.f32.gmra.mrb[0].mxu0 %v2050
  %v2052 = vpop.f32.mrb[0].mxu0
  %v2053 = vadd.f32 %v1888, %v2052
  %v2054 = vpop.f32.mrb[0].mxu0
  %2055 = vmatprep.mubr.f32.mxu0 0.0
  %v2056 = vand.u32 %v942, 4294901760
  %2057 = vmatmul.mubr.f32.gmra.mrb[0].mxu0 %v2056
  %v2058 = vpop.f32.mrb[0].mxu0
  %v2059 = vadd.f32 %v1894, %v2058
  %v2060 = vpop.f32.mrb[0].mxu0
  %2061 = vmatprep.mubr.f32.mxu0 0.0
  %v2062 = vand.u32 %v945, 4294901760
  %2063 = vmatmul.mubr.f32.gmra.mrb[0].mxu0 %v2062
  %v2064 = vpop.f32.mrb[0].mxu0
  %v2065 = vadd.f32 %v1900, %v2064
  %v2066 = vpop.f32.mrb[0].mxu0
  %2067 = vmatprep.mubr.f32.mxu0 0.0
  %v2068 = vand.u32 %v948, 4294901760
  %2069 = vmatmul.mubr.f32.gmra.mrb[0].mxu0 %v2068
  %v2070 = vpop.f32.mrb[0].mxu0
  %v2071 = vadd.f32 %v1906, %v2070
  %v2072 = vpop.f32.mrb[0].mxu0
  %2073 = vmatprep.mubr.f32.mxu0 0.0
  %v2074 = vand.u32 %v951, 4294901760
  %2075 = vmatmul.mubr.f32.gmra.mrb[0].mxu0 %v2074
  %v2076 = vpop.f32.mrb[0].mxu0
  %v2077 = vadd.f32 %v1912, %v2076
  %v2078 = vpop.f32.mrb[0].mxu0
  %2079 = vmatprep.mubr.f32.mxu0 0.0
  %v2080 = vand.u32 %v954, 4294901760
  %2081 = vmatmul.mubr.f32.gmra.mrb[0].mxu0 %v2080
  %v2082 = vpop.f32.mrb[0].mxu0
  %v2083 = vadd.f32 %v1918, %v2082
  %v2084 = vpop.f32.mrb[0].mxu0
  %2085 = vdwg.mxu0
  %2086 = vmax.xlane.f32.xlu0 %v1993
  %v2087 = vpop.xlane.xlu0 %2086
  %2088 = vmax.xlane.f32.xlu0 %v1999
  %v2089 = vpop.xlane.xlu0 %2088
  %2090 = vmax.xlane.f32.xlu0 %v2005
  %v2091 = vpop.xlane.xlu0 %2090
  %2092 = vmax.xlane.f32.xlu0 %v2011
  %v2093 = vpop.xlane.xlu0 %2092
  %2094 = vmax.xlane.f32.xlu0 %v2017
  %v2095 = vpop.xlane.xlu0 %2094
  %2096 = vmax.xlane.f32.xlu0 %v2023
  %v2097 = vpop.xlane.xlu0 %2096
  %2098 = vmax.xlane.f32.xlu0 %v2029
  %v2099 = vpop.xlane.xlu0 %2098
  %2100 = vmax.xlane.f32.xlu0 %v2035
  %v2101 = vpop.xlane.xlu0 %2100
  %2102 = vmax.xlane.f32.xlu0 %v2041
  %v2103 = vpop.xlane.xlu0 %2102
  %2104 = vmax.xlane.f32.xlu0 %v2047
  %v2105 = vpop.xlane.xlu0 %2104
  %2106 = vmax.xlane.f32.xlu0 %v2053
  %v2107 = vpop.xlane.xlu0 %2106
  %2108 = vmax.xlane.f32.xlu0 %v2059
  %v2109 = vpop.xlane.xlu0 %2108
  %2110 = vmax.xlane.f32.xlu0 %v2065
  %v2111 = vpop.xlane.xlu0 %2110
  %2112 = vmax.xlane.f32.xlu0 %v2071
  %v2113 = vpop.xlane.xlu0 %2112
  %2114 = vmax.xlane.f32.xlu0 %v2077
  %v2115 = vpop.xlane.xlu0 %2114
  %2116 = vmax.xlane.f32.xlu0 %v2083
  %v2117 = vpop.xlane.xlu0 %2116
  %v2118 = vsub.f32 %v1993, %v2087
  %v2119 = vsub.f32 %v1999, %v2089
  %v2120 = vsub.f32 %v2005, %v2091
  %v2121 = vsub.f32 %v2011, %v2093
  %v2122 = vsub.f32 %v2017, %v2095
  %v2123 = vsub.f32 %v2023, %v2097
  %v2124 = vsub.f32 %v2029, %v2099
  %v2125 = vsub.f32 %v2035, %v2101
  %v2126 = vsub.f32 %v2041, %v2103
  %v2127 = vsub.f32 %v2047, %v2105
  %v2128 = vsub.f32 %v2053, %v2107
  %v2129 = vsub.f32 %v2059, %v2109
  %v2130 = vsub.f32 %v2065, %v2111
  %v2131 = vsub.f32 %v2071, %v2113
  %v2132 = vsub.f32 %v2077, %v2115
  %v2133 = vsub.f32 %v2083, %v2117
  %v2134 = vmul.f32 %v2118, 1.442695
  %v2135 = vpow.pop %v2134
  %v2136 = vmul.f32 %v2119, 1.442695
  %v2137 = vpow.pop %v2136
  %v2138 = vmul.f32 %v2120, 1.442695
  %v2139 = vpow.pop %v2138
  %v2140 = vmul.f32 %v2121, 1.442695
  %v2141 = vpow.pop %v2140
  %v2142 = vmul.f32 %v2122, 1.442695
  %v2143 = vpow.pop %v2142
  %v2144 = vmul.f32 %v2123, 1.442695
  %v2145 = vpow.pop %v2144
  %v2146 = vmul.f32 %v2124, 1.442695
  %v2147 = vpow.pop %v2146
  %v2148 = vmul.f32 %v2125, 1.442695
  %v2149 = vpow.pop %v2148
  %v2150 = vmul.f32 %v2126, 1.442695
  %v2151 = vpow.pop %v2150
  %v2152 = vmul.f32 %v2127, 1.442695
  %v2153 = vpow.pop %v2152
  %v2154 = vmul.f32 %v2128, 1.442695
  %v2155 = vpow.pop %v2154
  %v2156 = vmul.f32 %v2129, 1.442695
  %v2157 = vpow.pop %v2156
  %v2158 = vmul.f32 %v2130, 1.442695
  %v2159 = vpow.pop %v2158
  %v2160 = vmul.f32 %v2131, 1.442695
  %v2161 = vpow.pop %v2160
  %v2162 = vmul.f32 %v2132, 1.442695
  %v2163 = vpow.pop %v2162
  %v2164 = vmul.f32 %v2133, 1.442695
  %v2165 = vpow.pop %v2164
  %2166 = vadd.xlane.f32.xlu0 %v2135
  %v2167 = vpop.xlane.xlu0 %2166
  %2168 = vadd.xlane.f32.xlu0 %v2137
  %v2169 = vpop.xlane.xlu0 %2168
  %2170 = vadd.xlane.f32.xlu0 %v2139
  %v2171 = vpop.xlane.xlu0 %2170
  %2172 = vadd.xlane.f32.xlu0 %v2141
  %v2173 = vpop.xlane.xlu0 %2172
  %2174 = vadd.xlane.f32.xlu0 %v2143
  %v2175 = vpop.xlane.xlu0 %2174
  %2176 = vadd.xlane.f32.xlu0 %v2145
  %v2177 = vpop.xlane.xlu0 %2176
  %2178 = vadd.xlane.f32.xlu0 %v2147
  %v2179 = vpop.xlane.xlu0 %2178
  %2180 = vadd.xlane.f32.xlu0 %v2149
  %v2181 = vpop.xlane.xlu0 %2180
  %2182 = vadd.xlane.f32.xlu0 %v2151
  %v2183 = vpop.xlane.xlu0 %2182
  %2184 = vadd.xlane.f32.xlu0 %v2153
  %v2185 = vpop.xlane.xlu0 %2184
  %2186 = vadd.xlane.f32.xlu0 %v2155
  %v2187 = vpop.xlane.xlu0 %2186
  %2188 = vadd.xlane.f32.xlu0 %v2157
  %v2189 = vpop.xlane.xlu0 %2188
  %2190 = vadd.xlane.f32.xlu0 %v2159
  %v2191 = vpop.xlane.xlu0 %2190
  %2192 = vadd.xlane.f32.xlu0 %v2161
  %v2193 = vpop.xlane.xlu0 %2192
  %2194 = vadd.xlane.f32.xlu0 %v2163
  %v2195 = vpop.xlane.xlu0 %2194
  %2196 = vadd.xlane.f32.xlu0 %v2165
  %v2197 = vpop.xlane.xlu0 %2196
  %v2198 = vrcp.pop %v2167
  %v2199 = vrcp.pop %v2169
  %v2200 = vrcp.pop %v2171
  %v2201 = vrcp.pop %v2173
  %v2202 = vrcp.pop %v2175
  %v2203 = vrcp.pop %v2177
  %v2204 = vrcp.pop %v2179
  %v2205 = vrcp.pop %v2181
  %v2206 = vrcp.pop %v2183
  %v2207 = vrcp.pop %v2185
  %v2208 = vrcp.pop %v2187
  %v2209 = vrcp.pop %v2189
  %v2210 = vrcp.pop %v2191
  %v2211 = vrcp.pop %v2193
  %v2212 = vrcp.pop %v2195
  %v2213 = vrcp.pop %v2197
  %v2214 = vmul.f32 %v2167, %v2198
  %v2215 = vmul.f32 %v2169, %v2199
  %v2216 = vmul.f32 %v2171, %v2200
  %v2217 = vmul.f32 %v2173, %v2201
  %v2218 = vmul.f32 %v2175, %v2202
  %v2219 = vmul.f32 %v2177, %v2203
  %v2220 = vmul.f32 %v2179, %v2204
  %v2221 = vmul.f32 %v2181, %v2205
  %v2222 = vmul.f32 %v2183, %v2206
  %v2223 = vmul.f32 %v2185, %v2207
  %v2224 = vmul.f32 %v2187, %v2208
  %v2225 = vmul.f32 %v2189, %v2209
  %v2226 = vmul.f32 %v2191, %v2210
  %v2227 = vmul.f32 %v2193, %v2211
  %v2228 = vmul.f32 %v2195, %v2212
  %v2229 = vmul.f32 %v2197, %v2213
  %v2230 = vsub.f32 2.0, %v2214
  %v2231 = vsub.f32 2.0, %v2215
  %v2232 = vsub.f32 2.0, %v2216
  %v2233 = vsub.f32 2.0, %v2217
  %v2234 = vsub.f32 2.0, %v2218
  %v2235 = vsub.f32 2.0, %v2219
  %v2236 = vsub.f32 2.0, %v2220
  %v2237 = vsub.f32 2.0, %v2221
  %v2238 = vsub.f32 2.0, %v2222
  %v2239 = vsub.f32 2.0, %v2223
  %v2240 = vsub.f32 2.0, %v2224
  %v2241 = vsub.f32 2.0, %v2225
  %v2242 = vsub.f32 2.0, %v2226
  %v2243 = vsub.f32 2.0, %v2227
  %v2244 = vsub.f32 2.0, %v2228
  %v2245 = vsub.f32 2.0, %v2229
  %v2246 = vmul.f32 %v2198, %v2230
  %v2247 = vmul.f32 %v2199, %v2231
  %v2248 = vmul.f32 %v2200, %v2232
  %v2249 = vmul.f32 %v2201, %v2233
  %v2250 = vmul.f32 %v2202, %v2234
  %v2251 = vmul.f32 %v2203, %v2235
  %v2252 = vmul.f32 %v2204, %v2236
  %v2253 = vmul.f32 %v2205, %v2237
  %v2254 = vmul.f32 %v2206, %v2238
  %v2255 = vmul.f32 %v2207, %v2239
  %v2256 = vmul.f32 %v2208, %v2240
  %v2257 = vmul.f32 %v2209, %v2241
  %v2258 = vmul.f32 %v2210, %v2242
  %v2259 = vmul.f32 %v2211, %v2243
  %v2260 = vmul.f32 %v2212, %v2244
  %v2261 = vmul.f32 %v2213, %v2245
  %v2262 = vmul.f32 %v2135, %v2246
  %v2263 = vmul.f32 %v2137, %v2247
  %v2264 = vmul.f32 %v2139, %v2248
  %v2265 = vmul.f32 %v2141, %v2249
  %v2266 = vmul.f32 %v2143, %v2250
  %v2267 = vmul.f32 %v2145, %v2251
  %v2268 = vmul.f32 %v2147, %v2252
  %v2269 = vmul.f32 %v2149, %v2253
  %v2270 = vmul.f32 %v2151, %v2254
  %v2271 = vmul.f32 %v2153, %v2255
  %v2272 = vmul.f32 %v2155, %v2256
  %v2273 = vmul.f32 %v2157, %v2257
  %v2274 = vmul.f32 %v2159, %v2258
  %v2275 = vmul.f32 %v2161, %v2259
  %v2276 = vmul.f32 %v2163, %v2260
  %v2277 = vmul.f32 %v2165, %v2261
  %v2278 = vadd.f32 %v2262, %v2263
  %v2279 = vadd.f32 %v2278, %v2264
  %v2280 = vadd.f32 %v2279, %v2265
  %v2281 = vadd.f32 %v2280, %v2266
  %v2282 = vadd.f32 %v2281, %v2267
  %v2283 = vadd.f32 %v2282, %v2268
  %v2284 = vadd.f32 %v2283, %v2269
  %v2285 = vadd.f32 %v2284, %v2270
  %v2286 = vadd.f32 %v2285, %v2271
  %v2287 = vadd.f32 %v2286, %v2272
  %v2288 = vadd.f32 %v2287, %v2273
  %v2289 = vadd.f32 %v2288, %v2274
  %v2290 = vadd.f32 %v2289, %v2275
  %v2291 = vadd.f32 %v2290, %v2276
  %v2292 = vadd.f32 %v2291, %v2277
  %v2293 = vrot.slane %v2292, 4
  %v2294 = vadd.f32 %v2292, %v2293
  %v2295 = vrot.slane %v2294, 2
  %v2296 = vadd.f32 %v2294, %v2295
  %v2297 = vrot.slane %v2296, 1
  %v2298 = vadd.f32 %v2296, %v2297
  %v2299 = vadd.f32 %v2298, 1e-09
  %v2300 = vrcp.pop %v2299
  %v2301 = vmul.f32 %v2299, %v2300
  %v2302 = vsub.f32 2.0, %v2301
  %v2303 = vmul.f32 %v2300, %v2302
  %v2304 = vmul.f32 %v2262, %v2303
  %v2305 = vmul.f32 %v2263, %v2303
  %v2306 = vmul.f32 %v2264, %v2303
  %v2307 = vmul.f32 %v2265, %v2303
  %v2308 = vmul.f32 %v2266, %v2303
  %v2309 = vmul.f32 %v2267, %v2303
  %v2310 = vmul.f32 %v2268, %v2303
  %v2311 = vmul.f32 %v2269, %v2303
  %v2312 = vmul.f32 %v2270, %v2303
  %v2313 = vmul.f32 %v2271, %v2303
  %v2314 = vmul.f32 %v2272, %v2303
  %v2315 = vmul.f32 %v2273, %v2303
  %v2316 = vmul.f32 %v2274, %v2303
  %v2317 = vmul.f32 %v2275, %v2303
  %v2318 = vmul.f32 %v2276, %v2303
  %v2319 = vmul.f32 %v2277, %v2303
  %2320 = vmatprep.subr.mxu0 0.0
  %v2321 = vand.u32 %v2304, 4294901760
  %2322 = vmatpush1.msra.mxu0 %v2321
  %2323 = vmatprep.subr.mxu0 0.0
  %v2324 = vand.u32 %v2305, 4294901760
  %2325 = vmatpush1.msra.mxu0 %v2324
  %2326 = vmatprep.subr.mxu0 0.0
  %v2327 = vand.u32 %v2306, 4294901760
  %2328 = vmatpush1.msra.mxu0 %v2327
  %2329 = vmatprep.subr.mxu0 0.0
  %v2330 = vand.u32 %v2307, 4294901760
  %2331 = vmatpush1.msra.mxu0 %v2330
  %2332 = vmatprep.subr.mxu0 0.0
  %v2333 = vand.u32 %v2308, 4294901760
  %2334 = vmatpush1.msra.mxu0 %v2333
  %2335 = vmatprep.subr.mxu0 0.0
  %v2336 = vand.u32 %v2309, 4294901760
  %2337 = vmatpush1.msra.mxu0 %v2336
  %2338 = vmatprep.subr.mxu0 0.0
  %v2339 = vand.u32 %v2310, 4294901760
  %2340 = vmatpush1.msra.mxu0 %v2339
  %2341 = vmatprep.subr.mxu0 0.0
  %v2342 = vand.u32 %v2311, 4294901760
  %2343 = vmatpush1.msra.mxu0 %v2342
  %2344 = vmatprep.subr.mxu0 0.0
  %v2345 = vand.u32 %v2312, 4294901760
  %2346 = vmatpush1.msra.mxu0 %v2345
  %2347 = vmatprep.subr.mxu0 0.0
  %v2348 = vand.u32 %v2313, 4294901760
  %2349 = vmatpush1.msra.mxu0 %v2348
  %2350 = vmatprep.subr.mxu0 0.0
  %v2351 = vand.u32 %v2314, 4294901760
  %2352 = vmatpush1.msra.mxu0 %v2351
  %2353 = vmatprep.subr.mxu0 0.0
  %v2354 = vand.u32 %v2315, 4294901760
  %2355 = vmatpush1.msra.mxu0 %v2354
  %2356 = vmatprep.subr.mxu0 0.0
  %v2357 = vand.u32 %v2316, 4294901760
  %2358 = vmatpush1.msra.mxu0 %v2357
  %2359 = vmatprep.subr.mxu0 0.0
  %v2360 = vand.u32 %v2317, 4294901760
  %2361 = vmatpush1.msra.mxu0 %v2360
  %2362 = vmatprep.subr.mxu0 0.0
  %v2363 = vand.u32 %v2318, 4294901760
  %2364 = vmatpush1.msra.mxu0 %v2363
  %2365 = vmatprep.subr.mxu0 0.0
  %v2366 = vand.u32 %v2319, 4294901760
  %2367 = vmatpush1.msra.mxu0 %v2366
  %2368 = vmatprep.subr.mxu0 0.0
  %2369 = vmatpush1.msra.mxu0 0.0
  %2370 = vmatprep.subr.mxu0 0.0
  %2371 = vmatpush1.msra.mxu0 0.0
  %2372 = vmatprep.subr.mxu0 0.0
  %2373 = vmatpush1.msra.mxu0 0.0
  %2374 = vmatprep.subr.mxu0 0.0
  %2375 = vmatpush1.msra.mxu0 0.0
  %2376 = vmatprep.subr.mxu0 0.0
  %2377 = vmatpush1.msra.mxu0 0.0
  %2378 = vmatprep.subr.mxu0 0.0
  %2379 = vmatpush1.msra.mxu0 0.0
  %2380 = vmatprep.subr.mxu0 0.0
  %2381 = vmatpush1.msra.mxu0 0.0
  %2382 = vmatprep.subr.mxu0 0.0
  %2383 = vmatpush1.msra.mxu0 0.0
  %2384 = vmatprep.subr.mxu0 0.0
  %2385 = vmatpush1.msra.mxu0 0.0
  %2386 = vmatprep.subr.mxu0 0.0
  %2387 = vmatpush1.msra.mxu0 0.0
  %2388 = vmatprep.subr.mxu0 0.0
  %2389 = vmatpush1.msra.mxu0 0.0
  %2390 = vmatprep.subr.mxu0 0.0
  %2391 = vmatpush1.msra.mxu0 0.0
  %2392 = vmatprep.subr.mxu0 0.0
  %2393 = vmatpush1.msra.mxu0 0.0
  %2394 = vmatprep.subr.mxu0 0.0
  %2395 = vmatpush1.msra.mxu0 0.0
  %2396 = vmatprep.subr.mxu0 0.0
  %2397 = vmatpush1.msra.mxu0 0.0
  %2398 = vmatprep.subr.mxu0 0.0
  %2399 = vmatpush1.msra.mxu0 0.0
  %2400 = vmatprep.mubr.f32.mxu0 0.0
  %v2401 = vand.u32 %v872, 4294901760
  %v2402 = vsub.f32 %v872, %v2401
  %v2403 = vand.u32 %v2402, 4294901760
  %v2404 = vsub.f32 %v2402, %v2403
  %v2405 = vand.u32 %v2404, 4294901760
  %2406 = vmatmul.mubr.f32.gmra.mrb[0].mxu0 %v2405
  %v2407 = vpop.f32.mrb[0].mxu0
  %v2408 = vadd.f32 0.0, %v2407
  %v2409 = vpop.f32.mrb[0].mxu0
  %2410 = vmatprep.mubr.f32.mxu0 0.0
  %v2411 = vand.u32 %v873, 4294901760
  %v2412 = vsub.f32 %v873, %v2411
  %v2413 = vand.u32 %v2412, 4294901760
  %v2414 = vsub.f32 %v2412, %v2413
  %v2415 = vand.u32 %v2414, 4294901760
  %2416 = vmatmul.mubr.f32.gmra.mrb[0].mxu0 %v2415
  %v2417 = vpop.f32.mrb[0].mxu0
  %v2418 = vadd.f32 0.0, %v2417
  %v2419 = vpop.f32.mrb[0].mxu0
  %2420 = vmatprep.mubr.f32.mxu0 0.0
  %v2421 = vand.u32 %v874, 4294901760
  %v2422 = vsub.f32 %v874, %v2421
  %v2423 = vand.u32 %v2422, 4294901760
  %v2424 = vsub.f32 %v2422, %v2423
  %v2425 = vand.u32 %v2424, 4294901760
  %2426 = vmatmul.mubr.f32.gmra.mrb[0].mxu0 %v2425
  %v2427 = vpop.f32.mrb[0].mxu0
  %v2428 = vadd.f32 0.0, %v2427
  %v2429 = vpop.f32.mrb[0].mxu0
  %2430 = vmatprep.mubr.f32.mxu0 0.0
  %v2431 = vand.u32 %v875, 4294901760
  %v2432 = vsub.f32 %v875, %v2431
  %v2433 = vand.u32 %v2432, 4294901760
  %v2434 = vsub.f32 %v2432, %v2433
  %v2435 = vand.u32 %v2434, 4294901760
  %2436 = vmatmul.mubr.f32.gmra.mrb[0].mxu0 %v2435
  %v2437 = vpop.f32.mrb[0].mxu0
  %v2438 = vadd.f32 0.0, %v2437
  %v2439 = vpop.f32.mrb[0].mxu0
  %2440 = vdwg.mxu0
  %2441 = vmatprep.subr.mxu0 0.0
  %v2442 = vand.u32 %v2304, 4294901760
  %v2443 = vsub.f32 %v2304, %v2442
  %v2444 = vand.u32 %v2443, 4294901760
  %v2445 = vsub.f32 %v2443, %v2444
  %v2446 = vand.u32 %v2445, 4294901760
  %2447 = vmatpush1.msra.mxu0 %v2446
  %2448 = vmatprep.subr.mxu0 0.0
  %v2449 = vand.u32 %v2305, 4294901760
  %v2450 = vsub.f32 %v2305, %v2449
  %v2451 = vand.u32 %v2450, 4294901760
  %v2452 = vsub.f32 %v2450, %v2451
  %v2453 = vand.u32 %v2452, 4294901760
  %2454 = vmatpush1.msra.mxu0 %v2453
  %2455 = vmatprep.subr.mxu0 0.0
  %v2456 = vand.u32 %v2306, 4294901760
  %v2457 = vsub.f32 %v2306, %v2456
  %v2458 = vand.u32 %v2457, 4294901760
  %v2459 = vsub.f32 %v2457, %v2458
  %v2460 = vand.u32 %v2459, 4294901760
  %2461 = vmatpush1.msra.mxu0 %v2460
  %2462 = vmatprep.subr.mxu0 0.0
  %v2463 = vand.u32 %v2307, 4294901760
  %v2464 = vsub.f32 %v2307, %v2463
  %v2465 = vand.u32 %v2464, 4294901760
  %v2466 = vsub.f32 %v2464, %v2465
  %v2467 = vand.u32 %v2466, 4294901760
  %2468 = vmatpush1.msra.mxu0 %v2467
  %2469 = vmatprep.subr.mxu0 0.0
  %v2470 = vand.u32 %v2308, 4294901760
  %v2471 = vsub.f32 %v2308, %v2470
  %v2472 = vand.u32 %v2471, 4294901760
  %v2473 = vsub.f32 %v2471, %v2472
  %v2474 = vand.u32 %v2473, 4294901760
  %2475 = vmatpush1.msra.mxu0 %v2474
  %2476 = vmatprep.subr.mxu0 0.0
  %v2477 = vand.u32 %v2309, 4294901760
  %v2478 = vsub.f32 %v2309, %v2477
  %v2479 = vand.u32 %v2478, 4294901760
  %v2480 = vsub.f32 %v2478, %v2479
  %v2481 = vand.u32 %v2480, 4294901760
  %2482 = vmatpush1.msra.mxu0 %v2481
  %2483 = vmatprep.subr.mxu0 0.0
  %v2484 = vand.u32 %v2310, 4294901760
  %v2485 = vsub.f32 %v2310, %v2484
  %v2486 = vand.u32 %v2485, 4294901760
  %v2487 = vsub.f32 %v2485, %v2486
  %v2488 = vand.u32 %v2487, 4294901760
  %2489 = vmatpush1.msra.mxu0 %v2488
  %2490 = vmatprep.subr.mxu0 0.0
  %v2491 = vand.u32 %v2311, 4294901760
  %v2492 = vsub.f32 %v2311, %v2491
  %v2493 = vand.u32 %v2492, 4294901760
  %v2494 = vsub.f32 %v2492, %v2493
  %v2495 = vand.u32 %v2494, 4294901760
  %2496 = vmatpush1.msra.mxu0 %v2495
  %2497 = vmatprep.subr.mxu0 0.0
  %v2498 = vand.u32 %v2312, 4294901760
  %v2499 = vsub.f32 %v2312, %v2498
  %v2500 = vand.u32 %v2499, 4294901760
  %v2501 = vsub.f32 %v2499, %v2500
  %v2502 = vand.u32 %v2501, 4294901760
  %2503 = vmatpush1.msra.mxu0 %v2502
  %2504 = vmatprep.subr.mxu0 0.0
  %v2505 = vand.u32 %v2313, 4294901760
  %v2506 = vsub.f32 %v2313, %v2505
  %v2507 = vand.u32 %v2506, 4294901760
  %v2508 = vsub.f32 %v2506, %v2507
  %v2509 = vand.u32 %v2508, 4294901760
  %2510 = vmatpush1.msra.mxu0 %v2509
  %2511 = vmatprep.subr.mxu0 0.0
  %v2512 = vand.u32 %v2314, 4294901760
  %v2513 = vsub.f32 %v2314, %v2512
  %v2514 = vand.u32 %v2513, 4294901760
  %v2515 = vsub.f32 %v2513, %v2514
  %v2516 = vand.u32 %v2515, 4294901760
  %2517 = vmatpush1.msra.mxu0 %v2516
  %2518 = vmatprep.subr.mxu0 0.0
  %v2519 = vand.u32 %v2315, 4294901760
  %v2520 = vsub.f32 %v2315, %v2519
  %v2521 = vand.u32 %v2520, 4294901760
  %v2522 = vsub.f32 %v2520, %v2521
  %v2523 = vand.u32 %v2522, 4294901760
  %2524 = vmatpush1.msra.mxu0 %v2523
  %2525 = vmatprep.subr.mxu0 0.0
  %v2526 = vand.u32 %v2316, 4294901760
  %v2527 = vsub.f32 %v2316, %v2526
  %v2528 = vand.u32 %v2527, 4294901760
  %v2529 = vsub.f32 %v2527, %v2528
  %v2530 = vand.u32 %v2529, 4294901760
  %2531 = vmatpush1.msra.mxu0 %v2530
  %2532 = vmatprep.subr.mxu0 0.0
  %v2533 = vand.u32 %v2317, 4294901760
  %v2534 = vsub.f32 %v2317, %v2533
  %v2535 = vand.u32 %v2534, 4294901760
  %v2536 = vsub.f32 %v2534, %v2535
  %v2537 = vand.u32 %v2536, 4294901760
  %2538 = vmatpush1.msra.mxu0 %v2537
  %2539 = vmatprep.subr.mxu0 0.0
  %v2540 = vand.u32 %v2318, 4294901760
  %v2541 = vsub.f32 %v2318, %v2540
  %v2542 = vand.u32 %v2541, 4294901760
  %v2543 = vsub.f32 %v2541, %v2542
  %v2544 = vand.u32 %v2543, 4294901760
  %2545 = vmatpush1.msra.mxu0 %v2544
  %2546 = vmatprep.subr.mxu0 0.0
  %v2547 = vand.u32 %v2319, 4294901760
  %v2548 = vsub.f32 %v2319, %v2547
  %v2549 = vand.u32 %v2548, 4294901760
  %v2550 = vsub.f32 %v2548, %v2549
  %v2551 = vand.u32 %v2550, 4294901760
  %2552 = vmatpush1.msra.mxu0 %v2551
  %2553 = vmatprep.subr.mxu0 0.0
  %2554 = vmatpush1.msra.mxu0 0.0
  %2555 = vmatprep.subr.mxu0 0.0
  %2556 = vmatpush1.msra.mxu0 0.0
  %2557 = vmatprep.subr.mxu0 0.0
  %2558 = vmatpush1.msra.mxu0 0.0
  %2559 = vmatprep.subr.mxu0 0.0
  %2560 = vmatpush1.msra.mxu0 0.0
  %2561 = vmatprep.subr.mxu0 0.0
  %2562 = vmatpush1.msra.mxu0 0.0
  %2563 = vmatprep.subr.mxu0 0.0
  %2564 = vmatpush1.msra.mxu0 0.0
  %2565 = vmatprep.subr.mxu0 0.0
  %2566 = vmatpush1.msra.mxu0 0.0
  %2567 = vmatprep.subr.mxu0 0.0
  %2568 = vmatpush1.msra.mxu0 0.0
  %2569 = vmatprep.subr.mxu0 0.0
  %2570 = vmatpush1.msra.mxu0 0.0
  %2571 = vmatprep.subr.mxu0 0.0
  %2572 = vmatpush1.msra.mxu0 0.0
  %2573 = vmatprep.subr.mxu0 0.0
  %2574 = vmatpush1.msra.mxu0 0.0
  %2575 = vmatprep.subr.mxu0 0.0
  %2576 = vmatpush1.msra.mxu0 0.0
  %2577 = vmatprep.subr.mxu0 0.0
  %2578 = vmatpush1.msra.mxu0 0.0
  %2579 = vmatprep.subr.mxu0 0.0
  %2580 = vmatpush1.msra.mxu0 0.0
  %2581 = vmatprep.subr.mxu0 0.0
  %2582 = vmatpush1.msra.mxu0 0.0
  %2583 = vmatprep.subr.mxu0 0.0
  %2584 = vmatpush1.msra.mxu0 0.0
  %2585 = vmatprep.mubr.f32.mxu0 0.0
  %v2586 = vand.u32 %v872, 4294901760
  %2587 = vmatmul.mubr.f32.gmra.mrb[0].mxu0 %v2586
  %v2588 = vpop.f32.mrb[0].mxu0
  %v2589 = vadd.f32 %v2408, %v2588
  %v2590 = vpop.f32.mrb[0].mxu0
  %2591 = vmatprep.mubr.f32.mxu0 0.0
  %v2592 = vand.u32 %v873, 4294901760
  %2593 = vmatmul.mubr.f32.gmra.mrb[0].mxu0 %v2592
  %v2594 = vpop.f32.mrb[0].mxu0
  %v2595 = vadd.f32 %v2418, %v2594
  %v2596 = vpop.f32.mrb[0].mxu0
  %2597 = vmatprep.mubr.f32.mxu0 0.0
  %v2598 = vand.u32 %v874, 4294901760
  %2599 = vmatmul.mubr.f32.gmra.mrb[0].mxu0 %v2598
  %v2600 = vpop.f32.mrb[0].mxu0
  %v2601 = vadd.f32 %v2428, %v2600
  %v2602 = vpop.f32.mrb[0].mxu0
  %2603 = vmatprep.mubr.f32.mxu0 0.0
  %v2604 = vand.u32 %v875, 4294901760
  %2605 = vmatmul.mubr.f32.gmra.mrb[0].mxu0 %v2604
  %v2606 = vpop.f32.mrb[0].mxu0
  %v2607 = vadd.f32 %v2438, %v2606
  %v2608 = vpop.f32.mrb[0].mxu0
  %2609 = vdwg.mxu0
  %2610 = vmatprep.subr.mxu0 0.0
  %v2611 = vand.u32 %v2304, 4294901760
  %v2612 = vsub.f32 %v2304, %v2611
  %2613 = vmatpush1.msra.mxu0 %v2612
  %2614 = vmatprep.subr.mxu0 0.0
  %v2615 = vand.u32 %v2305, 4294901760
  %v2616 = vsub.f32 %v2305, %v2615
  %2617 = vmatpush1.msra.mxu0 %v2616
  %2618 = vmatprep.subr.mxu0 0.0
  %v2619 = vand.u32 %v2306, 4294901760
  %v2620 = vsub.f32 %v2306, %v2619
  %2621 = vmatpush1.msra.mxu0 %v2620
  %2622 = vmatprep.subr.mxu0 0.0
  %v2623 = vand.u32 %v2307, 4294901760
  %v2624 = vsub.f32 %v2307, %v2623
  %2625 = vmatpush1.msra.mxu0 %v2624
  %2626 = vmatprep.subr.mxu0 0.0
  %v2627 = vand.u32 %v2308, 4294901760
  %v2628 = vsub.f32 %v2308, %v2627
  %2629 = vmatpush1.msra.mxu0 %v2628
  %2630 = vmatprep.subr.mxu0 0.0
  %v2631 = vand.u32 %v2309, 4294901760
  %v2632 = vsub.f32 %v2309, %v2631
  %2633 = vmatpush1.msra.mxu0 %v2632
  %2634 = vmatprep.subr.mxu0 0.0
  %v2635 = vand.u32 %v2310, 4294901760
  %v2636 = vsub.f32 %v2310, %v2635
  %2637 = vmatpush1.msra.mxu0 %v2636
  %2638 = vmatprep.subr.mxu0 0.0
  %v2639 = vand.u32 %v2311, 4294901760
  %v2640 = vsub.f32 %v2311, %v2639
  %2641 = vmatpush1.msra.mxu0 %v2640
  %2642 = vmatprep.subr.mxu0 0.0
  %v2643 = vand.u32 %v2312, 4294901760
  %v2644 = vsub.f32 %v2312, %v2643
  %2645 = vmatpush1.msra.mxu0 %v2644
  %2646 = vmatprep.subr.mxu0 0.0
  %v2647 = vand.u32 %v2313, 4294901760
  %v2648 = vsub.f32 %v2313, %v2647
  %2649 = vmatpush1.msra.mxu0 %v2648
  %2650 = vmatprep.subr.mxu0 0.0
  %v2651 = vand.u32 %v2314, 4294901760
  %v2652 = vsub.f32 %v2314, %v2651
  %2653 = vmatpush1.msra.mxu0 %v2652
  %2654 = vmatprep.subr.mxu0 0.0
  %v2655 = vand.u32 %v2315, 4294901760
  %v2656 = vsub.f32 %v2315, %v2655
  %2657 = vmatpush1.msra.mxu0 %v2656
  %2658 = vmatprep.subr.mxu0 0.0
  %v2659 = vand.u32 %v2316, 4294901760
  %v2660 = vsub.f32 %v2316, %v2659
  %2661 = vmatpush1.msra.mxu0 %v2660
  %2662 = vmatprep.subr.mxu0 0.0
  %v2663 = vand.u32 %v2317, 4294901760
  %v2664 = vsub.f32 %v2317, %v2663
  %2665 = vmatpush1.msra.mxu0 %v2664
  %2666 = vmatprep.subr.mxu0 0.0
  %v2667 = vand.u32 %v2318, 4294901760
  %v2668 = vsub.f32 %v2318, %v2667
  %2669 = vmatpush1.msra.mxu0 %v2668
  %2670 = vmatprep.subr.mxu0 0.0
  %v2671 = vand.u32 %v2319, 4294901760
  %v2672 = vsub.f32 %v2319, %v2671
  %2673 = vmatpush1.msra.mxu0 %v2672
  %2674 = vmatprep.subr.mxu0 0.0
  %2675 = vmatpush1.msra.mxu0 0.0
  %2676 = vmatprep.subr.mxu0 0.0
  %2677 = vmatpush1.msra.mxu0 0.0
  %2678 = vmatprep.subr.mxu0 0.0
  %2679 = vmatpush1.msra.mxu0 0.0
  %2680 = vmatprep.subr.mxu0 0.0
  %2681 = vmatpush1.msra.mxu0 0.0
  %2682 = vmatprep.subr.mxu0 0.0
  %2683 = vmatpush1.msra.mxu0 0.0
  %2684 = vmatprep.subr.mxu0 0.0
  %2685 = vmatpush1.msra.mxu0 0.0
  %2686 = vmatprep.subr.mxu0 0.0
  %2687 = vmatpush1.msra.mxu0 0.0
  %2688 = vmatprep.subr.mxu0 0.0
  %2689 = vmatpush1.msra.mxu0 0.0
  %2690 = vmatprep.subr.mxu0 0.0
  %2691 = vmatpush1.msra.mxu0 0.0
  %2692 = vmatprep.subr.mxu0 0.0
  %2693 = vmatpush1.msra.mxu0 0.0
  %2694 = vmatprep.subr.mxu0 0.0
  %2695 = vmatpush1.msra.mxu0 0.0
  %2696 = vmatprep.subr.mxu0 0.0
  %2697 = vmatpush1.msra.mxu0 0.0
  %2698 = vmatprep.subr.mxu0 0.0
  %2699 = vmatpush1.msra.mxu0 0.0
  %2700 = vmatprep.subr.mxu0 0.0
  %2701 = vmatpush1.msra.mxu0 0.0
  %2702 = vmatprep.subr.mxu0 0.0
  %2703 = vmatpush1.msra.mxu0 0.0
  %2704 = vmatprep.subr.mxu0 0.0
  %2705 = vmatpush1.msra.mxu0 0.0
  %2706 = vmatprep.mubr.f32.mxu0 0.0
  %v2707 = vand.u32 %v872, 4294901760
  %v2708 = vsub.f32 %v872, %v2707
  %2709 = vmatmul.mubr.f32.gmra.mrb[0].mxu0 %v2708
  %v2710 = vpop.f32.mrb[0].mxu0
  %v2711 = vadd.f32 %v2589, %v2710
  %v2712 = vpop.f32.mrb[0].mxu0
  %2713 = vmatprep.mubr.f32.mxu0 0.0
  %v2714 = vand.u32 %v873, 4294901760
  %v2715 = vsub.f32 %v873, %v2714
  %2716 = vmatmul.mubr.f32.gmra.mrb[0].mxu0 %v2715
  %v2717 = vpop.f32.mrb[0].mxu0
  %v2718 = vadd.f32 %v2595, %v2717
  %v2719 = vpop.f32.mrb[0].mxu0
  %2720 = vmatprep.mubr.f32.mxu0 0.0
  %v2721 = vand.u32 %v874, 4294901760
  %v2722 = vsub.f32 %v874, %v2721
  %2723 = vmatmul.mubr.f32.gmra.mrb[0].mxu0 %v2722
  %v2724 = vpop.f32.mrb[0].mxu0
  %v2725 = vadd.f32 %v2601, %v2724
  %v2726 = vpop.f32.mrb[0].mxu0
  %2727 = vmatprep.mubr.f32.mxu0 0.0
  %v2728 = vand.u32 %v875, 4294901760
  %v2729 = vsub.f32 %v875, %v2728
  %2730 = vmatmul.mubr.f32.gmra.mrb[0].mxu0 %v2729
  %v2731 = vpop.f32.mrb[0].mxu0
  %v2732 = vadd.f32 %v2607, %v2731
  %v2733 = vpop.f32.mrb[0].mxu0
  %2734 = vdwg.mxu0
  %2735 = vmatprep.subr.mxu0 0.0
  %v2736 = vand.u32 %v2304, 4294901760
  %2737 = vmatpush1.msra.mxu0 %v2736
  %2738 = vmatprep.subr.mxu0 0.0
  %v2739 = vand.u32 %v2305, 4294901760
  %2740 = vmatpush1.msra.mxu0 %v2739
  %2741 = vmatprep.subr.mxu0 0.0
  %v2742 = vand.u32 %v2306, 4294901760
  %2743 = vmatpush1.msra.mxu0 %v2742
  %2744 = vmatprep.subr.mxu0 0.0
  %v2745 = vand.u32 %v2307, 4294901760
  %2746 = vmatpush1.msra.mxu0 %v2745
  %2747 = vmatprep.subr.mxu0 0.0
  %v2748 = vand.u32 %v2308, 4294901760
  %2749 = vmatpush1.msra.mxu0 %v2748
  %2750 = vmatprep.subr.mxu0 0.0
  %v2751 = vand.u32 %v2309, 4294901760
  %2752 = vmatpush1.msra.mxu0 %v2751
  %2753 = vmatprep.subr.mxu0 0.0
  %v2754 = vand.u32 %v2310, 4294901760
  %2755 = vmatpush1.msra.mxu0 %v2754
  %2756 = vmatprep.subr.mxu0 0.0
  %v2757 = vand.u32 %v2311, 4294901760
  %2758 = vmatpush1.msra.mxu0 %v2757
  %2759 = vmatprep.subr.mxu0 0.0
  %v2760 = vand.u32 %v2312, 4294901760
  %2761 = vmatpush1.msra.mxu0 %v2760
  %2762 = vmatprep.subr.mxu0 0.0
  %v2763 = vand.u32 %v2313, 4294901760
  %2764 = vmatpush1.msra.mxu0 %v2763
  %2765 = vmatprep.subr.mxu0 0.0
  %v2766 = vand.u32 %v2314, 4294901760
  %2767 = vmatpush1.msra.mxu0 %v2766
  %2768 = vmatprep.subr.mxu0 0.0
  %v2769 = vand.u32 %v2315, 4294901760
  %2770 = vmatpush1.msra.mxu0 %v2769
  %2771 = vmatprep.subr.mxu0 0.0
  %v2772 = vand.u32 %v2316, 4294901760
  %2773 = vmatpush1.msra.mxu0 %v2772
  %2774 = vmatprep.subr.mxu0 0.0
  %v2775 = vand.u32 %v2317, 4294901760
  %2776 = vmatpush1.msra.mxu0 %v2775
  %2777 = vmatprep.subr.mxu0 0.0
  %v2778 = vand.u32 %v2318, 4294901760
  %2779 = vmatpush1.msra.mxu0 %v2778
  %2780 = vmatprep.subr.mxu0 0.0
  %v2781 = vand.u32 %v2319, 4294901760
  %2782 = vmatpush1.msra.mxu0 %v2781
  %2783 = vmatprep.subr.mxu0 0.0
  %2784 = vmatpush1.msra.mxu0 0.0
  %2785 = vmatprep.subr.mxu0 0.0
  %2786 = vmatpush1.msra.mxu0 0.0
  %2787 = vmatprep.subr.mxu0 0.0
  %2788 = vmatpush1.msra.mxu0 0.0
  %2789 = vmatprep.subr.mxu0 0.0
  %2790 = vmatpush1.msra.mxu0 0.0
  %2791 = vmatprep.subr.mxu0 0.0
  %2792 = vmatpush1.msra.mxu0 0.0
  %2793 = vmatprep.subr.mxu0 0.0
  %2794 = vmatpush1.msra.mxu0 0.0
  %2795 = vmatprep.subr.mxu0 0.0
  %2796 = vmatpush1.msra.mxu0 0.0
  %2797 = vmatprep.subr.mxu0 0.0
  %2798 = vmatpush1.msra.mxu0 0.0
  %2799 = vmatprep.subr.mxu0 0.0
  %2800 = vmatpush1.msra.mxu0 0.0
  %2801 = vmatprep.subr.mxu0 0.0
  %2802 = vmatpush1.msra.mxu0 0.0
  %2803 = vmatprep.subr.mxu0 0.0
  %2804 = vmatpush1.msra.mxu0 0.0
  %2805 = vmatprep.subr.mxu0 0.0
  %2806 = vmatpush1.msra.mxu0 0.0
  %2807 = vmatprep.subr.mxu0 0.0
  %2808 = vmatpush1.msra.mxu0 0.0
  %2809 = vmatprep.subr.mxu0 0.0
  %2810 = vmatpush1.msra.mxu0 0.0
  %2811 = vmatprep.subr.mxu0 0.0
  %2812 = vmatpush1.msra.mxu0 0.0
  %2813 = vmatprep.subr.mxu0 0.0
  %2814 = vmatpush1.msra.mxu0 0.0
  %2815 = vmatprep.mubr.f32.mxu0 0.0
  %v2816 = vand.u32 %v872, 4294901760
  %v2817 = vsub.f32 %v872, %v2816
  %v2818 = vand.u32 %v2817, 4294901760
  %2819 = vmatmul.mubr.f32.gmra.mrb[0].mxu0 %v2818
  %v2820 = vpop.f32.mrb[0].mxu0
  %v2821 = vadd.f32 %v2711, %v2820
  %v2822 = vpop.f32.mrb[0].mxu0
  %2823 = vmatprep.mubr.f32.mxu0 0.0
  %v2824 = vand.u32 %v873, 4294901760
  %v2825 = vsub.f32 %v873, %v2824
  %v2826 = vand.u32 %v2825, 4294901760
  %2827 = vmatmul.mubr.f32.gmra.mrb[0].mxu0 %v2826
  %v2828 = vpop.f32.mrb[0].mxu0
  %v2829 = vadd.f32 %v2718, %v2828
  %v2830 = vpop.f32.mrb[0].mxu0
  %2831 = vmatprep.mubr.f32.mxu0 0.0
  %v2832 = vand.u32 %v874, 4294901760
  %v2833 = vsub.f32 %v874, %v2832
  %v2834 = vand.u32 %v2833, 4294901760
  %2835 = vmatmul.mubr.f32.gmra.mrb[0].mxu0 %v2834
  %v2836 = vpop.f32.mrb[0].mxu0
  %v2837 = vadd.f32 %v2725, %v2836
  %v2838 = vpop.f32.mrb[0].mxu0
  %2839 = vmatprep.mubr.f32.mxu0 0.0
  %v2840 = vand.u32 %v875, 4294901760
  %v2841 = vsub.f32 %v875, %v2840
  %v2842 = vand.u32 %v2841, 4294901760
  %2843 = vmatmul.mubr.f32.gmra.mrb[0].mxu0 %v2842
  %v2844 = vpop.f32.mrb[0].mxu0
  %v2845 = vadd.f32 %v2732, %v2844
  %v2846 = vpop.f32.mrb[0].mxu0
  %2847 = vdwg.mxu0
  %2848 = vmatprep.subr.mxu0 0.0
  %v2849 = vand.u32 %v2304, 4294901760
  %v2850 = vsub.f32 %v2304, %v2849
  %v2851 = vand.u32 %v2850, 4294901760
  %2852 = vmatpush1.msra.mxu0 %v2851
  %2853 = vmatprep.subr.mxu0 0.0
  %v2854 = vand.u32 %v2305, 4294901760
  %v2855 = vsub.f32 %v2305, %v2854
  %v2856 = vand.u32 %v2855, 4294901760
  %2857 = vmatpush1.msra.mxu0 %v2856
  %2858 = vmatprep.subr.mxu0 0.0
  %v2859 = vand.u32 %v2306, 4294901760
  %v2860 = vsub.f32 %v2306, %v2859
  %v2861 = vand.u32 %v2860, 4294901760
  %2862 = vmatpush1.msra.mxu0 %v2861
  %2863 = vmatprep.subr.mxu0 0.0
  %v2864 = vand.u32 %v2307, 4294901760
  %v2865 = vsub.f32 %v2307, %v2864
  %v2866 = vand.u32 %v2865, 4294901760
  %2867 = vmatpush1.msra.mxu0 %v2866
  %2868 = vmatprep.subr.mxu0 0.0
  %v2869 = vand.u32 %v2308, 4294901760
  %v2870 = vsub.f32 %v2308, %v2869
  %v2871 = vand.u32 %v2870, 4294901760
  %2872 = vmatpush1.msra.mxu0 %v2871
  %2873 = vmatprep.subr.mxu0 0.0
  %v2874 = vand.u32 %v2309, 4294901760
  %v2875 = vsub.f32 %v2309, %v2874
  %v2876 = vand.u32 %v2875, 4294901760
  %2877 = vmatpush1.msra.mxu0 %v2876
  %2878 = vmatprep.subr.mxu0 0.0
  %v2879 = vand.u32 %v2310, 4294901760
  %v2880 = vsub.f32 %v2310, %v2879
  %v2881 = vand.u32 %v2880, 4294901760
  %2882 = vmatpush1.msra.mxu0 %v2881
  %2883 = vmatprep.subr.mxu0 0.0
  %v2884 = vand.u32 %v2311, 4294901760
  %v2885 = vsub.f32 %v2311, %v2884
  %v2886 = vand.u32 %v2885, 4294901760
  %2887 = vmatpush1.msra.mxu0 %v2886
  %2888 = vmatprep.subr.mxu0 0.0
  %v2889 = vand.u32 %v2312, 4294901760
  %v2890 = vsub.f32 %v2312, %v2889
  %v2891 = vand.u32 %v2890, 4294901760
  %2892 = vmatpush1.msra.mxu0 %v2891
  %2893 = vmatprep.subr.mxu0 0.0
  %v2894 = vand.u32 %v2313, 4294901760
  %v2895 = vsub.f32 %v2313, %v2894
  %v2896 = vand.u32 %v2895, 4294901760
  %2897 = vmatpush1.msra.mxu0 %v2896
  %2898 = vmatprep.subr.mxu0 0.0
  %v2899 = vand.u32 %v2314, 4294901760
  %v2900 = vsub.f32 %v2314, %v2899
  %v2901 = vand.u32 %v2900, 4294901760
  %2902 = vmatpush1.msra.mxu0 %v2901
  %2903 = vmatprep.subr.mxu0 0.0
  %v2904 = vand.u32 %v2315, 4294901760
  %v2905 = vsub.f32 %v2315, %v2904
  %v2906 = vand.u32 %v2905, 4294901760
  %2907 = vmatpush1.msra.mxu0 %v2906
  %2908 = vmatprep.subr.mxu0 0.0
  %v2909 = vand.u32 %v2316, 4294901760
  %v2910 = vsub.f32 %v2316, %v2909
  %v2911 = vand.u32 %v2910, 4294901760
  %2912 = vmatpush1.msra.mxu0 %v2911
  %2913 = vmatprep.subr.mxu0 0.0
  %v2914 = vand.u32 %v2317, 4294901760
  %v2915 = vsub.f32 %v2317, %v2914
  %v2916 = vand.u32 %v2915, 4294901760
  %2917 = vmatpush1.msra.mxu0 %v2916
  %2918 = vmatprep.subr.mxu0 0.0
  %v2919 = vand.u32 %v2318, 4294901760
  %v2920 = vsub.f32 %v2318, %v2919
  %v2921 = vand.u32 %v2920, 4294901760
  %2922 = vmatpush1.msra.mxu0 %v2921
  %2923 = vmatprep.subr.mxu0 0.0
  %v2924 = vand.u32 %v2319, 4294901760
  %v2925 = vsub.f32 %v2319, %v2924
  %v2926 = vand.u32 %v2925, 4294901760
  %2927 = vmatpush1.msra.mxu0 %v2926
  %2928 = vmatprep.subr.mxu0 0.0
  %2929 = vmatpush1.msra.mxu0 0.0
  %2930 = vmatprep.subr.mxu0 0.0
  %2931 = vmatpush1.msra.mxu0 0.0
  %2932 = vmatprep.subr.mxu0 0.0
  %2933 = vmatpush1.msra.mxu0 0.0
  %2934 = vmatprep.subr.mxu0 0.0
  %2935 = vmatpush1.msra.mxu0 0.0
  %2936 = vmatprep.subr.mxu0 0.0
  %2937 = vmatpush1.msra.mxu0 0.0
  %2938 = vmatprep.subr.mxu0 0.0
  %2939 = vmatpush1.msra.mxu0 0.0
  %2940 = vmatprep.subr.mxu0 0.0
  %2941 = vmatpush1.msra.mxu0 0.0
  %2942 = vmatprep.subr.mxu0 0.0
  %2943 = vmatpush1.msra.mxu0 0.0
  %2944 = vmatprep.subr.mxu0 0.0
  %2945 = vmatpush1.msra.mxu0 0.0
  %2946 = vmatprep.subr.mxu0 0.0
  %2947 = vmatpush1.msra.mxu0 0.0
  %2948 = vmatprep.subr.mxu0 0.0
  %2949 = vmatpush1.msra.mxu0 0.0
  %2950 = vmatprep.subr.mxu0 0.0
  %2951 = vmatpush1.msra.mxu0 0.0
  %2952 = vmatprep.subr.mxu0 0.0
  %2953 = vmatpush1.msra.mxu0 0.0
  %2954 = vmatprep.subr.mxu0 0.0
  %2955 = vmatpush1.msra.mxu0 0.0
  %2956 = vmatprep.subr.mxu0 0.0
  %2957 = vmatpush1.msra.mxu0 0.0
  %2958 = vmatprep.subr.mxu0 0.0
  %2959 = vmatpush1.msra.mxu0 0.0
  %2960 = vmatprep.mubr.f32.mxu0 0.0
  %v2961 = vand.u32 %v872, 4294901760
  %2962 = vmatmul.mubr.f32.gmra.mrb[0].mxu0 %v2961
  %v2963 = vpop.f32.mrb[0].mxu0
  %v2964 = vadd.f32 %v2821, %v2963
  %v2965 = vpop.f32.mrb[0].mxu0
  %2966 = vmatprep.mubr.f32.mxu0 0.0
  %v2967 = vand.u32 %v873, 4294901760
  %2968 = vmatmul.mubr.f32.gmra.mrb[0].mxu0 %v2967
  %v2969 = vpop.f32.mrb[0].mxu0
  %v2970 = vadd.f32 %v2829, %v2969
  %v2971 = vpop.f32.mrb[0].mxu0
  %2972 = vmatprep.mubr.f32.mxu0 0.0
  %v2973 = vand.u32 %v874, 4294901760
  %2974 = vmatmul.mubr.f32.gmra.mrb[0].mxu0 %v2973
  %v2975 = vpop.f32.mrb[0].mxu0
  %v2976 = vadd.f32 %v2837, %v2975
  %v2977 = vpop.f32.mrb[0].mxu0
  %2978 = vmatprep.mubr.f32.mxu0 0.0
  %v2979 = vand.u32 %v875, 4294901760
  %2980 = vmatmul.mubr.f32.gmra.mrb[0].mxu0 %v2979
  %v2981 = vpop.f32.mrb[0].mxu0
  %v2982 = vadd.f32 %v2845, %v2981
  %v2983 = vpop.f32.mrb[0].mxu0
  %2984 = vdwg.mxu0
  %2985 = vmatprep.subr.mxu0 0.0
  %v2986 = vand.u32 %v2304, 4294901760
  %2987 = vmatpush1.msra.mxu0 %v2986
  %2988 = vmatprep.subr.mxu0 0.0
  %v2989 = vand.u32 %v2305, 4294901760
  %2990 = vmatpush1.msra.mxu0 %v2989
  %2991 = vmatprep.subr.mxu0 0.0
  %v2992 = vand.u32 %v2306, 4294901760
  %2993 = vmatpush1.msra.mxu0 %v2992
  %2994 = vmatprep.subr.mxu0 0.0
  %v2995 = vand.u32 %v2307, 4294901760
  %2996 = vmatpush1.msra.mxu0 %v2995
  %2997 = vmatprep.subr.mxu0 0.0
  %v2998 = vand.u32 %v2308, 4294901760
  %2999 = vmatpush1.msra.mxu0 %v2998
  %3000 = vmatprep.subr.mxu0 0.0
  %v3001 = vand.u32 %v2309, 4294901760
  %3002 = vmatpush1.msra.mxu0 %v3001
  %3003 = vmatprep.subr.mxu0 0.0
  %v3004 = vand.u32 %v2310, 4294901760
  %3005 = vmatpush1.msra.mxu0 %v3004
  %3006 = vmatprep.subr.mxu0 0.0
  %v3007 = vand.u32 %v2311, 4294901760
  %3008 = vmatpush1.msra.mxu0 %v3007
  %3009 = vmatprep.subr.mxu0 0.0
  %v3010 = vand.u32 %v2312, 4294901760
  %3011 = vmatpush1.msra.mxu0 %v3010
  %3012 = vmatprep.subr.mxu0 0.0
  %v3013 = vand.u32 %v2313, 4294901760
  %3014 = vmatpush1.msra.mxu0 %v3013
  %3015 = vmatprep.subr.mxu0 0.0
  %v3016 = vand.u32 %v2314, 4294901760
  %3017 = vmatpush1.msra.mxu0 %v3016
  %3018 = vmatprep.subr.mxu0 0.0
  %v3019 = vand.u32 %v2315, 4294901760
  %3020 = vmatpush1.msra.mxu0 %v3019
  %3021 = vmatprep.subr.mxu0 0.0
  %v3022 = vand.u32 %v2316, 4294901760
  %3023 = vmatpush1.msra.mxu0 %v3022
  %3024 = vmatprep.subr.mxu0 0.0
  %v3025 = vand.u32 %v2317, 4294901760
  %3026 = vmatpush1.msra.mxu0 %v3025
  %3027 = vmatprep.subr.mxu0 0.0
  %v3028 = vand.u32 %v2318, 4294901760
  %3029 = vmatpush1.msra.mxu0 %v3028
  %3030 = vmatprep.subr.mxu0 0.0
  %v3031 = vand.u32 %v2319, 4294901760
  %3032 = vmatpush1.msra.mxu0 %v3031
  %3033 = vmatprep.subr.mxu0 0.0
  %3034 = vmatpush1.msra.mxu0 0.0
  %3035 = vmatprep.subr.mxu0 0.0
  %3036 = vmatpush1.msra.mxu0 0.0
  %3037 = vmatprep.subr.mxu0 0.0
  %3038 = vmatpush1.msra.mxu0 0.0
  %3039 = vmatprep.subr.mxu0 0.0
  %3040 = vmatpush1.msra.mxu0 0.0
  %3041 = vmatprep.subr.mxu0 0.0
  %3042 = vmatpush1.msra.mxu0 0.0
  %3043 = vmatprep.subr.mxu0 0.0
  %3044 = vmatpush1.msra.mxu0 0.0
  %3045 = vmatprep.subr.mxu0 0.0
  %3046 = vmatpush1.msra.mxu0 0.0
  %3047 = vmatprep.subr.mxu0 0.0
  %3048 = vmatpush1.msra.mxu0 0.0
  %3049 = vmatprep.subr.mxu0 0.0
  %3050 = vmatpush1.msra.mxu0 0.0
  %3051 = vmatprep.subr.mxu0 0.0
  %3052 = vmatpush1.msra.mxu0 0.0
  %3053 = vmatprep.subr.mxu0 0.0
  %3054 = vmatpush1.msra.mxu0 0.0
  %3055 = vmatprep.subr.mxu0 0.0
  %3056 = vmatpush1.msra.mxu0 0.0
  %3057 = vmatprep.subr.mxu0 0.0
  %3058 = vmatpush1.msra.mxu0 0.0
  %3059 = vmatprep.subr.mxu0 0.0
  %3060 = vmatpush1.msra.mxu0 0.0
  %3061 = vmatprep.subr.mxu0 0.0
  %3062 = vmatpush1.msra.mxu0 0.0
  %3063 = vmatprep.subr.mxu0 0.0
  %3064 = vmatpush1.msra.mxu0 0.0
  %3065 = vmatprep.mubr.f32.mxu0 0.0
  %v3066 = vand.u32 %v872, 4294901760
  %3067 = vmatmul.mubr.f32.gmra.mrb[0].mxu0 %v3066
  %v3068 = vpop.f32.mrb[0].mxu0
  %v3069 = vadd.f32 %v2964, %v3068
  %v3070 = vpop.f32.mrb[0].mxu0
  %3071 = vmatprep.mubr.f32.mxu0 0.0
  %v3072 = vand.u32 %v873, 4294901760
  %3073 = vmatmul.mubr.f32.gmra.mrb[0].mxu0 %v3072
  %v3074 = vpop.f32.mrb[0].mxu0
  %v3075 = vadd.f32 %v2970, %v3074
  %v3076 = vpop.f32.mrb[0].mxu0
  %3077 = vmatprep.mubr.f32.mxu0 0.0
  %v3078 = vand.u32 %v874, 4294901760
  %3079 = vmatmul.mubr.f32.gmra.mrb[0].mxu0 %v3078
  %v3080 = vpop.f32.mrb[0].mxu0
  %v3081 = vadd.f32 %v2976, %v3080
  %v3082 = vpop.f32.mrb[0].mxu0
  %3083 = vmatprep.mubr.f32.mxu0 0.0
  %v3084 = vand.u32 %v875, 4294901760
  %3085 = vmatmul.mubr.f32.gmra.mrb[0].mxu0 %v3084
  %v3086 = vpop.f32.mrb[0].mxu0
  %v3087 = vadd.f32 %v2982, %v3086
  %v3088 = vpop.f32.mrb[0].mxu0
  %3089 = vdwg.mxu0
  %v3090 = vsub.f32 %v37, %v3069
  %v3091 = vsub.f32 %v38, %v3075
  %v3092 = vsub.f32 %v39, %v3081
  %v3093 = vsub.f32 %v40, %v3087
  %3095 = vset.pattern.permute.xlu0 0
  %3096 = vperm.xlu0 %3095, %v33
  %v3097 = vpop.permute.xlu0 %3096
  %3100 = vset.pattern.permute.xlu0 0
  %3101 = vperm.xlu0 %3100, %v34
  %v3102 = vpop.permute.xlu0 %3101
  %3105 = vset.pattern.permute.xlu0 0
  %3106 = vperm.xlu0 %3105, %v35
  %v3107 = vpop.permute.xlu0 %3106
  %3110 = vset.pattern.permute.xlu0 0
  %3111 = vperm.xlu0 %3110, %v36
  %v3112 = vpop.permute.xlu0 %3111
  %v3115 = vsel %vm41, %v24, 0
  %v3118 = vsel %vm41, %v25, 0
  %v3121 = vsel %vm41, %v26, 0
  %v3124 = vsel %vm41, %v27, 0
  %3126 = vmatprep.subr.mxu0 0.0
  %v3127 = vand.u32 %v3090, 4294901760
  %3128 = vmatpush1.msra.mxu0 %v3127
  %3129 = vmatprep.subr.mxu0 0.0
  %v3130 = vand.u32 %v3091, 4294901760
  %3131 = vmatpush1.msra.mxu0 %v3130
  %3132 = vmatprep.subr.mxu0 0.0
  %v3133 = vand.u32 %v3092, 4294901760
  %3134 = vmatpush1.msra.mxu0 %v3133
  %3135 = vmatprep.subr.mxu0 0.0
  %v3136 = vand.u32 %v3093, 4294901760
  %3137 = vmatpush1.msra.mxu0 %v3136
  %3138 = vmatprep.subr.mxu0 0.0
  %3139 = vmatpush1.msra.mxu0 0.0
  %3140 = vmatprep.subr.mxu0 0.0
  %3141 = vmatpush1.msra.mxu0 0.0
  %3142 = vmatprep.subr.mxu0 0.0
  %3143 = vmatpush1.msra.mxu0 0.0
  %3144 = vmatprep.subr.mxu0 0.0
  %3145 = vmatpush1.msra.mxu0 0.0
  %3146 = vmatprep.subr.mxu0 0.0
  %3147 = vmatpush1.msra.mxu0 0.0
  %3148 = vmatprep.subr.mxu0 0.0
  %3149 = vmatpush1.msra.mxu0 0.0
  %3150 = vmatprep.subr.mxu0 0.0
  %3151 = vmatpush1.msra.mxu0 0.0
  %3152 = vmatprep.subr.mxu0 0.0
  %3153 = vmatpush1.msra.mxu0 0.0
  %3154 = vmatprep.subr.mxu0 0.0
  %3155 = vmatpush1.msra.mxu0 0.0
  %3156 = vmatprep.subr.mxu0 0.0
  %3157 = vmatpush1.msra.mxu0 0.0
  %3158 = vmatprep.subr.mxu0 0.0
  %3159 = vmatpush1.msra.mxu0 0.0
  %3160 = vmatprep.subr.mxu0 0.0
  %3161 = vmatpush1.msra.mxu0 0.0
  %3162 = vmatprep.subr.mxu0 0.0
  %3163 = vmatpush1.msra.mxu0 0.0
  %3164 = vmatprep.subr.mxu0 0.0
  %3165 = vmatpush1.msra.mxu0 0.0
  %3166 = vmatprep.subr.mxu0 0.0
  %3167 = vmatpush1.msra.mxu0 0.0
  %3168 = vmatprep.subr.mxu0 0.0
  %3169 = vmatpush1.msra.mxu0 0.0
  %3170 = vmatprep.subr.mxu0 0.0
  %3171 = vmatpush1.msra.mxu0 0.0
  %3172 = vmatprep.subr.mxu0 0.0
  %3173 = vmatpush1.msra.mxu0 0.0
  %3174 = vmatprep.subr.mxu0 0.0
  %3175 = vmatpush1.msra.mxu0 0.0
  %3176 = vmatprep.subr.mxu0 0.0
  %3177 = vmatpush1.msra.mxu0 0.0
  %3178 = vmatprep.subr.mxu0 0.0
  %3179 = vmatpush1.msra.mxu0 0.0
  %3180 = vmatprep.subr.mxu0 0.0
  %3181 = vmatpush1.msra.mxu0 0.0
  %3182 = vmatprep.subr.mxu0 0.0
  %3183 = vmatpush1.msra.mxu0 0.0
  %3184 = vmatprep.subr.mxu0 0.0
  %3185 = vmatpush1.msra.mxu0 0.0
  %3186 = vmatprep.subr.mxu0 0.0
  %3187 = vmatpush1.msra.mxu0 0.0
  %3188 = vmatprep.subr.mxu0 0.0
  %3189 = vmatpush1.msra.mxu0 0.0
  %3190 = vmatprep.subr.mxu0 0.0
  %3191 = vmatpush1.msra.mxu0 0.0
  %3192 = vmatprep.subr.mxu0 0.0
  %3193 = vmatpush1.msra.mxu0 0.0
  %3194 = vmatprep.mubr.f32.mxu0 0.0
  %v3195 = vand.u32 %v3115, 4294901760
  %v3196 = vsub.f32 %v3115, %v3195
  %v3197 = vand.u32 %v3196, 4294901760
  %v3198 = vsub.f32 %v3196, %v3197
  %v3199 = vand.u32 %v3198, 4294901760
  %3200 = vmatmul.mubr.f32.gmra.mrb[0].mxu0 %v3199
  %v3201 = vpop.f32.mrb[0].mxu0
  %v3202 = vadd.f32 %v3097, %v3201
  %v3203 = vpop.f32.mrb[0].mxu0
  %3204 = vmatprep.mubr.f32.mxu0 0.0
  %v3205 = vand.u32 %v3118, 4294901760
  %v3206 = vsub.f32 %v3118, %v3205
  %v3207 = vand.u32 %v3206, 4294901760
  %v3208 = vsub.f32 %v3206, %v3207
  %v3209 = vand.u32 %v3208, 4294901760
  %3210 = vmatmul.mubr.f32.gmra.mrb[0].mxu0 %v3209
  %v3211 = vpop.f32.mrb[0].mxu0
  %v3212 = vadd.f32 %v3102, %v3211
  %v3213 = vpop.f32.mrb[0].mxu0
  %3214 = vmatprep.mubr.f32.mxu0 0.0
  %v3215 = vand.u32 %v3121, 4294901760
  %v3216 = vsub.f32 %v3121, %v3215
  %v3217 = vand.u32 %v3216, 4294901760
  %v3218 = vsub.f32 %v3216, %v3217
  %v3219 = vand.u32 %v3218, 4294901760
  %3220 = vmatmul.mubr.f32.gmra.mrb[0].mxu0 %v3219
  %v3221 = vpop.f32.mrb[0].mxu0
  %v3222 = vadd.f32 %v3107, %v3221
  %v3223 = vpop.f32.mrb[0].mxu0
  %3224 = vmatprep.mubr.f32.mxu0 0.0
  %v3225 = vand.u32 %v3124, 4294901760
  %v3226 = vsub.f32 %v3124, %v3225
  %v3227 = vand.u32 %v3226, 4294901760
  %v3228 = vsub.f32 %v3226, %v3227
  %v3229 = vand.u32 %v3228, 4294901760
  %3230 = vmatmul.mubr.f32.gmra.mrb[0].mxu0 %v3229
  %v3231 = vpop.f32.mrb[0].mxu0
  %v3232 = vadd.f32 %v3112, %v3231
  %v3233 = vpop.f32.mrb[0].mxu0
  %3234 = vdwg.mxu0
  %3235 = vmatprep.subr.mxu0 0.0
  %v3236 = vand.u32 %v3090, 4294901760
  %v3237 = vsub.f32 %v3090, %v3236
  %v3238 = vand.u32 %v3237, 4294901760
  %v3239 = vsub.f32 %v3237, %v3238
  %v3240 = vand.u32 %v3239, 4294901760
  %3241 = vmatpush1.msra.mxu0 %v3240
  %3242 = vmatprep.subr.mxu0 0.0
  %v3243 = vand.u32 %v3091, 4294901760
  %v3244 = vsub.f32 %v3091, %v3243
  %v3245 = vand.u32 %v3244, 4294901760
  %v3246 = vsub.f32 %v3244, %v3245
  %v3247 = vand.u32 %v3246, 4294901760
  %3248 = vmatpush1.msra.mxu0 %v3247
  %3249 = vmatprep.subr.mxu0 0.0
  %v3250 = vand.u32 %v3092, 4294901760
  %v3251 = vsub.f32 %v3092, %v3250
  %v3252 = vand.u32 %v3251, 4294901760
  %v3253 = vsub.f32 %v3251, %v3252
  %v3254 = vand.u32 %v3253, 4294901760
  %3255 = vmatpush1.msra.mxu0 %v3254
  %3256 = vmatprep.subr.mxu0 0.0
  %v3257 = vand.u32 %v3093, 4294901760
  %v3258 = vsub.f32 %v3093, %v3257
  %v3259 = vand.u32 %v3258, 4294901760
  %v3260 = vsub.f32 %v3258, %v3259
  %v3261 = vand.u32 %v3260, 4294901760
  %3262 = vmatpush1.msra.mxu0 %v3261
  %3263 = vmatprep.subr.mxu0 0.0
  %3264 = vmatpush1.msra.mxu0 0.0
  %3265 = vmatprep.subr.mxu0 0.0
  %3266 = vmatpush1.msra.mxu0 0.0
  %3267 = vmatprep.subr.mxu0 0.0
  %3268 = vmatpush1.msra.mxu0 0.0
  %3269 = vmatprep.subr.mxu0 0.0
  %3270 = vmatpush1.msra.mxu0 0.0
  %3271 = vmatprep.subr.mxu0 0.0
  %3272 = vmatpush1.msra.mxu0 0.0
  %3273 = vmatprep.subr.mxu0 0.0
  %3274 = vmatpush1.msra.mxu0 0.0
  %3275 = vmatprep.subr.mxu0 0.0
  %3276 = vmatpush1.msra.mxu0 0.0
  %3277 = vmatprep.subr.mxu0 0.0
  %3278 = vmatpush1.msra.mxu0 0.0
  %3279 = vmatprep.subr.mxu0 0.0
  %3280 = vmatpush1.msra.mxu0 0.0
  %3281 = vmatprep.subr.mxu0 0.0
  %3282 = vmatpush1.msra.mxu0 0.0
  %3283 = vmatprep.subr.mxu0 0.0
  %3284 = vmatpush1.msra.mxu0 0.0
  %3285 = vmatprep.subr.mxu0 0.0
  %3286 = vmatpush1.msra.mxu0 0.0
  %3287 = vmatprep.subr.mxu0 0.0
  %3288 = vmatpush1.msra.mxu0 0.0
  %3289 = vmatprep.subr.mxu0 0.0
  %3290 = vmatpush1.msra.mxu0 0.0
  %3291 = vmatprep.subr.mxu0 0.0
  %3292 = vmatpush1.msra.mxu0 0.0
  %3293 = vmatprep.subr.mxu0 0.0
  %3294 = vmatpush1.msra.mxu0 0.0
  %3295 = vmatprep.subr.mxu0 0.0
  %3296 = vmatpush1.msra.mxu0 0.0
  %3297 = vmatprep.subr.mxu0 0.0
  %3298 = vmatpush1.msra.mxu0 0.0
  %3299 = vmatprep.subr.mxu0 0.0
  %3300 = vmatpush1.msra.mxu0 0.0
  %3301 = vmatprep.subr.mxu0 0.0
  %3302 = vmatpush1.msra.mxu0 0.0
  %3303 = vmatprep.subr.mxu0 0.0
  %3304 = vmatpush1.msra.mxu0 0.0
  %3305 = vmatprep.subr.mxu0 0.0
  %3306 = vmatpush1.msra.mxu0 0.0
  %3307 = vmatprep.subr.mxu0 0.0
  %3308 = vmatpush1.msra.mxu0 0.0
  %3309 = vmatprep.subr.mxu0 0.0
  %3310 = vmatpush1.msra.mxu0 0.0
  %3311 = vmatprep.subr.mxu0 0.0
  %3312 = vmatpush1.msra.mxu0 0.0
  %3313 = vmatprep.subr.mxu0 0.0
  %3314 = vmatpush1.msra.mxu0 0.0
  %3315 = vmatprep.subr.mxu0 0.0
  %3316 = vmatpush1.msra.mxu0 0.0
  %3317 = vmatprep.subr.mxu0 0.0
  %3318 = vmatpush1.msra.mxu0 0.0
  %3319 = vmatprep.mubr.f32.mxu0 0.0
  %v3320 = vand.u32 %v3115, 4294901760
  %3321 = vmatmul.mubr.f32.gmra.mrb[0].mxu0 %v3320
  %v3322 = vpop.f32.mrb[0].mxu0
  %v3323 = vadd.f32 %v3202, %v3322
  %v3324 = vpop.f32.mrb[0].mxu0
  %3325 = vmatprep.mubr.f32.mxu0 0.0
  %v3326 = vand.u32 %v3118, 4294901760
  %3327 = vmatmul.mubr.f32.gmra.mrb[0].mxu0 %v3326
  %v3328 = vpop.f32.mrb[0].mxu0
  %v3329 = vadd.f32 %v3212, %v3328
  %v3330 = vpop.f32.mrb[0].mxu0
  %3331 = vmatprep.mubr.f32.mxu0 0.0
  %v3332 = vand.u32 %v3121, 4294901760
  %3333 = vmatmul.mubr.f32.gmra.mrb[0].mxu0 %v3332
  %v3334 = vpop.f32.mrb[0].mxu0
  %v3335 = vadd.f32 %v3222, %v3334
  %v3336 = vpop.f32.mrb[0].mxu0
  %3337 = vmatprep.mubr.f32.mxu0 0.0
  %v3338 = vand.u32 %v3124, 4294901760
  %3339 = vmatmul.mubr.f32.gmra.mrb[0].mxu0 %v3338
  %v3340 = vpop.f32.mrb[0].mxu0
  %v3341 = vadd.f32 %v3232, %v3340
  %v3342 = vpop.f32.mrb[0].mxu0
  %3343 = vdwg.mxu0
  %3344 = vmatprep.subr.mxu0 0.0
  %v3345 = vand.u32 %v3090, 4294901760
  %v3346 = vsub.f32 %v3090, %v3345
  %3347 = vmatpush1.msra.mxu0 %v3346
  %3348 = vmatprep.subr.mxu0 0.0
  %v3349 = vand.u32 %v3091, 4294901760
  %v3350 = vsub.f32 %v3091, %v3349
  %3351 = vmatpush1.msra.mxu0 %v3350
  %3352 = vmatprep.subr.mxu0 0.0
  %v3353 = vand.u32 %v3092, 4294901760
  %v3354 = vsub.f32 %v3092, %v3353
  %3355 = vmatpush1.msra.mxu0 %v3354
  %3356 = vmatprep.subr.mxu0 0.0
  %v3357 = vand.u32 %v3093, 4294901760
  %v3358 = vsub.f32 %v3093, %v3357
  %3359 = vmatpush1.msra.mxu0 %v3358
  %3360 = vmatprep.subr.mxu0 0.0
  %3361 = vmatpush1.msra.mxu0 0.0
  %3362 = vmatprep.subr.mxu0 0.0
  %3363 = vmatpush1.msra.mxu0 0.0
  %3364 = vmatprep.subr.mxu0 0.0
  %3365 = vmatpush1.msra.mxu0 0.0
  %3366 = vmatprep.subr.mxu0 0.0
  %3367 = vmatpush1.msra.mxu0 0.0
  %3368 = vmatprep.subr.mxu0 0.0
  %3369 = vmatpush1.msra.mxu0 0.0
  %3370 = vmatprep.subr.mxu0 0.0
  %3371 = vmatpush1.msra.mxu0 0.0
  %3372 = vmatprep.subr.mxu0 0.0
  %3373 = vmatpush1.msra.mxu0 0.0
  %3374 = vmatprep.subr.mxu0 0.0
  %3375 = vmatpush1.msra.mxu0 0.0
  %3376 = vmatprep.subr.mxu0 0.0
  %3377 = vmatpush1.msra.mxu0 0.0
  %3378 = vmatprep.subr.mxu0 0.0
  %3379 = vmatpush1.msra.mxu0 0.0
  %3380 = vmatprep.subr.mxu0 0.0
  %3381 = vmatpush1.msra.mxu0 0.0
  %3382 = vmatprep.subr.mxu0 0.0
  %3383 = vmatpush1.msra.mxu0 0.0
  %3384 = vmatprep.subr.mxu0 0.0
  %3385 = vmatpush1.msra.mxu0 0.0
  %3386 = vmatprep.subr.mxu0 0.0
  %3387 = vmatpush1.msra.mxu0 0.0
  %3388 = vmatprep.subr.mxu0 0.0
  %3389 = vmatpush1.msra.mxu0 0.0
  %3390 = vmatprep.subr.mxu0 0.0
  %3391 = vmatpush1.msra.mxu0 0.0
  %3392 = vmatprep.subr.mxu0 0.0
  %3393 = vmatpush1.msra.mxu0 0.0
  %3394 = vmatprep.subr.mxu0 0.0
  %3395 = vmatpush1.msra.mxu0 0.0
  %3396 = vmatprep.subr.mxu0 0.0
  %3397 = vmatpush1.msra.mxu0 0.0
  %3398 = vmatprep.subr.mxu0 0.0
  %3399 = vmatpush1.msra.mxu0 0.0
  %3400 = vmatprep.subr.mxu0 0.0
  %3401 = vmatpush1.msra.mxu0 0.0
  %3402 = vmatprep.subr.mxu0 0.0
  %3403 = vmatpush1.msra.mxu0 0.0
  %3404 = vmatprep.subr.mxu0 0.0
  %3405 = vmatpush1.msra.mxu0 0.0
  %3406 = vmatprep.subr.mxu0 0.0
  %3407 = vmatpush1.msra.mxu0 0.0
  %3408 = vmatprep.subr.mxu0 0.0
  %3409 = vmatpush1.msra.mxu0 0.0
  %3410 = vmatprep.subr.mxu0 0.0
  %3411 = vmatpush1.msra.mxu0 0.0
  %3412 = vmatprep.subr.mxu0 0.0
  %3413 = vmatpush1.msra.mxu0 0.0
  %3414 = vmatprep.subr.mxu0 0.0
  %3415 = vmatpush1.msra.mxu0 0.0
  %3416 = vmatprep.mubr.f32.mxu0 0.0
  %v3417 = vand.u32 %v3115, 4294901760
  %v3418 = vsub.f32 %v3115, %v3417
  %3419 = vmatmul.mubr.f32.gmra.mrb[0].mxu0 %v3418
  %v3420 = vpop.f32.mrb[0].mxu0
  %v3421 = vadd.f32 %v3323, %v3420
  %v3422 = vpop.f32.mrb[0].mxu0
  %3423 = vmatprep.mubr.f32.mxu0 0.0
  %v3424 = vand.u32 %v3118, 4294901760
  %v3425 = vsub.f32 %v3118, %v3424
  %3426 = vmatmul.mubr.f32.gmra.mrb[0].mxu0 %v3425
  %v3427 = vpop.f32.mrb[0].mxu0
  %v3428 = vadd.f32 %v3329, %v3427
  %v3429 = vpop.f32.mrb[0].mxu0
  %3430 = vmatprep.mubr.f32.mxu0 0.0
  %v3431 = vand.u32 %v3121, 4294901760
  %v3432 = vsub.f32 %v3121, %v3431
  %3433 = vmatmul.mubr.f32.gmra.mrb[0].mxu0 %v3432
  %v3434 = vpop.f32.mrb[0].mxu0
  %v3435 = vadd.f32 %v3335, %v3434
  %v3436 = vpop.f32.mrb[0].mxu0
  %3437 = vmatprep.mubr.f32.mxu0 0.0
  %v3438 = vand.u32 %v3124, 4294901760
  %v3439 = vsub.f32 %v3124, %v3438
  %3440 = vmatmul.mubr.f32.gmra.mrb[0].mxu0 %v3439
  %v3441 = vpop.f32.mrb[0].mxu0
  %v3442 = vadd.f32 %v3341, %v3441
  %v3443 = vpop.f32.mrb[0].mxu0
  %3444 = vdwg.mxu0
  %3445 = vmatprep.subr.mxu0 0.0
  %v3446 = vand.u32 %v3090, 4294901760
  %3447 = vmatpush1.msra.mxu0 %v3446
  %3448 = vmatprep.subr.mxu0 0.0
  %v3449 = vand.u32 %v3091, 4294901760
  %3450 = vmatpush1.msra.mxu0 %v3449
  %3451 = vmatprep.subr.mxu0 0.0
  %v3452 = vand.u32 %v3092, 4294901760
  %3453 = vmatpush1.msra.mxu0 %v3452
  %3454 = vmatprep.subr.mxu0 0.0
  %v3455 = vand.u32 %v3093, 4294901760
  %3456 = vmatpush1.msra.mxu0 %v3455
  %3457 = vmatprep.subr.mxu0 0.0
  %3458 = vmatpush1.msra.mxu0 0.0
  %3459 = vmatprep.subr.mxu0 0.0
  %3460 = vmatpush1.msra.mxu0 0.0
  %3461 = vmatprep.subr.mxu0 0.0
  %3462 = vmatpush1.msra.mxu0 0.0
  %3463 = vmatprep.subr.mxu0 0.0
  %3464 = vmatpush1.msra.mxu0 0.0
  %3465 = vmatprep.subr.mxu0 0.0
  %3466 = vmatpush1.msra.mxu0 0.0
  %3467 = vmatprep.subr.mxu0 0.0
  %3468 = vmatpush1.msra.mxu0 0.0
  %3469 = vmatprep.subr.mxu0 0.0
  %3470 = vmatpush1.msra.mxu0 0.0
  %3471 = vmatprep.subr.mxu0 0.0
  %3472 = vmatpush1.msra.mxu0 0.0
  %3473 = vmatprep.subr.mxu0 0.0
  %3474 = vmatpush1.msra.mxu0 0.0
  %3475 = vmatprep.subr.mxu0 0.0
  %3476 = vmatpush1.msra.mxu0 0.0
  %3477 = vmatprep.subr.mxu0 0.0
  %3478 = vmatpush1.msra.mxu0 0.0
  %3479 = vmatprep.subr.mxu0 0.0
  %3480 = vmatpush1.msra.mxu0 0.0
  %3481 = vmatprep.subr.mxu0 0.0
  %3482 = vmatpush1.msra.mxu0 0.0
  %3483 = vmatprep.subr.mxu0 0.0
  %3484 = vmatpush1.msra.mxu0 0.0
  %3485 = vmatprep.subr.mxu0 0.0
  %3486 = vmatpush1.msra.mxu0 0.0
  %3487 = vmatprep.subr.mxu0 0.0
  %3488 = vmatpush1.msra.mxu0 0.0
  %3489 = vmatprep.subr.mxu0 0.0
  %3490 = vmatpush1.msra.mxu0 0.0
  %3491 = vmatprep.subr.mxu0 0.0
  %3492 = vmatpush1.msra.mxu0 0.0
  %3493 = vmatprep.subr.mxu0 0.0
  %3494 = vmatpush1.msra.mxu0 0.0
  %3495 = vmatprep.subr.mxu0 0.0
  %3496 = vmatpush1.msra.mxu0 0.0
  %3497 = vmatprep.subr.mxu0 0.0
  %3498 = vmatpush1.msra.mxu0 0.0
  %3499 = vmatprep.subr.mxu0 0.0
  %3500 = vmatpush1.msra.mxu0 0.0
  %3501 = vmatprep.subr.mxu0 0.0
  %3502 = vmatpush1.msra.mxu0 0.0
  %3503 = vmatprep.subr.mxu0 0.0
  %3504 = vmatpush1.msra.mxu0 0.0
  %3505 = vmatprep.subr.mxu0 0.0
  %3506 = vmatpush1.msra.mxu0 0.0
  %3507 = vmatprep.subr.mxu0 0.0
  %3508 = vmatpush1.msra.mxu0 0.0
  %3509 = vmatprep.subr.mxu0 0.0
  %3510 = vmatpush1.msra.mxu0 0.0
  %3511 = vmatprep.subr.mxu0 0.0
  %3512 = vmatpush1.msra.mxu0 0.0
  %3513 = vmatprep.mubr.f32.mxu0 0.0
  %v3514 = vand.u32 %v3115, 4294901760
  %v3515 = vsub.f32 %v3115, %v3514
  %v3516 = vand.u32 %v3515, 4294901760
  %3517 = vmatmul.mubr.f32.gmra.mrb[0].mxu0 %v3516
  %v3518 = vpop.f32.mrb[0].mxu0
  %v3519 = vadd.f32 %v3421, %v3518
  %v3520 = vpop.f32.mrb[0].mxu0
  %3521 = vmatprep.mubr.f32.mxu0 0.0
  %v3522 = vand.u32 %v3118, 4294901760
  %v3523 = vsub.f32 %v3118, %v3522
  %v3524 = vand.u32 %v3523, 4294901760
  %3525 = vmatmul.mubr.f32.gmra.mrb[0].mxu0 %v3524
  %v3526 = vpop.f32.mrb[0].mxu0
  %v3527 = vadd.f32 %v3428, %v3526
  %v3528 = vpop.f32.mrb[0].mxu0
  %3529 = vmatprep.mubr.f32.mxu0 0.0
  %v3530 = vand.u32 %v3121, 4294901760
  %v3531 = vsub.f32 %v3121, %v3530
  %v3532 = vand.u32 %v3531, 4294901760
  %3533 = vmatmul.mubr.f32.gmra.mrb[0].mxu0 %v3532
  %v3534 = vpop.f32.mrb[0].mxu0
  %v3535 = vadd.f32 %v3435, %v3534
  %v3536 = vpop.f32.mrb[0].mxu0
  %3537 = vmatprep.mubr.f32.mxu0 0.0
  %v3538 = vand.u32 %v3124, 4294901760
  %v3539 = vsub.f32 %v3124, %v3538
  %v3540 = vand.u32 %v3539, 4294901760
  %3541 = vmatmul.mubr.f32.gmra.mrb[0].mxu0 %v3540
  %v3542 = vpop.f32.mrb[0].mxu0
  %v3543 = vadd.f32 %v3442, %v3542
  %v3544 = vpop.f32.mrb[0].mxu0
  %3545 = vdwg.mxu0
  %3546 = vmatprep.subr.mxu0 0.0
  %v3547 = vand.u32 %v3090, 4294901760
  %v3548 = vsub.f32 %v3090, %v3547
  %v3549 = vand.u32 %v3548, 4294901760
  %3550 = vmatpush1.msra.mxu0 %v3549
  %3551 = vmatprep.subr.mxu0 0.0
  %v3552 = vand.u32 %v3091, 4294901760
  %v3553 = vsub.f32 %v3091, %v3552
  %v3554 = vand.u32 %v3553, 4294901760
  %3555 = vmatpush1.msra.mxu0 %v3554
  %3556 = vmatprep.subr.mxu0 0.0
  %v3557 = vand.u32 %v3092, 4294901760
  %v3558 = vsub.f32 %v3092, %v3557
  %v3559 = vand.u32 %v3558, 4294901760
  %3560 = vmatpush1.msra.mxu0 %v3559
  %3561 = vmatprep.subr.mxu0 0.0
  %v3562 = vand.u32 %v3093, 4294901760
  %v3563 = vsub.f32 %v3093, %v3562
  %v3564 = vand.u32 %v3563, 4294901760
  %3565 = vmatpush1.msra.mxu0 %v3564
  %3566 = vmatprep.subr.mxu0 0.0
  %3567 = vmatpush1.msra.mxu0 0.0
  %3568 = vmatprep.subr.mxu0 0.0
  %3569 = vmatpush1.msra.mxu0 0.0
  %3570 = vmatprep.subr.mxu0 0.0
  %3571 = vmatpush1.msra.mxu0 0.0
  %3572 = vmatprep.subr.mxu0 0.0
  %3573 = vmatpush1.msra.mxu0 0.0
  %3574 = vmatprep.subr.mxu0 0.0
  %3575 = vmatpush1.msra.mxu0 0.0
  %3576 = vmatprep.subr.mxu0 0.0
  %3577 = vmatpush1.msra.mxu0 0.0
  %3578 = vmatprep.subr.mxu0 0.0
  %3579 = vmatpush1.msra.mxu0 0.0
  %3580 = vmatprep.subr.mxu0 0.0
  %3581 = vmatpush1.msra.mxu0 0.0
  %3582 = vmatprep.subr.mxu0 0.0
  %3583 = vmatpush1.msra.mxu0 0.0
  %3584 = vmatprep.subr.mxu0 0.0
  %3585 = vmatpush1.msra.mxu0 0.0
  %3586 = vmatprep.subr.mxu0 0.0
  %3587 = vmatpush1.msra.mxu0 0.0
  %3588 = vmatprep.subr.mxu0 0.0
  %3589 = vmatpush1.msra.mxu0 0.0
  %3590 = vmatprep.subr.mxu0 0.0
  %3591 = vmatpush1.msra.mxu0 0.0
  %3592 = vmatprep.subr.mxu0 0.0
  %3593 = vmatpush1.msra.mxu0 0.0
  %3594 = vmatprep.subr.mxu0 0.0
  %3595 = vmatpush1.msra.mxu0 0.0
  %3596 = vmatprep.subr.mxu0 0.0
  %3597 = vmatpush1.msra.mxu0 0.0
  %3598 = vmatprep.subr.mxu0 0.0
  %3599 = vmatpush1.msra.mxu0 0.0
  %3600 = vmatprep.subr.mxu0 0.0
  %3601 = vmatpush1.msra.mxu0 0.0
  %3602 = vmatprep.subr.mxu0 0.0
  %3603 = vmatpush1.msra.mxu0 0.0
  %3604 = vmatprep.subr.mxu0 0.0
  %3605 = vmatpush1.msra.mxu0 0.0
  %3606 = vmatprep.subr.mxu0 0.0
  %3607 = vmatpush1.msra.mxu0 0.0
  %3608 = vmatprep.subr.mxu0 0.0
  %3609 = vmatpush1.msra.mxu0 0.0
  %3610 = vmatprep.subr.mxu0 0.0
  %3611 = vmatpush1.msra.mxu0 0.0
  %3612 = vmatprep.subr.mxu0 0.0
  %3613 = vmatpush1.msra.mxu0 0.0
  %3614 = vmatprep.subr.mxu0 0.0
  %3615 = vmatpush1.msra.mxu0 0.0
  %3616 = vmatprep.subr.mxu0 0.0
  %3617 = vmatpush1.msra.mxu0 0.0
  %3618 = vmatprep.subr.mxu0 0.0
  %3619 = vmatpush1.msra.mxu0 0.0
  %3620 = vmatprep.subr.mxu0 0.0
  %3621 = vmatpush1.msra.mxu0 0.0
  %3622 = vmatprep.mubr.f32.mxu0 0.0
  %v3623 = vand.u32 %v3115, 4294901760
  %3624 = vmatmul.mubr.f32.gmra.mrb[0].mxu0 %v3623
  %v3625 = vpop.f32.mrb[0].mxu0
  %v3626 = vadd.f32 %v3519, %v3625
  %v3627 = vpop.f32.mrb[0].mxu0
  %3628 = vmatprep.mubr.f32.mxu0 0.0
  %v3629 = vand.u32 %v3118, 4294901760
  %3630 = vmatmul.mubr.f32.gmra.mrb[0].mxu0 %v3629
  %v3631 = vpop.f32.mrb[0].mxu0
  %v3632 = vadd.f32 %v3527, %v3631
  %v3633 = vpop.f32.mrb[0].mxu0
  %3634 = vmatprep.mubr.f32.mxu0 0.0
  %v3635 = vand.u32 %v3121, 4294901760
  %3636 = vmatmul.mubr.f32.gmra.mrb[0].mxu0 %v3635
  %v3637 = vpop.f32.mrb[0].mxu0
  %v3638 = vadd.f32 %v3535, %v3637
  %v3639 = vpop.f32.mrb[0].mxu0
  %3640 = vmatprep.mubr.f32.mxu0 0.0
  %v3641 = vand.u32 %v3124, 4294901760
  %3642 = vmatmul.mubr.f32.gmra.mrb[0].mxu0 %v3641
  %v3643 = vpop.f32.mrb[0].mxu0
  %v3644 = vadd.f32 %v3543, %v3643
  %v3645 = vpop.f32.mrb[0].mxu0
  %3646 = vdwg.mxu0
  %3647 = vmatprep.subr.mxu0 0.0
  %v3648 = vand.u32 %v3090, 4294901760
  %3649 = vmatpush1.msra.mxu0 %v3648
  %3650 = vmatprep.subr.mxu0 0.0
  %v3651 = vand.u32 %v3091, 4294901760
  %3652 = vmatpush1.msra.mxu0 %v3651
  %3653 = vmatprep.subr.mxu0 0.0
  %v3654 = vand.u32 %v3092, 4294901760
  %3655 = vmatpush1.msra.mxu0 %v3654
  %3656 = vmatprep.subr.mxu0 0.0
  %v3657 = vand.u32 %v3093, 4294901760
  %3658 = vmatpush1.msra.mxu0 %v3657
  %3659 = vmatprep.subr.mxu0 0.0
  %3660 = vmatpush1.msra.mxu0 0.0
  %3661 = vmatprep.subr.mxu0 0.0
  %3662 = vmatpush1.msra.mxu0 0.0
  %3663 = vmatprep.subr.mxu0 0.0
  %3664 = vmatpush1.msra.mxu0 0.0
  %3665 = vmatprep.subr.mxu0 0.0
  %3666 = vmatpush1.msra.mxu0 0.0
  %3667 = vmatprep.subr.mxu0 0.0
  %3668 = vmatpush1.msra.mxu0 0.0
  %3669 = vmatprep.subr.mxu0 0.0
  %3670 = vmatpush1.msra.mxu0 0.0
  %3671 = vmatprep.subr.mxu0 0.0
  %3672 = vmatpush1.msra.mxu0 0.0
  %3673 = vmatprep.subr.mxu0 0.0
  %3674 = vmatpush1.msra.mxu0 0.0
  %3675 = vmatprep.subr.mxu0 0.0
  %3676 = vmatpush1.msra.mxu0 0.0
  %3677 = vmatprep.subr.mxu0 0.0
  %3678 = vmatpush1.msra.mxu0 0.0
  %3679 = vmatprep.subr.mxu0 0.0
  %3680 = vmatpush1.msra.mxu0 0.0
  %3681 = vmatprep.subr.mxu0 0.0
  %3682 = vmatpush1.msra.mxu0 0.0
  %3683 = vmatprep.subr.mxu0 0.0
  %3684 = vmatpush1.msra.mxu0 0.0
  %3685 = vmatprep.subr.mxu0 0.0
  %3686 = vmatpush1.msra.mxu0 0.0
  %3687 = vmatprep.subr.mxu0 0.0
  %3688 = vmatpush1.msra.mxu0 0.0
  %3689 = vmatprep.subr.mxu0 0.0
  %3690 = vmatpush1.msra.mxu0 0.0
  %3691 = vmatprep.subr.mxu0 0.0
  %3692 = vmatpush1.msra.mxu0 0.0
  %3693 = vmatprep.subr.mxu0 0.0
  %3694 = vmatpush1.msra.mxu0 0.0
  %3695 = vmatprep.subr.mxu0 0.0
  %3696 = vmatpush1.msra.mxu0 0.0
  %3697 = vmatprep.subr.mxu0 0.0
  %3698 = vmatpush1.msra.mxu0 0.0
  %3699 = vmatprep.subr.mxu0 0.0
  %3700 = vmatpush1.msra.mxu0 0.0
  %3701 = vmatprep.subr.mxu0 0.0
  %3702 = vmatpush1.msra.mxu0 0.0
  %3703 = vmatprep.subr.mxu0 0.0
  %3704 = vmatpush1.msra.mxu0 0.0
  %3705 = vmatprep.subr.mxu0 0.0
  %3706 = vmatpush1.msra.mxu0 0.0
  %3707 = vmatprep.subr.mxu0 0.0
  %3708 = vmatpush1.msra.mxu0 0.0
  %3709 = vmatprep.subr.mxu0 0.0
  %3710 = vmatpush1.msra.mxu0 0.0
  %3711 = vmatprep.subr.mxu0 0.0
  %3712 = vmatpush1.msra.mxu0 0.0
  %3713 = vmatprep.subr.mxu0 0.0
  %3714 = vmatpush1.msra.mxu0 0.0
  %3715 = vmatprep.mubr.f32.mxu0 0.0
  %v3716 = vand.u32 %v3115, 4294901760
  %3717 = vmatmul.mubr.f32.gmra.mrb[0].mxu0 %v3716
  %v3718 = vpop.f32.mrb[0].mxu0
  %v3719 = vadd.f32 %v3626, %v3718
  %v3720 = vpop.f32.mrb[0].mxu0
  %3721 = vmatprep.mubr.f32.mxu0 0.0
  %v3722 = vand.u32 %v3118, 4294901760
  %3723 = vmatmul.mubr.f32.gmra.mrb[0].mxu0 %v3722
  %v3724 = vpop.f32.mrb[0].mxu0
  %v3725 = vadd.f32 %v3632, %v3724
  %v3726 = vpop.f32.mrb[0].mxu0
  %3727 = vmatprep.mubr.f32.mxu0 0.0
  %v3728 = vand.u32 %v3121, 4294901760
  %3729 = vmatmul.mubr.f32.gmra.mrb[0].mxu0 %v3728
  %v3730 = vpop.f32.mrb[0].mxu0
  %v3731 = vadd.f32 %v3638, %v3730
  %v3732 = vpop.f32.mrb[0].mxu0
  %3733 = vmatprep.mubr.f32.mxu0 0.0
  %v3734 = vand.u32 %v3124, 4294901760
  %3735 = vmatmul.mubr.f32.gmra.mrb[0].mxu0 %v3734
  %v3736 = vpop.f32.mrb[0].mxu0
  %v3737 = vadd.f32 %v3644, %v3736
  %v3738 = vpop.f32.mrb[0].mxu0
  %3739 = vdwg.mxu0
  %3740 = vst [vmem:[%s3] sm:$0xff] %v3719
  %3741 = vst [vmem:[%s3 + $0x8] sm:$0xff] %v3725
  %3742 = vst [vmem:[%s3 + $0x10] sm:$0xff] %v3731
  %3743 = vst [vmem:[%s3 + $0x18] sm:$0xff] %v3737
  %3744 = vadd.xlane.f32.xlu0 %v3719
  %v3745 = vpop.xlane.xlu0 %3744
  %3746 = vadd.xlane.f32.xlu0 %v3725
  %v3747 = vpop.xlane.xlu0 %3746
  %3748 = vadd.xlane.f32.xlu0 %v3731
  %v3749 = vpop.xlane.xlu0 %3748
  %3750 = vadd.xlane.f32.xlu0 %v3737
  %v3751 = vpop.xlane.xlu0 %3750
  %v3752 = vmul.f32 %v3745, 0.0078125
  %v3753 = vmul.f32 %v3747, 0.0078125
  %v3754 = vmul.f32 %v3749, 0.0078125
  %v3755 = vmul.f32 %v3751, 0.0078125
  %v3756 = vsub.f32 %v3719, %v3752
  %v3757 = vsub.f32 %v3725, %v3753
  %v3758 = vsub.f32 %v3731, %v3754
  %v3759 = vsub.f32 %v3737, %v3755
  %v3760 = vmul.f32 %v3756, %v3756
  %v3761 = vmul.f32 %v3757, %v3757
  %v3762 = vmul.f32 %v3758, %v3758
  %v3763 = vmul.f32 %v3759, %v3759
  %3764 = vadd.xlane.f32.xlu0 %v3760
  %v3765 = vpop.xlane.xlu0 %3764
  %3766 = vadd.xlane.f32.xlu0 %v3761
  %v3767 = vpop.xlane.xlu0 %3766
  %3768 = vadd.xlane.f32.xlu0 %v3762
  %v3769 = vpop.xlane.xlu0 %3768
  %3770 = vadd.xlane.f32.xlu0 %v3763
  %v3771 = vpop.xlane.xlu0 %3770
  %vm3772 = vcmask 7168
  %v3773 = vsel %vm3772, %v3745, %v3765
  %v3774 = vsel %vm3772, %v3747, %v3767
  %v3775 = vsel %vm3772, %v3749, %v3769
  %v3776 = vsel %vm3772, %v3751, %v3771
  %vm3777 = vcmask 15360
  %3778 = vst.msk [vmem:[%s4] sm:$0xff] %vm3777, %v3773
  %3779 = vst.msk [vmem:[%s4 + $0x8] sm:$0xff] %vm3777, %v3774
  %3780 = vst.msk [vmem:[%s4 + $0x10] sm:$0xff] %vm3777, %v3775
  %3781 = vst.msk [vmem:[%s4 + $0x18] sm:$0xff] %vm3777, %v3776
  %s3782 = scalar_lea.vmem %s0, 32
  %v3783 = vld [vmem:[%s3782] sm:$0xff]
  %v3784 = vld [vmem:[%s3782 + $0x8] sm:$0xff]
  %v3785 = vld [vmem:[%s3782 + $0x10] sm:$0xff]
  %v3786 = vld [vmem:[%s3782 + $0x18] sm:$0xff]
  %3787 = vmatprep.subr.mxu0 0.0
  %v3788 = vand.u32 %v3783, 4294901760
  %3789 = vmatpush1.msra.mxu0 %v3788
  %3790 = vmatprep.subr.mxu0 0.0
  %v3791 = vand.u32 %v3784, 4294901760
  %3792 = vmatpush1.msra.mxu0 %v3791
  %3793 = vmatprep.subr.mxu0 0.0
  %v3794 = vand.u32 %v3785, 4294901760
  %3795 = vmatpush1.msra.mxu0 %v3794
  %3796 = vmatprep.subr.mxu0 0.0
  %v3797 = vand.u32 %v3786, 4294901760
  %3798 = vmatpush1.msra.mxu0 %v3797
  %3799 = vmatprep.subr.mxu0 0.0
  %3800 = vmatpush1.msra.mxu0 0.0
  %3801 = vmatprep.subr.mxu0 0.0
  %3802 = vmatpush1.msra.mxu0 0.0
  %3803 = vmatprep.subr.mxu0 0.0
  %3804 = vmatpush1.msra.mxu0 0.0
  %3805 = vmatprep.subr.mxu0 0.0
  %3806 = vmatpush1.msra.mxu0 0.0
  %3807 = vmatprep.subr.mxu0 0.0
  %3808 = vmatpush1.msra.mxu0 0.0
  %3809 = vmatprep.subr.mxu0 0.0
  %3810 = vmatpush1.msra.mxu0 0.0
  %3811 = vmatprep.subr.mxu0 0.0
  %3812 = vmatpush1.msra.mxu0 0.0
  %3813 = vmatprep.subr.mxu0 0.0
  %3814 = vmatpush1.msra.mxu0 0.0
  %3815 = vmatprep.subr.mxu0 0.0
  %3816 = vmatpush1.msra.mxu0 0.0
  %3817 = vmatprep.subr.mxu0 0.0
  %3818 = vmatpush1.msra.mxu0 0.0
  %3819 = vmatprep.subr.mxu0 0.0
  %3820 = vmatpush1.msra.mxu0 0.0
  %3821 = vmatprep.subr.mxu0 0.0
  %3822 = vmatpush1.msra.mxu0 0.0
  %3823 = vmatprep.subr.mxu0 0.0
  %3824 = vmatpush1.msra.mxu0 0.0
  %3825 = vmatprep.subr.mxu0 0.0
  %3826 = vmatpush1.msra.mxu0 0.0
  %3827 = vmatprep.subr.mxu0 0.0
  %3828 = vmatpush1.msra.mxu0 0.0
  %3829 = vmatprep.subr.mxu0 0.0
  %3830 = vmatpush1.msra.mxu0 0.0
  %3831 = vmatprep.subr.mxu0 0.0
  %3832 = vmatpush1.msra.mxu0 0.0
  %3833 = vmatprep.subr.mxu0 0.0
  %3834 = vmatpush1.msra.mxu0 0.0
  %3835 = vmatprep.subr.mxu0 0.0
  %3836 = vmatpush1.msra.mxu0 0.0
  %3837 = vmatprep.subr.mxu0 0.0
  %3838 = vmatpush1.msra.mxu0 0.0
  %3839 = vmatprep.subr.mxu0 0.0
  %3840 = vmatpush1.msra.mxu0 0.0
  %3841 = vmatprep.subr.mxu0 0.0
  %3842 = vmatpush1.msra.mxu0 0.0
  %3843 = vmatprep.subr.mxu0 0.0
  %3844 = vmatpush1.msra.mxu0 0.0
  %3845 = vmatprep.subr.mxu0 0.0
  %3846 = vmatpush1.msra.mxu0 0.0
  %3847 = vmatprep.subr.mxu0 0.0
  %3848 = vmatpush1.msra.mxu0 0.0
  %3849 = vmatprep.subr.mxu0 0.0
  %3850 = vmatpush1.msra.mxu0 0.0
  %3851 = vmatprep.subr.mxu0 0.0
  %3852 = vmatpush1.msra.mxu0 0.0
  %3853 = vmatprep.subr.mxu0 0.0
  %3854 = vmatpush1.msra.mxu0 0.0
  %3855 = vmatprep.mubr.f32.mxu0 0.0
  %v3856 = vand.u32 %v43, 4294901760
  %v3857 = vsub.f32 %v43, %v3856
  %v3858 = vand.u32 %v3857, 4294901760
  %v3859 = vsub.f32 %v3857, %v3858
  %v3860 = vand.u32 %v3859, 4294901760
  %3861 = vmatmul.mubr.f32.gmra.mrb[0].mxu0 %v3860
  %v3862 = vpop.f32.mrb[0].mxu0
  %v3863 = vadd.f32 0.0, %v3862
  %v3864 = vpop.f32.mrb[0].mxu0
  %3865 = vmatprep.mubr.f32.mxu0 0.0
  %v3866 = vand.u32 %v46, 4294901760
  %v3867 = vsub.f32 %v46, %v3866
  %v3868 = vand.u32 %v3867, 4294901760
  %v3869 = vsub.f32 %v3867, %v3868
  %v3870 = vand.u32 %v3869, 4294901760
  %3871 = vmatmul.mubr.f32.gmra.mrb[0].mxu0 %v3870
  %v3872 = vpop.f32.mrb[0].mxu0
  %v3873 = vadd.f32 0.0, %v3872
  %v3874 = vpop.f32.mrb[0].mxu0
  %3875 = vmatprep.mubr.f32.mxu0 0.0
  %v3876 = vand.u32 %v49, 4294901760
  %v3877 = vsub.f32 %v49, %v3876
  %v3878 = vand.u32 %v3877, 4294901760
  %v3879 = vsub.f32 %v3877, %v3878
  %v3880 = vand.u32 %v3879, 4294901760
  %3881 = vmatmul.mubr.f32.gmra.mrb[0].mxu0 %v3880
  %v3882 = vpop.f32.mrb[0].mxu0
  %v3883 = vadd.f32 0.0, %v3882
  %v3884 = vpop.f32.mrb[0].mxu0
  %3885 = vmatprep.mubr.f32.mxu0 0.0
  %v3886 = vand.u32 %v52, 4294901760
  %v3887 = vsub.f32 %v52, %v3886
  %v3888 = vand.u32 %v3887, 4294901760
  %v3889 = vsub.f32 %v3887, %v3888
  %v3890 = vand.u32 %v3889, 4294901760
  %3891 = vmatmul.mubr.f32.gmra.mrb[0].mxu0 %v3890
  %v3892 = vpop.f32.mrb[0].mxu0
  %v3893 = vadd.f32 0.0, %v3892
  %v3894 = vpop.f32.mrb[0].mxu0
  %3895 = vmatprep.mubr.f32.mxu0 0.0
  %v3896 = vand.u32 %v55, 4294901760
  %v3897 = vsub.f32 %v55, %v3896
  %v3898 = vand.u32 %v3897, 4294901760
  %v3899 = vsub.f32 %v3897, %v3898
  %v3900 = vand.u32 %v3899, 4294901760
  %3901 = vmatmul.mubr.f32.gmra.mrb[0].mxu0 %v3900
  %v3902 = vpop.f32.mrb[0].mxu0
  %v3903 = vadd.f32 0.0, %v3902
  %v3904 = vpop.f32.mrb[0].mxu0
  %3905 = vmatprep.mubr.f32.mxu0 0.0
  %v3906 = vand.u32 %v58, 4294901760
  %v3907 = vsub.f32 %v58, %v3906
  %v3908 = vand.u32 %v3907, 4294901760
  %v3909 = vsub.f32 %v3907, %v3908
  %v3910 = vand.u32 %v3909, 4294901760
  %3911 = vmatmul.mubr.f32.gmra.mrb[0].mxu0 %v3910
  %v3912 = vpop.f32.mrb[0].mxu0
  %v3913 = vadd.f32 0.0, %v3912
  %v3914 = vpop.f32.mrb[0].mxu0
  %3915 = vmatprep.mubr.f32.mxu0 0.0
  %v3916 = vand.u32 %v61, 4294901760
  %v3917 = vsub.f32 %v61, %v3916
  %v3918 = vand.u32 %v3917, 4294901760
  %v3919 = vsub.f32 %v3917, %v3918
  %v3920 = vand.u32 %v3919, 4294901760
  %3921 = vmatmul.mubr.f32.gmra.mrb[0].mxu0 %v3920
  %v3922 = vpop.f32.mrb[0].mxu0
  %v3923 = vadd.f32 0.0, %v3922
  %v3924 = vpop.f32.mrb[0].mxu0
  %3925 = vmatprep.mubr.f32.mxu0 0.0
  %v3926 = vand.u32 %v64, 4294901760
  %v3927 = vsub.f32 %v64, %v3926
  %v3928 = vand.u32 %v3927, 4294901760
  %v3929 = vsub.f32 %v3927, %v3928
  %v3930 = vand.u32 %v3929, 4294901760
  %3931 = vmatmul.mubr.f32.gmra.mrb[0].mxu0 %v3930
  %v3932 = vpop.f32.mrb[0].mxu0
  %v3933 = vadd.f32 0.0, %v3932
  %v3934 = vpop.f32.mrb[0].mxu0
  %3935 = vdwg.mxu0
  %3936 = vmatprep.subr.mxu0 0.0
  %v3937 = vand.u32 %v3783, 4294901760
  %v3938 = vsub.f32 %v3783, %v3937
  %v3939 = vand.u32 %v3938, 4294901760
  %v3940 = vsub.f32 %v3938, %v3939
  %v3941 = vand.u32 %v3940, 4294901760
  %3942 = vmatpush1.msra.mxu0 %v3941
  %3943 = vmatprep.subr.mxu0 0.0
  %v3944 = vand.u32 %v3784, 4294901760
  %v3945 = vsub.f32 %v3784, %v3944
  %v3946 = vand.u32 %v3945, 4294901760
  %v3947 = vsub.f32 %v3945, %v3946
  %v3948 = vand.u32 %v3947, 4294901760
  %3949 = vmatpush1.msra.mxu0 %v3948
  %3950 = vmatprep.subr.mxu0 0.0
  %v3951 = vand.u32 %v3785, 4294901760
  %v3952 = vsub.f32 %v3785, %v3951
  %v3953 = vand.u32 %v3952, 4294901760
  %v3954 = vsub.f32 %v3952, %v3953
  %v3955 = vand.u32 %v3954, 4294901760
  %3956 = vmatpush1.msra.mxu0 %v3955
  %3957 = vmatprep.subr.mxu0 0.0
  %v3958 = vand.u32 %v3786, 4294901760
  %v3959 = vsub.f32 %v3786, %v3958
  %v3960 = vand.u32 %v3959, 4294901760
  %v3961 = vsub.f32 %v3959, %v3960
  %v3962 = vand.u32 %v3961, 4294901760
  %3963 = vmatpush1.msra.mxu0 %v3962
  %3964 = vmatprep.subr.mxu0 0.0
  %3965 = vmatpush1.msra.mxu0 0.0
  %3966 = vmatprep.subr.mxu0 0.0
  %3967 = vmatpush1.msra.mxu0 0.0
  %3968 = vmatprep.subr.mxu0 0.0
  %3969 = vmatpush1.msra.mxu0 0.0
  %3970 = vmatprep.subr.mxu0 0.0
  %3971 = vmatpush1.msra.mxu0 0.0
  %3972 = vmatprep.subr.mxu0 0.0
  %3973 = vmatpush1.msra.mxu0 0.0
  %3974 = vmatprep.subr.mxu0 0.0
  %3975 = vmatpush1.msra.mxu0 0.0
  %3976 = vmatprep.subr.mxu0 0.0
  %3977 = vmatpush1.msra.mxu0 0.0
  %3978 = vmatprep.subr.mxu0 0.0
  %3979 = vmatpush1.msra.mxu0 0.0
  %3980 = vmatprep.subr.mxu0 0.0
  %3981 = vmatpush1.msra.mxu0 0.0
  %3982 = vmatprep.subr.mxu0 0.0
  %3983 = vmatpush1.msra.mxu0 0.0
  %3984 = vmatprep.subr.mxu0 0.0
  %3985 = vmatpush1.msra.mxu0 0.0
  %3986 = vmatprep.subr.mxu0 0.0
  %3987 = vmatpush1.msra.mxu0 0.0
  %3988 = vmatprep.subr.mxu0 0.0
  %3989 = vmatpush1.msra.mxu0 0.0
  %3990 = vmatprep.subr.mxu0 0.0
  %3991 = vmatpush1.msra.mxu0 0.0
  %3992 = vmatprep.subr.mxu0 0.0
  %3993 = vmatpush1.msra.mxu0 0.0
  %3994 = vmatprep.subr.mxu0 0.0
  %3995 = vmatpush1.msra.mxu0 0.0
  %3996 = vmatprep.subr.mxu0 0.0
  %3997 = vmatpush1.msra.mxu0 0.0
  %3998 = vmatprep.subr.mxu0 0.0
  %3999 = vmatpush1.msra.mxu0 0.0
  %4000 = vmatprep.subr.mxu0 0.0
  %4001 = vmatpush1.msra.mxu0 0.0
  %4002 = vmatprep.subr.mxu0 0.0
  %4003 = vmatpush1.msra.mxu0 0.0
  %4004 = vmatprep.subr.mxu0 0.0
  %4005 = vmatpush1.msra.mxu0 0.0
  %4006 = vmatprep.subr.mxu0 0.0
  %4007 = vmatpush1.msra.mxu0 0.0
  %4008 = vmatprep.subr.mxu0 0.0
  %4009 = vmatpush1.msra.mxu0 0.0
  %4010 = vmatprep.subr.mxu0 0.0
  %4011 = vmatpush1.msra.mxu0 0.0
  %4012 = vmatprep.subr.mxu0 0.0
  %4013 = vmatpush1.msra.mxu0 0.0
  %4014 = vmatprep.subr.mxu0 0.0
  %4015 = vmatpush1.msra.mxu0 0.0
  %4016 = vmatprep.subr.mxu0 0.0
  %4017 = vmatpush1.msra.mxu0 0.0
  %4018 = vmatprep.subr.mxu0 0.0
  %4019 = vmatpush1.msra.mxu0 0.0
  %4020 = vmatprep.mubr.f32.mxu0 0.0
  %v4021 = vand.u32 %v43, 4294901760
  %4022 = vmatmul.mubr.f32.gmra.mrb[0].mxu0 %v4021
  %v4023 = vpop.f32.mrb[0].mxu0
  %v4024 = vadd.f32 %v3863, %v4023
  %v4025 = vpop.f32.mrb[0].mxu0
  %4026 = vmatprep.mubr.f32.mxu0 0.0
  %v4027 = vand.u32 %v46, 4294901760
  %4028 = vmatmul.mubr.f32.gmra.mrb[0].mxu0 %v4027
  %v4029 = vpop.f32.mrb[0].mxu0
  %v4030 = vadd.f32 %v3873, %v4029
  %v4031 = vpop.f32.mrb[0].mxu0
  %4032 = vmatprep.mubr.f32.mxu0 0.0
  %v4033 = vand.u32 %v49, 4294901760
  %4034 = vmatmul.mubr.f32.gmra.mrb[0].mxu0 %v4033
  %v4035 = vpop.f32.mrb[0].mxu0
  %v4036 = vadd.f32 %v3883, %v4035
  %v4037 = vpop.f32.mrb[0].mxu0
  %4038 = vmatprep.mubr.f32.mxu0 0.0
  %v4039 = vand.u32 %v52, 4294901760
  %4040 = vmatmul.mubr.f32.gmra.mrb[0].mxu0 %v4039
  %v4041 = vpop.f32.mrb[0].mxu0
  %v4042 = vadd.f32 %v3893, %v4041
  %v4043 = vpop.f32.mrb[0].mxu0
  %4044 = vmatprep.mubr.f32.mxu0 0.0
  %v4045 = vand.u32 %v55, 4294901760
  %4046 = vmatmul.mubr.f32.gmra.mrb[0].mxu0 %v4045
  %v4047 = vpop.f32.mrb[0].mxu0
  %v4048 = vadd.f32 %v3903, %v4047
  %v4049 = vpop.f32.mrb[0].mxu0
  %4050 = vmatprep.mubr.f32.mxu0 0.0
  %v4051 = vand.u32 %v58, 4294901760
  %4052 = vmatmul.mubr.f32.gmra.mrb[0].mxu0 %v4051
  %v4053 = vpop.f32.mrb[0].mxu0
  %v4054 = vadd.f32 %v3913, %v4053
  %v4055 = vpop.f32.mrb[0].mxu0
  %4056 = vmatprep.mubr.f32.mxu0 0.0
  %v4057 = vand.u32 %v61, 4294901760
  %4058 = vmatmul.mubr.f32.gmra.mrb[0].mxu0 %v4057
  %v4059 = vpop.f32.mrb[0].mxu0
  %v4060 = vadd.f32 %v3923, %v4059
  %v4061 = vpop.f32.mrb[0].mxu0
  %4062 = vmatprep.mubr.f32.mxu0 0.0
  %v4063 = vand.u32 %v64, 4294901760
  %4064 = vmatmul.mubr.f32.gmra.mrb[0].mxu0 %v4063
  %v4065 = vpop.f32.mrb[0].mxu0
  %v4066 = vadd.f32 %v3933, %v4065
  %v4067 = vpop.f32.mrb[0].mxu0
  %4068 = vdwg.mxu0
  %4069 = vmatprep.subr.mxu0 0.0
  %v4070 = vand.u32 %v3783, 4294901760
  %v4071 = vsub.f32 %v3783, %v4070
  %4072 = vmatpush1.msra.mxu0 %v4071
  %4073 = vmatprep.subr.mxu0 0.0
  %v4074 = vand.u32 %v3784, 4294901760
  %v4075 = vsub.f32 %v3784, %v4074
  %4076 = vmatpush1.msra.mxu0 %v4075
  %4077 = vmatprep.subr.mxu0 0.0
  %v4078 = vand.u32 %v3785, 4294901760
  %v4079 = vsub.f32 %v3785, %v4078
  %4080 = vmatpush1.msra.mxu0 %v4079
  %4081 = vmatprep.subr.mxu0 0.0
  %v4082 = vand.u32 %v3786, 4294901760
  %v4083 = vsub.f32 %v3786, %v4082
  %4084 = vmatpush1.msra.mxu0 %v4083
  %4085 = vmatprep.subr.mxu0 0.0
  %4086 = vmatpush1.msra.mxu0 0.0
  %4087 = vmatprep.subr.mxu0 0.0
  %4088 = vmatpush1.msra.mxu0 0.0
  %4089 = vmatprep.subr.mxu0 0.0
  %4090 = vmatpush1.msra.mxu0 0.0
  %4091 = vmatprep.subr.mxu0 0.0
  %4092 = vmatpush1.msra.mxu0 0.0
  %4093 = vmatprep.subr.mxu0 0.0
  %4094 = vmatpush1.msra.mxu0 0.0
  %4095 = vmatprep.subr.mxu0 0.0
  %4096 = vmatpush1.msra.mxu0 0.0
  %4097 = vmatprep.subr.mxu0 0.0
  %4098 = vmatpush1.msra.mxu0 0.0
  %4099 = vmatprep.subr.mxu0 0.0
  %4100 = vmatpush1.msra.mxu0 0.0
  %4101 = vmatprep.subr.mxu0 0.0
  %4102 = vmatpush1.msra.mxu0 0.0
  %4103 = vmatprep.subr.mxu0 0.0
  %4104 = vmatpush1.msra.mxu0 0.0
  %4105 = vmatprep.subr.mxu0 0.0
  %4106 = vmatpush1.msra.mxu0 0.0
  %4107 = vmatprep.subr.mxu0 0.0
  %4108 = vmatpush1.msra.mxu0 0.0
  %4109 = vmatprep.subr.mxu0 0.0
  %4110 = vmatpush1.msra.mxu0 0.0
  %4111 = vmatprep.subr.mxu0 0.0
  %4112 = vmatpush1.msra.mxu0 0.0
  %4113 = vmatprep.subr.mxu0 0.0
  %4114 = vmatpush1.msra.mxu0 0.0
  %4115 = vmatprep.subr.mxu0 0.0
  %4116 = vmatpush1.msra.mxu0 0.0
  %4117 = vmatprep.subr.mxu0 0.0
  %4118 = vmatpush1.msra.mxu0 0.0
  %4119 = vmatprep.subr.mxu0 0.0
  %4120 = vmatpush1.msra.mxu0 0.0
  %4121 = vmatprep.subr.mxu0 0.0
  %4122 = vmatpush1.msra.mxu0 0.0
  %4123 = vmatprep.subr.mxu0 0.0
  %4124 = vmatpush1.msra.mxu0 0.0
  %4125 = vmatprep.subr.mxu0 0.0
  %4126 = vmatpush1.msra.mxu0 0.0
  %4127 = vmatprep.subr.mxu0 0.0
  %4128 = vmatpush1.msra.mxu0 0.0
  %4129 = vmatprep.subr.mxu0 0.0
  %4130 = vmatpush1.msra.mxu0 0.0
  %4131 = vmatprep.subr.mxu0 0.0
  %4132 = vmatpush1.msra.mxu0 0.0
  %4133 = vmatprep.subr.mxu0 0.0
  %4134 = vmatpush1.msra.mxu0 0.0
  %4135 = vmatprep.subr.mxu0 0.0
  %4136 = vmatpush1.msra.mxu0 0.0
  %4137 = vmatprep.subr.mxu0 0.0
  %4138 = vmatpush1.msra.mxu0 0.0
  %4139 = vmatprep.subr.mxu0 0.0
  %4140 = vmatpush1.msra.mxu0 0.0
  %4141 = vmatprep.mubr.f32.mxu0 0.0
  %v4142 = vand.u32 %v43, 4294901760
  %v4143 = vsub.f32 %v43, %v4142
  %4144 = vmatmul.mubr.f32.gmra.mrb[0].mxu0 %v4143
  %v4145 = vpop.f32.mrb[0].mxu0
  %v4146 = vadd.f32 %v4024, %v4145
  %v4147 = vpop.f32.mrb[0].mxu0
  %4148 = vmatprep.mubr.f32.mxu0 0.0
  %v4149 = vand.u32 %v46, 4294901760
  %v4150 = vsub.f32 %v46, %v4149
  %4151 = vmatmul.mubr.f32.gmra.mrb[0].mxu0 %v4150
  %v4152 = vpop.f32.mrb[0].mxu0
  %v4153 = vadd.f32 %v4030, %v4152
  %v4154 = vpop.f32.mrb[0].mxu0
  %4155 = vmatprep.mubr.f32.mxu0 0.0
  %v4156 = vand.u32 %v49, 4294901760
  %v4157 = vsub.f32 %v49, %v4156
  %4158 = vmatmul.mubr.f32.gmra.mrb[0].mxu0 %v4157
  %v4159 = vpop.f32.mrb[0].mxu0
  %v4160 = vadd.f32 %v4036, %v4159
  %v4161 = vpop.f32.mrb[0].mxu0
  %4162 = vmatprep.mubr.f32.mxu0 0.0
  %v4163 = vand.u32 %v52, 4294901760
  %v4164 = vsub.f32 %v52, %v4163
  %4165 = vmatmul.mubr.f32.gmra.mrb[0].mxu0 %v4164
  %v4166 = vpop.f32.mrb[0].mxu0
  %v4167 = vadd.f32 %v4042, %v4166
  %v4168 = vpop.f32.mrb[0].mxu0
  %4169 = vmatprep.mubr.f32.mxu0 0.0
  %v4170 = vand.u32 %v55, 4294901760
  %v4171 = vsub.f32 %v55, %v4170
  %4172 = vmatmul.mubr.f32.gmra.mrb[0].mxu0 %v4171
  %v4173 = vpop.f32.mrb[0].mxu0
  %v4174 = vadd.f32 %v4048, %v4173
  %v4175 = vpop.f32.mrb[0].mxu0
  %4176 = vmatprep.mubr.f32.mxu0 0.0
  %v4177 = vand.u32 %v58, 4294901760
  %v4178 = vsub.f32 %v58, %v4177
  %4179 = vmatmul.mubr.f32.gmra.mrb[0].mxu0 %v4178
  %v4180 = vpop.f32.mrb[0].mxu0
  %v4181 = vadd.f32 %v4054, %v4180
  %v4182 = vpop.f32.mrb[0].mxu0
  %4183 = vmatprep.mubr.f32.mxu0 0.0
  %v4184 = vand.u32 %v61, 4294901760
  %v4185 = vsub.f32 %v61, %v4184
  %4186 = vmatmul.mubr.f32.gmra.mrb[0].mxu0 %v4185
  %v4187 = vpop.f32.mrb[0].mxu0
  %v4188 = vadd.f32 %v4060, %v4187
  %v4189 = vpop.f32.mrb[0].mxu0
  %4190 = vmatprep.mubr.f32.mxu0 0.0
  %v4191 = vand.u32 %v64, 4294901760
  %v4192 = vsub.f32 %v64, %v4191
  %4193 = vmatmul.mubr.f32.gmra.mrb[0].mxu0 %v4192
  %v4194 = vpop.f32.mrb[0].mxu0
  %v4195 = vadd.f32 %v4066, %v4194
  %v4196 = vpop.f32.mrb[0].mxu0
  %4197 = vdwg.mxu0
  %4198 = vmatprep.subr.mxu0 0.0
  %v4199 = vand.u32 %v3783, 4294901760
  %4200 = vmatpush1.msra.mxu0 %v4199
  %4201 = vmatprep.subr.mxu0 0.0
  %v4202 = vand.u32 %v3784, 4294901760
  %4203 = vmatpush1.msra.mxu0 %v4202
  %4204 = vmatprep.subr.mxu0 0.0
  %v4205 = vand.u32 %v3785, 4294901760
  %4206 = vmatpush1.msra.mxu0 %v4205
  %4207 = vmatprep.subr.mxu0 0.0
  %v4208 = vand.u32 %v3786, 4294901760
  %4209 = vmatpush1.msra.mxu0 %v4208
  %4210 = vmatprep.subr.mxu0 0.0
  %4211 = vmatpush1.msra.mxu0 0.0
  %4212 = vmatprep.subr.mxu0 0.0
  %4213 = vmatpush1.msra.mxu0 0.0
  %4214 = vmatprep.subr.mxu0 0.0
  %4215 = vmatpush1.msra.mxu0 0.0
  %4216 = vmatprep.subr.mxu0 0.0
  %4217 = vmatpush1.msra.mxu0 0.0
  %4218 = vmatprep.subr.mxu0 0.0
  %4219 = vmatpush1.msra.mxu0 0.0
  %4220 = vmatprep.subr.mxu0 0.0
  %4221 = vmatpush1.msra.mxu0 0.0
  %4222 = vmatprep.subr.mxu0 0.0
  %4223 = vmatpush1.msra.mxu0 0.0
  %4224 = vmatprep.subr.mxu0 0.0
  %4225 = vmatpush1.msra.mxu0 0.0
  %4226 = vmatprep.subr.mxu0 0.0
  %4227 = vmatpush1.msra.mxu0 0.0
  %4228 = vmatprep.subr.mxu0 0.0
  %4229 = vmatpush1.msra.mxu0 0.0
  %4230 = vmatprep.subr.mxu0 0.0
  %4231 = vmatpush1.msra.mxu0 0.0
  %4232 = vmatprep.subr.mxu0 0.0
  %4233 = vmatpush1.msra.mxu0 0.0
  %4234 = vmatprep.subr.mxu0 0.0
  %4235 = vmatpush1.msra.mxu0 0.0
  %4236 = vmatprep.subr.mxu0 0.0
  %4237 = vmatpush1.msra.mxu0 0.0
  %4238 = vmatprep.subr.mxu0 0.0
  %4239 = vmatpush1.msra.mxu0 0.0
  %4240 = vmatprep.subr.mxu0 0.0
  %4241 = vmatpush1.msra.mxu0 0.0
  %4242 = vmatprep.subr.mxu0 0.0
  %4243 = vmatpush1.msra.mxu0 0.0
  %4244 = vmatprep.subr.mxu0 0.0
  %4245 = vmatpush1.msra.mxu0 0.0
  %4246 = vmatprep.subr.mxu0 0.0
  %4247 = vmatpush1.msra.mxu0 0.0
  %4248 = vmatprep.subr.mxu0 0.0
  %4249 = vmatpush1.msra.mxu0 0.0
  %4250 = vmatprep.subr.mxu0 0.0
  %4251 = vmatpush1.msra.mxu0 0.0
  %4252 = vmatprep.subr.mxu0 0.0
  %4253 = vmatpush1.msra.mxu0 0.0
  %4254 = vmatprep.subr.mxu0 0.0
  %4255 = vmatpush1.msra.mxu0 0.0
  %4256 = vmatprep.subr.mxu0 0.0
  %4257 = vmatpush1.msra.mxu0 0.0
  %4258 = vmatprep.subr.mxu0 0.0
  %4259 = vmatpush1.msra.mxu0 0.0
  %4260 = vmatprep.subr.mxu0 0.0
  %4261 = vmatpush1.msra.mxu0 0.0
  %4262 = vmatprep.subr.mxu0 0.0
  %4263 = vmatpush1.msra.mxu0 0.0
  %4264 = vmatprep.subr.mxu0 0.0
  %4265 = vmatpush1.msra.mxu0 0.0
  %4266 = vmatprep.mubr.f32.mxu0 0.0
  %v4267 = vand.u32 %v43, 4294901760
  %v4268 = vsub.f32 %v43, %v4267
  %v4269 = vand.u32 %v4268, 4294901760
  %4270 = vmatmul.mubr.f32.gmra.mrb[0].mxu0 %v4269
  %v4271 = vpop.f32.mrb[0].mxu0
  %v4272 = vadd.f32 %v4146, %v4271
  %v4273 = vpop.f32.mrb[0].mxu0
  %4274 = vmatprep.mubr.f32.mxu0 0.0
  %v4275 = vand.u32 %v46, 4294901760
  %v4276 = vsub.f32 %v46, %v4275
  %v4277 = vand.u32 %v4276, 4294901760
  %4278 = vmatmul.mubr.f32.gmra.mrb[0].mxu0 %v4277
  %v4279 = vpop.f32.mrb[0].mxu0
  %v4280 = vadd.f32 %v4153, %v4279
  %v4281 = vpop.f32.mrb[0].mxu0
  %4282 = vmatprep.mubr.f32.mxu0 0.0
  %v4283 = vand.u32 %v49, 4294901760
  %v4284 = vsub.f32 %v49, %v4283
  %v4285 = vand.u32 %v4284, 4294901760
  %4286 = vmatmul.mubr.f32.gmra.mrb[0].mxu0 %v4285
  %v4287 = vpop.f32.mrb[0].mxu0
  %v4288 = vadd.f32 %v4160, %v4287
  %v4289 = vpop.f32.mrb[0].mxu0
  %4290 = vmatprep.mubr.f32.mxu0 0.0
  %v4291 = vand.u32 %v52, 4294901760
  %v4292 = vsub.f32 %v52, %v4291
  %v4293 = vand.u32 %v4292, 4294901760
  %4294 = vmatmul.mubr.f32.gmra.mrb[0].mxu0 %v4293
  %v4295 = vpop.f32.mrb[0].mxu0
  %v4296 = vadd.f32 %v4167, %v4295
  %v4297 = vpop.f32.mrb[0].mxu0
  %4298 = vmatprep.mubr.f32.mxu0 0.0
  %v4299 = vand.u32 %v55, 4294901760
  %v4300 = vsub.f32 %v55, %v4299
  %v4301 = vand.u32 %v4300, 4294901760
  %4302 = vmatmul.mubr.f32.gmra.mrb[0].mxu0 %v4301
  %v4303 = vpop.f32.mrb[0].mxu0
  %v4304 = vadd.f32 %v4174, %v4303
  %v4305 = vpop.f32.mrb[0].mxu0
  %4306 = vmatprep.mubr.f32.mxu0 0.0
  %v4307 = vand.u32 %v58, 4294901760
  %v4308 = vsub.f32 %v58, %v4307
  %v4309 = vand.u32 %v4308, 4294901760
  %4310 = vmatmul.mubr.f32.gmra.mrb[0].mxu0 %v4309
  %v4311 = vpop.f32.mrb[0].mxu0
  %v4312 = vadd.f32 %v4181, %v4311
  %v4313 = vpop.f32.mrb[0].mxu0
  %4314 = vmatprep.mubr.f32.mxu0 0.0
  %v4315 = vand.u32 %v61, 4294901760
  %v4316 = vsub.f32 %v61, %v4315
  %v4317 = vand.u32 %v4316, 4294901760
  %4318 = vmatmul.mubr.f32.gmra.mrb[0].mxu0 %v4317
  %v4319 = vpop.f32.mrb[0].mxu0
  %v4320 = vadd.f32 %v4188, %v4319
  %v4321 = vpop.f32.mrb[0].mxu0
  %4322 = vmatprep.mubr.f32.mxu0 0.0
  %v4323 = vand.u32 %v64, 4294901760
  %v4324 = vsub.f32 %v64, %v4323
  %v4325 = vand.u32 %v4324, 4294901760
  %4326 = vmatmul.mubr.f32.gmra.mrb[0].mxu0 %v4325
  %v4327 = vpop.f32.mrb[0].mxu0
  %v4328 = vadd.f32 %v4195, %v4327
  %v4329 = vpop.f32.mrb[0].mxu0
  %4330 = vdwg.mxu0
  %4331 = vmatprep.subr.mxu0 0.0
  %v4332 = vand.u32 %v3783, 4294901760
  %v4333 = vsub.f32 %v3783, %v4332
  %v4334 = vand.u32 %v4333, 4294901760
  %4335 = vmatpush1.msra.mxu0 %v4334
  %4336 = vmatprep.subr.mxu0 0.0
  %v4337 = vand.u32 %v3784, 4294901760
  %v4338 = vsub.f32 %v3784, %v4337
  %v4339 = vand.u32 %v4338, 4294901760
  %4340 = vmatpush1.msra.mxu0 %v4339
  %4341 = vmatprep.subr.mxu0 0.0
  %v4342 = vand.u32 %v3785, 4294901760
  %v4343 = vsub.f32 %v3785, %v4342
  %v4344 = vand.u32 %v4343, 4294901760
  %4345 = vmatpush1.msra.mxu0 %v4344
  %4346 = vmatprep.subr.mxu0 0.0
  %v4347 = vand.u32 %v3786, 4294901760
  %v4348 = vsub.f32 %v3786, %v4347
  %v4349 = vand.u32 %v4348, 4294901760
  %4350 = vmatpush1.msra.mxu0 %v4349
  %4351 = vmatprep.subr.mxu0 0.0
  %4352 = vmatpush1.msra.mxu0 0.0
  %4353 = vmatprep.subr.mxu0 0.0
  %4354 = vmatpush1.msra.mxu0 0.0
  %4355 = vmatprep.subr.mxu0 0.0
  %4356 = vmatpush1.msra.mxu0 0.0
  %4357 = vmatprep.subr.mxu0 0.0
  %4358 = vmatpush1.msra.mxu0 0.0
  %4359 = vmatprep.subr.mxu0 0.0
  %4360 = vmatpush1.msra.mxu0 0.0
  %4361 = vmatprep.subr.mxu0 0.0
  %4362 = vmatpush1.msra.mxu0 0.0
  %4363 = vmatprep.subr.mxu0 0.0
  %4364 = vmatpush1.msra.mxu0 0.0
  %4365 = vmatprep.subr.mxu0 0.0
  %4366 = vmatpush1.msra.mxu0 0.0
  %4367 = vmatprep.subr.mxu0 0.0
  %4368 = vmatpush1.msra.mxu0 0.0
  %4369 = vmatprep.subr.mxu0 0.0
  %4370 = vmatpush1.msra.mxu0 0.0
  %4371 = vmatprep.subr.mxu0 0.0
  %4372 = vmatpush1.msra.mxu0 0.0
  %4373 = vmatprep.subr.mxu0 0.0
  %4374 = vmatpush1.msra.mxu0 0.0
  %4375 = vmatprep.subr.mxu0 0.0
  %4376 = vmatpush1.msra.mxu0 0.0
  %4377 = vmatprep.subr.mxu0 0.0
  %4378 = vmatpush1.msra.mxu0 0.0
  %4379 = vmatprep.subr.mxu0 0.0
  %4380 = vmatpush1.msra.mxu0 0.0
  %4381 = vmatprep.subr.mxu0 0.0
  %4382 = vmatpush1.msra.mxu0 0.0
  %4383 = vmatprep.subr.mxu0 0.0
  %4384 = vmatpush1.msra.mxu0 0.0
  %4385 = vmatprep.subr.mxu0 0.0
  %4386 = vmatpush1.msra.mxu0 0.0
  %4387 = vmatprep.subr.mxu0 0.0
  %4388 = vmatpush1.msra.mxu0 0.0
  %4389 = vmatprep.subr.mxu0 0.0
  %4390 = vmatpush1.msra.mxu0 0.0
  %4391 = vmatprep.subr.mxu0 0.0
  %4392 = vmatpush1.msra.mxu0 0.0
  %4393 = vmatprep.subr.mxu0 0.0
  %4394 = vmatpush1.msra.mxu0 0.0
  %4395 = vmatprep.subr.mxu0 0.0
  %4396 = vmatpush1.msra.mxu0 0.0
  %4397 = vmatprep.subr.mxu0 0.0
  %4398 = vmatpush1.msra.mxu0 0.0
  %4399 = vmatprep.subr.mxu0 0.0
  %4400 = vmatpush1.msra.mxu0 0.0
  %4401 = vmatprep.subr.mxu0 0.0
  %4402 = vmatpush1.msra.mxu0 0.0
  %4403 = vmatprep.subr.mxu0 0.0
  %4404 = vmatpush1.msra.mxu0 0.0
  %4405 = vmatprep.subr.mxu0 0.0
  %4406 = vmatpush1.msra.mxu0 0.0
  %4407 = vmatprep.mubr.f32.mxu0 0.0
  %v4408 = vand.u32 %v43, 4294901760
  %4409 = vmatmul.mubr.f32.gmra.mrb[0].mxu0 %v4408
  %v4410 = vpop.f32.mrb[0].mxu0
  %v4411 = vadd.f32 %v4272, %v4410
  %v4412 = vpop.f32.mrb[0].mxu0
  %4413 = vmatprep.mubr.f32.mxu0 0.0
  %v4414 = vand.u32 %v46, 4294901760
  %4415 = vmatmul.mubr.f32.gmra.mrb[0].mxu0 %v4414
  %v4416 = vpop.f32.mrb[0].mxu0
  %v4417 = vadd.f32 %v4280, %v4416
  %v4418 = vpop.f32.mrb[0].mxu0
  %4419 = vmatprep.mubr.f32.mxu0 0.0
  %v4420 = vand.u32 %v49, 4294901760
  %4421 = vmatmul.mubr.f32.gmra.mrb[0].mxu0 %v4420
  %v4422 = vpop.f32.mrb[0].mxu0
  %v4423 = vadd.f32 %v4288, %v4422
  %v4424 = vpop.f32.mrb[0].mxu0
  %4425 = vmatprep.mubr.f32.mxu0 0.0
  %v4426 = vand.u32 %v52, 4294901760
  %4427 = vmatmul.mubr.f32.gmra.mrb[0].mxu0 %v4426
  %v4428 = vpop.f32.mrb[0].mxu0
  %v4429 = vadd.f32 %v4296, %v4428
  %v4430 = vpop.f32.mrb[0].mxu0
  %4431 = vmatprep.mubr.f32.mxu0 0.0
  %v4432 = vand.u32 %v55, 4294901760
  %4433 = vmatmul.mubr.f32.gmra.mrb[0].mxu0 %v4432
  %v4434 = vpop.f32.mrb[0].mxu0
  %v4435 = vadd.f32 %v4304, %v4434
  %v4436 = vpop.f32.mrb[0].mxu0
  %4437 = vmatprep.mubr.f32.mxu0 0.0
  %v4438 = vand.u32 %v58, 4294901760
  %4439 = vmatmul.mubr.f32.gmra.mrb[0].mxu0 %v4438
  %v4440 = vpop.f32.mrb[0].mxu0
  %v4441 = vadd.f32 %v4312, %v4440
  %v4442 = vpop.f32.mrb[0].mxu0
  %4443 = vmatprep.mubr.f32.mxu0 0.0
  %v4444 = vand.u32 %v61, 4294901760
  %4445 = vmatmul.mubr.f32.gmra.mrb[0].mxu0 %v4444
  %v4446 = vpop.f32.mrb[0].mxu0
  %v4447 = vadd.f32 %v4320, %v4446
  %v4448 = vpop.f32.mrb[0].mxu0
  %4449 = vmatprep.mubr.f32.mxu0 0.0
  %v4450 = vand.u32 %v64, 4294901760
  %4451 = vmatmul.mubr.f32.gmra.mrb[0].mxu0 %v4450
  %v4452 = vpop.f32.mrb[0].mxu0
  %v4453 = vadd.f32 %v4328, %v4452
  %v4454 = vpop.f32.mrb[0].mxu0
  %4455 = vdwg.mxu0
  %4456 = vmatprep.subr.mxu0 0.0
  %v4457 = vand.u32 %v3783, 4294901760
  %4458 = vmatpush1.msra.mxu0 %v4457
  %4459 = vmatprep.subr.mxu0 0.0
  %v4460 = vand.u32 %v3784, 4294901760
  %4461 = vmatpush1.msra.mxu0 %v4460
  %4462 = vmatprep.subr.mxu0 0.0
  %v4463 = vand.u32 %v3785, 4294901760
  %4464 = vmatpush1.msra.mxu0 %v4463
  %4465 = vmatprep.subr.mxu0 0.0
  %v4466 = vand.u32 %v3786, 4294901760
  %4467 = vmatpush1.msra.mxu0 %v4466
  %4468 = vmatprep.subr.mxu0 0.0
  %4469 = vmatpush1.msra.mxu0 0.0
  %4470 = vmatprep.subr.mxu0 0.0
  %4471 = vmatpush1.msra.mxu0 0.0
  %4472 = vmatprep.subr.mxu0 0.0
  %4473 = vmatpush1.msra.mxu0 0.0
  %4474 = vmatprep.subr.mxu0 0.0
  %4475 = vmatpush1.msra.mxu0 0.0
  %4476 = vmatprep.subr.mxu0 0.0
  %4477 = vmatpush1.msra.mxu0 0.0
  %4478 = vmatprep.subr.mxu0 0.0
  %4479 = vmatpush1.msra.mxu0 0.0
  %4480 = vmatprep.subr.mxu0 0.0
  %4481 = vmatpush1.msra.mxu0 0.0
  %4482 = vmatprep.subr.mxu0 0.0
  %4483 = vmatpush1.msra.mxu0 0.0
  %4484 = vmatprep.subr.mxu0 0.0
  %4485 = vmatpush1.msra.mxu0 0.0
  %4486 = vmatprep.subr.mxu0 0.0
  %4487 = vmatpush1.msra.mxu0 0.0
  %4488 = vmatprep.subr.mxu0 0.0
  %4489 = vmatpush1.msra.mxu0 0.0
  %4490 = vmatprep.subr.mxu0 0.0
  %4491 = vmatpush1.msra.mxu0 0.0
  %4492 = vmatprep.subr.mxu0 0.0
  %4493 = vmatpush1.msra.mxu0 0.0
  %4494 = vmatprep.subr.mxu0 0.0
  %4495 = vmatpush1.msra.mxu0 0.0
  %4496 = vmatprep.subr.mxu0 0.0
  %4497 = vmatpush1.msra.mxu0 0.0
  %4498 = vmatprep.subr.mxu0 0.0
  %4499 = vmatpush1.msra.mxu0 0.0
  %4500 = vmatprep.subr.mxu0 0.0
  %4501 = vmatpush1.msra.mxu0 0.0
  %4502 = vmatprep.subr.mxu0 0.0
  %4503 = vmatpush1.msra.mxu0 0.0
  %4504 = vmatprep.subr.mxu0 0.0
  %4505 = vmatpush1.msra.mxu0 0.0
  %4506 = vmatprep.subr.mxu0 0.0
  %4507 = vmatpush1.msra.mxu0 0.0
  %4508 = vmatprep.subr.mxu0 0.0
  %4509 = vmatpush1.msra.mxu0 0.0
  %4510 = vmatprep.subr.mxu0 0.0
  %4511 = vmatpush1.msra.mxu0 0.0
  %4512 = vmatprep.subr.mxu0 0.0
  %4513 = vmatpush1.msra.mxu0 0.0
  %4514 = vmatprep.subr.mxu0 0.0
  %4515 = vmatpush1.msra.mxu0 0.0
  %4516 = vmatprep.subr.mxu0 0.0
  %4517 = vmatpush1.msra.mxu0 0.0
  %4518 = vmatprep.subr.mxu0 0.0
  %4519 = vmatpush1.msra.mxu0 0.0
  %4520 = vmatprep.subr.mxu0 0.0
  %4521 = vmatpush1.msra.mxu0 0.0
  %4522 = vmatprep.subr.mxu0 0.0
  %4523 = vmatpush1.msra.mxu0 0.0
  %4524 = vmatprep.mubr.f32.mxu0 0.0
  %v4525 = vand.u32 %v43, 4294901760
  %4526 = vmatmul.mubr.f32.gmra.mrb[0].mxu0 %v4525
  %v4527 = vpop.f32.mrb[0].mxu0
  %v4528 = vadd.f32 %v4411, %v4527
  %v4529 = vpop.f32.mrb[0].mxu0
  %4530 = vmatprep.mubr.f32.mxu0 0.0
  %v4531 = vand.u32 %v46, 4294901760
  %4532 = vmatmul.mubr.f32.gmra.mrb[0].mxu0 %v4531
  %v4533 = vpop.f32.mrb[0].mxu0
  %v4534 = vadd.f32 %v4417, %v4533
  %v4535 = vpop.f32.mrb[0].mxu0
  %4536 = vmatprep.mubr.f32.mxu0 0.0
  %v4537 = vand.u32 %v49, 4294901760
  %4538 = vmatmul.mubr.f32.gmra.mrb[0].mxu0 %v4537
  %v4539 = vpop.f32.mrb[0].mxu0
  %v4540 = vadd.f32 %v4423, %v4539
  %v4541 = vpop.f32.mrb[0].mxu0
  %4542 = vmatprep.mubr.f32.mxu0 0.0
  %v4543 = vand.u32 %v52, 4294901760
  %4544 = vmatmul.mubr.f32.gmra.mrb[0].mxu0 %v4543
  %v4545 = vpop.f32.mrb[0].mxu0
  %v4546 = vadd.f32 %v4429, %v4545
  %v4547 = vpop.f32.mrb[0].mxu0
  %4548 = vmatprep.mubr.f32.mxu0 0.0
  %v4549 = vand.u32 %v55, 4294901760
  %4550 = vmatmul.mubr.f32.gmra.mrb[0].mxu0 %v4549
  %v4551 = vpop.f32.mrb[0].mxu0
  %v4552 = vadd.f32 %v4435, %v4551
  %v4553 = vpop.f32.mrb[0].mxu0
  %4554 = vmatprep.mubr.f32.mxu0 0.0
  %v4555 = vand.u32 %v58, 4294901760
  %4556 = vmatmul.mubr.f32.gmra.mrb[0].mxu0 %v4555
  %v4557 = vpop.f32.mrb[0].mxu0
  %v4558 = vadd.f32 %v4441, %v4557
  %v4559 = vpop.f32.mrb[0].mxu0
  %4560 = vmatprep.mubr.f32.mxu0 0.0
  %v4561 = vand.u32 %v61, 4294901760
  %4562 = vmatmul.mubr.f32.gmra.mrb[0].mxu0 %v4561
  %v4563 = vpop.f32.mrb[0].mxu0
  %v4564 = vadd.f32 %v4447, %v4563
  %v4565 = vpop.f32.mrb[0].mxu0
  %4566 = vmatprep.mubr.f32.mxu0 0.0
  %v4567 = vand.u32 %v64, 4294901760
  %4568 = vmatmul.mubr.f32.gmra.mrb[0].mxu0 %v4567
  %v4569 = vpop.f32.mrb[0].mxu0
  %v4570 = vadd.f32 %v4453, %v4569
  %v4571 = vpop.f32.mrb[0].mxu0
  %4572 = vdwg.mxu0
  %v4573 = vadd.f32 %v4552, %v855
  %v4574 = vadd.f32 %v4558, %v860
  %v4575 = vadd.f32 %v4564, %v865
  %v4576 = vadd.f32 %v4570, %v870
  %4577 = vxpose.xlu0.b32.start [1/16] %v4528, 128
  %4578 = vxpose.xlu0.b32.cont [2/16] %v4534, 128
  %4579 = vxpose.xlu0.b32.cont [3/16] %v4540, 128
  %4580 = vxpose.xlu0.b32.cont [4/16] %v4546, 128
  %4581 = vxpose.xlu0.b32.cont [5/16] 0.0, 128
  %4582 = vxpose.xlu0.b32.cont [6/16] 0.0, 128
  %4583 = vxpose.xlu0.b32.cont [7/16] 0.0, 128
  %4584 = vxpose.xlu0.b32.cont [8/16] 0.0, 128
  %4585 = vxpose.xlu0.b32.cont [9/16] 0.0, 128
  %4586 = vxpose.xlu0.b32.cont [10/16] 0.0, 128
  %4587 = vxpose.xlu0.b32.cont [11/16] 0.0, 128
  %4588 = vxpose.xlu0.b32.cont [12/16] 0.0, 128
  %4589 = vxpose.xlu0.b32.cont [13/16] 0.0, 128
  %4590 = vxpose.xlu0.b32.cont [14/16] 0.0, 128
  %4591 = vxpose.xlu0.b32.cont [15/16] 0.0, 128
  %4592 = vxpose.xlu0.b32.end [16/16] 0.0, 128
  %v4593 = vpop.trf.xlu0
  %v4594 = vpop.trf.xlu0
  %v4595 = vpop.trf.xlu0
  %v4596 = vpop.trf.xlu0
  %v4597 = vpop.trf.xlu0
  %v4598 = vpop.trf.xlu0
  %v4599 = vpop.trf.xlu0
  %v4600 = vpop.trf.xlu0
  %v4601 = vpop.trf.xlu0
  %v4602 = vpop.trf.xlu0
  %v4603 = vpop.trf.xlu0
  %v4604 = vpop.trf.xlu0
  %v4605 = vpop.trf.xlu0
  %v4606 = vpop.trf.xlu0
  %v4607 = vpop.trf.xlu0
  %v4608 = vpop.trf.xlu0
  %v4610 = vsel %vm41, %v4593, 0
  %v4613 = vsel %vm41, %v4594, 0
  %v4616 = vsel %vm41, %v4595, 0
  %v4619 = vsel %vm41, %v4596, 0
  %v4622 = vsel %vm41, %v4597, 0
  %v4625 = vsel %vm41, %v4598, 0
  %v4628 = vsel %vm41, %v4599, 0
  %v4631 = vsel %vm41, %v4600, 0
  %v4634 = vsel %vm41, %v4601, 0
  %v4637 = vsel %vm41, %v4602, 0
  %v4640 = vsel %vm41, %v4603, 0
  %v4643 = vsel %vm41, %v4604, 0
  %v4646 = vsel %vm41, %v4605, 0
  %v4649 = vsel %vm41, %v4606, 0
  %v4652 = vsel %vm41, %v4607, 0
  %v4655 = vsel %vm41, %v4608, 0
  %4657 = vmatprep.subr.mxu0 0.0
  %v4658 = vand.u32 %v3783, 4294901760
  %4659 = vmatpush1.msra.mxu0 %v4658
  %4660 = vmatprep.subr.mxu0 0.0
  %v4661 = vand.u32 %v3784, 4294901760
  %4662 = vmatpush1.msra.mxu0 %v4661
  %4663 = vmatprep.subr.mxu0 0.0
  %v4664 = vand.u32 %v3785, 4294901760
  %4665 = vmatpush1.msra.mxu0 %v4664
  %4666 = vmatprep.subr.mxu0 0.0
  %v4667 = vand.u32 %v3786, 4294901760
  %4668 = vmatpush1.msra.mxu0 %v4667
  %4669 = vmatprep.subr.mxu0 0.0
  %4670 = vmatpush1.msra.mxu0 0.0
  %4671 = vmatprep.subr.mxu0 0.0
  %4672 = vmatpush1.msra.mxu0 0.0
  %4673 = vmatprep.subr.mxu0 0.0
  %4674 = vmatpush1.msra.mxu0 0.0
  %4675 = vmatprep.subr.mxu0 0.0
  %4676 = vmatpush1.msra.mxu0 0.0
  %4677 = vmatprep.subr.mxu0 0.0
  %4678 = vmatpush1.msra.mxu0 0.0
  %4679 = vmatprep.subr.mxu0 0.0
  %4680 = vmatpush1.msra.mxu0 0.0
  %4681 = vmatprep.subr.mxu0 0.0
  %4682 = vmatpush1.msra.mxu0 0.0
  %4683 = vmatprep.subr.mxu0 0.0
  %4684 = vmatpush1.msra.mxu0 0.0
  %4685 = vmatprep.subr.mxu0 0.0
  %4686 = vmatpush1.msra.mxu0 0.0
  %4687 = vmatprep.subr.mxu0 0.0
  %4688 = vmatpush1.msra.mxu0 0.0
  %4689 = vmatprep.subr.mxu0 0.0
  %4690 = vmatpush1.msra.mxu0 0.0
  %4691 = vmatprep.subr.mxu0 0.0
  %4692 = vmatpush1.msra.mxu0 0.0
  %4693 = vmatprep.subr.mxu0 0.0
  %4694 = vmatpush1.msra.mxu0 0.0
  %4695 = vmatprep.subr.mxu0 0.0
  %4696 = vmatpush1.msra.mxu0 0.0
  %4697 = vmatprep.subr.mxu0 0.0
  %4698 = vmatpush1.msra.mxu0 0.0
  %4699 = vmatprep.subr.mxu0 0.0
  %4700 = vmatpush1.msra.mxu0 0.0
  %4701 = vmatprep.subr.mxu0 0.0
  %4702 = vmatpush1.msra.mxu0 0.0
  %4703 = vmatprep.subr.mxu0 0.0
  %4704 = vmatpush1.msra.mxu0 0.0
  %4705 = vmatprep.subr.mxu0 0.0
  %4706 = vmatpush1.msra.mxu0 0.0
  %4707 = vmatprep.subr.mxu0 0.0
  %4708 = vmatpush1.msra.mxu0 0.0
  %4709 = vmatprep.subr.mxu0 0.0
  %4710 = vmatpush1.msra.mxu0 0.0
  %4711 = vmatprep.subr.mxu0 0.0
  %4712 = vmatpush1.msra.mxu0 0.0
  %4713 = vmatprep.subr.mxu0 0.0
  %4714 = vmatpush1.msra.mxu0 0.0
  %4715 = vmatprep.subr.mxu0 0.0
  %4716 = vmatpush1.msra.mxu0 0.0
  %4717 = vmatprep.subr.mxu0 0.0
  %4718 = vmatpush1.msra.mxu0 0.0
  %4719 = vmatprep.subr.mxu0 0.0
  %4720 = vmatpush1.msra.mxu0 0.0
  %4721 = vmatprep.subr.mxu0 0.0
  %4722 = vmatpush1.msra.mxu0 0.0
  %4723 = vmatprep.subr.mxu0 0.0
  %4724 = vmatpush1.msra.mxu0 0.0
  %4725 = vmatprep.mubr.f32.mxu0 0.0
  %v4726 = vand.u32 %v4610, 4294901760
  %v4727 = vsub.f32 %v4610, %v4726
  %v4728 = vand.u32 %v4727, 4294901760
  %v4729 = vsub.f32 %v4727, %v4728
  %v4730 = vand.u32 %v4729, 4294901760
  %4731 = vmatmul.mubr.f32.gmra.mrb[0].mxu0 %v4730
  %v4732 = vpop.f32.mrb[0].mxu0
  %v4733 = vadd.f32 0.0, %v4732
  %v4734 = vpop.f32.mrb[0].mxu0
  %4735 = vmatprep.mubr.f32.mxu0 0.0
  %v4736 = vand.u32 %v4613, 4294901760
  %v4737 = vsub.f32 %v4613, %v4736
  %v4738 = vand.u32 %v4737, 4294901760
  %v4739 = vsub.f32 %v4737, %v4738
  %v4740 = vand.u32 %v4739, 4294901760
  %4741 = vmatmul.mubr.f32.gmra.mrb[0].mxu0 %v4740
  %v4742 = vpop.f32.mrb[0].mxu0
  %v4743 = vadd.f32 0.0, %v4742
  %v4744 = vpop.f32.mrb[0].mxu0
  %4745 = vmatprep.mubr.f32.mxu0 0.0
  %v4746 = vand.u32 %v4616, 4294901760
  %v4747 = vsub.f32 %v4616, %v4746
  %v4748 = vand.u32 %v4747, 4294901760
  %v4749 = vsub.f32 %v4747, %v4748
  %v4750 = vand.u32 %v4749, 4294901760
  %4751 = vmatmul.mubr.f32.gmra.mrb[0].mxu0 %v4750
  %v4752 = vpop.f32.mrb[0].mxu0
  %v4753 = vadd.f32 0.0, %v4752
  %v4754 = vpop.f32.mrb[0].mxu0
  %4755 = vmatprep.mubr.f32.mxu0 0.0
  %v4756 = vand.u32 %v4619, 4294901760
  %v4757 = vsub.f32 %v4619, %v4756
  %v4758 = vand.u32 %v4757, 4294901760
  %v4759 = vsub.f32 %v4757, %v4758
  %v4760 = vand.u32 %v4759, 4294901760
  %4761 = vmatmul.mubr.f32.gmra.mrb[0].mxu0 %v4760
  %v4762 = vpop.f32.mrb[0].mxu0
  %v4763 = vadd.f32 0.0, %v4762
  %v4764 = vpop.f32.mrb[0].mxu0
  %4765 = vmatprep.mubr.f32.mxu0 0.0
  %v4766 = vand.u32 %v4622, 4294901760
  %v4767 = vsub.f32 %v4622, %v4766
  %v4768 = vand.u32 %v4767, 4294901760
  %v4769 = vsub.f32 %v4767, %v4768
  %v4770 = vand.u32 %v4769, 4294901760
  %4771 = vmatmul.mubr.f32.gmra.mrb[0].mxu0 %v4770
  %v4772 = vpop.f32.mrb[0].mxu0
  %v4773 = vadd.f32 0.0, %v4772
  %v4774 = vpop.f32.mrb[0].mxu0
  %4775 = vmatprep.mubr.f32.mxu0 0.0
  %v4776 = vand.u32 %v4625, 4294901760
  %v4777 = vsub.f32 %v4625, %v4776
  %v4778 = vand.u32 %v4777, 4294901760
  %v4779 = vsub.f32 %v4777, %v4778
  %v4780 = vand.u32 %v4779, 4294901760
  %4781 = vmatmul.mubr.f32.gmra.mrb[0].mxu0 %v4780
  %v4782 = vpop.f32.mrb[0].mxu0
  %v4783 = vadd.f32 0.0, %v4782
  %v4784 = vpop.f32.mrb[0].mxu0
  %4785 = vmatprep.mubr.f32.mxu0 0.0
  %v4786 = vand.u32 %v4628, 4294901760
  %v4787 = vsub.f32 %v4628, %v4786
  %v4788 = vand.u32 %v4787, 4294901760
  %v4789 = vsub.f32 %v4787, %v4788
  %v4790 = vand.u32 %v4789, 4294901760
  %4791 = vmatmul.mubr.f32.gmra.mrb[0].mxu0 %v4790
  %v4792 = vpop.f32.mrb[0].mxu0
  %v4793 = vadd.f32 0.0, %v4792
  %v4794 = vpop.f32.mrb[0].mxu0
  %4795 = vmatprep.mubr.f32.mxu0 0.0
  %v4796 = vand.u32 %v4631, 4294901760
  %v4797 = vsub.f32 %v4631, %v4796
  %v4798 = vand.u32 %v4797, 4294901760
  %v4799 = vsub.f32 %v4797, %v4798
  %v4800 = vand.u32 %v4799, 4294901760
  %4801 = vmatmul.mubr.f32.gmra.mrb[0].mxu0 %v4800
  %v4802 = vpop.f32.mrb[0].mxu0
  %v4803 = vadd.f32 0.0, %v4802
  %v4804 = vpop.f32.mrb[0].mxu0
  %4805 = vmatprep.mubr.f32.mxu0 0.0
  %v4806 = vand.u32 %v4634, 4294901760
  %v4807 = vsub.f32 %v4634, %v4806
  %v4808 = vand.u32 %v4807, 4294901760
  %v4809 = vsub.f32 %v4807, %v4808
  %v4810 = vand.u32 %v4809, 4294901760
  %4811 = vmatmul.mubr.f32.gmra.mrb[0].mxu0 %v4810
  %v4812 = vpop.f32.mrb[0].mxu0
  %v4813 = vadd.f32 0.0, %v4812
  %v4814 = vpop.f32.mrb[0].mxu0
  %4815 = vmatprep.mubr.f32.mxu0 0.0
  %v4816 = vand.u32 %v4637, 4294901760
  %v4817 = vsub.f32 %v4637, %v4816
  %v4818 = vand.u32 %v4817, 4294901760
  %v4819 = vsub.f32 %v4817, %v4818
  %v4820 = vand.u32 %v4819, 4294901760
  %4821 = vmatmul.mubr.f32.gmra.mrb[0].mxu0 %v4820
  %v4822 = vpop.f32.mrb[0].mxu0
  %v4823 = vadd.f32 0.0, %v4822
  %v4824 = vpop.f32.mrb[0].mxu0
  %4825 = vmatprep.mubr.f32.mxu0 0.0
  %v4826 = vand.u32 %v4640, 4294901760
  %v4827 = vsub.f32 %v4640, %v4826
  %v4828 = vand.u32 %v4827, 4294901760
  %v4829 = vsub.f32 %v4827, %v4828
  %v4830 = vand.u32 %v4829, 4294901760
  %4831 = vmatmul.mubr.f32.gmra.mrb[0].mxu0 %v4830
  %v4832 = vpop.f32.mrb[0].mxu0
  %v4833 = vadd.f32 0.0, %v4832
  %v4834 = vpop.f32.mrb[0].mxu0
  %4835 = vmatprep.mubr.f32.mxu0 0.0
  %v4836 = vand.u32 %v4643, 4294901760
  %v4837 = vsub.f32 %v4643, %v4836
  %v4838 = vand.u32 %v4837, 4294901760
  %v4839 = vsub.f32 %v4837, %v4838
  %v4840 = vand.u32 %v4839, 4294901760
  %4841 = vmatmul.mubr.f32.gmra.mrb[0].mxu0 %v4840
  %v4842 = vpop.f32.mrb[0].mxu0
  %v4843 = vadd.f32 0.0, %v4842
  %v4844 = vpop.f32.mrb[0].mxu0
  %4845 = vmatprep.mubr.f32.mxu0 0.0
  %v4846 = vand.u32 %v4646, 4294901760
  %v4847 = vsub.f32 %v4646, %v4846
  %v4848 = vand.u32 %v4847, 4294901760
  %v4849 = vsub.f32 %v4847, %v4848
  %v4850 = vand.u32 %v4849, 4294901760
  %4851 = vmatmul.mubr.f32.gmra.mrb[0].mxu0 %v4850
  %v4852 = vpop.f32.mrb[0].mxu0
  %v4853 = vadd.f32 0.0, %v4852
  %v4854 = vpop.f32.mrb[0].mxu0
  %4855 = vmatprep.mubr.f32.mxu0 0.0
  %v4856 = vand.u32 %v4649, 4294901760
  %v4857 = vsub.f32 %v4649, %v4856
  %v4858 = vand.u32 %v4857, 4294901760
  %v4859 = vsub.f32 %v4857, %v4858
  %v4860 = vand.u32 %v4859, 4294901760
  %4861 = vmatmul.mubr.f32.gmra.mrb[0].mxu0 %v4860
  %v4862 = vpop.f32.mrb[0].mxu0
  %v4863 = vadd.f32 0.0, %v4862
  %v4864 = vpop.f32.mrb[0].mxu0
  %4865 = vmatprep.mubr.f32.mxu0 0.0
  %v4866 = vand.u32 %v4652, 4294901760
  %v4867 = vsub.f32 %v4652, %v4866
  %v4868 = vand.u32 %v4867, 4294901760
  %v4869 = vsub.f32 %v4867, %v4868
  %v4870 = vand.u32 %v4869, 4294901760
  %4871 = vmatmul.mubr.f32.gmra.mrb[0].mxu0 %v4870
  %v4872 = vpop.f32.mrb[0].mxu0
  %v4873 = vadd.f32 0.0, %v4872
  %v4874 = vpop.f32.mrb[0].mxu0
  %4875 = vmatprep.mubr.f32.mxu0 0.0
  %v4876 = vand.u32 %v4655, 4294901760
  %v4877 = vsub.f32 %v4655, %v4876
  %v4878 = vand.u32 %v4877, 4294901760
  %v4879 = vsub.f32 %v4877, %v4878
  %v4880 = vand.u32 %v4879, 4294901760
  %4881 = vmatmul.mubr.f32.gmra.mrb[0].mxu0 %v4880
  %v4882 = vpop.f32.mrb[0].mxu0
  %v4883 = vadd.f32 0.0, %v4882
  %v4884 = vpop.f32.mrb[0].mxu0
  %4885 = vdwg.mxu0
  %4886 = vmatprep.subr.mxu0 0.0
  %v4887 = vand.u32 %v3783, 4294901760
  %v4888 = vsub.f32 %v3783, %v4887
  %v4889 = vand.u32 %v4888, 4294901760
  %v4890 = vsub.f32 %v4888, %v4889
  %v4891 = vand.u32 %v4890, 4294901760
  %4892 = vmatpush1.msra.mxu0 %v4891
  %4893 = vmatprep.subr.mxu0 0.0
  %v4894 = vand.u32 %v3784, 4294901760
  %v4895 = vsub.f32 %v3784, %v4894
  %v4896 = vand.u32 %v4895, 4294901760
  %v4897 = vsub.f32 %v4895, %v4896
  %v4898 = vand.u32 %v4897, 4294901760
  %4899 = vmatpush1.msra.mxu0 %v4898
  %4900 = vmatprep.subr.mxu0 0.0
  %v4901 = vand.u32 %v3785, 4294901760
  %v4902 = vsub.f32 %v3785, %v4901
  %v4903 = vand.u32 %v4902, 4294901760
  %v4904 = vsub.f32 %v4902, %v4903
  %v4905 = vand.u32 %v4904, 4294901760
  %4906 = vmatpush1.msra.mxu0 %v4905
  %4907 = vmatprep.subr.mxu0 0.0
  %v4908 = vand.u32 %v3786, 4294901760
  %v4909 = vsub.f32 %v3786, %v4908
  %v4910 = vand.u32 %v4909, 4294901760
  %v4911 = vsub.f32 %v4909, %v4910
  %v4912 = vand.u32 %v4911, 4294901760
  %4913 = vmatpush1.msra.mxu0 %v4912
  %4914 = vmatprep.subr.mxu0 0.0
  %4915 = vmatpush1.msra.mxu0 0.0
  %4916 = vmatprep.subr.mxu0 0.0
  %4917 = vmatpush1.msra.mxu0 0.0
  %4918 = vmatprep.subr.mxu0 0.0
  %4919 = vmatpush1.msra.mxu0 0.0
  %4920 = vmatprep.subr.mxu0 0.0
  %4921 = vmatpush1.msra.mxu0 0.0
  %4922 = vmatprep.subr.mxu0 0.0
  %4923 = vmatpush1.msra.mxu0 0.0
  %4924 = vmatprep.subr.mxu0 0.0
  %4925 = vmatpush1.msra.mxu0 0.0
  %4926 = vmatprep.subr.mxu0 0.0
  %4927 = vmatpush1.msra.mxu0 0.0
  %4928 = vmatprep.subr.mxu0 0.0
  %4929 = vmatpush1.msra.mxu0 0.0
  %4930 = vmatprep.subr.mxu0 0.0
  %4931 = vmatpush1.msra.mxu0 0.0
  %4932 = vmatprep.subr.mxu0 0.0
  %4933 = vmatpush1.msra.mxu0 0.0
  %4934 = vmatprep.subr.mxu0 0.0
  %4935 = vmatpush1.msra.mxu0 0.0
  %4936 = vmatprep.subr.mxu0 0.0
  %4937 = vmatpush1.msra.mxu0 0.0
  %4938 = vmatprep.subr.mxu0 0.0
  %4939 = vmatpush1.msra.mxu0 0.0
  %4940 = vmatprep.subr.mxu0 0.0
  %4941 = vmatpush1.msra.mxu0 0.0
  %4942 = vmatprep.subr.mxu0 0.0
  %4943 = vmatpush1.msra.mxu0 0.0
  %4944 = vmatprep.subr.mxu0 0.0
  %4945 = vmatpush1.msra.mxu0 0.0
  %4946 = vmatprep.subr.mxu0 0.0
  %4947 = vmatpush1.msra.mxu0 0.0
  %4948 = vmatprep.subr.mxu0 0.0
  %4949 = vmatpush1.msra.mxu0 0.0
  %4950 = vmatprep.subr.mxu0 0.0
  %4951 = vmatpush1.msra.mxu0 0.0
  %4952 = vmatprep.subr.mxu0 0.0
  %4953 = vmatpush1.msra.mxu0 0.0
  %4954 = vmatprep.subr.mxu0 0.0
  %4955 = vmatpush1.msra.mxu0 0.0
  %4956 = vmatprep.subr.mxu0 0.0
  %4957 = vmatpush1.msra.mxu0 0.0
  %4958 = vmatprep.subr.mxu0 0.0
  %4959 = vmatpush1.msra.mxu0 0.0
  %4960 = vmatprep.subr.mxu0 0.0
  %4961 = vmatpush1.msra.mxu0 0.0
  %4962 = vmatprep.subr.mxu0 0.0
  %4963 = vmatpush1.msra.mxu0 0.0
  %4964 = vmatprep.subr.mxu0 0.0
  %4965 = vmatpush1.msra.mxu0 0.0
  %4966 = vmatprep.subr.mxu0 0.0
  %4967 = vmatpush1.msra.mxu0 0.0
  %4968 = vmatprep.subr.mxu0 0.0
  %4969 = vmatpush1.msra.mxu0 0.0
  %4970 = vmatprep.mubr.f32.mxu0 0.0
  %v4971 = vand.u32 %v4610, 4294901760
  %4972 = vmatmul.mubr.f32.gmra.mrb[0].mxu0 %v4971
  %v4973 = vpop.f32.mrb[0].mxu0
  %v4974 = vadd.f32 %v4733, %v4973
  %v4975 = vpop.f32.mrb[0].mxu0
  %4976 = vmatprep.mubr.f32.mxu0 0.0
  %v4977 = vand.u32 %v4613, 4294901760
  %4978 = vmatmul.mubr.f32.gmra.mrb[0].mxu0 %v4977
  %v4979 = vpop.f32.mrb[0].mxu0
  %v4980 = vadd.f32 %v4743, %v4979
  %v4981 = vpop.f32.mrb[0].mxu0
  %4982 = vmatprep.mubr.f32.mxu0 0.0
  %v4983 = vand.u32 %v4616, 4294901760
  %4984 = vmatmul.mubr.f32.gmra.mrb[0].mxu0 %v4983
  %v4985 = vpop.f32.mrb[0].mxu0
  %v4986 = vadd.f32 %v4753, %v4985
  %v4987 = vpop.f32.mrb[0].mxu0
  %4988 = vmatprep.mubr.f32.mxu0 0.0
  %v4989 = vand.u32 %v4619, 4294901760
  %4990 = vmatmul.mubr.f32.gmra.mrb[0].mxu0 %v4989
  %v4991 = vpop.f32.mrb[0].mxu0
  %v4992 = vadd.f32 %v4763, %v4991
  %v4993 = vpop.f32.mrb[0].mxu0
  %4994 = vmatprep.mubr.f32.mxu0 0.0
  %v4995 = vand.u32 %v4622, 4294901760
  %4996 = vmatmul.mubr.f32.gmra.mrb[0].mxu0 %v4995
  %v4997 = vpop.f32.mrb[0].mxu0
  %v4998 = vadd.f32 %v4773, %v4997
  %v4999 = vpop.f32.mrb[0].mxu0
  %5000 = vmatprep.mubr.f32.mxu0 0.0
  %v5001 = vand.u32 %v4625, 4294901760
  %5002 = vmatmul.mubr.f32.gmra.mrb[0].mxu0 %v5001
  %v5003 = vpop.f32.mrb[0].mxu0
  %v5004 = vadd.f32 %v4783, %v5003
  %v5005 = vpop.f32.mrb[0].mxu0
  %5006 = vmatprep.mubr.f32.mxu0 0.0
  %v5007 = vand.u32 %v4628, 4294901760
  %5008 = vmatmul.mubr.f32.gmra.mrb[0].mxu0 %v5007
  %v5009 = vpop.f32.mrb[0].mxu0
  %v5010 = vadd.f32 %v4793, %v5009
  %v5011 = vpop.f32.mrb[0].mxu0
  %5012 = vmatprep.mubr.f32.mxu0 0.0
  %v5013 = vand.u32 %v4631, 4294901760
  %5014 = vmatmul.mubr.f32.gmra.mrb[0].mxu0 %v5013
  %v5015 = vpop.f32.mrb[0].mxu0
  %v5016 = vadd.f32 %v4803, %v5015
  %v5017 = vpop.f32.mrb[0].mxu0
  %5018 = vmatprep.mubr.f32.mxu0 0.0
  %v5019 = vand.u32 %v4634, 4294901760
  %5020 = vmatmul.mubr.f32.gmra.mrb[0].mxu0 %v5019
  %v5021 = vpop.f32.mrb[0].mxu0
  %v5022 = vadd.f32 %v4813, %v5021
  %v5023 = vpop.f32.mrb[0].mxu0
  %5024 = vmatprep.mubr.f32.mxu0 0.0
  %v5025 = vand.u32 %v4637, 4294901760
  %5026 = vmatmul.mubr.f32.gmra.mrb[0].mxu0 %v5025
  %v5027 = vpop.f32.mrb[0].mxu0
  %v5028 = vadd.f32 %v4823, %v5027
  %v5029 = vpop.f32.mrb[0].mxu0
  %5030 = vmatprep.mubr.f32.mxu0 0.0
  %v5031 = vand.u32 %v4640, 4294901760
  %5032 = vmatmul.mubr.f32.gmra.mrb[0].mxu0 %v5031
  %v5033 = vpop.f32.mrb[0].mxu0
  %v5034 = vadd.f32 %v4833, %v5033
  %v5035 = vpop.f32.mrb[0].mxu0
  %5036 = vmatprep.mubr.f32.mxu0 0.0
  %v5037 = vand.u32 %v4643, 4294901760
  %5038 = vmatmul.mubr.f32.gmra.mrb[0].mxu0 %v5037
  %v5039 = vpop.f32.mrb[0].mxu0
  %v5040 = vadd.f32 %v4843, %v5039
  %v5041 = vpop.f32.mrb[0].mxu0
  %5042 = vmatprep.mubr.f32.mxu0 0.0
  %v5043 = vand.u32 %v4646, 4294901760
  %5044 = vmatmul.mubr.f32.gmra.mrb[0].mxu0 %v5043
  %v5045 = vpop.f32.mrb[0].mxu0
  %v5046 = vadd.f32 %v4853, %v5045
  %v5047 = vpop.f32.mrb[0].mxu0
  %5048 = vmatprep.mubr.f32.mxu0 0.0
  %v5049 = vand.u32 %v4649, 4294901760
  %5050 = vmatmul.mubr.f32.gmra.mrb[0].mxu0 %v5049
  %v5051 = vpop.f32.mrb[0].mxu0
  %v5052 = vadd.f32 %v4863, %v5051
  %v5053 = vpop.f32.mrb[0].mxu0
  %5054 = vmatprep.mubr.f32.mxu0 0.0
  %v5055 = vand.u32 %v4652, 4294901760
  %5056 = vmatmul.mubr.f32.gmra.mrb[0].mxu0 %v5055
  %v5057 = vpop.f32.mrb[0].mxu0
  %v5058 = vadd.f32 %v4873, %v5057
  %v5059 = vpop.f32.mrb[0].mxu0
  %5060 = vmatprep.mubr.f32.mxu0 0.0
  %v5061 = vand.u32 %v4655, 4294901760
  %5062 = vmatmul.mubr.f32.gmra.mrb[0].mxu0 %v5061
  %v5063 = vpop.f32.mrb[0].mxu0
  %v5064 = vadd.f32 %v4883, %v5063
  %v5065 = vpop.f32.mrb[0].mxu0
  %5066 = vdwg.mxu0
  %5067 = vmatprep.subr.mxu0 0.0
  %v5068 = vand.u32 %v3783, 4294901760
  %v5069 = vsub.f32 %v3783, %v5068
  %5070 = vmatpush1.msra.mxu0 %v5069
  %5071 = vmatprep.subr.mxu0 0.0
  %v5072 = vand.u32 %v3784, 4294901760
  %v5073 = vsub.f32 %v3784, %v5072
  %5074 = vmatpush1.msra.mxu0 %v5073
  %5075 = vmatprep.subr.mxu0 0.0
  %v5076 = vand.u32 %v3785, 4294901760
  %v5077 = vsub.f32 %v3785, %v5076
  %5078 = vmatpush1.msra.mxu0 %v5077
  %5079 = vmatprep.subr.mxu0 0.0
  %v5080 = vand.u32 %v3786, 4294901760
  %v5081 = vsub.f32 %v3786, %v5080
  %5082 = vmatpush1.msra.mxu0 %v5081
  %5083 = vmatprep.subr.mxu0 0.0
  %5084 = vmatpush1.msra.mxu0 0.0
  %5085 = vmatprep.subr.mxu0 0.0
  %5086 = vmatpush1.msra.mxu0 0.0
  %5087 = vmatprep.subr.mxu0 0.0
  %5088 = vmatpush1.msra.mxu0 0.0
  %5089 = vmatprep.subr.mxu0 0.0
  %5090 = vmatpush1.msra.mxu0 0.0
  %5091 = vmatprep.subr.mxu0 0.0
  %5092 = vmatpush1.msra.mxu0 0.0
  %5093 = vmatprep.subr.mxu0 0.0
  %5094 = vmatpush1.msra.mxu0 0.0
  %5095 = vmatprep.subr.mxu0 0.0
  %5096 = vmatpush1.msra.mxu0 0.0
  %5097 = vmatprep.subr.mxu0 0.0
  %5098 = vmatpush1.msra.mxu0 0.0
  %5099 = vmatprep.subr.mxu0 0.0
  %5100 = vmatpush1.msra.mxu0 0.0
  %5101 = vmatprep.subr.mxu0 0.0
  %5102 = vmatpush1.msra.mxu0 0.0
  %5103 = vmatprep.subr.mxu0 0.0
  %5104 = vmatpush1.msra.mxu0 0.0
  %5105 = vmatprep.subr.mxu0 0.0
  %5106 = vmatpush1.msra.mxu0 0.0
  %5107 = vmatprep.subr.mxu0 0.0
  %5108 = vmatpush1.msra.mxu0 0.0
  %5109 = vmatprep.subr.mxu0 0.0
  %5110 = vmatpush1.msra.mxu0 0.0
  %5111 = vmatprep.subr.mxu0 0.0
  %5112 = vmatpush1.msra.mxu0 0.0
  %5113 = vmatprep.subr.mxu0 0.0
  %5114 = vmatpush1.msra.mxu0 0.0
  %5115 = vmatprep.subr.mxu0 0.0
  %5116 = vmatpush1.msra.mxu0 0.0
  %5117 = vmatprep.subr.mxu0 0.0
  %5118 = vmatpush1.msra.mxu0 0.0
  %5119 = vmatprep.subr.mxu0 0.0
  %5120 = vmatpush1.msra.mxu0 0.0
  %5121 = vmatprep.subr.mxu0 0.0
  %5122 = vmatpush1.msra.mxu0 0.0
  %5123 = vmatprep.subr.mxu0 0.0
  %5124 = vmatpush1.msra.mxu0 0.0
  %5125 = vmatprep.subr.mxu0 0.0
  %5126 = vmatpush1.msra.mxu0 0.0
  %5127 = vmatprep.subr.mxu0 0.0
  %5128 = vmatpush1.msra.mxu0 0.0
  %5129 = vmatprep.subr.mxu0 0.0
  %5130 = vmatpush1.msra.mxu0 0.0
  %5131 = vmatprep.subr.mxu0 0.0
  %5132 = vmatpush1.msra.mxu0 0.0
  %5133 = vmatprep.subr.mxu0 0.0
  %5134 = vmatpush1.msra.mxu0 0.0
  %5135 = vmatprep.subr.mxu0 0.0
  %5136 = vmatpush1.msra.mxu0 0.0
  %5137 = vmatprep.subr.mxu0 0.0
  %5138 = vmatpush1.msra.mxu0 0.0
  %5139 = vmatprep.mubr.f32.mxu0 0.0
  %v5140 = vand.u32 %v4610, 4294901760
  %v5141 = vsub.f32 %v4610, %v5140
  %5142 = vmatmul.mubr.f32.gmra.mrb[0].mxu0 %v5141
  %v5143 = vpop.f32.mrb[0].mxu0
  %v5144 = vadd.f32 %v4974, %v5143
  %v5145 = vpop.f32.mrb[0].mxu0
  %5146 = vmatprep.mubr.f32.mxu0 0.0
  %v5147 = vand.u32 %v4613, 4294901760
  %v5148 = vsub.f32 %v4613, %v5147
  %5149 = vmatmul.mubr.f32.gmra.mrb[0].mxu0 %v5148
  %v5150 = vpop.f32.mrb[0].mxu0
  %v5151 = vadd.f32 %v4980, %v5150
  %v5152 = vpop.f32.mrb[0].mxu0
  %5153 = vmatprep.mubr.f32.mxu0 0.0
  %v5154 = vand.u32 %v4616, 4294901760
  %v5155 = vsub.f32 %v4616, %v5154
  %5156 = vmatmul.mubr.f32.gmra.mrb[0].mxu0 %v5155
  %v5157 = vpop.f32.mrb[0].mxu0
  %v5158 = vadd.f32 %v4986, %v5157
  %v5159 = vpop.f32.mrb[0].mxu0
  %5160 = vmatprep.mubr.f32.mxu0 0.0
  %v5161 = vand.u32 %v4619, 4294901760
  %v5162 = vsub.f32 %v4619, %v5161
  %5163 = vmatmul.mubr.f32.gmra.mrb[0].mxu0 %v5162
  %v5164 = vpop.f32.mrb[0].mxu0
  %v5165 = vadd.f32 %v4992, %v5164
  %v5166 = vpop.f32.mrb[0].mxu0
  %5167 = vmatprep.mubr.f32.mxu0 0.0
  %v5168 = vand.u32 %v4622, 4294901760
  %v5169 = vsub.f32 %v4622, %v5168
  %5170 = vmatmul.mubr.f32.gmra.mrb[0].mxu0 %v5169
  %v5171 = vpop.f32.mrb[0].mxu0
  %v5172 = vadd.f32 %v4998, %v5171
  %v5173 = vpop.f32.mrb[0].mxu0
  %5174 = vmatprep.mubr.f32.mxu0 0.0
  %v5175 = vand.u32 %v4625, 4294901760
  %v5176 = vsub.f32 %v4625, %v5175
  %5177 = vmatmul.mubr.f32.gmra.mrb[0].mxu0 %v5176
  %v5178 = vpop.f32.mrb[0].mxu0
  %v5179 = vadd.f32 %v5004, %v5178
  %v5180 = vpop.f32.mrb[0].mxu0
  %5181 = vmatprep.mubr.f32.mxu0 0.0
  %v5182 = vand.u32 %v4628, 4294901760
  %v5183 = vsub.f32 %v4628, %v5182
  %5184 = vmatmul.mubr.f32.gmra.mrb[0].mxu0 %v5183
  %v5185 = vpop.f32.mrb[0].mxu0
  %v5186 = vadd.f32 %v5010, %v5185
  %v5187 = vpop.f32.mrb[0].mxu0
  %5188 = vmatprep.mubr.f32.mxu0 0.0
  %v5189 = vand.u32 %v4631, 4294901760
  %v5190 = vsub.f32 %v4631, %v5189
  %5191 = vmatmul.mubr.f32.gmra.mrb[0].mxu0 %v5190
  %v5192 = vpop.f32.mrb[0].mxu0
  %v5193 = vadd.f32 %v5016, %v5192
  %v5194 = vpop.f32.mrb[0].mxu0
  %5195 = vmatprep.mubr.f32.mxu0 0.0
  %v5196 = vand.u32 %v4634, 4294901760
  %v5197 = vsub.f32 %v4634, %v5196
  %5198 = vmatmul.mubr.f32.gmra.mrb[0].mxu0 %v5197
  %v5199 = vpop.f32.mrb[0].mxu0
  %v5200 = vadd.f32 %v5022, %v5199
  %v5201 = vpop.f32.mrb[0].mxu0
  %5202 = vmatprep.mubr.f32.mxu0 0.0
  %v5203 = vand.u32 %v4637, 4294901760
  %v5204 = vsub.f32 %v4637, %v5203
  %5205 = vmatmul.mubr.f32.gmra.mrb[0].mxu0 %v5204
  %v5206 = vpop.f32.mrb[0].mxu0
  %v5207 = vadd.f32 %v5028, %v5206
  %v5208 = vpop.f32.mrb[0].mxu0
  %5209 = vmatprep.mubr.f32.mxu0 0.0
  %v5210 = vand.u32 %v4640, 4294901760
  %v5211 = vsub.f32 %v4640, %v5210
  %5212 = vmatmul.mubr.f32.gmra.mrb[0].mxu0 %v5211
  %v5213 = vpop.f32.mrb[0].mxu0
  %v5214 = vadd.f32 %v5034, %v5213
  %v5215 = vpop.f32.mrb[0].mxu0
  %5216 = vmatprep.mubr.f32.mxu0 0.0
  %v5217 = vand.u32 %v4643, 4294901760
  %v5218 = vsub.f32 %v4643, %v5217
  %5219 = vmatmul.mubr.f32.gmra.mrb[0].mxu0 %v5218
  %v5220 = vpop.f32.mrb[0].mxu0
  %v5221 = vadd.f32 %v5040, %v5220
  %v5222 = vpop.f32.mrb[0].mxu0
  %5223 = vmatprep.mubr.f32.mxu0 0.0
  %v5224 = vand.u32 %v4646, 4294901760
  %v5225 = vsub.f32 %v4646, %v5224
  %5226 = vmatmul.mubr.f32.gmra.mrb[0].mxu0 %v5225
  %v5227 = vpop.f32.mrb[0].mxu0
  %v5228 = vadd.f32 %v5046, %v5227
  %v5229 = vpop.f32.mrb[0].mxu0
  %5230 = vmatprep.mubr.f32.mxu0 0.0
  %v5231 = vand.u32 %v4649, 4294901760
  %v5232 = vsub.f32 %v4649, %v5231
  %5233 = vmatmul.mubr.f32.gmra.mrb[0].mxu0 %v5232
  %v5234 = vpop.f32.mrb[0].mxu0
  %v5235 = vadd.f32 %v5052, %v5234
  %v5236 = vpop.f32.mrb[0].mxu0
  %5237 = vmatprep.mubr.f32.mxu0 0.0
  %v5238 = vand.u32 %v4652, 4294901760
  %v5239 = vsub.f32 %v4652, %v5238
  %5240 = vmatmul.mubr.f32.gmra.mrb[0].mxu0 %v5239
  %v5241 = vpop.f32.mrb[0].mxu0
  %v5242 = vadd.f32 %v5058, %v5241
  %v5243 = vpop.f32.mrb[0].mxu0
  %5244 = vmatprep.mubr.f32.mxu0 0.0
  %v5245 = vand.u32 %v4655, 4294901760
  %v5246 = vsub.f32 %v4655, %v5245
  %5247 = vmatmul.mubr.f32.gmra.mrb[0].mxu0 %v5246
  %v5248 = vpop.f32.mrb[0].mxu0
  %v5249 = vadd.f32 %v5064, %v5248
  %v5250 = vpop.f32.mrb[0].mxu0
  %5251 = vdwg.mxu0
  %5252 = vmatprep.subr.mxu0 0.0
  %v5253 = vand.u32 %v3783, 4294901760
  %5254 = vmatpush1.msra.mxu0 %v5253
  %5255 = vmatprep.subr.mxu0 0.0
  %v5256 = vand.u32 %v3784, 4294901760
  %5257 = vmatpush1.msra.mxu0 %v5256
  %5258 = vmatprep.subr.mxu0 0.0
  %v5259 = vand.u32 %v3785, 4294901760
  %5260 = vmatpush1.msra.mxu0 %v5259
  %5261 = vmatprep.subr.mxu0 0.0
  %v5262 = vand.u32 %v3786, 4294901760
  %5263 = vmatpush1.msra.mxu0 %v5262
  %5264 = vmatprep.subr.mxu0 0.0
  %5265 = vmatpush1.msra.mxu0 0.0
  %5266 = vmatprep.subr.mxu0 0.0
  %5267 = vmatpush1.msra.mxu0 0.0
  %5268 = vmatprep.subr.mxu0 0.0
  %5269 = vmatpush1.msra.mxu0 0.0
  %5270 = vmatprep.subr.mxu0 0.0
  %5271 = vmatpush1.msra.mxu0 0.0
  %5272 = vmatprep.subr.mxu0 0.0
  %5273 = vmatpush1.msra.mxu0 0.0
  %5274 = vmatprep.subr.mxu0 0.0
  %5275 = vmatpush1.msra.mxu0 0.0
  %5276 = vmatprep.subr.mxu0 0.0
  %5277 = vmatpush1.msra.mxu0 0.0
  %5278 = vmatprep.subr.mxu0 0.0
  %5279 = vmatpush1.msra.mxu0 0.0
  %5280 = vmatprep.subr.mxu0 0.0
  %5281 = vmatpush1.msra.mxu0 0.0
  %5282 = vmatprep.subr.mxu0 0.0
  %5283 = vmatpush1.msra.mxu0 0.0
  %5284 = vmatprep.subr.mxu0 0.0
  %5285 = vmatpush1.msra.mxu0 0.0
  %5286 = vmatprep.subr.mxu0 0.0
  %5287 = vmatpush1.msra.mxu0 0.0
  %5288 = vmatprep.subr.mxu0 0.0
  %5289 = vmatpush1.msra.mxu0 0.0
  %5290 = vmatprep.subr.mxu0 0.0
  %5291 = vmatpush1.msra.mxu0 0.0
  %5292 = vmatprep.subr.mxu0 0.0
  %5293 = vmatpush1.msra.mxu0 0.0
  %5294 = vmatprep.subr.mxu0 0.0
  %5295 = vmatpush1.msra.mxu0 0.0
  %5296 = vmatprep.subr.mxu0 0.0
  %5297 = vmatpush1.msra.mxu0 0.0
  %5298 = vmatprep.subr.mxu0 0.0
  %5299 = vmatpush1.msra.mxu0 0.0
  %5300 = vmatprep.subr.mxu0 0.0
  %5301 = vmatpush1.msra.mxu0 0.0
  %5302 = vmatprep.subr.mxu0 0.0
  %5303 = vmatpush1.msra.mxu0 0.0
  %5304 = vmatprep.subr.mxu0 0.0
  %5305 = vmatpush1.msra.mxu0 0.0
  %5306 = vmatprep.subr.mxu0 0.0
  %5307 = vmatpush1.msra.mxu0 0.0
  %5308 = vmatprep.subr.mxu0 0.0
  %5309 = vmatpush1.msra.mxu0 0.0
  %5310 = vmatprep.subr.mxu0 0.0
  %5311 = vmatpush1.msra.mxu0 0.0
  %5312 = vmatprep.subr.mxu0 0.0
  %5313 = vmatpush1.msra.mxu0 0.0
  %5314 = vmatprep.subr.mxu0 0.0
  %5315 = vmatpush1.msra.mxu0 0.0
  %5316 = vmatprep.subr.mxu0 0.0
  %5317 = vmatpush1.msra.mxu0 0.0
  %5318 = vmatprep.subr.mxu0 0.0
  %5319 = vmatpush1.msra.mxu0 0.0
  %5320 = vmatprep.mubr.f32.mxu0 0.0
  %v5321 = vand.u32 %v4610, 4294901760
  %v5322 = vsub.f32 %v4610, %v5321
  %v5323 = vand.u32 %v5322, 4294901760
  %5324 = vmatmul.mubr.f32.gmra.mrb[0].mxu0 %v5323
  %v5325 = vpop.f32.mrb[0].mxu0
  %v5326 = vadd.f32 %v5144, %v5325
  %v5327 = vpop.f32.mrb[0].mxu0
  %5328 = vmatprep.mubr.f32.mxu0 0.0
  %v5329 = vand.u32 %v4613, 4294901760
  %v5330 = vsub.f32 %v4613, %v5329
  %v5331 = vand.u32 %v5330, 4294901760
  %5332 = vmatmul.mubr.f32.gmra.mrb[0].mxu0 %v5331
  %v5333 = vpop.f32.mrb[0].mxu0
  %v5334 = vadd.f32 %v5151, %v5333
  %v5335 = vpop.f32.mrb[0].mxu0
  %5336 = vmatprep.mubr.f32.mxu0 0.0
  %v5337 = vand.u32 %v4616, 4294901760
  %v5338 = vsub.f32 %v4616, %v5337
  %v5339 = vand.u32 %v5338, 4294901760
  %5340 = vmatmul.mubr.f32.gmra.mrb[0].mxu0 %v5339
  %v5341 = vpop.f32.mrb[0].mxu0
  %v5342 = vadd.f32 %v5158, %v5341
  %v5343 = vpop.f32.mrb[0].mxu0
  %5344 = vmatprep.mubr.f32.mxu0 0.0
  %v5345 = vand.u32 %v4619, 4294901760
  %v5346 = vsub.f32 %v4619, %v5345
  %v5347 = vand.u32 %v5346, 4294901760
  %5348 = vmatmul.mubr.f32.gmra.mrb[0].mxu0 %v5347
  %v5349 = vpop.f32.mrb[0].mxu0
  %v5350 = vadd.f32 %v5165, %v5349
  %v5351 = vpop.f32.mrb[0].mxu0
  %5352 = vmatprep.mubr.f32.mxu0 0.0
  %v5353 = vand.u32 %v4622, 4294901760
  %v5354 = vsub.f32 %v4622, %v5353
  %v5355 = vand.u32 %v5354, 4294901760
  %5356 = vmatmul.mubr.f32.gmra.mrb[0].mxu0 %v5355
  %v5357 = vpop.f32.mrb[0].mxu0
  %v5358 = vadd.f32 %v5172, %v5357
  %v5359 = vpop.f32.mrb[0].mxu0
  %5360 = vmatprep.mubr.f32.mxu0 0.0
  %v5361 = vand.u32 %v4625, 4294901760
  %v5362 = vsub.f32 %v4625, %v5361
  %v5363 = vand.u32 %v5362, 4294901760
  %5364 = vmatmul.mubr.f32.gmra.mrb[0].mxu0 %v5363
  %v5365 = vpop.f32.mrb[0].mxu0
  %v5366 = vadd.f32 %v5179, %v5365
  %v5367 = vpop.f32.mrb[0].mxu0
  %5368 = vmatprep.mubr.f32.mxu0 0.0
  %v5369 = vand.u32 %v4628, 4294901760
  %v5370 = vsub.f32 %v4628, %v5369
  %v5371 = vand.u32 %v5370, 4294901760
  %5372 = vmatmul.mubr.f32.gmra.mrb[0].mxu0 %v5371
  %v5373 = vpop.f32.mrb[0].mxu0
  %v5374 = vadd.f32 %v5186, %v5373
  %v5375 = vpop.f32.mrb[0].mxu0
  %5376 = vmatprep.mubr.f32.mxu0 0.0
  %v5377 = vand.u32 %v4631, 4294901760
  %v5378 = vsub.f32 %v4631, %v5377
  %v5379 = vand.u32 %v5378, 4294901760
  %5380 = vmatmul.mubr.f32.gmra.mrb[0].mxu0 %v5379
  %v5381 = vpop.f32.mrb[0].mxu0
  %v5382 = vadd.f32 %v5193, %v5381
  %v5383 = vpop.f32.mrb[0].mxu0
  %5384 = vmatprep.mubr.f32.mxu0 0.0
  %v5385 = vand.u32 %v4634, 4294901760
  %v5386 = vsub.f32 %v4634, %v5385
  %v5387 = vand.u32 %v5386, 4294901760
  %5388 = vmatmul.mubr.f32.gmra.mrb[0].mxu0 %v5387
  %v5389 = vpop.f32.mrb[0].mxu0
  %v5390 = vadd.f32 %v5200, %v5389
  %v5391 = vpop.f32.mrb[0].mxu0
  %5392 = vmatprep.mubr.f32.mxu0 0.0
  %v5393 = vand.u32 %v4637, 4294901760
  %v5394 = vsub.f32 %v4637, %v5393
  %v5395 = vand.u32 %v5394, 4294901760
  %5396 = vmatmul.mubr.f32.gmra.mrb[0].mxu0 %v5395
  %v5397 = vpop.f32.mrb[0].mxu0
  %v5398 = vadd.f32 %v5207, %v5397
  %v5399 = vpop.f32.mrb[0].mxu0
  %5400 = vmatprep.mubr.f32.mxu0 0.0
  %v5401 = vand.u32 %v4640, 4294901760
  %v5402 = vsub.f32 %v4640, %v5401
  %v5403 = vand.u32 %v5402, 4294901760
  %5404 = vmatmul.mubr.f32.gmra.mrb[0].mxu0 %v5403
  %v5405 = vpop.f32.mrb[0].mxu0
  %v5406 = vadd.f32 %v5214, %v5405
  %v5407 = vpop.f32.mrb[0].mxu0
  %5408 = vmatprep.mubr.f32.mxu0 0.0
  %v5409 = vand.u32 %v4643, 4294901760
  %v5410 = vsub.f32 %v4643, %v5409
  %v5411 = vand.u32 %v5410, 4294901760
  %5412 = vmatmul.mubr.f32.gmra.mrb[0].mxu0 %v5411
  %v5413 = vpop.f32.mrb[0].mxu0
  %v5414 = vadd.f32 %v5221, %v5413
  %v5415 = vpop.f32.mrb[0].mxu0
  %5416 = vmatprep.mubr.f32.mxu0 0.0
  %v5417 = vand.u32 %v4646, 4294901760
  %v5418 = vsub.f32 %v4646, %v5417
  %v5419 = vand.u32 %v5418, 4294901760
  %5420 = vmatmul.mubr.f32.gmra.mrb[0].mxu0 %v5419
  %v5421 = vpop.f32.mrb[0].mxu0
  %v5422 = vadd.f32 %v5228, %v5421
  %v5423 = vpop.f32.mrb[0].mxu0
  %5424 = vmatprep.mubr.f32.mxu0 0.0
  %v5425 = vand.u32 %v4649, 4294901760
  %v5426 = vsub.f32 %v4649, %v5425
  %v5427 = vand.u32 %v5426, 4294901760
  %5428 = vmatmul.mubr.f32.gmra.mrb[0].mxu0 %v5427
  %v5429 = vpop.f32.mrb[0].mxu0
  %v5430 = vadd.f32 %v5235, %v5429
  %v5431 = vpop.f32.mrb[0].mxu0
  %5432 = vmatprep.mubr.f32.mxu0 0.0
  %v5433 = vand.u32 %v4652, 4294901760
  %v5434 = vsub.f32 %v4652, %v5433
  %v5435 = vand.u32 %v5434, 4294901760
  %5436 = vmatmul.mubr.f32.gmra.mrb[0].mxu0 %v5435
  %v5437 = vpop.f32.mrb[0].mxu0
  %v5438 = vadd.f32 %v5242, %v5437
  %v5439 = vpop.f32.mrb[0].mxu0
  %5440 = vmatprep.mubr.f32.mxu0 0.0
  %v5441 = vand.u32 %v4655, 4294901760
  %v5442 = vsub.f32 %v4655, %v5441
  %v5443 = vand.u32 %v5442, 4294901760
  %5444 = vmatmul.mubr.f32.gmra.mrb[0].mxu0 %v5443
  %v5445 = vpop.f32.mrb[0].mxu0
  %v5446 = vadd.f32 %v5249, %v5445
  %v5447 = vpop.f32.mrb[0].mxu0
  %5448 = vdwg.mxu0
  %5449 = vmatprep.subr.mxu0 0.0
  %v5450 = vand.u32 %v3783, 4294901760
  %v5451 = vsub.f32 %v3783, %v5450
  %v5452 = vand.u32 %v5451, 4294901760
  %5453 = vmatpush1.msra.mxu0 %v5452
  %5454 = vmatprep.subr.mxu0 0.0
  %v5455 = vand.u32 %v3784, 4294901760
  %v5456 = vsub.f32 %v3784, %v5455
  %v5457 = vand.u32 %v5456, 4294901760
  %5458 = vmatpush1.msra.mxu0 %v5457
  %5459 = vmatprep.subr.mxu0 0.0
  %v5460 = vand.u32 %v3785, 4294901760
  %v5461 = vsub.f32 %v3785, %v5460
  %v5462 = vand.u32 %v5461, 4294901760
  %5463 = vmatpush1.msra.mxu0 %v5462
  %5464 = vmatprep.subr.mxu0 0.0
  %v5465 = vand.u32 %v3786, 4294901760
  %v5466 = vsub.f32 %v3786, %v5465
  %v5467 = vand.u32 %v5466, 4294901760
  %5468 = vmatpush1.msra.mxu0 %v5467
  %5469 = vmatprep.subr.mxu0 0.0
  %5470 = vmatpush1.msra.mxu0 0.0
  %5471 = vmatprep.subr.mxu0 0.0
  %5472 = vmatpush1.msra.mxu0 0.0
  %5473 = vmatprep.subr.mxu0 0.0
  %5474 = vmatpush1.msra.mxu0 0.0
  %5475 = vmatprep.subr.mxu0 0.0
  %5476 = vmatpush1.msra.mxu0 0.0
  %5477 = vmatprep.subr.mxu0 0.0
  %5478 = vmatpush1.msra.mxu0 0.0
  %5479 = vmatprep.subr.mxu0 0.0
  %5480 = vmatpush1.msra.mxu0 0.0
  %5481 = vmatprep.subr.mxu0 0.0
  %5482 = vmatpush1.msra.mxu0 0.0
  %5483 = vmatprep.subr.mxu0 0.0
  %5484 = vmatpush1.msra.mxu0 0.0
  %5485 = vmatprep.subr.mxu0 0.0
  %5486 = vmatpush1.msra.mxu0 0.0
  %5487 = vmatprep.subr.mxu0 0.0
  %5488 = vmatpush1.msra.mxu0 0.0
  %5489 = vmatprep.subr.mxu0 0.0
  %5490 = vmatpush1.msra.mxu0 0.0
  %5491 = vmatprep.subr.mxu0 0.0
  %5492 = vmatpush1.msra.mxu0 0.0
  %5493 = vmatprep.subr.mxu0 0.0
  %5494 = vmatpush1.msra.mxu0 0.0
  %5495 = vmatprep.subr.mxu0 0.0
  %5496 = vmatpush1.msra.mxu0 0.0
  %5497 = vmatprep.subr.mxu0 0.0
  %5498 = vmatpush1.msra.mxu0 0.0
  %5499 = vmatprep.subr.mxu0 0.0
  %5500 = vmatpush1.msra.mxu0 0.0
  %5501 = vmatprep.subr.mxu0 0.0
  %5502 = vmatpush1.msra.mxu0 0.0
  %5503 = vmatprep.subr.mxu0 0.0
  %5504 = vmatpush1.msra.mxu0 0.0
  %5505 = vmatprep.subr.mxu0 0.0
  %5506 = vmatpush1.msra.mxu0 0.0
  %5507 = vmatprep.subr.mxu0 0.0
  %5508 = vmatpush1.msra.mxu0 0.0
  %5509 = vmatprep.subr.mxu0 0.0
  %5510 = vmatpush1.msra.mxu0 0.0
  %5511 = vmatprep.subr.mxu0 0.0
  %5512 = vmatpush1.msra.mxu0 0.0
  %5513 = vmatprep.subr.mxu0 0.0
  %5514 = vmatpush1.msra.mxu0 0.0
  %5515 = vmatprep.subr.mxu0 0.0
  %5516 = vmatpush1.msra.mxu0 0.0
  %5517 = vmatprep.subr.mxu0 0.0
  %5518 = vmatpush1.msra.mxu0 0.0
  %5519 = vmatprep.subr.mxu0 0.0
  %5520 = vmatpush1.msra.mxu0 0.0
  %5521 = vmatprep.subr.mxu0 0.0
  %5522 = vmatpush1.msra.mxu0 0.0
  %5523 = vmatprep.subr.mxu0 0.0
  %5524 = vmatpush1.msra.mxu0 0.0
  %5525 = vmatprep.mubr.f32.mxu0 0.0
  %v5526 = vand.u32 %v4610, 4294901760
  %5527 = vmatmul.mubr.f32.gmra.mrb[0].mxu0 %v5526
  %v5528 = vpop.f32.mrb[0].mxu0
  %v5529 = vadd.f32 %v5326, %v5528
  %v5530 = vpop.f32.mrb[0].mxu0
  %5531 = vmatprep.mubr.f32.mxu0 0.0
  %v5532 = vand.u32 %v4613, 4294901760
  %5533 = vmatmul.mubr.f32.gmra.mrb[0].mxu0 %v5532
  %v5534 = vpop.f32.mrb[0].mxu0
  %v5535 = vadd.f32 %v5334, %v5534
  %v5536 = vpop.f32.mrb[0].mxu0
  %5537 = vmatprep.mubr.f32.mxu0 0.0
  %v5538 = vand.u32 %v4616, 4294901760
  %5539 = vmatmul.mubr.f32.gmra.mrb[0].mxu0 %v5538
  %v5540 = vpop.f32.mrb[0].mxu0
  %v5541 = vadd.f32 %v5342, %v5540
  %v5542 = vpop.f32.mrb[0].mxu0
  %5543 = vmatprep.mubr.f32.mxu0 0.0
  %v5544 = vand.u32 %v4619, 4294901760
  %5545 = vmatmul.mubr.f32.gmra.mrb[0].mxu0 %v5544
  %v5546 = vpop.f32.mrb[0].mxu0
  %v5547 = vadd.f32 %v5350, %v5546
  %v5548 = vpop.f32.mrb[0].mxu0
  %5549 = vmatprep.mubr.f32.mxu0 0.0
  %v5550 = vand.u32 %v4622, 4294901760
  %5551 = vmatmul.mubr.f32.gmra.mrb[0].mxu0 %v5550
  %v5552 = vpop.f32.mrb[0].mxu0
  %v5553 = vadd.f32 %v5358, %v5552
  %v5554 = vpop.f32.mrb[0].mxu0
  %5555 = vmatprep.mubr.f32.mxu0 0.0
  %v5556 = vand.u32 %v4625, 4294901760
  %5557 = vmatmul.mubr.f32.gmra.mrb[0].mxu0 %v5556
  %v5558 = vpop.f32.mrb[0].mxu0
  %v5559 = vadd.f32 %v5366, %v5558
  %v5560 = vpop.f32.mrb[0].mxu0
  %5561 = vmatprep.mubr.f32.mxu0 0.0
  %v5562 = vand.u32 %v4628, 4294901760
  %5563 = vmatmul.mubr.f32.gmra.mrb[0].mxu0 %v5562
  %v5564 = vpop.f32.mrb[0].mxu0
  %v5565 = vadd.f32 %v5374, %v5564
  %v5566 = vpop.f32.mrb[0].mxu0
  %5567 = vmatprep.mubr.f32.mxu0 0.0
  %v5568 = vand.u32 %v4631, 4294901760
  %5569 = vmatmul.mubr.f32.gmra.mrb[0].mxu0 %v5568
  %v5570 = vpop.f32.mrb[0].mxu0
  %v5571 = vadd.f32 %v5382, %v5570
  %v5572 = vpop.f32.mrb[0].mxu0
  %5573 = vmatprep.mubr.f32.mxu0 0.0
  %v5574 = vand.u32 %v4634, 4294901760
  %5575 = vmatmul.mubr.f32.gmra.mrb[0].mxu0 %v5574
  %v5576 = vpop.f32.mrb[0].mxu0
  %v5577 = vadd.f32 %v5390, %v5576
  %v5578 = vpop.f32.mrb[0].mxu0
  %5579 = vmatprep.mubr.f32.mxu0 0.0
  %v5580 = vand.u32 %v4637, 4294901760
  %5581 = vmatmul.mubr.f32.gmra.mrb[0].mxu0 %v5580
  %v5582 = vpop.f32.mrb[0].mxu0
  %v5583 = vadd.f32 %v5398, %v5582
  %v5584 = vpop.f32.mrb[0].mxu0
  %5585 = vmatprep.mubr.f32.mxu0 0.0
  %v5586 = vand.u32 %v4640, 4294901760
  %5587 = vmatmul.mubr.f32.gmra.mrb[0].mxu0 %v5586
  %v5588 = vpop.f32.mrb[0].mxu0
  %v5589 = vadd.f32 %v5406, %v5588
  %v5590 = vpop.f32.mrb[0].mxu0
  %5591 = vmatprep.mubr.f32.mxu0 0.0
  %v5592 = vand.u32 %v4643, 4294901760
  %5593 = vmatmul.mubr.f32.gmra.mrb[0].mxu0 %v5592
  %v5594 = vpop.f32.mrb[0].mxu0
  %v5595 = vadd.f32 %v5414, %v5594
  %v5596 = vpop.f32.mrb[0].mxu0
  %5597 = vmatprep.mubr.f32.mxu0 0.0
  %v5598 = vand.u32 %v4646, 4294901760
  %5599 = vmatmul.mubr.f32.gmra.mrb[0].mxu0 %v5598
  %v5600 = vpop.f32.mrb[0].mxu0
  %v5601 = vadd.f32 %v5422, %v5600
  %v5602 = vpop.f32.mrb[0].mxu0
  %5603 = vmatprep.mubr.f32.mxu0 0.0
  %v5604 = vand.u32 %v4649, 4294901760
  %5605 = vmatmul.mubr.f32.gmra.mrb[0].mxu0 %v5604
  %v5606 = vpop.f32.mrb[0].mxu0
  %v5607 = vadd.f32 %v5430, %v5606
  %v5608 = vpop.f32.mrb[0].mxu0
  %5609 = vmatprep.mubr.f32.mxu0 0.0
  %v5610 = vand.u32 %v4652, 4294901760
  %5611 = vmatmul.mubr.f32.gmra.mrb[0].mxu0 %v5610
  %v5612 = vpop.f32.mrb[0].mxu0
  %v5613 = vadd.f32 %v5438, %v5612
  %v5614 = vpop.f32.mrb[0].mxu0
  %5615 = vmatprep.mubr.f32.mxu0 0.0
  %v5616 = vand.u32 %v4655, 4294901760
  %5617 = vmatmul.mubr.f32.gmra.mrb[0].mxu0 %v5616
  %v5618 = vpop.f32.mrb[0].mxu0
  %v5619 = vadd.f32 %v5446, %v5618
  %v5620 = vpop.f32.mrb[0].mxu0
  %5621 = vdwg.mxu0
  %5622 = vmatprep.subr.mxu0 0.0
  %v5623 = vand.u32 %v3783, 4294901760
  %5624 = vmatpush1.msra.mxu0 %v5623
  %5625 = vmatprep.subr.mxu0 0.0
  %v5626 = vand.u32 %v3784, 4294901760
  %5627 = vmatpush1.msra.mxu0 %v5626
  %5628 = vmatprep.subr.mxu0 0.0
  %v5629 = vand.u32 %v3785, 4294901760
  %5630 = vmatpush1.msra.mxu0 %v5629
  %5631 = vmatprep.subr.mxu0 0.0
  %v5632 = vand.u32 %v3786, 4294901760
  %5633 = vmatpush1.msra.mxu0 %v5632
  %5634 = vmatprep.subr.mxu0 0.0
  %5635 = vmatpush1.msra.mxu0 0.0
  %5636 = vmatprep.subr.mxu0 0.0
  %5637 = vmatpush1.msra.mxu0 0.0
  %5638 = vmatprep.subr.mxu0 0.0
  %5639 = vmatpush1.msra.mxu0 0.0
  %5640 = vmatprep.subr.mxu0 0.0
  %5641 = vmatpush1.msra.mxu0 0.0
  %5642 = vmatprep.subr.mxu0 0.0
  %5643 = vmatpush1.msra.mxu0 0.0
  %5644 = vmatprep.subr.mxu0 0.0
  %5645 = vmatpush1.msra.mxu0 0.0
  %5646 = vmatprep.subr.mxu0 0.0
  %5647 = vmatpush1.msra.mxu0 0.0
  %5648 = vmatprep.subr.mxu0 0.0
  %5649 = vmatpush1.msra.mxu0 0.0
  %5650 = vmatprep.subr.mxu0 0.0
  %5651 = vmatpush1.msra.mxu0 0.0
  %5652 = vmatprep.subr.mxu0 0.0
  %5653 = vmatpush1.msra.mxu0 0.0
  %5654 = vmatprep.subr.mxu0 0.0
  %5655 = vmatpush1.msra.mxu0 0.0
  %5656 = vmatprep.subr.mxu0 0.0
  %5657 = vmatpush1.msra.mxu0 0.0
  %5658 = vmatprep.subr.mxu0 0.0
  %5659 = vmatpush1.msra.mxu0 0.0
  %5660 = vmatprep.subr.mxu0 0.0
  %5661 = vmatpush1.msra.mxu0 0.0
  %5662 = vmatprep.subr.mxu0 0.0
  %5663 = vmatpush1.msra.mxu0 0.0
  %5664 = vmatprep.subr.mxu0 0.0
  %5665 = vmatpush1.msra.mxu0 0.0
  %5666 = vmatprep.subr.mxu0 0.0
  %5667 = vmatpush1.msra.mxu0 0.0
  %5668 = vmatprep.subr.mxu0 0.0
  %5669 = vmatpush1.msra.mxu0 0.0
  %5670 = vmatprep.subr.mxu0 0.0
  %5671 = vmatpush1.msra.mxu0 0.0
  %5672 = vmatprep.subr.mxu0 0.0
  %5673 = vmatpush1.msra.mxu0 0.0
  %5674 = vmatprep.subr.mxu0 0.0
  %5675 = vmatpush1.msra.mxu0 0.0
  %5676 = vmatprep.subr.mxu0 0.0
  %5677 = vmatpush1.msra.mxu0 0.0
  %5678 = vmatprep.subr.mxu0 0.0
  %5679 = vmatpush1.msra.mxu0 0.0
  %5680 = vmatprep.subr.mxu0 0.0
  %5681 = vmatpush1.msra.mxu0 0.0
  %5682 = vmatprep.subr.mxu0 0.0
  %5683 = vmatpush1.msra.mxu0 0.0
  %5684 = vmatprep.subr.mxu0 0.0
  %5685 = vmatpush1.msra.mxu0 0.0
  %5686 = vmatprep.subr.mxu0 0.0
  %5687 = vmatpush1.msra.mxu0 0.0
  %5688 = vmatprep.subr.mxu0 0.0
  %5689 = vmatpush1.msra.mxu0 0.0
  %5690 = vmatprep.mubr.f32.mxu0 0.0
  %v5691 = vand.u32 %v4610, 4294901760
  %5692 = vmatmul.mubr.f32.gmra.mrb[0].mxu0 %v5691
  %v5693 = vpop.f32.mrb[0].mxu0
  %v5694 = vadd.f32 %v5529, %v5693
  %v5695 = vpop.f32.mrb[0].mxu0
  %5696 = vmatprep.mubr.f32.mxu0 0.0
  %v5697 = vand.u32 %v4613, 4294901760
  %5698 = vmatmul.mubr.f32.gmra.mrb[0].mxu0 %v5697
  %v5699 = vpop.f32.mrb[0].mxu0
  %v5700 = vadd.f32 %v5535, %v5699
  %v5701 = vpop.f32.mrb[0].mxu0
  %5702 = vmatprep.mubr.f32.mxu0 0.0
  %v5703 = vand.u32 %v4616, 4294901760
  %5704 = vmatmul.mubr.f32.gmra.mrb[0].mxu0 %v5703
  %v5705 = vpop.f32.mrb[0].mxu0
  %v5706 = vadd.f32 %v5541, %v5705
  %v5707 = vpop.f32.mrb[0].mxu0
  %5708 = vmatprep.mubr.f32.mxu0 0.0
  %v5709 = vand.u32 %v4619, 4294901760
  %5710 = vmatmul.mubr.f32.gmra.mrb[0].mxu0 %v5709
  %v5711 = vpop.f32.mrb[0].mxu0
  %v5712 = vadd.f32 %v5547, %v5711
  %v5713 = vpop.f32.mrb[0].mxu0
  %5714 = vmatprep.mubr.f32.mxu0 0.0
  %v5715 = vand.u32 %v4622, 4294901760
  %5716 = vmatmul.mubr.f32.gmra.mrb[0].mxu0 %v5715
  %v5717 = vpop.f32.mrb[0].mxu0
  %v5718 = vadd.f32 %v5553, %v5717
  %v5719 = vpop.f32.mrb[0].mxu0
  %5720 = vmatprep.mubr.f32.mxu0 0.0
  %v5721 = vand.u32 %v4625, 4294901760
  %5722 = vmatmul.mubr.f32.gmra.mrb[0].mxu0 %v5721
  %v5723 = vpop.f32.mrb[0].mxu0
  %v5724 = vadd.f32 %v5559, %v5723
  %v5725 = vpop.f32.mrb[0].mxu0
  %5726 = vmatprep.mubr.f32.mxu0 0.0
  %v5727 = vand.u32 %v4628, 4294901760
  %5728 = vmatmul.mubr.f32.gmra.mrb[0].mxu0 %v5727
  %v5729 = vpop.f32.mrb[0].mxu0
  %v5730 = vadd.f32 %v5565, %v5729
  %v5731 = vpop.f32.mrb[0].mxu0
  %5732 = vmatprep.mubr.f32.mxu0 0.0
  %v5733 = vand.u32 %v4631, 4294901760
  %5734 = vmatmul.mubr.f32.gmra.mrb[0].mxu0 %v5733
  %v5735 = vpop.f32.mrb[0].mxu0
  %v5736 = vadd.f32 %v5571, %v5735
  %v5737 = vpop.f32.mrb[0].mxu0
  %5738 = vmatprep.mubr.f32.mxu0 0.0
  %v5739 = vand.u32 %v4634, 4294901760
  %5740 = vmatmul.mubr.f32.gmra.mrb[0].mxu0 %v5739
  %v5741 = vpop.f32.mrb[0].mxu0
  %v5742 = vadd.f32 %v5577, %v5741
  %v5743 = vpop.f32.mrb[0].mxu0
  %5744 = vmatprep.mubr.f32.mxu0 0.0
  %v5745 = vand.u32 %v4637, 4294901760
  %5746 = vmatmul.mubr.f32.gmra.mrb[0].mxu0 %v5745
  %v5747 = vpop.f32.mrb[0].mxu0
  %v5748 = vadd.f32 %v5583, %v5747
  %v5749 = vpop.f32.mrb[0].mxu0
  %5750 = vmatprep.mubr.f32.mxu0 0.0
  %v5751 = vand.u32 %v4640, 4294901760
  %5752 = vmatmul.mubr.f32.gmra.mrb[0].mxu0 %v5751
  %v5753 = vpop.f32.mrb[0].mxu0
  %v5754 = vadd.f32 %v5589, %v5753
  %v5755 = vpop.f32.mrb[0].mxu0
  %5756 = vmatprep.mubr.f32.mxu0 0.0
  %v5757 = vand.u32 %v4643, 4294901760
  %5758 = vmatmul.mubr.f32.gmra.mrb[0].mxu0 %v5757
  %v5759 = vpop.f32.mrb[0].mxu0
  %v5760 = vadd.f32 %v5595, %v5759
  %v5761 = vpop.f32.mrb[0].mxu0
  %5762 = vmatprep.mubr.f32.mxu0 0.0
  %v5763 = vand.u32 %v4646, 4294901760
  %5764 = vmatmul.mubr.f32.gmra.mrb[0].mxu0 %v5763
  %v5765 = vpop.f32.mrb[0].mxu0
  %v5766 = vadd.f32 %v5601, %v5765
  %v5767 = vpop.f32.mrb[0].mxu0
  %5768 = vmatprep.mubr.f32.mxu0 0.0
  %v5769 = vand.u32 %v4649, 4294901760
  %5770 = vmatmul.mubr.f32.gmra.mrb[0].mxu0 %v5769
  %v5771 = vpop.f32.mrb[0].mxu0
  %v5772 = vadd.f32 %v5607, %v5771
  %v5773 = vpop.f32.mrb[0].mxu0
  %5774 = vmatprep.mubr.f32.mxu0 0.0
  %v5775 = vand.u32 %v4652, 4294901760
  %5776 = vmatmul.mubr.f32.gmra.mrb[0].mxu0 %v5775
  %v5777 = vpop.f32.mrb[0].mxu0
  %v5778 = vadd.f32 %v5613, %v5777
  %v5779 = vpop.f32.mrb[0].mxu0
  %5780 = vmatprep.mubr.f32.mxu0 0.0
  %v5781 = vand.u32 %v4655, 4294901760
  %5782 = vmatmul.mubr.f32.gmra.mrb[0].mxu0 %v5781
  %v5783 = vpop.f32.mrb[0].mxu0
  %v5784 = vadd.f32 %v5619, %v5783
  %v5785 = vpop.f32.mrb[0].mxu0
  %5786 = vdwg.mxu0
  %5787 = vmax.xlane.f32.xlu0 %v5694
  %v5788 = vpop.xlane.xlu0 %5787
  %5789 = vmax.xlane.f32.xlu0 %v5700
  %v5790 = vpop.xlane.xlu0 %5789
  %5791 = vmax.xlane.f32.xlu0 %v5706
  %v5792 = vpop.xlane.xlu0 %5791
  %5793 = vmax.xlane.f32.xlu0 %v5712
  %v5794 = vpop.xlane.xlu0 %5793
  %5795 = vmax.xlane.f32.xlu0 %v5718
  %v5796 = vpop.xlane.xlu0 %5795
  %5797 = vmax.xlane.f32.xlu0 %v5724
  %v5798 = vpop.xlane.xlu0 %5797
  %5799 = vmax.xlane.f32.xlu0 %v5730
  %v5800 = vpop.xlane.xlu0 %5799
  %5801 = vmax.xlane.f32.xlu0 %v5736
  %v5802 = vpop.xlane.xlu0 %5801
  %5803 = vmax.xlane.f32.xlu0 %v5742
  %v5804 = vpop.xlane.xlu0 %5803
  %5805 = vmax.xlane.f32.xlu0 %v5748
  %v5806 = vpop.xlane.xlu0 %5805
  %5807 = vmax.xlane.f32.xlu0 %v5754
  %v5808 = vpop.xlane.xlu0 %5807
  %5809 = vmax.xlane.f32.xlu0 %v5760
  %v5810 = vpop.xlane.xlu0 %5809
  %5811 = vmax.xlane.f32.xlu0 %v5766
  %v5812 = vpop.xlane.xlu0 %5811
  %5813 = vmax.xlane.f32.xlu0 %v5772
  %v5814 = vpop.xlane.xlu0 %5813
  %5815 = vmax.xlane.f32.xlu0 %v5778
  %v5816 = vpop.xlane.xlu0 %5815
  %5817 = vmax.xlane.f32.xlu0 %v5784
  %v5818 = vpop.xlane.xlu0 %5817
  %v5819 = vsub.f32 %v5694, %v5788
  %v5820 = vsub.f32 %v5700, %v5790
  %v5821 = vsub.f32 %v5706, %v5792
  %v5822 = vsub.f32 %v5712, %v5794
  %v5823 = vsub.f32 %v5718, %v5796
  %v5824 = vsub.f32 %v5724, %v5798
  %v5825 = vsub.f32 %v5730, %v5800
  %v5826 = vsub.f32 %v5736, %v5802
  %v5827 = vsub.f32 %v5742, %v5804
  %v5828 = vsub.f32 %v5748, %v5806
  %v5829 = vsub.f32 %v5754, %v5808
  %v5830 = vsub.f32 %v5760, %v5810
  %v5831 = vsub.f32 %v5766, %v5812
  %v5832 = vsub.f32 %v5772, %v5814
  %v5833 = vsub.f32 %v5778, %v5816
  %v5834 = vsub.f32 %v5784, %v5818
  %v5835 = vmul.f32 %v5819, 1.442695
  %v5836 = vpow.pop %v5835
  %v5837 = vmul.f32 %v5820, 1.442695
  %v5838 = vpow.pop %v5837
  %v5839 = vmul.f32 %v5821, 1.442695
  %v5840 = vpow.pop %v5839
  %v5841 = vmul.f32 %v5822, 1.442695
  %v5842 = vpow.pop %v5841
  %v5843 = vmul.f32 %v5823, 1.442695
  %v5844 = vpow.pop %v5843
  %v5845 = vmul.f32 %v5824, 1.442695
  %v5846 = vpow.pop %v5845
  %v5847 = vmul.f32 %v5825, 1.442695
  %v5848 = vpow.pop %v5847
  %v5849 = vmul.f32 %v5826, 1.442695
  %v5850 = vpow.pop %v5849
  %v5851 = vmul.f32 %v5827, 1.442695
  %v5852 = vpow.pop %v5851
  %v5853 = vmul.f32 %v5828, 1.442695
  %v5854 = vpow.pop %v5853
  %v5855 = vmul.f32 %v5829, 1.442695
  %v5856 = vpow.pop %v5855
  %v5857 = vmul.f32 %v5830, 1.442695
  %v5858 = vpow.pop %v5857
  %v5859 = vmul.f32 %v5831, 1.442695
  %v5860 = vpow.pop %v5859
  %v5861 = vmul.f32 %v5832, 1.442695
  %v5862 = vpow.pop %v5861
  %v5863 = vmul.f32 %v5833, 1.442695
  %v5864 = vpow.pop %v5863
  %v5865 = vmul.f32 %v5834, 1.442695
  %v5866 = vpow.pop %v5865
  %5867 = vadd.xlane.f32.xlu0 %v5836
  %v5868 = vpop.xlane.xlu0 %5867
  %5869 = vadd.xlane.f32.xlu0 %v5838
  %v5870 = vpop.xlane.xlu0 %5869
  %5871 = vadd.xlane.f32.xlu0 %v5840
  %v5872 = vpop.xlane.xlu0 %5871
  %5873 = vadd.xlane.f32.xlu0 %v5842
  %v5874 = vpop.xlane.xlu0 %5873
  %5875 = vadd.xlane.f32.xlu0 %v5844
  %v5876 = vpop.xlane.xlu0 %5875
  %5877 = vadd.xlane.f32.xlu0 %v5846
  %v5878 = vpop.xlane.xlu0 %5877
  %5879 = vadd.xlane.f32.xlu0 %v5848
  %v5880 = vpop.xlane.xlu0 %5879
  %5881 = vadd.xlane.f32.xlu0 %v5850
  %v5882 = vpop.xlane.xlu0 %5881
  %5883 = vadd.xlane.f32.xlu0 %v5852
  %v5884 = vpop.xlane.xlu0 %5883
  %5885 = vadd.xlane.f32.xlu0 %v5854
  %v5886 = vpop.xlane.xlu0 %5885
  %5887 = vadd.xlane.f32.xlu0 %v5856
  %v5888 = vpop.xlane.xlu0 %5887
  %5889 = vadd.xlane.f32.xlu0 %v5858
  %v5890 = vpop.xlane.xlu0 %5889
  %5891 = vadd.xlane.f32.xlu0 %v5860
  %v5892 = vpop.xlane.xlu0 %5891
  %5893 = vadd.xlane.f32.xlu0 %v5862
  %v5894 = vpop.xlane.xlu0 %5893
  %5895 = vadd.xlane.f32.xlu0 %v5864
  %v5896 = vpop.xlane.xlu0 %5895
  %5897 = vadd.xlane.f32.xlu0 %v5866
  %v5898 = vpop.xlane.xlu0 %5897
  %v5899 = vrcp.pop %v5868
  %v5900 = vrcp.pop %v5870
  %v5901 = vrcp.pop %v5872
  %v5902 = vrcp.pop %v5874
  %v5903 = vrcp.pop %v5876
  %v5904 = vrcp.pop %v5878
  %v5905 = vrcp.pop %v5880
  %v5906 = vrcp.pop %v5882
  %v5907 = vrcp.pop %v5884
  %v5908 = vrcp.pop %v5886
  %v5909 = vrcp.pop %v5888
  %v5910 = vrcp.pop %v5890
  %v5911 = vrcp.pop %v5892
  %v5912 = vrcp.pop %v5894
  %v5913 = vrcp.pop %v5896
  %v5914 = vrcp.pop %v5898
  %v5915 = vmul.f32 %v5868, %v5899
  %v5916 = vmul.f32 %v5870, %v5900
  %v5917 = vmul.f32 %v5872, %v5901
  %v5918 = vmul.f32 %v5874, %v5902
  %v5919 = vmul.f32 %v5876, %v5903
  %v5920 = vmul.f32 %v5878, %v5904
  %v5921 = vmul.f32 %v5880, %v5905
  %v5922 = vmul.f32 %v5882, %v5906
  %v5923 = vmul.f32 %v5884, %v5907
  %v5924 = vmul.f32 %v5886, %v5908
  %v5925 = vmul.f32 %v5888, %v5909
  %v5926 = vmul.f32 %v5890, %v5910
  %v5927 = vmul.f32 %v5892, %v5911
  %v5928 = vmul.f32 %v5894, %v5912
  %v5929 = vmul.f32 %v5896, %v5913
  %v5930 = vmul.f32 %v5898, %v5914
  %v5931 = vsub.f32 2.0, %v5915
  %v5932 = vsub.f32 2.0, %v5916
  %v5933 = vsub.f32 2.0, %v5917
  %v5934 = vsub.f32 2.0, %v5918
  %v5935 = vsub.f32 2.0, %v5919
  %v5936 = vsub.f32 2.0, %v5920
  %v5937 = vsub.f32 2.0, %v5921
  %v5938 = vsub.f32 2.0, %v5922
  %v5939 = vsub.f32 2.0, %v5923
  %v5940 = vsub.f32 2.0, %v5924
  %v5941 = vsub.f32 2.0, %v5925
  %v5942 = vsub.f32 2.0, %v5926
  %v5943 = vsub.f32 2.0, %v5927
  %v5944 = vsub.f32 2.0, %v5928
  %v5945 = vsub.f32 2.0, %v5929
  %v5946 = vsub.f32 2.0, %v5930
  %v5947 = vmul.f32 %v5899, %v5931
  %v5948 = vmul.f32 %v5900, %v5932
  %v5949 = vmul.f32 %v5901, %v5933
  %v5950 = vmul.f32 %v5902, %v5934
  %v5951 = vmul.f32 %v5903, %v5935
  %v5952 = vmul.f32 %v5904, %v5936
  %v5953 = vmul.f32 %v5905, %v5937
  %v5954 = vmul.f32 %v5906, %v5938
  %v5955 = vmul.f32 %v5907, %v5939
  %v5956 = vmul.f32 %v5908, %v5940
  %v5957 = vmul.f32 %v5909, %v5941
  %v5958 = vmul.f32 %v5910, %v5942
  %v5959 = vmul.f32 %v5911, %v5943
  %v5960 = vmul.f32 %v5912, %v5944
  %v5961 = vmul.f32 %v5913, %v5945
  %v5962 = vmul.f32 %v5914, %v5946
  %v5963 = vmul.f32 %v5836, %v5947
  %v5964 = vmul.f32 %v5838, %v5948
  %v5965 = vmul.f32 %v5840, %v5949
  %v5966 = vmul.f32 %v5842, %v5950
  %v5967 = vmul.f32 %v5844, %v5951
  %v5968 = vmul.f32 %v5846, %v5952
  %v5969 = vmul.f32 %v5848, %v5953
  %v5970 = vmul.f32 %v5850, %v5954
  %v5971 = vmul.f32 %v5852, %v5955
  %v5972 = vmul.f32 %v5854, %v5956
  %v5973 = vmul.f32 %v5856, %v5957
  %v5974 = vmul.f32 %v5858, %v5958
  %v5975 = vmul.f32 %v5860, %v5959
  %v5976 = vmul.f32 %v5862, %v5960
  %v5977 = vmul.f32 %v5864, %v5961
  %v5978 = vmul.f32 %v5866, %v5962
  %v5979 = vadd.f32 %v5963, %v5964
  %v5980 = vadd.f32 %v5979, %v5965
  %v5981 = vadd.f32 %v5980, %v5966
  %v5982 = vadd.f32 %v5981, %v5967
  %v5983 = vadd.f32 %v5982, %v5968
  %v5984 = vadd.f32 %v5983, %v5969
  %v5985 = vadd.f32 %v5984, %v5970
  %v5986 = vadd.f32 %v5985, %v5971
  %v5987 = vadd.f32 %v5986, %v5972
  %v5988 = vadd.f32 %v5987, %v5973
  %v5989 = vadd.f32 %v5988, %v5974
  %v5990 = vadd.f32 %v5989, %v5975
  %v5991 = vadd.f32 %v5990, %v5976
  %v5992 = vadd.f32 %v5991, %v5977
  %v5993 = vadd.f32 %v5992, %v5978
  %v5994 = vrot.slane %v5993, 4
  %v5995 = vadd.f32 %v5993, %v5994
  %v5996 = vrot.slane %v5995, 2
  %v5997 = vadd.f32 %v5995, %v5996
  %v5998 = vrot.slane %v5997, 1
  %v5999 = vadd.f32 %v5997, %v5998
  %v6000 = vadd.f32 %v5999, 1e-09
  %v6001 = vrcp.pop %v6000
  %v6002 = vmul.f32 %v6000, %v6001
  %v6003 = vsub.f32 2.0, %v6002
  %v6004 = vmul.f32 %v6001, %v6003
  %v6005 = vmul.f32 %v5963, %v6004
  %v6006 = vmul.f32 %v5964, %v6004
  %v6007 = vmul.f32 %v5965, %v6004
  %v6008 = vmul.f32 %v5966, %v6004
  %v6009 = vmul.f32 %v5967, %v6004
  %v6010 = vmul.f32 %v5968, %v6004
  %v6011 = vmul.f32 %v5969, %v6004
  %v6012 = vmul.f32 %v5970, %v6004
  %v6013 = vmul.f32 %v5971, %v6004
  %v6014 = vmul.f32 %v5972, %v6004
  %v6015 = vmul.f32 %v5973, %v6004
  %v6016 = vmul.f32 %v5974, %v6004
  %v6017 = vmul.f32 %v5975, %v6004
  %v6018 = vmul.f32 %v5976, %v6004
  %v6019 = vmul.f32 %v5977, %v6004
  %v6020 = vmul.f32 %v5978, %v6004
  %6021 = vmatprep.subr.mxu0 0.0
  %v6022 = vand.u32 %v6005, 4294901760
  %6023 = vmatpush1.msra.mxu0 %v6022
  %6024 = vmatprep.subr.mxu0 0.0
  %v6025 = vand.u32 %v6006, 4294901760
  %6026 = vmatpush1.msra.mxu0 %v6025
  %6027 = vmatprep.subr.mxu0 0.0
  %v6028 = vand.u32 %v6007, 4294901760
  %6029 = vmatpush1.msra.mxu0 %v6028
  %6030 = vmatprep.subr.mxu0 0.0
  %v6031 = vand.u32 %v6008, 4294901760
  %6032 = vmatpush1.msra.mxu0 %v6031
  %6033 = vmatprep.subr.mxu0 0.0
  %v6034 = vand.u32 %v6009, 4294901760
  %6035 = vmatpush1.msra.mxu0 %v6034
  %6036 = vmatprep.subr.mxu0 0.0
  %v6037 = vand.u32 %v6010, 4294901760
  %6038 = vmatpush1.msra.mxu0 %v6037
  %6039 = vmatprep.subr.mxu0 0.0
  %v6040 = vand.u32 %v6011, 4294901760
  %6041 = vmatpush1.msra.mxu0 %v6040
  %6042 = vmatprep.subr.mxu0 0.0
  %v6043 = vand.u32 %v6012, 4294901760
  %6044 = vmatpush1.msra.mxu0 %v6043
  %6045 = vmatprep.subr.mxu0 0.0
  %v6046 = vand.u32 %v6013, 4294901760
  %6047 = vmatpush1.msra.mxu0 %v6046
  %6048 = vmatprep.subr.mxu0 0.0
  %v6049 = vand.u32 %v6014, 4294901760
  %6050 = vmatpush1.msra.mxu0 %v6049
  %6051 = vmatprep.subr.mxu0 0.0
  %v6052 = vand.u32 %v6015, 4294901760
  %6053 = vmatpush1.msra.mxu0 %v6052
  %6054 = vmatprep.subr.mxu0 0.0
  %v6055 = vand.u32 %v6016, 4294901760
  %6056 = vmatpush1.msra.mxu0 %v6055
  %6057 = vmatprep.subr.mxu0 0.0
  %v6058 = vand.u32 %v6017, 4294901760
  %6059 = vmatpush1.msra.mxu0 %v6058
  %6060 = vmatprep.subr.mxu0 0.0
  %v6061 = vand.u32 %v6018, 4294901760
  %6062 = vmatpush1.msra.mxu0 %v6061
  %6063 = vmatprep.subr.mxu0 0.0
  %v6064 = vand.u32 %v6019, 4294901760
  %6065 = vmatpush1.msra.mxu0 %v6064
  %6066 = vmatprep.subr.mxu0 0.0
  %v6067 = vand.u32 %v6020, 4294901760
  %6068 = vmatpush1.msra.mxu0 %v6067
  %6069 = vmatprep.subr.mxu0 0.0
  %6070 = vmatpush1.msra.mxu0 0.0
  %6071 = vmatprep.subr.mxu0 0.0
  %6072 = vmatpush1.msra.mxu0 0.0
  %6073 = vmatprep.subr.mxu0 0.0
  %6074 = vmatpush1.msra.mxu0 0.0
  %6075 = vmatprep.subr.mxu0 0.0
  %6076 = vmatpush1.msra.mxu0 0.0
  %6077 = vmatprep.subr.mxu0 0.0
  %6078 = vmatpush1.msra.mxu0 0.0
  %6079 = vmatprep.subr.mxu0 0.0
  %6080 = vmatpush1.msra.mxu0 0.0
  %6081 = vmatprep.subr.mxu0 0.0
  %6082 = vmatpush1.msra.mxu0 0.0
  %6083 = vmatprep.subr.mxu0 0.0
  %6084 = vmatpush1.msra.mxu0 0.0
  %6085 = vmatprep.subr.mxu0 0.0
  %6086 = vmatpush1.msra.mxu0 0.0
  %6087 = vmatprep.subr.mxu0 0.0
  %6088 = vmatpush1.msra.mxu0 0.0
  %6089 = vmatprep.subr.mxu0 0.0
  %6090 = vmatpush1.msra.mxu0 0.0
  %6091 = vmatprep.subr.mxu0 0.0
  %6092 = vmatpush1.msra.mxu0 0.0
  %6093 = vmatprep.subr.mxu0 0.0
  %6094 = vmatpush1.msra.mxu0 0.0
  %6095 = vmatprep.subr.mxu0 0.0
  %6096 = vmatpush1.msra.mxu0 0.0
  %6097 = vmatprep.subr.mxu0 0.0
  %6098 = vmatpush1.msra.mxu0 0.0
  %6099 = vmatprep.subr.mxu0 0.0
  %6100 = vmatpush1.msra.mxu0 0.0
  %6101 = vmatprep.mubr.f32.mxu0 0.0
  %v6102 = vand.u32 %v4573, 4294901760
  %v6103 = vsub.f32 %v4573, %v6102
  %v6104 = vand.u32 %v6103, 4294901760
  %v6105 = vsub.f32 %v6103, %v6104
  %v6106 = vand.u32 %v6105, 4294901760
  %6107 = vmatmul.mubr.f32.gmra.mrb[0].mxu0 %v6106
  %v6108 = vpop.f32.mrb[0].mxu0
  %v6109 = vadd.f32 0.0, %v6108
  %v6110 = vpop.f32.mrb[0].mxu0
  %6111 = vmatprep.mubr.f32.mxu0 0.0
  %v6112 = vand.u32 %v4574, 4294901760
  %v6113 = vsub.f32 %v4574, %v6112
  %v6114 = vand.u32 %v6113, 4294901760
  %v6115 = vsub.f32 %v6113, %v6114
  %v6116 = vand.u32 %v6115, 4294901760
  %6117 = vmatmul.mubr.f32.gmra.mrb[0].mxu0 %v6116
  %v6118 = vpop.f32.mrb[0].mxu0
  %v6119 = vadd.f32 0.0, %v6118
  %v6120 = vpop.f32.mrb[0].mxu0
  %6121 = vmatprep.mubr.f32.mxu0 0.0
  %v6122 = vand.u32 %v4575, 4294901760
  %v6123 = vsub.f32 %v4575, %v6122
  %v6124 = vand.u32 %v6123, 4294901760
  %v6125 = vsub.f32 %v6123, %v6124
  %v6126 = vand.u32 %v6125, 4294901760
  %6127 = vmatmul.mubr.f32.gmra.mrb[0].mxu0 %v6126
  %v6128 = vpop.f32.mrb[0].mxu0
  %v6129 = vadd.f32 0.0, %v6128
  %v6130 = vpop.f32.mrb[0].mxu0
  %6131 = vmatprep.mubr.f32.mxu0 0.0
  %v6132 = vand.u32 %v4576, 4294901760
  %v6133 = vsub.f32 %v4576, %v6132
  %v6134 = vand.u32 %v6133, 4294901760
  %v6135 = vsub.f32 %v6133, %v6134
  %v6136 = vand.u32 %v6135, 4294901760
  %6137 = vmatmul.mubr.f32.gmra.mrb[0].mxu0 %v6136
  %v6138 = vpop.f32.mrb[0].mxu0
  %v6139 = vadd.f32 0.0, %v6138
  %v6140 = vpop.f32.mrb[0].mxu0
  %6141 = vdwg.mxu0
  %6142 = vmatprep.subr.mxu0 0.0
  %v6143 = vand.u32 %v6005, 4294901760
  %v6144 = vsub.f32 %v6005, %v6143
  %v6145 = vand.u32 %v6144, 4294901760
  %v6146 = vsub.f32 %v6144, %v6145
  %v6147 = vand.u32 %v6146, 4294901760
  %6148 = vmatpush1.msra.mxu0 %v6147
  %6149 = vmatprep.subr.mxu0 0.0
  %v6150 = vand.u32 %v6006, 4294901760
  %v6151 = vsub.f32 %v6006, %v6150
  %v6152 = vand.u32 %v6151, 4294901760
  %v6153 = vsub.f32 %v6151, %v6152
  %v6154 = vand.u32 %v6153, 4294901760
  %6155 = vmatpush1.msra.mxu0 %v6154
  %6156 = vmatprep.subr.mxu0 0.0
  %v6157 = vand.u32 %v6007, 4294901760
  %v6158 = vsub.f32 %v6007, %v6157
  %v6159 = vand.u32 %v6158, 4294901760
  %v6160 = vsub.f32 %v6158, %v6159
  %v6161 = vand.u32 %v6160, 4294901760
  %6162 = vmatpush1.msra.mxu0 %v6161
  %6163 = vmatprep.subr.mxu0 0.0
  %v6164 = vand.u32 %v6008, 4294901760
  %v6165 = vsub.f32 %v6008, %v6164
  %v6166 = vand.u32 %v6165, 4294901760
  %v6167 = vsub.f32 %v6165, %v6166
  %v6168 = vand.u32 %v6167, 4294901760
  %6169 = vmatpush1.msra.mxu0 %v6168
  %6170 = vmatprep.subr.mxu0 0.0
  %v6171 = vand.u32 %v6009, 4294901760
  %v6172 = vsub.f32 %v6009, %v6171
  %v6173 = vand.u32 %v6172, 4294901760
  %v6174 = vsub.f32 %v6172, %v6173
  %v6175 = vand.u32 %v6174, 4294901760
  %6176 = vmatpush1.msra.mxu0 %v6175
  %6177 = vmatprep.subr.mxu0 0.0
  %v6178 = vand.u32 %v6010, 4294901760
  %v6179 = vsub.f32 %v6010, %v6178
  %v6180 = vand.u32 %v6179, 4294901760
  %v6181 = vsub.f32 %v6179, %v6180
  %v6182 = vand.u32 %v6181, 4294901760
  %6183 = vmatpush1.msra.mxu0 %v6182
  %6184 = vmatprep.subr.mxu0 0.0
  %v6185 = vand.u32 %v6011, 4294901760
  %v6186 = vsub.f32 %v6011, %v6185
  %v6187 = vand.u32 %v6186, 4294901760
  %v6188 = vsub.f32 %v6186, %v6187
  %v6189 = vand.u32 %v6188, 4294901760
  %6190 = vmatpush1.msra.mxu0 %v6189
  %6191 = vmatprep.subr.mxu0 0.0
  %v6192 = vand.u32 %v6012, 4294901760
  %v6193 = vsub.f32 %v6012, %v6192
  %v6194 = vand.u32 %v6193, 4294901760
  %v6195 = vsub.f32 %v6193, %v6194
  %v6196 = vand.u32 %v6195, 4294901760
  %6197 = vmatpush1.msra.mxu0 %v6196
  %6198 = vmatprep.subr.mxu0 0.0
  %v6199 = vand.u32 %v6013, 4294901760
  %v6200 = vsub.f32 %v6013, %v6199
  %v6201 = vand.u32 %v6200, 4294901760
  %v6202 = vsub.f32 %v6200, %v6201
  %v6203 = vand.u32 %v6202, 4294901760
  %6204 = vmatpush1.msra.mxu0 %v6203
  %6205 = vmatprep.subr.mxu0 0.0
  %v6206 = vand.u32 %v6014, 4294901760
  %v6207 = vsub.f32 %v6014, %v6206
  %v6208 = vand.u32 %v6207, 4294901760
  %v6209 = vsub.f32 %v6207, %v6208
  %v6210 = vand.u32 %v6209, 4294901760
  %6211 = vmatpush1.msra.mxu0 %v6210
  %6212 = vmatprep.subr.mxu0 0.0
  %v6213 = vand.u32 %v6015, 4294901760
  %v6214 = vsub.f32 %v6015, %v6213
  %v6215 = vand.u32 %v6214, 4294901760
  %v6216 = vsub.f32 %v6214, %v6215
  %v6217 = vand.u32 %v6216, 4294901760
  %6218 = vmatpush1.msra.mxu0 %v6217
  %6219 = vmatprep.subr.mxu0 0.0
  %v6220 = vand.u32 %v6016, 4294901760
  %v6221 = vsub.f32 %v6016, %v6220
  %v6222 = vand.u32 %v6221, 4294901760
  %v6223 = vsub.f32 %v6221, %v6222
  %v6224 = vand.u32 %v6223, 4294901760
  %6225 = vmatpush1.msra.mxu0 %v6224
  %6226 = vmatprep.subr.mxu0 0.0
  %v6227 = vand.u32 %v6017, 4294901760
  %v6228 = vsub.f32 %v6017, %v6227
  %v6229 = vand.u32 %v6228, 4294901760
  %v6230 = vsub.f32 %v6228, %v6229
  %v6231 = vand.u32 %v6230, 4294901760
  %6232 = vmatpush1.msra.mxu0 %v6231
  %6233 = vmatprep.subr.mxu0 0.0
  %v6234 = vand.u32 %v6018, 4294901760
  %v6235 = vsub.f32 %v6018, %v6234
  %v6236 = vand.u32 %v6235, 4294901760
  %v6237 = vsub.f32 %v6235, %v6236
  %v6238 = vand.u32 %v6237, 4294901760
  %6239 = vmatpush1.msra.mxu0 %v6238
  %6240 = vmatprep.subr.mxu0 0.0
  %v6241 = vand.u32 %v6019, 4294901760
  %v6242 = vsub.f32 %v6019, %v6241
  %v6243 = vand.u32 %v6242, 4294901760
  %v6244 = vsub.f32 %v6242, %v6243
  %v6245 = vand.u32 %v6244, 4294901760
  %6246 = vmatpush1.msra.mxu0 %v6245
  %6247 = vmatprep.subr.mxu0 0.0
  %v6248 = vand.u32 %v6020, 4294901760
  %v6249 = vsub.f32 %v6020, %v6248
  %v6250 = vand.u32 %v6249, 4294901760
  %v6251 = vsub.f32 %v6249, %v6250
  %v6252 = vand.u32 %v6251, 4294901760
  %6253 = vmatpush1.msra.mxu0 %v6252
  %6254 = vmatprep.subr.mxu0 0.0
  %6255 = vmatpush1.msra.mxu0 0.0
  %6256 = vmatprep.subr.mxu0 0.0
  %6257 = vmatpush1.msra.mxu0 0.0
  %6258 = vmatprep.subr.mxu0 0.0
  %6259 = vmatpush1.msra.mxu0 0.0
  %6260 = vmatprep.subr.mxu0 0.0
  %6261 = vmatpush1.msra.mxu0 0.0
  %6262 = vmatprep.subr.mxu0 0.0
  %6263 = vmatpush1.msra.mxu0 0.0
  %6264 = vmatprep.subr.mxu0 0.0
  %6265 = vmatpush1.msra.mxu0 0.0
  %6266 = vmatprep.subr.mxu0 0.0
  %6267 = vmatpush1.msra.mxu0 0.0
  %6268 = vmatprep.subr.mxu0 0.0
  %6269 = vmatpush1.msra.mxu0 0.0
  %6270 = vmatprep.subr.mxu0 0.0
  %6271 = vmatpush1.msra.mxu0 0.0
  %6272 = vmatprep.subr.mxu0 0.0
  %6273 = vmatpush1.msra.mxu0 0.0
  %6274 = vmatprep.subr.mxu0 0.0
  %6275 = vmatpush1.msra.mxu0 0.0
  %6276 = vmatprep.subr.mxu0 0.0
  %6277 = vmatpush1.msra.mxu0 0.0
  %6278 = vmatprep.subr.mxu0 0.0
  %6279 = vmatpush1.msra.mxu0 0.0
  %6280 = vmatprep.subr.mxu0 0.0
  %6281 = vmatpush1.msra.mxu0 0.0
  %6282 = vmatprep.subr.mxu0 0.0
  %6283 = vmatpush1.msra.mxu0 0.0
  %6284 = vmatprep.subr.mxu0 0.0
  %6285 = vmatpush1.msra.mxu0 0.0
  %6286 = vmatprep.mubr.f32.mxu0 0.0
  %v6287 = vand.u32 %v4573, 4294901760
  %6288 = vmatmul.mubr.f32.gmra.mrb[0].mxu0 %v6287
  %v6289 = vpop.f32.mrb[0].mxu0
  %v6290 = vadd.f32 %v6109, %v6289
  %v6291 = vpop.f32.mrb[0].mxu0
  %6292 = vmatprep.mubr.f32.mxu0 0.0
  %v6293 = vand.u32 %v4574, 4294901760
  %6294 = vmatmul.mubr.f32.gmra.mrb[0].mxu0 %v6293
  %v6295 = vpop.f32.mrb[0].mxu0
  %v6296 = vadd.f32 %v6119, %v6295
  %v6297 = vpop.f32.mrb[0].mxu0
  %6298 = vmatprep.mubr.f32.mxu0 0.0
  %v6299 = vand.u32 %v4575, 4294901760
  %6300 = vmatmul.mubr.f32.gmra.mrb[0].mxu0 %v6299
  %v6301 = vpop.f32.mrb[0].mxu0
  %v6302 = vadd.f32 %v6129, %v6301
  %v6303 = vpop.f32.mrb[0].mxu0
  %6304 = vmatprep.mubr.f32.mxu0 0.0
  %v6305 = vand.u32 %v4576, 4294901760
  %6306 = vmatmul.mubr.f32.gmra.mrb[0].mxu0 %v6305
  %v6307 = vpop.f32.mrb[0].mxu0
  %v6308 = vadd.f32 %v6139, %v6307
  %v6309 = vpop.f32.mrb[0].mxu0
  %6310 = vdwg.mxu0
  %6311 = vmatprep.subr.mxu0 0.0
  %v6312 = vand.u32 %v6005, 4294901760
  %v6313 = vsub.f32 %v6005, %v6312
  %6314 = vmatpush1.msra.mxu0 %v6313
  %6315 = vmatprep.subr.mxu0 0.0
  %v6316 = vand.u32 %v6006, 4294901760
  %v6317 = vsub.f32 %v6006, %v6316
  %6318 = vmatpush1.msra.mxu0 %v6317
  %6319 = vmatprep.subr.mxu0 0.0
  %v6320 = vand.u32 %v6007, 4294901760
  %v6321 = vsub.f32 %v6007, %v6320
  %6322 = vmatpush1.msra.mxu0 %v6321
  %6323 = vmatprep.subr.mxu0 0.0
  %v6324 = vand.u32 %v6008, 4294901760
  %v6325 = vsub.f32 %v6008, %v6324
  %6326 = vmatpush1.msra.mxu0 %v6325
  %6327 = vmatprep.subr.mxu0 0.0
  %v6328 = vand.u32 %v6009, 4294901760
  %v6329 = vsub.f32 %v6009, %v6328
  %6330 = vmatpush1.msra.mxu0 %v6329
  %6331 = vmatprep.subr.mxu0 0.0
  %v6332 = vand.u32 %v6010, 4294901760
  %v6333 = vsub.f32 %v6010, %v6332
  %6334 = vmatpush1.msra.mxu0 %v6333
  %6335 = vmatprep.subr.mxu0 0.0
  %v6336 = vand.u32 %v6011, 4294901760
  %v6337 = vsub.f32 %v6011, %v6336
  %6338 = vmatpush1.msra.mxu0 %v6337
  %6339 = vmatprep.subr.mxu0 0.0
  %v6340 = vand.u32 %v6012, 4294901760
  %v6341 = vsub.f32 %v6012, %v6340
  %6342 = vmatpush1.msra.mxu0 %v6341
  %6343 = vmatprep.subr.mxu0 0.0
  %v6344 = vand.u32 %v6013, 4294901760
  %v6345 = vsub.f32 %v6013, %v6344
  %6346 = vmatpush1.msra.mxu0 %v6345
  %6347 = vmatprep.subr.mxu0 0.0
  %v6348 = vand.u32 %v6014, 4294901760
  %v6349 = vsub.f32 %v6014, %v6348
  %6350 = vmatpush1.msra.mxu0 %v6349
  %6351 = vmatprep.subr.mxu0 0.0
  %v6352 = vand.u32 %v6015, 4294901760
  %v6353 = vsub.f32 %v6015, %v6352
  %6354 = vmatpush1.msra.mxu0 %v6353
  %6355 = vmatprep.subr.mxu0 0.0
  %v6356 = vand.u32 %v6016, 4294901760
  %v6357 = vsub.f32 %v6016, %v6356
  %6358 = vmatpush1.msra.mxu0 %v6357
  %6359 = vmatprep.subr.mxu0 0.0
  %v6360 = vand.u32 %v6017, 4294901760
  %v6361 = vsub.f32 %v6017, %v6360
  %6362 = vmatpush1.msra.mxu0 %v6361
  %6363 = vmatprep.subr.mxu0 0.0
  %v6364 = vand.u32 %v6018, 4294901760
  %v6365 = vsub.f32 %v6018, %v6364
  %6366 = vmatpush1.msra.mxu0 %v6365
  %6367 = vmatprep.subr.mxu0 0.0
  %v6368 = vand.u32 %v6019, 4294901760
  %v6369 = vsub.f32 %v6019, %v6368
  %6370 = vmatpush1.msra.mxu0 %v6369
  %6371 = vmatprep.subr.mxu0 0.0
  %v6372 = vand.u32 %v6020, 4294901760
  %v6373 = vsub.f32 %v6020, %v6372
  %6374 = vmatpush1.msra.mxu0 %v6373
  %6375 = vmatprep.subr.mxu0 0.0
  %6376 = vmatpush1.msra.mxu0 0.0
  %6377 = vmatprep.subr.mxu0 0.0
  %6378 = vmatpush1.msra.mxu0 0.0
  %6379 = vmatprep.subr.mxu0 0.0
  %6380 = vmatpush1.msra.mxu0 0.0
  %6381 = vmatprep.subr.mxu0 0.0
  %6382 = vmatpush1.msra.mxu0 0.0
  %6383 = vmatprep.subr.mxu0 0.0
  %6384 = vmatpush1.msra.mxu0 0.0
  %6385 = vmatprep.subr.mxu0 0.0
  %6386 = vmatpush1.msra.mxu0 0.0
  %6387 = vmatprep.subr.mxu0 0.0
  %6388 = vmatpush1.msra.mxu0 0.0
  %6389 = vmatprep.subr.mxu0 0.0
  %6390 = vmatpush1.msra.mxu0 0.0
  %6391 = vmatprep.subr.mxu0 0.0
  %6392 = vmatpush1.msra.mxu0 0.0
  %6393 = vmatprep.subr.mxu0 0.0
  %6394 = vmatpush1.msra.mxu0 0.0
  %6395 = vmatprep.subr.mxu0 0.0
  %6396 = vmatpush1.msra.mxu0 0.0
  %6397 = vmatprep.subr.mxu0 0.0
  %6398 = vmatpush1.msra.mxu0 0.0
  %6399 = vmatprep.subr.mxu0 0.0
  %6400 = vmatpush1.msra.mxu0 0.0
  %6401 = vmatprep.subr.mxu0 0.0
  %6402 = vmatpush1.msra.mxu0 0.0
  %6403 = vmatprep.subr.mxu0 0.0
  %6404 = vmatpush1.msra.mxu0 0.0
  %6405 = vmatprep.subr.mxu0 0.0
  %6406 = vmatpush1.msra.mxu0 0.0
  %6407 = vmatprep.mubr.f32.mxu0 0.0
  %v6408 = vand.u32 %v4573, 4294901760
  %v6409 = vsub.f32 %v4573, %v6408
  %6410 = vmatmul.mubr.f32.gmra.mrb[0].mxu0 %v6409
  %v6411 = vpop.f32.mrb[0].mxu0
  %v6412 = vadd.f32 %v6290, %v6411
  %v6413 = vpop.f32.mrb[0].mxu0
  %6414 = vmatprep.mubr.f32.mxu0 0.0
  %v6415 = vand.u32 %v4574, 4294901760
  %v6416 = vsub.f32 %v4574, %v6415
  %6417 = vmatmul.mubr.f32.gmra.mrb[0].mxu0 %v6416
  %v6418 = vpop.f32.mrb[0].mxu0
  %v6419 = vadd.f32 %v6296, %v6418
  %v6420 = vpop.f32.mrb[0].mxu0
  %6421 = vmatprep.mubr.f32.mxu0 0.0
  %v6422 = vand.u32 %v4575, 4294901760
  %v6423 = vsub.f32 %v4575, %v6422
  %6424 = vmatmul.mubr.f32.gmra.mrb[0].mxu0 %v6423
  %v6425 = vpop.f32.mrb[0].mxu0
  %v6426 = vadd.f32 %v6302, %v6425
  %v6427 = vpop.f32.mrb[0].mxu0
  %6428 = vmatprep.mubr.f32.mxu0 0.0
  %v6429 = vand.u32 %v4576, 4294901760
  %v6430 = vsub.f32 %v4576, %v6429
  %6431 = vmatmul.mubr.f32.gmra.mrb[0].mxu0 %v6430
  %v6432 = vpop.f32.mrb[0].mxu0
  %v6433 = vadd.f32 %v6308, %v6432
  %v6434 = vpop.f32.mrb[0].mxu0
  %6435 = vdwg.mxu0
  %6436 = vmatprep.subr.mxu0 0.0
  %v6437 = vand.u32 %v6005, 4294901760
  %6438 = vmatpush1.msra.mxu0 %v6437
  %6439 = vmatprep.subr.mxu0 0.0
  %v6440 = vand.u32 %v6006, 4294901760
  %6441 = vmatpush1.msra.mxu0 %v6440
  %6442 = vmatprep.subr.mxu0 0.0
  %v6443 = vand.u32 %v6007, 4294901760
  %6444 = vmatpush1.msra.mxu0 %v6443
  %6445 = vmatprep.subr.mxu0 0.0
  %v6446 = vand.u32 %v6008, 4294901760
  %6447 = vmatpush1.msra.mxu0 %v6446
  %6448 = vmatprep.subr.mxu0 0.0
  %v6449 = vand.u32 %v6009, 4294901760
  %6450 = vmatpush1.msra.mxu0 %v6449
  %6451 = vmatprep.subr.mxu0 0.0
  %v6452 = vand.u32 %v6010, 4294901760
  %6453 = vmatpush1.msra.mxu0 %v6452
  %6454 = vmatprep.subr.mxu0 0.0
  %v6455 = vand.u32 %v6011, 4294901760
  %6456 = vmatpush1.msra.mxu0 %v6455
  %6457 = vmatprep.subr.mxu0 0.0
  %v6458 = vand.u32 %v6012, 4294901760
  %6459 = vmatpush1.msra.mxu0 %v6458
  %6460 = vmatprep.subr.mxu0 0.0
  %v6461 = vand.u32 %v6013, 4294901760
  %6462 = vmatpush1.msra.mxu0 %v6461
  %6463 = vmatprep.subr.mxu0 0.0
  %v6464 = vand.u32 %v6014, 4294901760
  %6465 = vmatpush1.msra.mxu0 %v6464
  %6466 = vmatprep.subr.mxu0 0.0
  %v6467 = vand.u32 %v6015, 4294901760
  %6468 = vmatpush1.msra.mxu0 %v6467
  %6469 = vmatprep.subr.mxu0 0.0
  %v6470 = vand.u32 %v6016, 4294901760
  %6471 = vmatpush1.msra.mxu0 %v6470
  %6472 = vmatprep.subr.mxu0 0.0
  %v6473 = vand.u32 %v6017, 4294901760
  %6474 = vmatpush1.msra.mxu0 %v6473
  %6475 = vmatprep.subr.mxu0 0.0
  %v6476 = vand.u32 %v6018, 4294901760
  %6477 = vmatpush1.msra.mxu0 %v6476
  %6478 = vmatprep.subr.mxu0 0.0
  %v6479 = vand.u32 %v6019, 4294901760
  %6480 = vmatpush1.msra.mxu0 %v6479
  %6481 = vmatprep.subr.mxu0 0.0
  %v6482 = vand.u32 %v6020, 4294901760
  %6483 = vmatpush1.msra.mxu0 %v6482
  %6484 = vmatprep.subr.mxu0 0.0
  %6485 = vmatpush1.msra.mxu0 0.0
  %6486 = vmatprep.subr.mxu0 0.0
  %6487 = vmatpush1.msra.mxu0 0.0
  %6488 = vmatprep.subr.mxu0 0.0
  %6489 = vmatpush1.msra.mxu0 0.0
  %6490 = vmatprep.subr.mxu0 0.0
  %6491 = vmatpush1.msra.mxu0 0.0
  %6492 = vmatprep.subr.mxu0 0.0
  %6493 = vmatpush1.msra.mxu0 0.0
  %6494 = vmatprep.subr.mxu0 0.0
  %6495 = vmatpush1.msra.mxu0 0.0
  %6496 = vmatprep.subr.mxu0 0.0
  %6497 = vmatpush1.msra.mxu0 0.0
  %6498 = vmatprep.subr.mxu0 0.0
  %6499 = vmatpush1.msra.mxu0 0.0
  %6500 = vmatprep.subr.mxu0 0.0
  %6501 = vmatpush1.msra.mxu0 0.0
  %6502 = vmatprep.subr.mxu0 0.0
  %6503 = vmatpush1.msra.mxu0 0.0
  %6504 = vmatprep.subr.mxu0 0.0
  %6505 = vmatpush1.msra.mxu0 0.0
  %6506 = vmatprep.subr.mxu0 0.0
  %6507 = vmatpush1.msra.mxu0 0.0
  %6508 = vmatprep.subr.mxu0 0.0
  %6509 = vmatpush1.msra.mxu0 0.0
  %6510 = vmatprep.subr.mxu0 0.0
  %6511 = vmatpush1.msra.mxu0 0.0
  %6512 = vmatprep.subr.mxu0 0.0
  %6513 = vmatpush1.msra.mxu0 0.0
  %6514 = vmatprep.subr.mxu0 0.0
  %6515 = vmatpush1.msra.mxu0 0.0
  %6516 = vmatprep.mubr.f32.mxu0 0.0
  %v6517 = vand.u32 %v4573, 4294901760
  %v6518 = vsub.f32 %v4573, %v6517
  %v6519 = vand.u32 %v6518, 4294901760
  %6520 = vmatmul.mubr.f32.gmra.mrb[0].mxu0 %v6519
  %v6521 = vpop.f32.mrb[0].mxu0
  %v6522 = vadd.f32 %v6412, %v6521
  %v6523 = vpop.f32.mrb[0].mxu0
  %6524 = vmatprep.mubr.f32.mxu0 0.0
  %v6525 = vand.u32 %v4574, 4294901760
  %v6526 = vsub.f32 %v4574, %v6525
  %v6527 = vand.u32 %v6526, 4294901760
  %6528 = vmatmul.mubr.f32.gmra.mrb[0].mxu0 %v6527
  %v6529 = vpop.f32.mrb[0].mxu0
  %v6530 = vadd.f32 %v6419, %v6529
  %v6531 = vpop.f32.mrb[0].mxu0
  %6532 = vmatprep.mubr.f32.mxu0 0.0
  %v6533 = vand.u32 %v4575, 4294901760
  %v6534 = vsub.f32 %v4575, %v6533
  %v6535 = vand.u32 %v6534, 4294901760
  %6536 = vmatmul.mubr.f32.gmra.mrb[0].mxu0 %v6535
  %v6537 = vpop.f32.mrb[0].mxu0
  %v6538 = vadd.f32 %v6426, %v6537
  %v6539 = vpop.f32.mrb[0].mxu0
  %6540 = vmatprep.mubr.f32.mxu0 0.0
  %v6541 = vand.u32 %v4576, 4294901760
  %v6542 = vsub.f32 %v4576, %v6541
  %v6543 = vand.u32 %v6542, 4294901760
  %6544 = vmatmul.mubr.f32.gmra.mrb[0].mxu0 %v6543
  %v6545 = vpop.f32.mrb[0].mxu0
  %v6546 = vadd.f32 %v6433, %v6545
  %v6547 = vpop.f32.mrb[0].mxu0
  %6548 = vdwg.mxu0
  %6549 = vmatprep.subr.mxu0 0.0
  %v6550 = vand.u32 %v6005, 4294901760
  %v6551 = vsub.f32 %v6005, %v6550
  %v6552 = vand.u32 %v6551, 4294901760
  %6553 = vmatpush1.msra.mxu0 %v6552
  %6554 = vmatprep.subr.mxu0 0.0
  %v6555 = vand.u32 %v6006, 4294901760
  %v6556 = vsub.f32 %v6006, %v6555
  %v6557 = vand.u32 %v6556, 4294901760
  %6558 = vmatpush1.msra.mxu0 %v6557
  %6559 = vmatprep.subr.mxu0 0.0
  %v6560 = vand.u32 %v6007, 4294901760
  %v6561 = vsub.f32 %v6007, %v6560
  %v6562 = vand.u32 %v6561, 4294901760
  %6563 = vmatpush1.msra.mxu0 %v6562
  %6564 = vmatprep.subr.mxu0 0.0
  %v6565 = vand.u32 %v6008, 4294901760
  %v6566 = vsub.f32 %v6008, %v6565
  %v6567 = vand.u32 %v6566, 4294901760
  %6568 = vmatpush1.msra.mxu0 %v6567
  %6569 = vmatprep.subr.mxu0 0.0
  %v6570 = vand.u32 %v6009, 4294901760
  %v6571 = vsub.f32 %v6009, %v6570
  %v6572 = vand.u32 %v6571, 4294901760
  %6573 = vmatpush1.msra.mxu0 %v6572
  %6574 = vmatprep.subr.mxu0 0.0
  %v6575 = vand.u32 %v6010, 4294901760
  %v6576 = vsub.f32 %v6010, %v6575
  %v6577 = vand.u32 %v6576, 4294901760
  %6578 = vmatpush1.msra.mxu0 %v6577
  %6579 = vmatprep.subr.mxu0 0.0
  %v6580 = vand.u32 %v6011, 4294901760
  %v6581 = vsub.f32 %v6011, %v6580
  %v6582 = vand.u32 %v6581, 4294901760
  %6583 = vmatpush1.msra.mxu0 %v6582
  %6584 = vmatprep.subr.mxu0 0.0
  %v6585 = vand.u32 %v6012, 4294901760
  %v6586 = vsub.f32 %v6012, %v6585
  %v6587 = vand.u32 %v6586, 4294901760
  %6588 = vmatpush1.msra.mxu0 %v6587
  %6589 = vmatprep.subr.mxu0 0.0
  %v6590 = vand.u32 %v6013, 4294901760
  %v6591 = vsub.f32 %v6013, %v6590
  %v6592 = vand.u32 %v6591, 4294901760
  %6593 = vmatpush1.msra.mxu0 %v6592
  %6594 = vmatprep.subr.mxu0 0.0
  %v6595 = vand.u32 %v6014, 4294901760
  %v6596 = vsub.f32 %v6014, %v6595
  %v6597 = vand.u32 %v6596, 4294901760
  %6598 = vmatpush1.msra.mxu0 %v6597
  %6599 = vmatprep.subr.mxu0 0.0
  %v6600 = vand.u32 %v6015, 4294901760
  %v6601 = vsub.f32 %v6015, %v6600
  %v6602 = vand.u32 %v6601, 4294901760
  %6603 = vmatpush1.msra.mxu0 %v6602
  %6604 = vmatprep.subr.mxu0 0.0
  %v6605 = vand.u32 %v6016, 4294901760
  %v6606 = vsub.f32 %v6016, %v6605
  %v6607 = vand.u32 %v6606, 4294901760
  %6608 = vmatpush1.msra.mxu0 %v6607
  %6609 = vmatprep.subr.mxu0 0.0
  %v6610 = vand.u32 %v6017, 4294901760
  %v6611 = vsub.f32 %v6017, %v6610
  %v6612 = vand.u32 %v6611, 4294901760
  %6613 = vmatpush1.msra.mxu0 %v6612
  %6614 = vmatprep.subr.mxu0 0.0
  %v6615 = vand.u32 %v6018, 4294901760
  %v6616 = vsub.f32 %v6018, %v6615
  %v6617 = vand.u32 %v6616, 4294901760
  %6618 = vmatpush1.msra.mxu0 %v6617
  %6619 = vmatprep.subr.mxu0 0.0
  %v6620 = vand.u32 %v6019, 4294901760
  %v6621 = vsub.f32 %v6019, %v6620
  %v6622 = vand.u32 %v6621, 4294901760
  %6623 = vmatpush1.msra.mxu0 %v6622
  %6624 = vmatprep.subr.mxu0 0.0
  %v6625 = vand.u32 %v6020, 4294901760
  %v6626 = vsub.f32 %v6020, %v6625
  %v6627 = vand.u32 %v6626, 4294901760
  %6628 = vmatpush1.msra.mxu0 %v6627
  %6629 = vmatprep.subr.mxu0 0.0
  %6630 = vmatpush1.msra.mxu0 0.0
  %6631 = vmatprep.subr.mxu0 0.0
  %6632 = vmatpush1.msra.mxu0 0.0
  %6633 = vmatprep.subr.mxu0 0.0
  %6634 = vmatpush1.msra.mxu0 0.0
  %6635 = vmatprep.subr.mxu0 0.0
  %6636 = vmatpush1.msra.mxu0 0.0
  %6637 = vmatprep.subr.mxu0 0.0
  %6638 = vmatpush1.msra.mxu0 0.0
  %6639 = vmatprep.subr.mxu0 0.0
  %6640 = vmatpush1.msra.mxu0 0.0
  %6641 = vmatprep.subr.mxu0 0.0
  %6642 = vmatpush1.msra.mxu0 0.0
  %6643 = vmatprep.subr.mxu0 0.0
  %6644 = vmatpush1.msra.mxu0 0.0
  %6645 = vmatprep.subr.mxu0 0.0
  %6646 = vmatpush1.msra.mxu0 0.0
  %6647 = vmatprep.subr.mxu0 0.0
  %6648 = vmatpush1.msra.mxu0 0.0
  %6649 = vmatprep.subr.mxu0 0.0
  %6650 = vmatpush1.msra.mxu0 0.0
  %6651 = vmatprep.subr.mxu0 0.0
  %6652 = vmatpush1.msra.mxu0 0.0
  %6653 = vmatprep.subr.mxu0 0.0
  %6654 = vmatpush1.msra.mxu0 0.0
  %6655 = vmatprep.subr.mxu0 0.0
  %6656 = vmatpush1.msra.mxu0 0.0
  %6657 = vmatprep.subr.mxu0 0.0
  %6658 = vmatpush1.msra.mxu0 0.0
  %6659 = vmatprep.subr.mxu0 0.0
  %6660 = vmatpush1.msra.mxu0 0.0
  %6661 = vmatprep.mubr.f32.mxu0 0.0
  %v6662 = vand.u32 %v4573, 4294901760
  %6663 = vmatmul.mubr.f32.gmra.mrb[0].mxu0 %v6662
  %v6664 = vpop.f32.mrb[0].mxu0
  %v6665 = vadd.f32 %v6522, %v6664
  %v6666 = vpop.f32.mrb[0].mxu0
  %6667 = vmatprep.mubr.f32.mxu0 0.0
  %v6668 = vand.u32 %v4574, 4294901760
  %6669 = vmatmul.mubr.f32.gmra.mrb[0].mxu0 %v6668
  %v6670 = vpop.f32.mrb[0].mxu0
  %v6671 = vadd.f32 %v6530, %v6670
  %v6672 = vpop.f32.mrb[0].mxu0
  %6673 = vmatprep.mubr.f32.mxu0 0.0
  %v6674 = vand.u32 %v4575, 4294901760
  %6675 = vmatmul.mubr.f32.gmra.mrb[0].mxu0 %v6674
  %v6676 = vpop.f32.mrb[0].mxu0
  %v6677 = vadd.f32 %v6538, %v6676
  %v6678 = vpop.f32.mrb[0].mxu0
  %6679 = vmatprep.mubr.f32.mxu0 0.0
  %v6680 = vand.u32 %v4576, 4294901760
  %6681 = vmatmul.mubr.f32.gmra.mrb[0].mxu0 %v6680
  %v6682 = vpop.f32.mrb[0].mxu0
  %v6683 = vadd.f32 %v6546, %v6682
  %v6684 = vpop.f32.mrb[0].mxu0
  %6685 = vdwg.mxu0
  %6686 = vmatprep.subr.mxu0 0.0
  %v6687 = vand.u32 %v6005, 4294901760
  %6688 = vmatpush1.msra.mxu0 %v6687
  %6689 = vmatprep.subr.mxu0 0.0
  %v6690 = vand.u32 %v6006, 4294901760
  %6691 = vmatpush1.msra.mxu0 %v6690
  %6692 = vmatprep.subr.mxu0 0.0
  %v6693 = vand.u32 %v6007, 4294901760
  %6694 = vmatpush1.msra.mxu0 %v6693
  %6695 = vmatprep.subr.mxu0 0.0
  %v6696 = vand.u32 %v6008, 4294901760
  %6697 = vmatpush1.msra.mxu0 %v6696
  %6698 = vmatprep.subr.mxu0 0.0
  %v6699 = vand.u32 %v6009, 4294901760
  %6700 = vmatpush1.msra.mxu0 %v6699
  %6701 = vmatprep.subr.mxu0 0.0
  %v6702 = vand.u32 %v6010, 4294901760
  %6703 = vmatpush1.msra.mxu0 %v6702
  %6704 = vmatprep.subr.mxu0 0.0
  %v6705 = vand.u32 %v6011, 4294901760
  %6706 = vmatpush1.msra.mxu0 %v6705
  %6707 = vmatprep.subr.mxu0 0.0
  %v6708 = vand.u32 %v6012, 4294901760
  %6709 = vmatpush1.msra.mxu0 %v6708
  %6710 = vmatprep.subr.mxu0 0.0
  %v6711 = vand.u32 %v6013, 4294901760
  %6712 = vmatpush1.msra.mxu0 %v6711
  %6713 = vmatprep.subr.mxu0 0.0
  %v6714 = vand.u32 %v6014, 4294901760
  %6715 = vmatpush1.msra.mxu0 %v6714
  %6716 = vmatprep.subr.mxu0 0.0
  %v6717 = vand.u32 %v6015, 4294901760
  %6718 = vmatpush1.msra.mxu0 %v6717
  %6719 = vmatprep.subr.mxu0 0.0
  %v6720 = vand.u32 %v6016, 4294901760
  %6721 = vmatpush1.msra.mxu0 %v6720
  %6722 = vmatprep.subr.mxu0 0.0
  %v6723 = vand.u32 %v6017, 4294901760
  %6724 = vmatpush1.msra.mxu0 %v6723
  %6725 = vmatprep.subr.mxu0 0.0
  %v6726 = vand.u32 %v6018, 4294901760
  %6727 = vmatpush1.msra.mxu0 %v6726
  %6728 = vmatprep.subr.mxu0 0.0
  %v6729 = vand.u32 %v6019, 4294901760
  %6730 = vmatpush1.msra.mxu0 %v6729
  %6731 = vmatprep.subr.mxu0 0.0
  %v6732 = vand.u32 %v6020, 4294901760
  %6733 = vmatpush1.msra.mxu0 %v6732
  %6734 = vmatprep.subr.mxu0 0.0
  %6735 = vmatpush1.msra.mxu0 0.0
  %6736 = vmatprep.subr.mxu0 0.0
  %6737 = vmatpush1.msra.mxu0 0.0
  %6738 = vmatprep.subr.mxu0 0.0
  %6739 = vmatpush1.msra.mxu0 0.0
  %6740 = vmatprep.subr.mxu0 0.0
  %6741 = vmatpush1.msra.mxu0 0.0
  %6742 = vmatprep.subr.mxu0 0.0
  %6743 = vmatpush1.msra.mxu0 0.0
  %6744 = vmatprep.subr.mxu0 0.0
  %6745 = vmatpush1.msra.mxu0 0.0
  %6746 = vmatprep.subr.mxu0 0.0
  %6747 = vmatpush1.msra.mxu0 0.0
  %6748 = vmatprep.subr.mxu0 0.0
  %6749 = vmatpush1.msra.mxu0 0.0
  %6750 = vmatprep.subr.mxu0 0.0
  %6751 = vmatpush1.msra.mxu0 0.0
  %6752 = vmatprep.subr.mxu0 0.0
  %6753 = vmatpush1.msra.mxu0 0.0
  %6754 = vmatprep.subr.mxu0 0.0
  %6755 = vmatpush1.msra.mxu0 0.0
  %6756 = vmatprep.subr.mxu0 0.0
  %6757 = vmatpush1.msra.mxu0 0.0
  %6758 = vmatprep.subr.mxu0 0.0
  %6759 = vmatpush1.msra.mxu0 0.0
  %6760 = vmatprep.subr.mxu0 0.0
  %6761 = vmatpush1.msra.mxu0 0.0
  %6762 = vmatprep.subr.mxu0 0.0
  %6763 = vmatpush1.msra.mxu0 0.0
  %6764 = vmatprep.subr.mxu0 0.0
  %6765 = vmatpush1.msra.mxu0 0.0
  %6766 = vmatprep.mubr.f32.mxu0 0.0
  %v6767 = vand.u32 %v4573, 4294901760
  %6768 = vmatmul.mubr.f32.gmra.mrb[0].mxu0 %v6767
  %v6769 = vpop.f32.mrb[0].mxu0
  %v6770 = vadd.f32 %v6665, %v6769
  %v6771 = vpop.f32.mrb[0].mxu0
  %6772 = vmatprep.mubr.f32.mxu0 0.0
  %v6773 = vand.u32 %v4574, 4294901760
  %6774 = vmatmul.mubr.f32.gmra.mrb[0].mxu0 %v6773
  %v6775 = vpop.f32.mrb[0].mxu0
  %v6776 = vadd.f32 %v6671, %v6775
  %v6777 = vpop.f32.mrb[0].mxu0
  %6778 = vmatprep.mubr.f32.mxu0 0.0
  %v6779 = vand.u32 %v4575, 4294901760
  %6780 = vmatmul.mubr.f32.gmra.mrb[0].mxu0 %v6779
  %v6781 = vpop.f32.mrb[0].mxu0
  %v6782 = vadd.f32 %v6677, %v6781
  %v6783 = vpop.f32.mrb[0].mxu0
  %6784 = vmatprep.mubr.f32.mxu0 0.0
  %v6785 = vand.u32 %v4576, 4294901760
  %6786 = vmatmul.mubr.f32.gmra.mrb[0].mxu0 %v6785
  %v6787 = vpop.f32.mrb[0].mxu0
  %v6788 = vadd.f32 %v6683, %v6787
  %v6789 = vpop.f32.mrb[0].mxu0
  %6790 = vdwg.mxu0
  %v6791 = vsub.f32 %v3783, %v6770
  %v6792 = vsub.f32 %v3784, %v6776
  %v6793 = vsub.f32 %v3785, %v6782
  %v6794 = vsub.f32 %v3786, %v6788
  %6795 = vmatprep.subr.mxu0 0.0
  %v6796 = vand.u32 %v6791, 4294901760
  %6797 = vmatpush1.msra.mxu0 %v6796
  %6798 = vmatprep.subr.mxu0 0.0
  %v6799 = vand.u32 %v6792, 4294901760
  %6800 = vmatpush1.msra.mxu0 %v6799
  %6801 = vmatprep.subr.mxu0 0.0
  %v6802 = vand.u32 %v6793, 4294901760
  %6803 = vmatpush1.msra.mxu0 %v6802
  %6804 = vmatprep.subr.mxu0 0.0
  %v6805 = vand.u32 %v6794, 4294901760
  %6806 = vmatpush1.msra.mxu0 %v6805
  %6807 = vmatprep.subr.mxu0 0.0
  %6808 = vmatpush1.msra.mxu0 0.0
  %6809 = vmatprep.subr.mxu0 0.0
  %6810 = vmatpush1.msra.mxu0 0.0
  %6811 = vmatprep.subr.mxu0 0.0
  %6812 = vmatpush1.msra.mxu0 0.0
  %6813 = vmatprep.subr.mxu0 0.0
  %6814 = vmatpush1.msra.mxu0 0.0
  %6815 = vmatprep.subr.mxu0 0.0
  %6816 = vmatpush1.msra.mxu0 0.0
  %6817 = vmatprep.subr.mxu0 0.0
  %6818 = vmatpush1.msra.mxu0 0.0
  %6819 = vmatprep.subr.mxu0 0.0
  %6820 = vmatpush1.msra.mxu0 0.0
  %6821 = vmatprep.subr.mxu0 0.0
  %6822 = vmatpush1.msra.mxu0 0.0
  %6823 = vmatprep.subr.mxu0 0.0
  %6824 = vmatpush1.msra.mxu0 0.0
  %6825 = vmatprep.subr.mxu0 0.0
  %6826 = vmatpush1.msra.mxu0 0.0
  %6827 = vmatprep.subr.mxu0 0.0
  %6828 = vmatpush1.msra.mxu0 0.0
  %6829 = vmatprep.subr.mxu0 0.0
  %6830 = vmatpush1.msra.mxu0 0.0
  %6831 = vmatprep.subr.mxu0 0.0
  %6832 = vmatpush1.msra.mxu0 0.0
  %6833 = vmatprep.subr.mxu0 0.0
  %6834 = vmatpush1.msra.mxu0 0.0
  %6835 = vmatprep.subr.mxu0 0.0
  %6836 = vmatpush1.msra.mxu0 0.0
  %6837 = vmatprep.subr.mxu0 0.0
  %6838 = vmatpush1.msra.mxu0 0.0
  %6839 = vmatprep.subr.mxu0 0.0
  %6840 = vmatpush1.msra.mxu0 0.0
  %6841 = vmatprep.subr.mxu0 0.0
  %6842 = vmatpush1.msra.mxu0 0.0
  %6843 = vmatprep.subr.mxu0 0.0
  %6844 = vmatpush1.msra.mxu0 0.0
  %6845 = vmatprep.subr.mxu0 0.0
  %6846 = vmatpush1.msra.mxu0 0.0
  %6847 = vmatprep.subr.mxu0 0.0
  %6848 = vmatpush1.msra.mxu0 0.0
  %6849 = vmatprep.subr.mxu0 0.0
  %6850 = vmatpush1.msra.mxu0 0.0
  %6851 = vmatprep.subr.mxu0 0.0
  %6852 = vmatpush1.msra.mxu0 0.0
  %6853 = vmatprep.subr.mxu0 0.0
  %6854 = vmatpush1.msra.mxu0 0.0
  %6855 = vmatprep.subr.mxu0 0.0
  %6856 = vmatpush1.msra.mxu0 0.0
  %6857 = vmatprep.subr.mxu0 0.0
  %6858 = vmatpush1.msra.mxu0 0.0
  %6859 = vmatprep.subr.mxu0 0.0
  %6860 = vmatpush1.msra.mxu0 0.0
  %6861 = vmatprep.subr.mxu0 0.0
  %6862 = vmatpush1.msra.mxu0 0.0
  %6863 = vmatprep.mubr.f32.mxu0 0.0
  %v6864 = vand.u32 %v3115, 4294901760
  %v6865 = vsub.f32 %v3115, %v6864
  %v6866 = vand.u32 %v6865, 4294901760
  %v6867 = vsub.f32 %v6865, %v6866
  %v6868 = vand.u32 %v6867, 4294901760
  %6869 = vmatmul.mubr.f32.gmra.mrb[0].mxu0 %v6868
  %v6870 = vpop.f32.mrb[0].mxu0
  %v6871 = vadd.f32 %v3097, %v6870
  %v6872 = vpop.f32.mrb[0].mxu0
  %6873 = vmatprep.mubr.f32.mxu0 0.0
  %v6874 = vand.u32 %v3118, 4294901760
  %v6875 = vsub.f32 %v3118, %v6874
  %v6876 = vand.u32 %v6875, 4294901760
  %v6877 = vsub.f32 %v6875, %v6876
  %v6878 = vand.u32 %v6877, 4294901760
  %6879 = vmatmul.mubr.f32.gmra.mrb[0].mxu0 %v6878
  %v6880 = vpop.f32.mrb[0].mxu0
  %v6881 = vadd.f32 %v3102, %v6880
  %v6882 = vpop.f32.mrb[0].mxu0
  %6883 = vmatprep.mubr.f32.mxu0 0.0
  %v6884 = vand.u32 %v3121, 4294901760
  %v6885 = vsub.f32 %v3121, %v6884
  %v6886 = vand.u32 %v6885, 4294901760
  %v6887 = vsub.f32 %v6885, %v6886
  %v6888 = vand.u32 %v6887, 4294901760
  %6889 = vmatmul.mubr.f32.gmra.mrb[0].mxu0 %v6888
  %v6890 = vpop.f32.mrb[0].mxu0
  %v6891 = vadd.f32 %v3107, %v6890
  %v6892 = vpop.f32.mrb[0].mxu0
  %6893 = vmatprep.mubr.f32.mxu0 0.0
  %v6894 = vand.u32 %v3124, 4294901760
  %v6895 = vsub.f32 %v3124, %v6894
  %v6896 = vand.u32 %v6895, 4294901760
  %v6897 = vsub.f32 %v6895, %v6896
  %v6898 = vand.u32 %v6897, 4294901760
  %6899 = vmatmul.mubr.f32.gmra.mrb[0].mxu0 %v6898
  %v6900 = vpop.f32.mrb[0].mxu0
  %v6901 = vadd.f32 %v3112, %v6900
  %v6902 = vpop.f32.mrb[0].mxu0
  %6903 = vdwg.mxu0
  %6904 = vmatprep.subr.mxu0 0.0
  %v6905 = vand.u32 %v6791, 4294901760
  %v6906 = vsub.f32 %v6791, %v6905
  %v6907 = vand.u32 %v6906, 4294901760
  %v6908 = vsub.f32 %v6906, %v6907
  %v6909 = vand.u32 %v6908, 4294901760
  %6910 = vmatpush1.msra.mxu0 %v6909
  %6911 = vmatprep.subr.mxu0 0.0
  %v6912 = vand.u32 %v6792, 4294901760
  %v6913 = vsub.f32 %v6792, %v6912
  %v6914 = vand.u32 %v6913, 4294901760
  %v6915 = vsub.f32 %v6913, %v6914
  %v6916 = vand.u32 %v6915, 4294901760
  %6917 = vmatpush1.msra.mxu0 %v6916
  %6918 = vmatprep.subr.mxu0 0.0
  %v6919 = vand.u32 %v6793, 4294901760
  %v6920 = vsub.f32 %v6793, %v6919
  %v6921 = vand.u32 %v6920, 4294901760
  %v6922 = vsub.f32 %v6920, %v6921
  %v6923 = vand.u32 %v6922, 4294901760
  %6924 = vmatpush1.msra.mxu0 %v6923
  %6925 = vmatprep.subr.mxu0 0.0
  %v6926 = vand.u32 %v6794, 4294901760
  %v6927 = vsub.f32 %v6794, %v6926
  %v6928 = vand.u32 %v6927, 4294901760
  %v6929 = vsub.f32 %v6927, %v6928
  %v6930 = vand.u32 %v6929, 4294901760
  %6931 = vmatpush1.msra.mxu0 %v6930
  %6932 = vmatprep.subr.mxu0 0.0
  %6933 = vmatpush1.msra.mxu0 0.0
  %6934 = vmatprep.subr.mxu0 0.0
  %6935 = vmatpush1.msra.mxu0 0.0
  %6936 = vmatprep.subr.mxu0 0.0
  %6937 = vmatpush1.msra.mxu0 0.0
  %6938 = vmatprep.subr.mxu0 0.0
  %6939 = vmatpush1.msra.mxu0 0.0
  %6940 = vmatprep.subr.mxu0 0.0
  %6941 = vmatpush1.msra.mxu0 0.0
  %6942 = vmatprep.subr.mxu0 0.0
  %6943 = vmatpush1.msra.mxu0 0.0
  %6944 = vmatprep.subr.mxu0 0.0
  %6945 = vmatpush1.msra.mxu0 0.0
  %6946 = vmatprep.subr.mxu0 0.0
  %6947 = vmatpush1.msra.mxu0 0.0
  %6948 = vmatprep.subr.mxu0 0.0
  %6949 = vmatpush1.msra.mxu0 0.0
  %6950 = vmatprep.subr.mxu0 0.0
  %6951 = vmatpush1.msra.mxu0 0.0
  %6952 = vmatprep.subr.mxu0 0.0
  %6953 = vmatpush1.msra.mxu0 0.0
  %6954 = vmatprep.subr.mxu0 0.0
  %6955 = vmatpush1.msra.mxu0 0.0
  %6956 = vmatprep.subr.mxu0 0.0
  %6957 = vmatpush1.msra.mxu0 0.0
  %6958 = vmatprep.subr.mxu0 0.0
  %6959 = vmatpush1.msra.mxu0 0.0
  %6960 = vmatprep.subr.mxu0 0.0
  %6961 = vmatpush1.msra.mxu0 0.0
  %6962 = vmatprep.subr.mxu0 0.0
  %6963 = vmatpush1.msra.mxu0 0.0
  %6964 = vmatprep.subr.mxu0 0.0
  %6965 = vmatpush1.msra.mxu0 0.0
  %6966 = vmatprep.subr.mxu0 0.0
  %6967 = vmatpush1.msra.mxu0 0.0
  %6968 = vmatprep.subr.mxu0 0.0
  %6969 = vmatpush1.msra.mxu0 0.0
  %6970 = vmatprep.subr.mxu0 0.0
  %6971 = vmatpush1.msra.mxu0 0.0
  %6972 = vmatprep.subr.mxu0 0.0
  %6973 = vmatpush1.msra.mxu0 0.0
  %6974 = vmatprep.subr.mxu0 0.0
  %6975 = vmatpush1.msra.mxu0 0.0
  %6976 = vmatprep.subr.mxu0 0.0
  %6977 = vmatpush1.msra.mxu0 0.0
  %6978 = vmatprep.subr.mxu0 0.0
  %6979 = vmatpush1.msra.mxu0 0.0
  %6980 = vmatprep.subr.mxu0 0.0
  %6981 = vmatpush1.msra.mxu0 0.0
  %6982 = vmatprep.subr.mxu0 0.0
  %6983 = vmatpush1.msra.mxu0 0.0
  %6984 = vmatprep.subr.mxu0 0.0
  %6985 = vmatpush1.msra.mxu0 0.0
  %6986 = vmatprep.subr.mxu0 0.0
  %6987 = vmatpush1.msra.mxu0 0.0
  %6988 = vmatprep.mubr.f32.mxu0 0.0
  %v6989 = vand.u32 %v3115, 4294901760
  %6990 = vmatmul.mubr.f32.gmra.mrb[0].mxu0 %v6989
  %v6991 = vpop.f32.mrb[0].mxu0
  %v6992 = vadd.f32 %v6871, %v6991
  %v6993 = vpop.f32.mrb[0].mxu0
  %6994 = vmatprep.mubr.f32.mxu0 0.0
  %v6995 = vand.u32 %v3118, 4294901760
  %6996 = vmatmul.mubr.f32.gmra.mrb[0].mxu0 %v6995
  %v6997 = vpop.f32.mrb[0].mxu0
  %v6998 = vadd.f32 %v6881, %v6997
  %v6999 = vpop.f32.mrb[0].mxu0
  %7000 = vmatprep.mubr.f32.mxu0 0.0
  %v7001 = vand.u32 %v3121, 4294901760
  %7002 = vmatmul.mubr.f32.gmra.mrb[0].mxu0 %v7001
  %v7003 = vpop.f32.mrb[0].mxu0
  %v7004 = vadd.f32 %v6891, %v7003
  %v7005 = vpop.f32.mrb[0].mxu0
  %7006 = vmatprep.mubr.f32.mxu0 0.0
  %v7007 = vand.u32 %v3124, 4294901760
  %7008 = vmatmul.mubr.f32.gmra.mrb[0].mxu0 %v7007
  %v7009 = vpop.f32.mrb[0].mxu0
  %v7010 = vadd.f32 %v6901, %v7009
  %v7011 = vpop.f32.mrb[0].mxu0
  %7012 = vdwg.mxu0
  %7013 = vmatprep.subr.mxu0 0.0
  %v7014 = vand.u32 %v6791, 4294901760
  %v7015 = vsub.f32 %v6791, %v7014
  %7016 = vmatpush1.msra.mxu0 %v7015
  %7017 = vmatprep.subr.mxu0 0.0
  %v7018 = vand.u32 %v6792, 4294901760
  %v7019 = vsub.f32 %v6792, %v7018
  %7020 = vmatpush1.msra.mxu0 %v7019
  %7021 = vmatprep.subr.mxu0 0.0
  %v7022 = vand.u32 %v6793, 4294901760
  %v7023 = vsub.f32 %v6793, %v7022
  %7024 = vmatpush1.msra.mxu0 %v7023
  %7025 = vmatprep.subr.mxu0 0.0
  %v7026 = vand.u32 %v6794, 4294901760
  %v7027 = vsub.f32 %v6794, %v7026
  %7028 = vmatpush1.msra.mxu0 %v7027
  %7029 = vmatprep.subr.mxu0 0.0
  %7030 = vmatpush1.msra.mxu0 0.0
  %7031 = vmatprep.subr.mxu0 0.0
  %7032 = vmatpush1.msra.mxu0 0.0
  %7033 = vmatprep.subr.mxu0 0.0
  %7034 = vmatpush1.msra.mxu0 0.0
  %7035 = vmatprep.subr.mxu0 0.0
  %7036 = vmatpush1.msra.mxu0 0.0
  %7037 = vmatprep.subr.mxu0 0.0
  %7038 = vmatpush1.msra.mxu0 0.0
  %7039 = vmatprep.subr.mxu0 0.0
  %7040 = vmatpush1.msra.mxu0 0.0
  %7041 = vmatprep.subr.mxu0 0.0
  %7042 = vmatpush1.msra.mxu0 0.0
  %7043 = vmatprep.subr.mxu0 0.0
  %7044 = vmatpush1.msra.mxu0 0.0
  %7045 = vmatprep.subr.mxu0 0.0
  %7046 = vmatpush1.msra.mxu0 0.0
  %7047 = vmatprep.subr.mxu0 0.0
  %7048 = vmatpush1.msra.mxu0 0.0
  %7049 = vmatprep.subr.mxu0 0.0
  %7050 = vmatpush1.msra.mxu0 0.0
  %7051 = vmatprep.subr.mxu0 0.0
  %7052 = vmatpush1.msra.mxu0 0.0
  %7053 = vmatprep.subr.mxu0 0.0
  %7054 = vmatpush1.msra.mxu0 0.0
  %7055 = vmatprep.subr.mxu0 0.0
  %7056 = vmatpush1.msra.mxu0 0.0
  %7057 = vmatprep.subr.mxu0 0.0
  %7058 = vmatpush1.msra.mxu0 0.0
  %7059 = vmatprep.subr.mxu0 0.0
  %7060 = vmatpush1.msra.mxu0 0.0
  %7061 = vmatprep.subr.mxu0 0.0
  %7062 = vmatpush1.msra.mxu0 0.0
  %7063 = vmatprep.subr.mxu0 0.0
  %7064 = vmatpush1.msra.mxu0 0.0
  %7065 = vmatprep.subr.mxu0 0.0
  %7066 = vmatpush1.msra.mxu0 0.0
  %7067 = vmatprep.subr.mxu0 0.0
  %7068 = vmatpush1.msra.mxu0 0.0
  %7069 = vmatprep.subr.mxu0 0.0
  %7070 = vmatpush1.msra.mxu0 0.0
  %7071 = vmatprep.subr.mxu0 0.0
  %7072 = vmatpush1.msra.mxu0 0.0
  %7073 = vmatprep.subr.mxu0 0.0
  %7074 = vmatpush1.msra.mxu0 0.0
  %7075 = vmatprep.subr.mxu0 0.0
  %7076 = vmatpush1.msra.mxu0 0.0
  %7077 = vmatprep.subr.mxu0 0.0
  %7078 = vmatpush1.msra.mxu0 0.0
  %7079 = vmatprep.subr.mxu0 0.0
  %7080 = vmatpush1.msra.mxu0 0.0
  %7081 = vmatprep.subr.mxu0 0.0
  %7082 = vmatpush1.msra.mxu0 0.0
  %7083 = vmatprep.subr.mxu0 0.0
  %7084 = vmatpush1.msra.mxu0 0.0
  %7085 = vmatprep.mubr.f32.mxu0 0.0
  %v7086 = vand.u32 %v3115, 4294901760
  %v7087 = vsub.f32 %v3115, %v7086
  %7088 = vmatmul.mubr.f32.gmra.mrb[0].mxu0 %v7087
  %v7089 = vpop.f32.mrb[0].mxu0
  %v7090 = vadd.f32 %v6992, %v7089
  %v7091 = vpop.f32.mrb[0].mxu0
  %7092 = vmatprep.mubr.f32.mxu0 0.0
  %v7093 = vand.u32 %v3118, 4294901760
  %v7094 = vsub.f32 %v3118, %v7093
  %7095 = vmatmul.mubr.f32.gmra.mrb[0].mxu0 %v7094
  %v7096 = vpop.f32.mrb[0].mxu0
  %v7097 = vadd.f32 %v6998, %v7096
  %v7098 = vpop.f32.mrb[0].mxu0
  %7099 = vmatprep.mubr.f32.mxu0 0.0
  %v7100 = vand.u32 %v3121, 4294901760
  %v7101 = vsub.f32 %v3121, %v7100
  %7102 = vmatmul.mubr.f32.gmra.mrb[0].mxu0 %v7101
  %v7103 = vpop.f32.mrb[0].mxu0
  %v7104 = vadd.f32 %v7004, %v7103
  %v7105 = vpop.f32.mrb[0].mxu0
  %7106 = vmatprep.mubr.f32.mxu0 0.0
  %v7107 = vand.u32 %v3124, 4294901760
  %v7108 = vsub.f32 %v3124, %v7107
  %7109 = vmatmul.mubr.f32.gmra.mrb[0].mxu0 %v7108
  %v7110 = vpop.f32.mrb[0].mxu0
  %v7111 = vadd.f32 %v7010, %v7110
  %v7112 = vpop.f32.mrb[0].mxu0
  %7113 = vdwg.mxu0
  %7114 = vmatprep.subr.mxu0 0.0
  %v7115 = vand.u32 %v6791, 4294901760
  %7116 = vmatpush1.msra.mxu0 %v7115
  %7117 = vmatprep.subr.mxu0 0.0
  %v7118 = vand.u32 %v6792, 4294901760
  %7119 = vmatpush1.msra.mxu0 %v7118
  %7120 = vmatprep.subr.mxu0 0.0
  %v7121 = vand.u32 %v6793, 4294901760
  %7122 = vmatpush1.msra.mxu0 %v7121
  %7123 = vmatprep.subr.mxu0 0.0
  %v7124 = vand.u32 %v6794, 4294901760
  %7125 = vmatpush1.msra.mxu0 %v7124
  %7126 = vmatprep.subr.mxu0 0.0
  %7127 = vmatpush1.msra.mxu0 0.0
  %7128 = vmatprep.subr.mxu0 0.0
  %7129 = vmatpush1.msra.mxu0 0.0
  %7130 = vmatprep.subr.mxu0 0.0
  %7131 = vmatpush1.msra.mxu0 0.0
  %7132 = vmatprep.subr.mxu0 0.0
  %7133 = vmatpush1.msra.mxu0 0.0
  %7134 = vmatprep.subr.mxu0 0.0
  %7135 = vmatpush1.msra.mxu0 0.0
  %7136 = vmatprep.subr.mxu0 0.0
  %7137 = vmatpush1.msra.mxu0 0.0
  %7138 = vmatprep.subr.mxu0 0.0
  %7139 = vmatpush1.msra.mxu0 0.0
  %7140 = vmatprep.subr.mxu0 0.0
  %7141 = vmatpush1.msra.mxu0 0.0
  %7142 = vmatprep.subr.mxu0 0.0
  %7143 = vmatpush1.msra.mxu0 0.0
  %7144 = vmatprep.subr.mxu0 0.0
  %7145 = vmatpush1.msra.mxu0 0.0
  %7146 = vmatprep.subr.mxu0 0.0
  %7147 = vmatpush1.msra.mxu0 0.0
  %7148 = vmatprep.subr.mxu0 0.0
  %7149 = vmatpush1.msra.mxu0 0.0
  %7150 = vmatprep.subr.mxu0 0.0
  %7151 = vmatpush1.msra.mxu0 0.0
  %7152 = vmatprep.subr.mxu0 0.0
  %7153 = vmatpush1.msra.mxu0 0.0
  %7154 = vmatprep.subr.mxu0 0.0
  %7155 = vmatpush1.msra.mxu0 0.0
  %7156 = vmatprep.subr.mxu0 0.0
  %7157 = vmatpush1.msra.mxu0 0.0
  %7158 = vmatprep.subr.mxu0 0.0
  %7159 = vmatpush1.msra.mxu0 0.0
  %7160 = vmatprep.subr.mxu0 0.0
  %7161 = vmatpush1.msra.mxu0 0.0
  %7162 = vmatprep.subr.mxu0 0.0
  %7163 = vmatpush1.msra.mxu0 0.0
  %7164 = vmatprep.subr.mxu0 0.0
  %7165 = vmatpush1.msra.mxu0 0.0
  %7166 = vmatprep.subr.mxu0 0.0
  %7167 = vmatpush1.msra.mxu0 0.0
  %7168 = vmatprep.subr.mxu0 0.0
  %7169 = vmatpush1.msra.mxu0 0.0
  %7170 = vmatprep.subr.mxu0 0.0
  %7171 = vmatpush1.msra.mxu0 0.0
  %7172 = vmatprep.subr.mxu0 0.0
  %7173 = vmatpush1.msra.mxu0 0.0
  %7174 = vmatprep.subr.mxu0 0.0
  %7175 = vmatpush1.msra.mxu0 0.0
  %7176 = vmatprep.subr.mxu0 0.0
  %7177 = vmatpush1.msra.mxu0 0.0
  %7178 = vmatprep.subr.mxu0 0.0
  %7179 = vmatpush1.msra.mxu0 0.0
  %7180 = vmatprep.subr.mxu0 0.0
  %7181 = vmatpush1.msra.mxu0 0.0
  %7182 = vmatprep.mubr.f32.mxu0 0.0
  %v7183 = vand.u32 %v3115, 4294901760
  %v7184 = vsub.f32 %v3115, %v7183
  %v7185 = vand.u32 %v7184, 4294901760
  %7186 = vmatmul.mubr.f32.gmra.mrb[0].mxu0 %v7185
  %v7187 = vpop.f32.mrb[0].mxu0
  %v7188 = vadd.f32 %v7090, %v7187
  %v7189 = vpop.f32.mrb[0].mxu0
  %7190 = vmatprep.mubr.f32.mxu0 0.0
  %v7191 = vand.u32 %v3118, 4294901760
  %v7192 = vsub.f32 %v3118, %v7191
  %v7193 = vand.u32 %v7192, 4294901760
  %7194 = vmatmul.mubr.f32.gmra.mrb[0].mxu0 %v7193
  %v7195 = vpop.f32.mrb[0].mxu0
  %v7196 = vadd.f32 %v7097, %v7195
  %v7197 = vpop.f32.mrb[0].mxu0
  %7198 = vmatprep.mubr.f32.mxu0 0.0
  %v7199 = vand.u32 %v3121, 4294901760
  %v7200 = vsub.f32 %v3121, %v7199
  %v7201 = vand.u32 %v7200, 4294901760
  %7202 = vmatmul.mubr.f32.gmra.mrb[0].mxu0 %v7201
  %v7203 = vpop.f32.mrb[0].mxu0
  %v7204 = vadd.f32 %v7104, %v7203
  %v7205 = vpop.f32.mrb[0].mxu0
  %7206 = vmatprep.mubr.f32.mxu0 0.0
  %v7207 = vand.u32 %v3124, 4294901760
  %v7208 = vsub.f32 %v3124, %v7207
  %v7209 = vand.u32 %v7208, 4294901760
  %7210 = vmatmul.mubr.f32.gmra.mrb[0].mxu0 %v7209
  %v7211 = vpop.f32.mrb[0].mxu0
  %v7212 = vadd.f32 %v7111, %v7211
  %v7213 = vpop.f32.mrb[0].mxu0
  %7214 = vdwg.mxu0
  %7215 = vmatprep.subr.mxu0 0.0
  %v7216 = vand.u32 %v6791, 4294901760
  %v7217 = vsub.f32 %v6791, %v7216
  %v7218 = vand.u32 %v7217, 4294901760
  %7219 = vmatpush1.msra.mxu0 %v7218
  %7220 = vmatprep.subr.mxu0 0.0
  %v7221 = vand.u32 %v6792, 4294901760
  %v7222 = vsub.f32 %v6792, %v7221
  %v7223 = vand.u32 %v7222, 4294901760
  %7224 = vmatpush1.msra.mxu0 %v7223
  %7225 = vmatprep.subr.mxu0 0.0
  %v7226 = vand.u32 %v6793, 4294901760
  %v7227 = vsub.f32 %v6793, %v7226
  %v7228 = vand.u32 %v7227, 4294901760
  %7229 = vmatpush1.msra.mxu0 %v7228
  %7230 = vmatprep.subr.mxu0 0.0
  %v7231 = vand.u32 %v6794, 4294901760
  %v7232 = vsub.f32 %v6794, %v7231
  %v7233 = vand.u32 %v7232, 4294901760
  %7234 = vmatpush1.msra.mxu0 %v7233
  %7235 = vmatprep.subr.mxu0 0.0
  %7236 = vmatpush1.msra.mxu0 0.0
  %7237 = vmatprep.subr.mxu0 0.0
  %7238 = vmatpush1.msra.mxu0 0.0
  %7239 = vmatprep.subr.mxu0 0.0
  %7240 = vmatpush1.msra.mxu0 0.0
  %7241 = vmatprep.subr.mxu0 0.0
  %7242 = vmatpush1.msra.mxu0 0.0
  %7243 = vmatprep.subr.mxu0 0.0
  %7244 = vmatpush1.msra.mxu0 0.0
  %7245 = vmatprep.subr.mxu0 0.0
  %7246 = vmatpush1.msra.mxu0 0.0
  %7247 = vmatprep.subr.mxu0 0.0
  %7248 = vmatpush1.msra.mxu0 0.0
  %7249 = vmatprep.subr.mxu0 0.0
  %7250 = vmatpush1.msra.mxu0 0.0
  %7251 = vmatprep.subr.mxu0 0.0
  %7252 = vmatpush1.msra.mxu0 0.0
  %7253 = vmatprep.subr.mxu0 0.0
  %7254 = vmatpush1.msra.mxu0 0.0
  %7255 = vmatprep.subr.mxu0 0.0
  %7256 = vmatpush1.msra.mxu0 0.0
  %7257 = vmatprep.subr.mxu0 0.0
  %7258 = vmatpush1.msra.mxu0 0.0
  %7259 = vmatprep.subr.mxu0 0.0
  %7260 = vmatpush1.msra.mxu0 0.0
  %7261 = vmatprep.subr.mxu0 0.0
  %7262 = vmatpush1.msra.mxu0 0.0
  %7263 = vmatprep.subr.mxu0 0.0
  %7264 = vmatpush1.msra.mxu0 0.0
  %7265 = vmatprep.subr.mxu0 0.0
  %7266 = vmatpush1.msra.mxu0 0.0
  %7267 = vmatprep.subr.mxu0 0.0
  %7268 = vmatpush1.msra.mxu0 0.0
  %7269 = vmatprep.subr.mxu0 0.0
  %7270 = vmatpush1.msra.mxu0 0.0
  %7271 = vmatprep.subr.mxu0 0.0
  %7272 = vmatpush1.msra.mxu0 0.0
  %7273 = vmatprep.subr.mxu0 0.0
  %7274 = vmatpush1.msra.mxu0 0.0
  %7275 = vmatprep.subr.mxu0 0.0
  %7276 = vmatpush1.msra.mxu0 0.0
  %7277 = vmatprep.subr.mxu0 0.0
  %7278 = vmatpush1.msra.mxu0 0.0
  %7279 = vmatprep.subr.mxu0 0.0
  %7280 = vmatpush1.msra.mxu0 0.0
  %7281 = vmatprep.subr.mxu0 0.0
  %7282 = vmatpush1.msra.mxu0 0.0
  %7283 = vmatprep.subr.mxu0 0.0
  %7284 = vmatpush1.msra.mxu0 0.0
  %7285 = vmatprep.subr.mxu0 0.0
  %7286 = vmatpush1.msra.mxu0 0.0
  %7287 = vmatprep.subr.mxu0 0.0
  %7288 = vmatpush1.msra.mxu0 0.0
  %7289 = vmatprep.subr.mxu0 0.0
  %7290 = vmatpush1.msra.mxu0 0.0
  %7291 = vmatprep.mubr.f32.mxu0 0.0
  %v7292 = vand.u32 %v3115, 4294901760
  %7293 = vmatmul.mubr.f32.gmra.mrb[0].mxu0 %v7292
  %v7294 = vpop.f32.mrb[0].mxu0
  %v7295 = vadd.f32 %v7188, %v7294
  %v7296 = vpop.f32.mrb[0].mxu0
  %7297 = vmatprep.mubr.f32.mxu0 0.0
  %v7298 = vand.u32 %v3118, 4294901760
  %7299 = vmatmul.mubr.f32.gmra.mrb[0].mxu0 %v7298
  %v7300 = vpop.f32.mrb[0].mxu0
  %v7301 = vadd.f32 %v7196, %v7300
  %v7302 = vpop.f32.mrb[0].mxu0
  %7303 = vmatprep.mubr.f32.mxu0 0.0
  %v7304 = vand.u32 %v3121, 4294901760
  %7305 = vmatmul.mubr.f32.gmra.mrb[0].mxu0 %v7304
  %v7306 = vpop.f32.mrb[0].mxu0
  %v7307 = vadd.f32 %v7204, %v7306
  %v7308 = vpop.f32.mrb[0].mxu0
  %7309 = vmatprep.mubr.f32.mxu0 0.0
  %v7310 = vand.u32 %v3124, 4294901760
  %7311 = vmatmul.mubr.f32.gmra.mrb[0].mxu0 %v7310
  %v7312 = vpop.f32.mrb[0].mxu0
  %v7313 = vadd.f32 %v7212, %v7312
  %v7314 = vpop.f32.mrb[0].mxu0
  %7315 = vdwg.mxu0
  %7316 = vmatprep.subr.mxu0 0.0
  %v7317 = vand.u32 %v6791, 4294901760
  %7318 = vmatpush1.msra.mxu0 %v7317
  %7319 = vmatprep.subr.mxu0 0.0
  %v7320 = vand.u32 %v6792, 4294901760
  %7321 = vmatpush1.msra.mxu0 %v7320
  %7322 = vmatprep.subr.mxu0 0.0
  %v7323 = vand.u32 %v6793, 4294901760
  %7324 = vmatpush1.msra.mxu0 %v7323
  %7325 = vmatprep.subr.mxu0 0.0
  %v7326 = vand.u32 %v6794, 4294901760
  %7327 = vmatpush1.msra.mxu0 %v7326
  %7328 = vmatprep.subr.mxu0 0.0
  %7329 = vmatpush1.msra.mxu0 0.0
  %7330 = vmatprep.subr.mxu0 0.0
  %7331 = vmatpush1.msra.mxu0 0.0
  %7332 = vmatprep.subr.mxu0 0.0
  %7333 = vmatpush1.msra.mxu0 0.0
  %7334 = vmatprep.subr.mxu0 0.0
  %7335 = vmatpush1.msra.mxu0 0.0
  %7336 = vmatprep.subr.mxu0 0.0
  %7337 = vmatpush1.msra.mxu0 0.0
  %7338 = vmatprep.subr.mxu0 0.0
  %7339 = vmatpush1.msra.mxu0 0.0
  %7340 = vmatprep.subr.mxu0 0.0
  %7341 = vmatpush1.msra.mxu0 0.0
  %7342 = vmatprep.subr.mxu0 0.0
  %7343 = vmatpush1.msra.mxu0 0.0
  %7344 = vmatprep.subr.mxu0 0.0
  %7345 = vmatpush1.msra.mxu0 0.0
  %7346 = vmatprep.subr.mxu0 0.0
  %7347 = vmatpush1.msra.mxu0 0.0
  %7348 = vmatprep.subr.mxu0 0.0
  %7349 = vmatpush1.msra.mxu0 0.0
  %7350 = vmatprep.subr.mxu0 0.0
  %7351 = vmatpush1.msra.mxu0 0.0
  %7352 = vmatprep.subr.mxu0 0.0
  %7353 = vmatpush1.msra.mxu0 0.0
  %7354 = vmatprep.subr.mxu0 0.0
  %7355 = vmatpush1.msra.mxu0 0.0
  %7356 = vmatprep.subr.mxu0 0.0
  %7357 = vmatpush1.msra.mxu0 0.0
  %7358 = vmatprep.subr.mxu0 0.0
  %7359 = vmatpush1.msra.mxu0 0.0
  %7360 = vmatprep.subr.mxu0 0.0
  %7361 = vmatpush1.msra.mxu0 0.0
  %7362 = vmatprep.subr.mxu0 0.0
  %7363 = vmatpush1.msra.mxu0 0.0
  %7364 = vmatprep.subr.mxu0 0.0
  %7365 = vmatpush1.msra.mxu0 0.0
  %7366 = vmatprep.subr.mxu0 0.0
  %7367 = vmatpush1.msra.mxu0 0.0
  %7368 = vmatprep.subr.mxu0 0.0
  %7369 = vmatpush1.msra.mxu0 0.0
  %7370 = vmatprep.subr.mxu0 0.0
  %7371 = vmatpush1.msra.mxu0 0.0
  %7372 = vmatprep.subr.mxu0 0.0
  %7373 = vmatpush1.msra.mxu0 0.0
  %7374 = vmatprep.subr.mxu0 0.0
  %7375 = vmatpush1.msra.mxu0 0.0
  %7376 = vmatprep.subr.mxu0 0.0
  %7377 = vmatpush1.msra.mxu0 0.0
  %7378 = vmatprep.subr.mxu0 0.0
  %7379 = vmatpush1.msra.mxu0 0.0
  %7380 = vmatprep.subr.mxu0 0.0
  %7381 = vmatpush1.msra.mxu0 0.0
  %7382 = vmatprep.subr.mxu0 0.0
  %7383 = vmatpush1.msra.mxu0 0.0
  %7384 = vmatprep.mubr.f32.mxu0 0.0
  %v7385 = vand.u32 %v3115, 4294901760
  %7386 = vmatmul.mubr.f32.gmra.mrb[0].mxu0 %v7385
  %v7387 = vpop.f32.mrb[0].mxu0
  %v7388 = vadd.f32 %v7295, %v7387
  %v7389 = vpop.f32.mrb[0].mxu0
  %7390 = vmatprep.mubr.f32.mxu0 0.0
  %v7391 = vand.u32 %v3118, 4294901760
  %7392 = vmatmul.mubr.f32.gmra.mrb[0].mxu0 %v7391
  %v7393 = vpop.f32.mrb[0].mxu0
  %v7394 = vadd.f32 %v7301, %v7393
  %v7395 = vpop.f32.mrb[0].mxu0
  %7396 = vmatprep.mubr.f32.mxu0 0.0
  %v7397 = vand.u32 %v3121, 4294901760
  %7398 = vmatmul.mubr.f32.gmra.mrb[0].mxu0 %v7397
  %v7399 = vpop.f32.mrb[0].mxu0
  %v7400 = vadd.f32 %v7307, %v7399
  %v7401 = vpop.f32.mrb[0].mxu0
  %7402 = vmatprep.mubr.f32.mxu0 0.0
  %v7403 = vand.u32 %v3124, 4294901760
  %7404 = vmatmul.mubr.f32.gmra.mrb[0].mxu0 %v7403
  %v7405 = vpop.f32.mrb[0].mxu0
  %v7406 = vadd.f32 %v7313, %v7405
  %v7407 = vpop.f32.mrb[0].mxu0
  %7408 = vdwg.mxu0
  %s7409 = scalar_lea.vmem %s3, 32
  %7410 = vst [vmem:[%s7409] sm:$0xff] %v7388
  %7411 = vst [vmem:[%s7409 + $0x8] sm:$0xff] %v7394
  %7412 = vst [vmem:[%s7409 + $0x10] sm:$0xff] %v7400
  %7413 = vst [vmem:[%s7409 + $0x18] sm:$0xff] %v7406
  %7414 = vadd.xlane.f32.xlu0 %v7388
  %v7415 = vpop.xlane.xlu0 %7414
  %7416 = vadd.xlane.f32.xlu0 %v7394
  %v7417 = vpop.xlane.xlu0 %7416
  %7418 = vadd.xlane.f32.xlu0 %v7400
  %v7419 = vpop.xlane.xlu0 %7418
  %7420 = vadd.xlane.f32.xlu0 %v7406
  %v7421 = vpop.xlane.xlu0 %7420
  %v7422 = vmul.f32 %v7415, 0.0078125
  %v7423 = vmul.f32 %v7417, 0.0078125
  %v7424 = vmul.f32 %v7419, 0.0078125
  %v7425 = vmul.f32 %v7421, 0.0078125
  %v7426 = vsub.f32 %v7388, %v7422
  %v7427 = vsub.f32 %v7394, %v7423
  %v7428 = vsub.f32 %v7400, %v7424
  %v7429 = vsub.f32 %v7406, %v7425
  %v7430 = vmul.f32 %v7426, %v7426
  %v7431 = vmul.f32 %v7427, %v7427
  %v7432 = vmul.f32 %v7428, %v7428
  %v7433 = vmul.f32 %v7429, %v7429
  %7434 = vadd.xlane.f32.xlu0 %v7430
  %v7435 = vpop.xlane.xlu0 %7434
  %7436 = vadd.xlane.f32.xlu0 %v7431
  %v7437 = vpop.xlane.xlu0 %7436
  %7438 = vadd.xlane.f32.xlu0 %v7432
  %v7439 = vpop.xlane.xlu0 %7438
  %7440 = vadd.xlane.f32.xlu0 %v7433
  %v7441 = vpop.xlane.xlu0 %7440
  %v7442 = vsel %vm3772, %v7415, %v7435
  %v7443 = vsel %vm3772, %v7417, %v7437
  %v7444 = vsel %vm3772, %v7419, %v7439
  %v7445 = vsel %vm3772, %v7421, %v7441
  %s7446 = scalar_lea.vmem %s4, 32
  %7447 = vst.msk [vmem:[%s7446] sm:$0xff] %vm3777, %v7442
  %7448 = vst.msk [vmem:[%s7446 + $0x8] sm:$0xff] %vm3777, %v7443
  %7449 = vst.msk [vmem:[%s7446 + $0x10] sm:$0xff] %vm3777, %v7444
  %7450 = vst.msk [vmem:[%s7446 + $0x18] sm:$0xff] %vm3777, %v7445
  // Predicated region
  $region14: #{sa_layer.2} parent=0 // pred_check
    _
  $region15: #{sa_layer.2} parent=0 // pred_check_branch
    %7452 = sbr.rel (0) target = $region17
  $region16: #{sa_layer.2} parent=0 // pred_region
    _
  $region17: #{sa_layer.2} parent=0 // pred_fallthru
    _
  // Predicated region
  $region18: #{sa_layer.2} parent=0 // pred_check
    _
  $region19: #{sa_layer.2} parent=0 // pred_check_branch
    %7454 = sbr.rel (0) target = $region21
  $region20: #{sa_layer.2} parent=0 // pred_region
    _
  $region21: #{sa_layer.2} parent=0 // pred_fallthru
    _
  // Predicated region
  $region22: #{sa_layer.2} parent=0 // pred_check
    _
  $region23: #{sa_layer.2} parent=0 // pred_check_branch
    %7456 = sbr.rel (0) target = $region25
  $region24: #{sa_layer.2} parent=0 // pred_region
    _
  $region25: #{sa_layer.2} parent=0 // pred_fallthru
    _
  // Predicated region
  $region26: #{sa_layer.2} parent=0 // pred_check
    _
  $region27: #{sa_layer.2} parent=0 // pred_check_branch
    %7458 = sbr.rel (0) target = $region29
  $region28: #{sa_layer.2} parent=0 // pred_region
    _
  $region29: #{sa_layer.2} parent=0 // pred_fallthru
    _

</llo_original>
